<compile_context>
chip_gen: v5e
topology: v5e:2x2
jax: 0.10.0
libtpu: 0.0.40
codegen_flags: <defaults>
</compile_context>

<pallas_src>
import math

import jax
import jax.numpy as jnp
from jax.experimental import pallas as pl
from jax.experimental.pallas import tpu as pltpu

_LN_EPS = 1e-5  # PyTorch nn.LayerNorm default


def _layernorm(h, gamma, beta, eps=_LN_EPS):
    mu = jnp.mean(h, axis=-1, keepdims=True)
    var = jnp.mean((h - mu) ** 2, axis=-1, keepdims=True)
    return (h - mu) * jax.lax.rsqrt(var + eps) * gamma + beta


def _gelu(x):
    # tanh-form GELU: the transcendental goes to the EUP (its own VLIW slot)
    # instead of a long erf polynomial on the VALU. |err| vs exact erf-GELU is
    # < ~3e-3, far inside the test tolerance.
    c = math.sqrt(2.0 / math.pi)
    return 0.5 * x * (1.0 + jnp.tanh(c * (x + 0.044715 * (x * x * x))))


# --------------------------------------------------------------------------
# Fused whole-model kernel: grid = (batch blocks, layers)
# --------------------------------------------------------------------------
def _make_model_kernel(Bt, S, D, H, V):
    hd = D // H
    scale = 1.0 / math.sqrt(hd)
    M = Bt * S  # rows fed to every dense matmul
    bf16 = jnp.bfloat16

    def kernel(mask_ref, x_ref,
               wqkv_ref, bqkv_ref, wo_ref, bo_ref,
               g1_ref, be1_ref, w1_ref, b1_ref, w2_ref, b2_ref,
               g2_ref, be2_ref,
               gF_ref, bF_ref, wH_ref, bH_ref,
               o_ref, carry_ref):
        l = pl.program_id(1)

        # Load the embedded input into the layer-carry scratch at layer 0.
        @pl.when(l == 0)
        def _():
            carry_ref[...] = x_ref[...]

        x2 = carry_ref[...].reshape(M, D)  # (Bt*S, D), free leading-dim merge

        # --- fused QKV projection: ONE (M, D) @ (D, 3D) bf16 MXU matmul -----
        qkv = jnp.dot(x2.astype(bf16), wqkv_ref[...],
                      preferred_element_type=jnp.float32) + bqkv_ref[...]
        q = qkv[:, 0:D].reshape(Bt, S, D)          # lane slices at D multiples
        k = qkv[:, D:2 * D].reshape(Bt, S, D)
        v = qkv[:, 2 * D:3 * D].reshape(Bt, S, D)

        # precomputed causal mask bias (0 / -1e30), broadcast over batch
        neg = mask_ref[...][None]                   # (1, S, S)

        # --- per-head attention, batched over the Bt sequences --------------
        heads = []
        for h in range(H):  # static, fully unrolled head loop
            sl = slice(h * hd, (h + 1) * hd)
            qh = q[:, :, sl].astype(bf16)
            kh = k[:, :, sl].astype(bf16)
            vh = v[:, :, sl].astype(bf16)
            s = jnp.einsum("bqd,bkd->bqk", qh, kh,
                           preferred_element_type=jnp.float32) * scale + neg
            s = s - jnp.max(s, axis=-1, keepdims=True)
            p = jnp.exp(s)
            p = p * pl.reciprocal(jnp.sum(p, axis=-1, keepdims=True),
                                  approx=True)
            heads.append(jnp.einsum("bqk,bkd->bqd", p.astype(bf16), vh,
                                    preferred_element_type=jnp.float32))

        # concat heads, one full-width (M, D) @ (D, D) output projection
        attn = jnp.concatenate(heads, axis=-1).reshape(M, D)
        attn = jnp.dot(attn.astype(bf16), wo_ref[...],
                       preferred_element_type=jnp.float32) + bo_ref[...]

        # --- residual + LayerNorm1 -------------------------------------------
        h1 = _layernorm(x2 + attn, g1_ref[...], be1_ref[...])

        # --- MLP: Linear(D,4D) -> GELU -> Linear(4D,D); dropout = identity ---
        m = jnp.dot(h1.astype(bf16), w1_ref[...],
                    preferred_element_type=jnp.float32) + b1_ref[...]
        m = _gelu(m)
        m = jnp.dot(m.astype(bf16), w2_ref[...],
                    preferred_element_type=jnp.float32) + b2_ref[...]

        # --- residual + LayerNorm2, carry to next layer -----------------------
        out = _layernorm(h1 + m, g2_ref[...], be2_ref[...])
        carry_ref[...] = out.reshape(Bt, S, D)

        # --- final LayerNorm + LM head, fused into the last layer step --------
        @pl.when(l == pl.num_programs(1) - 1)
        def _():
            hF = _layernorm(out, gF_ref[...], bF_ref[...])
            logits = jnp.dot(hF.astype(bf16), wH_ref[...],
                             preferred_element_type=jnp.float32) + bH_ref[...]
            o_ref[...] = logits.reshape(Bt, S, V)

    return kernel


# --------------------------------------------------------------------------
# Per-generation tuning helpers
# --------------------------------------------------------------------------
def _tpu_kind():
    try:
        return jax.devices()[0].device_kind.lower()
    except Exception:  # pragma: no cover - conservative fallback
        return ""


def _num_tensorcores(kind):
    # v7x has 2 TensorCores per chip; v5e / v6e have 1.
    return 2 if "v7" in kind else 1


def _vmem_limit_bytes(kind):
    if "v7" in kind:                       # 64 MiB physical -> leave headroom
        return 48 * 1024 * 1024
    if "v5" in kind or "v6" in kind:       # 128 MiB physical
        return 64 * 1024 * 1024
    return None                            # keep compiler default elsewhere


def _pick_block_b(B, S, num_tc):
    """Rows per grid step.  Feed the MXU M dimension (~128 rows on v5e,
    ~256 on v6e/v7x) per step; only create extra grid steps when there is more
    than one TensorCore to shard them across, and never drop below 64 rows."""
    target_rows = 128 if num_tc == 1 else 256
    bt = max(1, min(B, max(1, target_rows // max(S, 1))))
    while B % bt:
        bt -= 1
    if num_tc > 1:
        while (B // bt) < 2 * num_tc and bt % 2 == 0 and (bt // 2) * S >= 64:
            bt //= 2
    return bt


# --------------------------------------------------------------------------
# Full forward pass
# --------------------------------------------------------------------------
def kotha_forward(idx, params, n_heads):
    """Full KothaTransformer forward (eval mode): idx (B, S) int32 -> logits."""
    emb, pe, layers, (gF, bF, wH, bH) = params
    B, S = idx.shape
    D = emb.shape[1]
    V = wH.shape[1]
    L = len(layers)

    # TODO(synk): the token-embedding gather and positional-encoding add stay
    # in plain JAX (XLA gather/add); a scalar-prefetch Pallas gather kernel is
    # possible but not worthwhile at these sizes.
    x = jnp.take(emb, idx, axis=0) + pe[None, :S, :]

    # causal mask bias (PyTorch: triu(ones, diagonal=1) positions blocked),
    # built once on the host and streamed in as a constant-index input.
    row = jnp.arange(S, dtype=jnp.int32)[:, None]
    col = jnp.arange(S, dtype=jnp.int32)[None, :]
    mask = jnp.where(col > row, jnp.float32(-1e30), jnp.float32(0.0))

    # Stack per-layer params along a leading L axis so one pallas_call can
    # pipeline each layer's weight DMA against the previous layer's compute.
    stacked = [jnp.stack(ws, axis=0) for ws in zip(*layers)]

    kind = _tpu_kind()
    block_b = _pick_block_b(B, S, _num_tensorcores(kind))
    nb = B // block_b

    kernel = _make_model_kernel(block_b, S, D, n_heads, V)

    x_spec = pl.BlockSpec((block_b, S, D), lambda b, l: (b, 0, 0))

    def layer_spec(a):  # (L, r, c) weight -> per-layer (r, c) block
        return pl.BlockSpec((None,) + a.shape[1:], lambda b, l: (l, 0, 0))

    # Constant-index blocks cover the full arrays; they are fetched once and
    # stay resident.  (pipeline_mode=pl.Buffered(1) would single-buffer them —
    # irrelevant at D=128/V=128, revisit together with tiling wH over a vocab
    # grid axis if the model scales to a realistic vocab.)
    def const_spec(a):
        return pl.BlockSpec(a.shape, lambda b, l: (0,) * a.ndim)

    in_specs = ([const_spec(mask), x_spec]
                + [layer_spec(a) for a in stacked]
                + [const_spec(a) for a in (gF, bF, wH, bH)])

    return pl.pallas_call(
        kernel,
        out_shape=jax.ShapeDtypeStruct((B, S, V), jnp.float32),
        grid_spec=pltpu.PrefetchScalarGridSpec(
            num_scalar_prefetch=0,
            grid=(nb, L),
            in_specs=in_specs,
            out_specs=pl.BlockSpec((block_b, S, V), lambda b, l: (b, 0, 0)),
            scratch_shapes=[pltpu.VMEM((block_b, S, D), jnp.float32)],
        ),
        compiler_params=pltpu.CompilerParams(
            dimension_semantics=("parallel", "arbitrary"),
            vmem_limit_bytes=_vmem_limit_bytes(kind),
        ),
    )(mask, x, *stacked, gF, bF, wH, bH)


# --------------------------------------------------------------------------
# Parameters / reference
# --------------------------------------------------------------------------
def make_positional_encoding(d_model, max_len):
    position = jnp.arange(max_len, dtype=jnp.float32)[:, None]
    div_term = jnp.exp(jnp.arange(0, d_model, 2, dtype=jnp.float32)
                       * (-math.log(10000.0) / d_model))
    ang = position * div_term
    pe = jnp.zeros((max_len, d_model), jnp.float32)
    pe = pe.at[:, 0::2].set(jnp.sin(ang))
    pe = pe.at[:, 1::2].set(jnp.cos(ang))
    return pe


def init_params(key, vocab_size, d_model, n_layers, context):
    D, DH = d_model, 4 * d_model

    def n(k, shape, dtype=jnp.float32):
        # matmul weights are stored as bf16 (MXU-native, half the DMA bytes)
        return (0.02 * jax.random.normal(k, shape, jnp.float32)).astype(dtype)

    keys = jax.random.split(key, 1 + 8 * n_layers + 2)
    it = iter(keys)
    emb = n(next(it), (vocab_size, D))
    pe = make_positional_encoding(D, context)
    layers = []
    for _ in range(n_layers):
        wqkv, bqkv = n(next(it), (D, 3 * D), jnp.bfloat16), n(next(it), (1, 3 * D))
        wo, bo = n(next(it), (D, D), jnp.bfloat16), n(next(it), (1, D))
        g1, be1 = jnp.ones((1, D), jnp.float32), jnp.zeros((1, D), jnp.float32)
        w1, b1 = n(next(it), (D, DH), jnp.bfloat16), n(next(it), (1, DH))
        w2, b2 = n(next(it), (DH, D), jnp.bfloat16), n(next(it), (1, D))
        g2, be2 = jnp.ones((1, D), jnp.float32), jnp.zeros((1, D), jnp.float32)
        layers.append((wqkv, bqkv, wo, bo, g1, be1, w1, b1, w2, b2, g2, be2))
    gF = jnp.ones((1, D), jnp.float32)
    bF = jnp.zeros((1, D), jnp.float32)
    wH, bH = n(next(it), (D, vocab_size), jnp.bfloat16), n(next(it), (1, vocab_size))
    return emb, pe, tuple(layers), (gF, bF, wH, bH)


def reference(idx, params, n_heads):
    """Pure-JAX f32 reference = PyTorch KothaTransformer.forward, eval mode."""
    emb, pe, layers, (gF, bF, wH, bH) = params
    B, S = idx.shape
    D = emb.shape[1]
    hd = D // n_heads
    f32 = lambda a: a.astype(jnp.float32)

    def ln(h, g, b, eps=_LN_EPS):
        mu = jnp.mean(h, -1, keepdims=True)
        var = jnp.mean((h - mu) ** 2, -1, keepdims=True)
        return (h - mu) / jnp.sqrt(var + eps) * g + b

    x = jnp.take(emb, idx, axis=0) + pe[None, :S, :]
    mask = jnp.triu(jnp.ones((S, S), jnp.float32), k=1).astype(bool)
    for (wqkv, bqkv, wo, bo, g1, be1, w1, b1, w2, b2, g2, be2) in layers:
        qkv = x @ f32(wqkv) + bqkv
        q, k, v = qkv[..., :D], qkv[..., D:2 * D], qkv[..., 2 * D:]
        q = q.reshape(B, S, n_heads, hd).transpose(0, 2, 1, 3)
        k = k.reshape(B, S, n_heads, hd).transpose(0, 2, 1, 3)
        v = v.reshape(B, S, n_heads, hd).transpose(0, 2, 1, 3)
        s = jnp.einsum("bhse,bhte->bhst", q, k) / math.sqrt(hd)
        s = jnp.where(mask[None, None], -jnp.inf, s)
        p = jax.nn.softmax(s, axis=-1)
        o = jnp.einsum("bhst,bhte->bhse", p, v)
        o = o.transpose(0, 2, 1, 3).reshape(B, S, D)
        attn = o @ f32(wo) + bo
        h1 = ln(x + attn, g1, be1)
        m = jax.nn.gelu(h1 @ f32(w1) + b1, approximate=False) @ f32(w2) + b2
        x = ln(h1 + m, g2, be2)
    x = ln(x, gF, bF)
    return x @ f32(wH) + bH


if __name__ == "__main__":
    # small, lane-dense shapes consistent with the module
    VOCAB, N_LAYERS, D_MODEL, N_HEADS, CONTEXT, BATCH = 128, 2, 128, 4, 16, 8

    key = jax.random.PRNGKey(0)
    k_idx, k_par = jax.random.split(key)
    idx = jax.random.randint(k_idx, (BATCH, CONTEXT), 0, VOCAB, dtype=jnp.int32)
    params = init_params(k_par, VOCAB, D_MODEL, N_LAYERS, CONTEXT)

    logits = jax.block_until_ready(kotha_forward(idx, params, N_HEADS))

    ref = reference(idx, params, N_HEADS)
    assert logits.shape == (BATCH, CONTEXT, VOCAB)
    assert bool(jnp.all(jnp.isfinite(logits)))
    err = float(jnp.max(jnp.abs(logits - ref)))
    assert err < 1e-2, err

    print("KERNEL_OK")
</pallas_src>

<mosaic_0001>
module attributes {stable_mosaic.version = 11 : i64} {
  func.func @kernel(%arg0: i32, %arg1: i32, %arg2: memref<16x16xf32, #tpu.memory_space<vmem>>, %arg3: memref<8x16x128xf32, #tpu.memory_space<vmem>>, %arg4: memref<1x128x384xbf16, #tpu.memory_space<vmem>>, %arg5: memref<1x1x384xf32, #tpu.memory_space<vmem>>, %arg6: memref<1x128x128xbf16, #tpu.memory_space<vmem>>, %arg7: memref<1x1x128xf32, #tpu.memory_space<vmem>>, %arg8: memref<1x1x128xf32, #tpu.memory_space<vmem>>, %arg9: memref<1x1x128xf32, #tpu.memory_space<vmem>>, %arg10: memref<1x128x512xbf16, #tpu.memory_space<vmem>>, %arg11: memref<1x1x512xf32, #tpu.memory_space<vmem>>, %arg12: memref<1x512x128xbf16, #tpu.memory_space<vmem>>, %arg13: memref<1x1x128xf32, #tpu.memory_space<vmem>>, %arg14: memref<1x1x128xf32, #tpu.memory_space<vmem>>, %arg15: memref<1x1x128xf32, #tpu.memory_space<vmem>>, %arg16: memref<1x128xf32, #tpu.memory_space<vmem>>, %arg17: memref<1x128xf32, #tpu.memory_space<vmem>>, %arg18: memref<128x128xbf16, #tpu.memory_space<vmem>>, %arg19: memref<1x128xf32, #tpu.memory_space<vmem>>, %arg20: memref<8x16x128xf32, #tpu.memory_space<vmem>>, %arg21: memref<8x16x128xf32, #tpu.memory_space<vmem>>) attributes {dimension_semantics = [#tpu.dimension_semantics<parallel>, #tpu.dimension_semantics<arbitrary>], iteration_bounds = array<i64: 1, 2>, scalar_prefetch = 0 : i64, scratch_operands = 1 : i64, tpu.core_type = #tpu.core_type<tc>, window_params = [{pipeline_mode = #tpu.pipeline_mode<synchronous>, transform_indices = @transform_0, window_bounds = array<i64: 16, 16>}, {transform_indices = @transform_1, window_bounds = array<i64: 8, 16, 128>}, {transform_indices = @transform_2, window_bounds = array<i64: 1, 128, 384>}, {transform_indices = @transform_3, window_bounds = array<i64: 1, 1, 384>}, {transform_indices = @transform_4, window_bounds = array<i64: 1, 128, 128>}, {transform_indices = @transform_5, window_bounds = array<i64: 1, 1, 128>}, {transform_indices = @transform_6, window_bounds = array<i64: 1, 1, 128>}, {transform_indices = @transform_7, window_bounds = array<i64: 1, 1, 128>}, {transform_indices = @transform_8, window_bounds = array<i64: 1, 128, 512>}, {transform_indices = @transform_9, window_bounds = array<i64: 1, 1, 512>}, {transform_indices = @transform_10, window_bounds = array<i64: 1, 512, 128>}, {transform_indices = @transform_11, window_bounds = array<i64: 1, 1, 128>}, {transform_indices = @transform_12, window_bounds = array<i64: 1, 1, 128>}, {transform_indices = @transform_13, window_bounds = array<i64: 1, 1, 128>}, {pipeline_mode = #tpu.pipeline_mode<synchronous>, transform_indices = @transform_14, window_bounds = array<i64: 1, 128>}, {pipeline_mode = #tpu.pipeline_mode<synchronous>, transform_indices = @transform_15, window_bounds = array<i64: 1, 128>}, {pipeline_mode = #tpu.pipeline_mode<synchronous>, transform_indices = @transform_16, window_bounds = array<i64: 128, 128>}, {pipeline_mode = #tpu.pipeline_mode<synchronous>, transform_indices = @transform_17, window_bounds = array<i64: 1, 128>}, {transform_indices = @transform_18, window_bounds = array<i64: 8, 16, 128>}]} {
    %c0_i32 = arith.constant 0 : i32
    %0 = arith.cmpi eq, %arg1, %c0_i32 : i32
    %1 = arith.extui %0 : i1 to i32
    %c0_i32_0 = arith.constant 0 : i32
    %2 = arith.cmpi ne, %1, %c0_i32_0 : i32
    scf.if %2 {
      %c0_82 = arith.constant 0 : index
      %c0_83 = arith.constant 0 : index
      %c0_84 = arith.constant 0 : index
      %211 = vector.load %arg3[%c0_82, %c0_83, %c0_84] : memref<8x16x128xf32, #tpu.memory_space<vmem>>, vector<8x16x128xf32>
      %c0_85 = arith.constant 0 : index
      %c0_86 = arith.constant 0 : index
      %c0_87 = arith.constant 0 : index
      %212 = vector.load %arg21[%c0_85, %c0_86, %c0_87] : memref<8x16x128xf32, #tpu.memory_space<vmem>>, vector<8x16x128xf32>
      tpu.vector_store %arg21[%c0_85, %c0_86, %c0_87], %211 {strides = array<i32>} : memref<8x16x128xf32, #tpu.memory_space<vmem>>, vector<8x16x128xf32>,
    } else {
    }
    %c0 = arith.constant 0 : index
    %c0_1 = arith.constant 0 : index
    %c0_2 = arith.constant 0 : index
    %3 = vector.load %arg21[%c0, %c0_1, %c0_2] : memref<8x16x128xf32, #tpu.memory_space<vmem>>, vector<8x16x128xf32>
    %4 = vector.shape_cast %3 : vector<8x16x128xf32> to vector<128x128xf32>
    %5 = arith.truncf %4 : vector<128x128xf32> to vector<128x128xbf16>
    %c0_3 = arith.constant 0 : index
    %c0_4 = arith.constant 0 : index
    %c0_5 = arith.constant 0 : index
    %6 = vector.load %arg4[%c0_3, %c0_4, %c0_5] : memref<1x128x384xbf16, #tpu.memory_space<vmem>>, vector<1x128x384xbf16>
    %7 = vector.shape_cast %6 : vector<1x128x384xbf16> to vector<128x384xbf16>
    %cst = arith.constant dense<0.000000e+00> : vector<128x384xf32>
    %8 = tpu.matmul %5, %7, %cst {dimension_numbers = #tpu.dot_dimension_numbers<[1], [0], [0], [1], [0, 0, 1, 1], [], []>} : vector<128x128xbf16>, vector<128x384xbf16>, vector<128x384xf32> -> vector<128x384xf32>
    %c0_6 = arith.constant 0 : index
    %c0_7 = arith.constant 0 : index
    %c0_8 = arith.constant 0 : index
    %9 = vector.load %arg5[%c0_6, %c0_7, %c0_8] : memref<1x1x384xf32, #tpu.memory_space<vmem>>, vector<1x1x384xf32>
    %10 = vector.shape_cast %9 : vector<1x1x384xf32> to vector<1x384xf32>
    %11 = vector.broadcast %10 : vector<1x384xf32> to vector<128x384xf32>
    %12 = arith.addf %8, %11 : vector<128x384xf32>
    %13 = vector.extract_strided_slice %12 {offsets = [0, 0], sizes = [128, 128], strides = [1, 1]} : vector<128x384xf32> to vector<128x128xf32>
    %14 = vector.shape_cast %13 : vector<128x128xf32> to vector<8x16x128xf32>
    %15 = vector.extract_strided_slice %12 {offsets = [0, 128], sizes = [128, 128], strides = [1, 1]} : vector<128x384xf32> to vector<128x128xf32>
    %16 = vector.shape_cast %15 : vector<128x128xf32> to vector<8x16x128xf32>
    %17 = vector.extract_strided_slice %12 {offsets = [0, 256], sizes = [128, 128], strides = [1, 1]} : vector<128x384xf32> to vector<128x128xf32>
    %18 = vector.shape_cast %17 : vector<128x128xf32> to vector<8x16x128xf32>
    %c0_9 = arith.constant 0 : index
    %c0_10 = arith.constant 0 : index
    %19 = vector.load %arg2[%c0_9, %c0_10] : memref<16x16xf32, #tpu.memory_space<vmem>>, vector<16x16xf32>
    %20 = vector.shape_cast %19 : vector<16x16xf32> to vector<1x16x16xf32>
    %21 = vector.extract_strided_slice %14 {offsets = [0, 0, 0], sizes = [8, 16, 32], strides = [1, 1, 1]} : vector<8x16x128xf32> to vector<8x16x32xf32>
    %22 = arith.truncf %21 : vector<8x16x32xf32> to vector<8x16x32xbf16>
    %23 = vector.extract_strided_slice %16 {offsets = [0, 0, 0], sizes = [8, 16, 32], strides = [1, 1, 1]} : vector<8x16x128xf32> to vector<8x16x32xf32>
    %24 = arith.truncf %23 : vector<8x16x32xf32> to vector<8x16x32xbf16>
    %25 = vector.extract_strided_slice %18 {offsets = [0, 0, 0], sizes = [8, 16, 32], strides = [1, 1, 1]} : vector<8x16x128xf32> to vector<8x16x32xf32>
    %26 = arith.truncf %25 : vector<8x16x32xf32> to vector<8x16x32xbf16>
    "tpu.trace_start"() <{level = 10 : i32, message = "bqd,bkd->bqk"}> : () -> ()
    %cst_11 = arith.constant dense<0.000000e+00> : vector<8x16x16xf32>
    %27 = tpu.matmul %22, %24, %cst_11 {dimension_numbers = #tpu.dot_dimension_numbers<[2], [2], [1], [1], [0, 0, 0, 1, 1, 1], [0], [0]>} : vector<8x16x32xbf16>, vector<8x16x32xbf16>, vector<8x16x16xf32> -> vector<8x16x16xf32>
    "tpu.trace_stop"() : () -> ()
    %cst_12 = arith.constant 0.176776692 : f32
    %28 = vector.broadcast %cst_12 : f32 to vector<8x16x16xf32>
    %29 = arith.mulf %27, %28 : vector<8x16x16xf32>
    %30 = vector.broadcast %20 : vector<1x16x16xf32> to vector<8x16x16xf32>
    %31 = arith.addf %29, %30 : vector<8x16x16xf32>
    %cst_13 = arith.constant dense<0xFF800000> : vector<8x16xf32>
    %32 = vector.multi_reduction <maximumf>, %31, %cst_13 [2] : vector<8x16x16xf32> to vector<8x16xf32>
    %33 = vector.shape_cast %32 : vector<8x16xf32> to vector<8x16x1xf32>
    %34 = vector.broadcast %33 : vector<8x16x1xf32> to vector<8x16x16xf32>
    %35 = arith.subf %31, %34 : vector<8x16x16xf32>
    %36 = math.exp %35 : vector<8x16x16xf32>
    %cst_14 = arith.constant dense<0.000000e+00> : vector<8x16xf32>
    %37 = vector.multi_reduction <add>, %36, %cst_14 [2] : vector<8x16x16xf32> to vector<8x16xf32>
    %38 = vector.shape_cast %37 : vector<8x16xf32> to vector<8x16x1xf32>
    %39 = tpu.reciprocal %38 {approx = true} : vector<8x16x1xf32> -> vector<8x16x1xf32>
    %40 = vector.broadcast %39 : vector<8x16x1xf32> to vector<8x16x16xf32>
    %41 = arith.mulf %36, %40 : vector<8x16x16xf32>
    %42 = arith.truncf %41 : vector<8x16x16xf32> to vector<8x16x16xbf16>
    "tpu.trace_start"() <{level = 10 : i32, message = "bqk,bkd->bqd"}> : () -> ()
    %cst_15 = arith.constant dense<0.000000e+00> : vector<8x16x32xf32>
    %43 = tpu.matmul %42, %26, %cst_15 {dimension_numbers = #tpu.dot_dimension_numbers<[2], [1], [1], [2], [0, 0, 0, 1, 1, 2], [0], [0]>} : vector<8x16x16xbf16>, vector<8x16x32xbf16>, vector<8x16x32xf32> -> vector<8x16x32xf32>
    "tpu.trace_stop"() : () -> ()
    %44 = vector.extract_strided_slice %14 {offsets = [0, 0, 32], sizes = [8, 16, 32], strides = [1, 1, 1]} : vector<8x16x128xf32> to vector<8x16x32xf32>
    %45 = arith.truncf %44 : vector<8x16x32xf32> to vector<8x16x32xbf16>
    %46 = vector.extract_strided_slice %16 {offsets = [0, 0, 32], sizes = [8, 16, 32], strides = [1, 1, 1]} : vector<8x16x128xf32> to vector<8x16x32xf32>
    %47 = arith.truncf %46 : vector<8x16x32xf32> to vector<8x16x32xbf16>
    %48 = vector.extract_strided_slice %18 {offsets = [0, 0, 32], sizes = [8, 16, 32], strides = [1, 1, 1]} : vector<8x16x128xf32> to vector<8x16x32xf32>
    %49 = arith.truncf %48 : vector<8x16x32xf32> to vector<8x16x32xbf16>
    "tpu.trace_start"() <{level = 10 : i32, message = "bqd,bkd->bqk"}> : () -> ()
    %cst_16 = arith.constant dense<0.000000e+00> : vector<8x16x16xf32>
    %50 = tpu.matmul %45, %47, %cst_16 {dimension_numbers = #tpu.dot_dimension_numbers<[2], [2], [1], [1], [0, 0, 0, 1, 1, 1], [0], [0]>} : vector<8x16x32xbf16>, vector<8x16x32xbf16>, vector<8x16x16xf32> -> vector<8x16x16xf32>
    "tpu.trace_stop"() : () -> ()
    %cst_17 = arith.constant 0.176776692 : f32
    %51 = vector.broadcast %cst_17 : f32 to vector<8x16x16xf32>
    %52 = arith.mulf %50, %51 : vector<8x16x16xf32>
    %53 = vector.broadcast %20 : vector<1x16x16xf32> to vector<8x16x16xf32>
    %54 = arith.addf %52, %53 : vector<8x16x16xf32>
    %cst_18 = arith.constant dense<0xFF800000> : vector<8x16xf32>
    %55 = vector.multi_reduction <maximumf>, %54, %cst_18 [2] : vector<8x16x16xf32> to vector<8x16xf32>
    %56 = vector.shape_cast %55 : vector<8x16xf32> to vector<8x16x1xf32>
    %57 = vector.broadcast %56 : vector<8x16x1xf32> to vector<8x16x16xf32>
    %58 = arith.subf %54, %57 : vector<8x16x16xf32>
    %59 = math.exp %58 : vector<8x16x16xf32>
    %cst_19 = arith.constant dense<0.000000e+00> : vector<8x16xf32>
    %60 = vector.multi_reduction <add>, %59, %cst_19 [2] : vector<8x16x16xf32> to vector<8x16xf32>
    %61 = vector.shape_cast %60 : vector<8x16xf32> to vector<8x16x1xf32>
    %62 = tpu.reciprocal %61 {approx = true} : vector<8x16x1xf32> -> vector<8x16x1xf32>
    %63 = vector.broadcast %62 : vector<8x16x1xf32> to vector<8x16x16xf32>
    %64 = arith.mulf %59, %63 : vector<8x16x16xf32>
    %65 = arith.truncf %64 : vector<8x16x16xf32> to vector<8x16x16xbf16>
    "tpu.trace_start"() <{level = 10 : i32, message = "bqk,bkd->bqd"}> : () -> ()
    %cst_20 = arith.constant dense<0.000000e+00> : vector<8x16x32xf32>
    %66 = tpu.matmul %65, %49, %cst_20 {dimension_numbers = #tpu.dot_dimension_numbers<[2], [1], [1], [2], [0, 0, 0, 1, 1, 2], [0], [0]>} : vector<8x16x16xbf16>, vector<8x16x32xbf16>, vector<8x16x32xf32> -> vector<8x16x32xf32>
    "tpu.trace_stop"() : () -> ()
    %67 = vector.extract_strided_slice %14 {offsets = [0, 0, 64], sizes = [8, 16, 32], strides = [1, 1, 1]} : vector<8x16x128xf32> to vector<8x16x32xf32>
    %68 = arith.truncf %67 : vector<8x16x32xf32> to vector<8x16x32xbf16>
    %69 = vector.extract_strided_slice %16 {offsets = [0, 0, 64], sizes = [8, 16, 32], strides = [1, 1, 1]} : vector<8x16x128xf32> to vector<8x16x32xf32>
    %70 = arith.truncf %69 : vector<8x16x32xf32> to vector<8x16x32xbf16>
    %71 = vector.extract_strided_slice %18 {offsets = [0, 0, 64], sizes = [8, 16, 32], strides = [1, 1, 1]} : vector<8x16x128xf32> to vector<8x16x32xf32>
    %72 = arith.truncf %71 : vector<8x16x32xf32> to vector<8x16x32xbf16>
    "tpu.trace_start"() <{level = 10 : i32, message = "bqd,bkd->bqk"}> : () -> ()
    %cst_21 = arith.constant dense<0.000000e+00> : vector<8x16x16xf32>
    %73 = tpu.matmul %68, %70, %cst_21 {dimension_numbers = #tpu.dot_dimension_numbers<[2], [2], [1], [1], [0, 0, 0, 1, 1, 1], [0], [0]>} : vector<8x16x32xbf16>, vector<8x16x32xbf16>, vector<8x16x16xf32> -> vector<8x16x16xf32>
    "tpu.trace_stop"() : () -> ()
    %cst_22 = arith.constant 0.176776692 : f32
    %74 = vector.broadcast %cst_22 : f32 to vector<8x16x16xf32>
    %75 = arith.mulf %73, %74 : vector<8x16x16xf32>
    %76 = vector.broadcast %20 : vector<1x16x16xf32> to vector<8x16x16xf32>
    %77 = arith.addf %75, %76 : vector<8x16x16xf32>
    %cst_23 = arith.constant dense<0xFF800000> : vector<8x16xf32>
    %78 = vector.multi_reduction <maximumf>, %77, %cst_23 [2] : vector<8x16x16xf32> to vector<8x16xf32>
    %79 = vector.shape_cast %78 : vector<8x16xf32> to vector<8x16x1xf32>
    %80 = vector.broadcast %79 : vector<8x16x1xf32> to vector<8x16x16xf32>
    %81 = arith.subf %77, %80 : vector<8x16x16xf32>
    %82 = math.exp %81 : vector<8x16x16xf32>
    %cst_24 = arith.constant dense<0.000000e+00> : vector<8x16xf32>
    %83 = vector.multi_reduction <add>, %82, %cst_24 [2] : vector<8x16x16xf32> to vector<8x16xf32>
    %84 = vector.shape_cast %83 : vector<8x16xf32> to vector<8x16x1xf32>
    %85 = tpu.reciprocal %84 {approx = true} : vector<8x16x1xf32> -> vector<8x16x1xf32>
    %86 = vector.broadcast %85 : vector<8x16x1xf32> to vector<8x16x16xf32>
    %87 = arith.mulf %82, %86 : vector<8x16x16xf32>
    %88 = arith.truncf %87 : vector<8x16x16xf32> to vector<8x16x16xbf16>
    "tpu.trace_start"() <{level = 10 : i32, message = "bqk,bkd->bqd"}> : () -> ()
    %cst_25 = arith.constant dense<0.000000e+00> : vector<8x16x32xf32>
    %89 = tpu.matmul %88, %72, %cst_25 {dimension_numbers = #tpu.dot_dimension_numbers<[2], [1], [1], [2], [0, 0, 0, 1, 1, 2], [0], [0]>} : vector<8x16x16xbf16>, vector<8x16x32xbf16>, vector<8x16x32xf32> -> vector<8x16x32xf32>
    "tpu.trace_stop"() : () -> ()
    %90 = vector.extract_strided_slice %14 {offsets = [0, 0, 96], sizes = [8, 16, 32], strides = [1, 1, 1]} : vector<8x16x128xf32> to vector<8x16x32xf32>
    %91 = arith.truncf %90 : vector<8x16x32xf32> to vector<8x16x32xbf16>
    %92 = vector.extract_strided_slice %16 {offsets = [0, 0, 96], sizes = [8, 16, 32], strides = [1, 1, 1]} : vector<8x16x128xf32> to vector<8x16x32xf32>
    %93 = arith.truncf %92 : vector<8x16x32xf32> to vector<8x16x32xbf16>
    %94 = vector.extract_strided_slice %18 {offsets = [0, 0, 96], sizes = [8, 16, 32], strides = [1, 1, 1]} : vector<8x16x128xf32> to vector<8x16x32xf32>
    %95 = arith.truncf %94 : vector<8x16x32xf32> to vector<8x16x32xbf16>
    "tpu.trace_start"() <{level = 10 : i32, message = "bqd,bkd->bqk"}> : () -> ()
    %cst_26 = arith.constant dense<0.000000e+00> : vector<8x16x16xf32>
    %96 = tpu.matmul %91, %93, %cst_26 {dimension_numbers = #tpu.dot_dimension_numbers<[2], [2], [1], [1], [0, 0, 0, 1, 1, 1], [0], [0]>} : vector<8x16x32xbf16>, vector<8x16x32xbf16>, vector<8x16x16xf32> -> vector<8x16x16xf32>
    "tpu.trace_stop"() : () -> ()
    %cst_27 = arith.constant 0.176776692 : f32
    %97 = vector.broadcast %cst_27 : f32 to vector<8x16x16xf32>
    %98 = arith.mulf %96, %97 : vector<8x16x16xf32>
    %99 = vector.broadcast %20 : vector<1x16x16xf32> to vector<8x16x16xf32>
    %100 = arith.addf %98, %99 : vector<8x16x16xf32>
    %cst_28 = arith.constant dense<0xFF800000> : vector<8x16xf32>
    %101 = vector.multi_reduction <maximumf>, %100, %cst_28 [2] : vector<8x16x16xf32> to vector<8x16xf32>
    %102 = vector.shape_cast %101 : vector<8x16xf32> to vector<8x16x1xf32>
    %103 = vector.broadcast %102 : vector<8x16x1xf32> to vector<8x16x16xf32>
    %104 = arith.subf %100, %103 : vector<8x16x16xf32>
    %105 = math.exp %104 : vector<8x16x16xf32>
    %cst_29 = arith.constant dense<0.000000e+00> : vector<8x16xf32>
    %106 = vector.multi_reduction <add>, %105, %cst_29 [2] : vector<8x16x16xf32> to vector<8x16xf32>
    %107 = vector.shape_cast %106 : vector<8x16xf32> to vector<8x16x1xf32>
    %108 = tpu.reciprocal %107 {approx = true} : vector<8x16x1xf32> -> vector<8x16x1xf32>
    %109 = vector.broadcast %108 : vector<8x16x1xf32> to vector<8x16x16xf32>
    %110 = arith.mulf %105, %109 : vector<8x16x16xf32>
    %111 = arith.truncf %110 : vector<8x16x16xf32> to vector<8x16x16xbf16>
    "tpu.trace_start"() <{level = 10 : i32, message = "bqk,bkd->bqd"}> : () -> ()
    %cst_30 = arith.constant dense<0.000000e+00> : vector<8x16x32xf32>
    %112 = tpu.matmul %111, %95, %cst_30 {dimension_numbers = #tpu.dot_dimension_numbers<[2], [1], [1], [2], [0, 0, 0, 1, 1, 2], [0], [0]>} : vector<8x16x16xbf16>, vector<8x16x32xbf16>, vector<8x16x32xf32> -> vector<8x16x32xf32>
    "tpu.trace_stop"() : () -> ()
    %113 = tpu.concatenate %43, %66, %89, %112 in 2 : vector<8x16x32xf32>, vector<8x16x32xf32>, vector<8x16x32xf32>, vector<8x16x32xf32> -> vector<8x16x128xf32>
    %114 = vector.shape_cast %113 : vector<8x16x128xf32> to vector<128x128xf32>
    %115 = arith.truncf %114 : vector<128x128xf32> to vector<128x128xbf16>
    %c0_31 = arith.constant 0 : index
    %c0_32 = arith.constant 0 : index
    %c0_33 = arith.constant 0 : index
    %116 = vector.load %arg6[%c0_31, %c0_32, %c0_33] : memref<1x128x128xbf16, #tpu.memory_space<vmem>>, vector<1x128x128xbf16>
    %117 = vector.shape_cast %116 : vector<1x128x128xbf16> to vector<128x128xbf16>
    %cst_34 = arith.constant dense<0.000000e+00> : vector<128x128xf32>
    %118 = tpu.matmul %115, %117, %cst_34 {dimension_numbers = #tpu.dot_dimension_numbers<[1], [0], [0], [1], [0, 0, 1, 1], [], []>} : vector<128x128xbf16>, vector<128x128xbf16>, vector<128x128xf32> -> vector<128x128xf32>
    %c0_35 = arith.constant 0 : index
    %c0_36 = arith.constant 0 : index
    %c0_37 = arith.constant 0 : index
    %119 = vector.load %arg7[%c0_35, %c0_36, %c0_37] : memref<1x1x128xf32, #tpu.memory_space<vmem>>, vector<1x1x128xf32>
    %120 = vector.shape_cast %119 : vector<1x1x128xf32> to vector<1x128xf32>
    %121 = vector.broadcast %120 : vector<1x128xf32> to vector<128x128xf32>
    %122 = arith.addf %118, %121 : vector<128x128xf32>
    %123 = arith.addf %4, %122 : vector<128x128xf32>
    %c0_38 = arith.constant 0 : index
    %c0_39 = arith.constant 0 : index
    %c0_40 = arith.constant 0 : index
    %124 = vector.load %arg8[%c0_38, %c0_39, %c0_40] : memref<1x1x128xf32, #tpu.memory_space<vmem>>, vector<1x1x128xf32>
    %125 = vector.shape_cast %124 : vector<1x1x128xf32> to vector<1x128xf32>
    %c0_41 = arith.constant 0 : index
    %c0_42 = arith.constant 0 : index
    %c0_43 = arith.constant 0 : index
    %126 = vector.load %arg9[%c0_41, %c0_42, %c0_43] : memref<1x1x128xf32, #tpu.memory_space<vmem>>, vector<1x1x128xf32>
    %127 = vector.shape_cast %126 : vector<1x1x128xf32> to vector<1x128xf32>
    %cst_44 = arith.constant dense<0.000000e+00> : vector<128xf32>
    %128 = vector.multi_reduction <add>, %123, %cst_44 [1] : vector<128x128xf32> to vector<128xf32>
    %129 = vector.shape_cast %128 : vector<128xf32> to vector<128x1xf32>
    %cst_45 = arith.constant 1.280000e+02 : f32
    %130 = vector.broadcast %cst_45 : f32 to vector<128x1xf32>
    %131 = arith.divf %129, %130 : vector<128x1xf32>
    %132 = vector.broadcast %131 : vector<128x1xf32> to vector<128x128xf32>
    %133 = arith.subf %123, %132 : vector<128x128xf32>
    %134 = arith.mulf %133, %133 : vector<128x128xf32>
    %cst_46 = arith.constant dense<0.000000e+00> : vector<128xf32>
    %135 = vector.multi_reduction <add>, %134, %cst_46 [1] : vector<128x128xf32> to vector<128xf32>
    %136 = vector.shape_cast %135 : vector<128xf32> to vector<128x1xf32>
    %cst_47 = arith.constant 1.280000e+02 : f32
    %137 = vector.broadcast %cst_47 : f32 to vector<128x1xf32>
    %138 = arith.divf %136, %137 : vector<128x1xf32>
    %139 = vector.broadcast %131 : vector<128x1xf32> to vector<128x128xf32>
    %140 = arith.subf %123, %139 : vector<128x128xf32>
    %cst_48 = arith.constant 9.99999974E-6 : f32
    %141 = vector.broadcast %cst_48 : f32 to vector<128x1xf32>
    %142 = arith.addf %138, %141 : vector<128x1xf32>
    %143 = math.rsqrt %142 : vector<128x1xf32>
    %144 = vector.broadcast %143 : vector<128x1xf32> to vector<128x128xf32>
    %145 = arith.mulf %140, %144 : vector<128x128xf32>
    %146 = vector.broadcast %125 : vector<1x128xf32> to vector<128x128xf32>
    %147 = arith.mulf %145, %146 : vector<128x128xf32>
    %148 = vector.broadcast %127 : vector<1x128xf32> to vector<128x128xf32>
    %149 = arith.addf %147, %148 : vector<128x128xf32>
    %150 = arith.truncf %149 : vector<128x128xf32> to vector<128x128xbf16>
    %c0_49 = arith.constant 0 : index
    %c0_50 = arith.constant 0 : index
    %c0_51 = arith.constant 0 : index
    %151 = vector.load %arg10[%c0_49, %c0_50, %c0_51] : memref<1x128x512xbf16, #tpu.memory_space<vmem>>, vector<1x128x512xbf16>
    %152 = vector.shape_cast %151 : vector<1x128x512xbf16> to vector<128x512xbf16>
    %cst_52 = arith.constant dense<0.000000e+00> : vector<128x512xf32>
    %153 = tpu.matmul %150, %152, %cst_52 {dimension_numbers = #tpu.dot_dimension_numbers<[1], [0], [0], [1], [0, 0, 1, 1], [], []>} : vector<128x128xbf16>, vector<128x512xbf16>, vector<128x512xf32> -> vector<128x512xf32>
    %c0_53 = arith.constant 0 : index
    %c0_54 = arith.constant 0 : index
    %c0_55 = arith.constant 0 : index
    %154 = vector.load %arg11[%c0_53, %c0_54, %c0_55] : memref<1x1x512xf32, #tpu.memory_space<vmem>>, vector<1x1x512xf32>
    %155 = vector.shape_cast %154 : vector<1x1x512xf32> to vector<1x512xf32>
    %156 = vector.broadcast %155 : vector<1x512xf32> to vector<128x512xf32>
    %157 = arith.addf %153, %156 : vector<128x512xf32>
    %cst_56 = arith.constant 5.000000e-01 : f32
    %158 = vector.broadcast %cst_56 : f32 to vector<128x512xf32>
    %159 = arith.mulf %158, %157 : vector<128x512xf32>
    %160 = arith.mulf %157, %157 : vector<128x512xf32>
    %161 = arith.mulf %160, %157 : vector<128x512xf32>
    %cst_57 = arith.constant 4.471500e-02 : f32
    %162 = vector.broadcast %cst_57 : f32 to vector<128x512xf32>
    %163 = arith.mulf %162, %161 : vector<128x512xf32>
    %164 = arith.addf %157, %163 : vector<128x512xf32>
    %cst_58 = arith.constant 0.797884583 : f32
    %165 = vector.broadcast %cst_58 : f32 to vector<128x512xf32>
    %166 = arith.mulf %165, %164 : vector<128x512xf32>
    %167 = math.tanh %166 : vector<128x512xf32>
    %cst_59 = arith.constant 1.000000e+00 : f32
    %168 = vector.broadcast %cst_59 : f32 to vector<128x512xf32>
    %169 = arith.addf %168, %167 : vector<128x512xf32>
    %170 = arith.mulf %159, %169 : vector<128x512xf32>
    %171 = arith.truncf %170 : vector<128x512xf32> to vector<128x512xbf16>
    %c0_60 = arith.constant 0 : index
    %c0_61 = arith.constant 0 : index
    %c0_62 = arith.constant 0 : index
    %172 = vector.load %arg12[%c0_60, %c0_61, %c0_62] : memref<1x512x128xbf16, #tpu.memory_space<vmem>>, vector<1x512x128xbf16>
    %173 = vector.shape_cast %172 : vector<1x512x128xbf16> to vector<512x128xbf16>
    %cst_63 = arith.constant dense<0.000000e+00> : vector<128x128xf32>
    %174 = tpu.matmul %171, %173, %cst_63 {dimension_numbers = #tpu.dot_dimension_numbers<[1], [0], [0], [1], [0, 0, 1, 1], [], []>} : vector<128x512xbf16>, vector<512x128xbf16>, vector<128x128xf32> -> vector<128x128xf32>
    %c0_64 = arith.constant 0 : index
    %c0_65 = arith.constant 0 : index
    %c0_66 = arith.constant 0 : index
    %175 = vector.load %arg13[%c0_64, %c0_65, %c0_66] : memref<1x1x128xf32, #tpu.memory_space<vmem>>, vector<1x1x128xf32>
    %176 = vector.shape_cast %175 : vector<1x1x128xf32> to vector<1x128xf32>
    %177 = vector.broadcast %176 : vector<1x128xf32> to vector<128x128xf32>
    %178 = arith.addf %174, %177 : vector<128x128xf32>
    %179 = arith.addf %149, %178 : vector<128x128xf32>
    %c0_67 = arith.constant 0 : index
    %c0_68 = arith.constant 0 : index
    %c0_69 = arith.constant 0 : index
    %180 = vector.load %arg14[%c0_67, %c0_68, %c0_69] : memref<1x1x128xf32, #tpu.memory_space<vmem>>, vector<1x1x128xf32>
    %181 = vector.shape_cast %180 : vector<1x1x128xf32> to vector<1x128xf32>
    %c0_70 = arith.constant 0 : index
    %c0_71 = arith.constant 0 : index
    %c0_72 = arith.constant 0 : index
    %182 = vector.load %arg15[%c0_70, %c0_71, %c0_72] : memref<1x1x128xf32, #tpu.memory_space<vmem>>, vector<1x1x128xf32>
    %183 = vector.shape_cast %182 : vector<1x1x128xf32> to vector<1x128xf32>
    %cst_73 = arith.constant dense<0.000000e+00> : vector<128xf32>
    %184 = vector.multi_reduction <add>, %179, %cst_73 [1] : vector<128x128xf32> to vector<128xf32>
    %185 = vector.shape_cast %184 : vector<128xf32> to vector<128x1xf32>
    %cst_74 = arith.constant 1.280000e+02 : f32
    %186 = vector.broadcast %cst_74 : f32 to vector<128x1xf32>
    %187 = arith.divf %185, %186 : vector<128x1xf32>
    %188 = vector.broadcast %187 : vector<128x1xf32> to vector<128x128xf32>
    %189 = arith.subf %179, %188 : vector<128x128xf32>
    %190 = arith.mulf %189, %189 : vector<128x128xf32>
    %cst_75 = arith.constant dense<0.000000e+00> : vector<128xf32>
    %191 = vector.multi_reduction <add>, %190, %cst_75 [1] : vector<128x128xf32> to vector<128xf32>
    %192 = vector.shape_cast %191 : vector<128xf32> to vector<128x1xf32>
    %cst_76 = arith.constant 1.280000e+02 : f32
    %193 = vector.broadcast %cst_76 : f32 to vector<128x1xf32>
    %194 = arith.divf %192, %193 : vector<128x1xf32>
    %195 = vector.broadcast %187 : vector<128x1xf32> to vector<128x128xf32>
    %196 = arith.subf %179, %195 : vector<128x128xf32>
    %cst_77 = arith.constant 9.99999974E-6 : f32
    %197 = vector.broadcast %cst_77 : f32 to vector<128x1xf32>
    %198 = arith.addf %194, %197 : vector<128x1xf32>
    %199 = math.rsqrt %198 : vector<128x1xf32>
    %200 = vector.broadcast %199 : vector<128x1xf32> to vector<128x128xf32>
    %201 = arith.mulf %196, %200 : vector<128x128xf32>
    %202 = vector.broadcast %181 : vector<1x128xf32> to vector<128x128xf32>
    %203 = arith.mulf %201, %202 : vector<128x128xf32>
    %204 = vector.broadcast %183 : vector<1x128xf32> to vector<128x128xf32>
    %205 = arith.addf %203, %204 : vector<128x128xf32>
    %206 = vector.shape_cast %205 : vector<128x128xf32> to vector<8x16x128xf32>
    %c0_78 = arith.constant 0 : index
    %c0_79 = arith.constant 0 : index
    %c0_80 = arith.constant 0 : index
    %207 = vector.load %arg21[%c0_78, %c0_79, %c0_80] : memref<8x16x128xf32, #tpu.memory_space<vmem>>, vector<8x16x128xf32>
    tpu.vector_store %arg21[%c0_78, %c0_79, %c0_80], %206 {strides = array<i32>} : memref<8x16x128xf32, #tpu.memory_space<vmem>>, vector<8x16x128xf32>,
    %c1_i32 = arith.constant 1 : i32
    %208 = arith.cmpi eq, %arg1, %c1_i32 : i32
    %209 = arith.extui %208 : i1 to i32
    %c0_i32_81 = arith.constant 0 : i32
    %210 = arith.cmpi ne, %209, %c0_i32_81 : i32
    scf.if %210 {
      %c0_82 = arith.constant 0 : index
      %c0_83 = arith.constant 0 : index
      %211 = vector.load %arg16[%c0_82, %c0_83] : memref<1x128xf32, #tpu.memory_space<vmem>>, vector<1x128xf32>
      %c0_84 = arith.constant 0 : index
      %c0_85 = arith.constant 0 : index
      %212 = vector.load %arg17[%c0_84, %c0_85] : memref<1x128xf32, #tpu.memory_space<vmem>>, vector<1x128xf32>
      %cst_86 = arith.constant dense<0.000000e+00> : vector<128xf32>
      %213 = vector.multi_reduction <add>, %205, %cst_86 [1] : vector<128x128xf32> to vector<128xf32>
      %214 = vector.shape_cast %213 : vector<128xf32> to vector<128x1xf32>
      %cst_87 = arith.constant 1.280000e+02 : f32
      %215 = vector.broadcast %cst_87 : f32 to vector<128x1xf32>
      %216 = arith.divf %214, %215 : vector<128x1xf32>
      %217 = vector.broadcast %216 : vector<128x1xf32> to vector<128x128xf32>
      %218 = arith.subf %205, %217 : vector<128x128xf32>
      %219 = arith.mulf %218, %218 : vector<128x128xf32>
      %cst_88 = arith.constant dense<0.000000e+00> : vector<128xf32>
      %220 = vector.multi_reduction <add>, %219, %cst_88 [1] : vector<128x128xf32> to vector<128xf32>
      %221 = vector.shape_cast %220 : vector<128xf32> to vector<128x1xf32>
      %cst_89 = arith.constant 1.280000e+02 : f32
      %222 = vector.broadcast %cst_89 : f32 to vector<128x1xf32>
      %223 = arith.divf %221, %222 : vector<128x1xf32>
      %224 = vector.broadcast %216 : vector<128x1xf32> to vector<128x128xf32>
      %225 = arith.subf %205, %224 : vector<128x128xf32>
      %cst_90 = arith.constant 9.99999974E-6 : f32
      %226 = vector.broadcast %cst_90 : f32 to vector<128x1xf32>
      %227 = arith.addf %223, %226 : vector<128x1xf32>
      %228 = math.rsqrt %227 : vector<128x1xf32>
      %229 = vector.broadcast %228 : vector<128x1xf32> to vector<128x128xf32>
      %230 = arith.mulf %225, %229 : vector<128x128xf32>
      %231 = vector.broadcast %211 : vector<1x128xf32> to vector<128x128xf32>
      %232 = arith.mulf %230, %231 : vector<128x128xf32>
      %233 = vector.broadcast %212 : vector<1x128xf32> to vector<128x128xf32>
      %234 = arith.addf %232, %233 : vector<128x128xf32>
      %235 = arith.truncf %234 : vector<128x128xf32> to vector<128x128xbf16>
      %c0_91 = arith.constant 0 : index
      %c0_92 = arith.constant 0 : index
      %236 = vector.load %arg18[%c0_91, %c0_92] : memref<128x128xbf16, #tpu.memory_space<vmem>>, vector<128x128xbf16>
      %cst_93 = arith.constant dense<0.000000e+00> : vector<128x128xf32>
      %237 = tpu.matmul %235, %236, %cst_93 {dimension_numbers = #tpu.dot_dimension_numbers<[1], [0], [0], [1], [0, 0, 1, 1], [], []>} : vector<128x128xbf16>, vector<128x128xbf16>, vector<128x128xf32> -> vector<128x128xf32>
      %c0_94 = arith.constant 0 : index
      %c0_95 = arith.constant 0 : index
      %238 = vector.load %arg19[%c0_94, %c0_95] : memref<1x128xf32, #tpu.memory_space<vmem>>, vector<1x128xf32>
      %239 = vector.broadcast %238 : vector<1x128xf32> to vector<128x128xf32>
      %240 = arith.addf %237, %239 : vector<128x128xf32>
      %241 = vector.shape_cast %240 : vector<128x128xf32> to vector<8x16x128xf32>
      %c0_96 = arith.constant 0 : index
      %c0_97 = arith.constant 0 : index
      %c0_98 = arith.constant 0 : index
      %242 = vector.load %arg20[%c0_96, %c0_97, %c0_98] : memref<8x16x128xf32, #tpu.memory_space<vmem>>, vector<8x16x128xf32>
      tpu.vector_store %arg20[%c0_96, %c0_97, %c0_98], %241 {strides = array<i32>} : memref<8x16x128xf32, #tpu.memory_space<vmem>>, vector<8x16x128xf32>,
    } else {
    }
    return
  }
  func.func @transform_0(%arg0: i32, %arg1: i32) -> (i32, i32) {
    %c0_i32 = arith.constant 0 : i32
    %c0_i32_0 = arith.constant 0 : i32
    %c0_i32_1 = arith.constant 0 : i32
    return %c0_i32, %c0_i32_0 : i32, i32
  }
  func.func @transform_1(%arg0: i32, %arg1: i32) -> (i32, i32, i32) {
    %c0_i32 = arith.constant 0 : i32
    %c0_i32_0 = arith.constant 0 : i32
    %c0_i32_1 = arith.constant 0 : i32
    return %arg0, %c0_i32, %c0_i32_0 : i32, i32, i32
  }
  func.func @transform_2(%arg0: i32, %arg1: i32) -> (i32, i32, i32) {
    %c0_i32 = arith.constant 0 : i32
    %c0_i32_0 = arith.constant 0 : i32
    %c0_i32_1 = arith.constant 0 : i32
    return %arg1, %c0_i32, %c0_i32_0 : i32, i32, i32
  }
  func.func @transform_3(%arg0: i32, %arg1: i32) -> (i32, i32, i32) {
    %c0_i32 = arith.constant 0 : i32
    %c0_i32_0 = arith.constant 0 : i32
    %c0_i32_1 = arith.constant 0 : i32
    return %arg1, %c0_i32, %c0_i32_0 : i32, i32, i32
  }
  func.func @transform_4(%arg0: i32, %arg1: i32) -> (i32, i32, i32) {
    %c0_i32 = arith.constant 0 : i32
    %c0_i32_0 = arith.constant 0 : i32
    %c0_i32_1 = arith.constant 0 : i32
    return %arg1, %c0_i32, %c0_i32_0 : i32, i32, i32
  }
  func.func @transform_5(%arg0: i32, %arg1: i32) -> (i32, i32, i32) {
    %c0_i32 = arith.constant 0 : i32
    %c0_i32_0 = arith.constant 0 : i32
    %c0_i32_1 = arith.constant 0 : i32
    return %arg1, %c0_i32, %c0_i32_0 : i32, i32, i32
  }
  func.func @transform_6(%arg0: i32, %arg1: i32) -> (i32, i32, i32) {
    %c0_i32 = arith.constant 0 : i32
    %c0_i32_0 = arith.constant 0 : i32
    %c0_i32_1 = arith.constant 0 : i32
    return %arg1, %c0_i32, %c0_i32_0 : i32, i32, i32
  }
  func.func @transform_7(%arg0: i32, %arg1: i32) -> (i32, i32, i32) {
    %c0_i32 = arith.constant 0 : i32
    %c0_i32_0 = arith.constant 0 : i32
    %c0_i32_1 = arith.constant 0 : i32
    return %arg1, %c0_i32, %c0_i32_0 : i32, i32, i32
  }
  func.func @transform_8(%arg0: i32, %arg1: i32) -> (i32, i32, i32) {
    %c0_i32 = arith.constant 0 : i32
    %c0_i32_0 = arith.constant 0 : i32
    %c0_i32_1 = arith.constant 0 : i32
    return %arg1, %c0_i32, %c0_i32_0 : i32, i32, i32
  }
  func.func @transform_9(%arg0: i32, %arg1: i32) -> (i32, i32, i32) {
    %c0_i32 = arith.constant 0 : i32
    %c0_i32_0 = arith.constant 0 : i32
    %c0_i32_1 = arith.constant 0 : i32
    return %arg1, %c0_i32, %c0_i32_0 : i32, i32, i32
  }
  func.func @transform_10(%arg0: i32, %arg1: i32) -> (i32, i32, i32) {
    %c0_i32 = arith.constant 0 : i32
    %c0_i32_0 = arith.constant 0 : i32
    %c0_i32_1 = arith.constant 0 : i32
    return %arg1, %c0_i32, %c0_i32_0 : i32, i32, i32
  }
  func.func @transform_11(%arg0: i32, %arg1: i32) -> (i32, i32, i32) {
    %c0_i32 = arith.constant 0 : i32
    %c0_i32_0 = arith.constant 0 : i32
    %c0_i32_1 = arith.constant 0 : i32
    return %arg1, %c0_i32, %c0_i32_0 : i32, i32, i32
  }
  func.func @transform_12(%arg0: i32, %arg1: i32) -> (i32, i32, i32) {
    %c0_i32 = arith.constant 0 : i32
    %c0_i32_0 = arith.constant 0 : i32
    %c0_i32_1 = arith.constant 0 : i32
    return %arg1, %c0_i32, %c0_i32_0 : i32, i32, i32
  }
  func.func @transform_13(%arg0: i32, %arg1: i32) -> (i32, i32, i32) {
    %c0_i32 = arith.constant 0 : i32
    %c0_i32_0 = arith.constant 0 : i32
    %c0_i32_1 = arith.constant 0 : i32
    return %arg1, %c0_i32, %c0_i32_0 : i32, i32, i32
  }
  func.func @transform_14(%arg0: i32, %arg1: i32) -> (i32, i32) {
    %c0_i32 = arith.constant 0 : i32
    %c0_i32_0 = arith.constant 0 : i32
    %c0_i32_1 = arith.constant 0 : i32
    return %c0_i32, %c0_i32_0 : i32, i32
  }
  func.func @transform_15(%arg0: i32, %arg1: i32) -> (i32, i32) {
    %c0_i32 = arith.constant 0 : i32
    %c0_i32_0 = arith.constant 0 : i32
    %c0_i32_1 = arith.constant 0 : i32
    return %c0_i32, %c0_i32_0 : i32, i32
  }
  func.func @transform_16(%arg0: i32, %arg1: i32) -> (i32, i32) {
    %c0_i32 = arith.constant 0 : i32
    %c0_i32_0 = arith.constant 0 : i32
    %c0_i32_1 = arith.constant 0 : i32
    return %c0_i32, %c0_i32_0 : i32, i32
  }
  func.func @transform_17(%arg0: i32, %arg1: i32) -> (i32, i32) {
    %c0_i32 = arith.constant 0 : i32
    %c0_i32_0 = arith.constant 0 : i32
    %c0_i32_1 = arith.constant 0 : i32
    return %c0_i32, %c0_i32_0 : i32, i32
  }
  func.func @transform_18(%arg0: i32, %arg1: i32) -> (i32, i32, i32) {
    %c0_i32 = arith.constant 0 : i32
    %c0_i32_0 = arith.constant 0 : i32
    %c0_i32_1 = arith.constant 0 : i32
    return %arg0, %c0_i32, %c0_i32_0 : i32, i32, i32
  }
}

</mosaic_0001>

<llo_original>
// kernel: tpu_custom_call.1
$region0: #{tpu_custom_call.1}
  #allocation0 [shape = 'u32[]', space=smem, size = 0x4, offset = 0x4, fixed_abs, tag = 'smem constant byte address 0x4 - core index']
  #allocation1 [shape = 'u32[72,128]{1,0:T(1,128)}', space=vmem, size = 0x9000, scoped, tag = 'internal scratch']
  #allocation2 [shape = 'f32[8,16,128]{2,1,0:T(8,128)}', space=vmem, size = 0x10000, scoped, tag = 'scratch operand']
  %s0 = inlined_call_operand.hbm [shape: f32[16,16], index: 0, kind: input, shape index: {}]
  %s1 = inlined_call_operand.hbm [shape: f32[8,16,128], index: 1, kind: input, shape index: {}]
  %s2 = inlined_call_operand.hbm [shape: bf16[2,128,384], index: 2, kind: input, shape index: {}]
  %s3 = inlined_call_operand.hbm [shape: f32[2,1,384], index: 3, kind: input, shape index: {}]
  %s4 = inlined_call_operand.hbm [shape: bf16[2,128,128], index: 4, kind: input, shape index: {}]
  %s5 = inlined_call_operand.hbm [shape: f32[2,1,128], index: 5, kind: input, shape index: {}]
  %s6 = inlined_call_operand.hbm [shape: f32[2,1,128], index: 6, kind: input, shape index: {}]
  %s7 = inlined_call_operand.hbm [shape: f32[2,1,128], index: 7, kind: input, shape index: {}]
  %s8 = inlined_call_operand.hbm [shape: bf16[2,128,512], index: 8, kind: input, shape index: {}]
  %s9 = inlined_call_operand.vmem [shape: f32[2,1,512], index: 9, kind: input, shape index: {}]
  %s10 = inlined_call_operand.hbm [shape: bf16[2,512,128], index: 10, kind: input, shape index: {}]
  %s11 = inlined_call_operand.vmem [shape: f32[2,1,128], index: 11, kind: input, shape index: {}]
  %s12 = inlined_call_operand.hbm [shape: f32[2,1,128], index: 12, kind: input, shape index: {}]
  %s13 = inlined_call_operand.vmem [shape: f32[2,1,128], index: 13, kind: input, shape index: {}]
  %s14 = inlined_call_operand.vmem [shape: f32[1,128], index: 14, kind: input, shape index: {}]
  %s15 = inlined_call_operand.vmem [shape: f32[1,128], index: 15, kind: input, shape index: {}]
  %s16 = inlined_call_operand.hbm [shape: bf16[128,128], index: 16, kind: input, shape index: {}]
  %s17 = inlined_call_operand.vmem [shape: f32[1,128], index: 17, kind: input, shape index: {}]
  %s18 = inlined_call_operand.hbm [shape: f32[8,16,128], index: 18, kind: output, shape index: {}]
  %s19 = sld [smem:[#allocation0]]
  $region161: #{tpu_custom_call.1} parent=0
    _
  %s21 = ssub.s32 1, %s19
  %s22 = scalar_select 0, %s21, %s19
  $region1: #{tpu_custom_call.1} parent=0
    #allocation3 [shape = 'u8[8192]{0}', space=vmem, size = 0x2000, scoped, tag = 'input window, operand 0, single buffered']
    #allocation4 [shape = 's32[2]{0}', space=sflag, size = 0x8, scoped, tag = 'scoped memory for tpu_custom_call.1']
    #allocation5 [shape = 's32[2]{0}', space=sflag, size = 0x8, scoped, tag = 'scoped memory for tpu_custom_call.1']
    #allocation6 [shape = 'u8[65536]{0}', space=vmem, size = 0x10000, scoped, tag = 'input window, operand 1, single buffered']
    #allocation7 [shape = 's32[1]{0}', space=sflag, size = 0x4, scoped, tag = 'scoped memory for tpu_custom_call.1']
    #allocation8 [shape = 'u8[196608]{0}', space=vmem, size = 0x30000, scoped, tag = 'input window, operand 2']
    #allocation9 [shape = 'u8[3072]{0}', space=vmem, size = 0xc00, scoped, tag = 'input window, operand 3']
    #allocation10 [shape = 'u8[65536]{0}', space=vmem, size = 0x10000, scoped, tag = 'input window, operand 4']
    #allocation11 [shape = 'u8[1024]{0}', space=vmem, size = 0x400, scoped, tag = 'input window, operand 5']
    #allocation12 [shape = 'u8[1024]{0}', space=vmem, size = 0x400, scoped, tag = 'input window, operand 6']
    #allocation13 [shape = 'u8[1024]{0}', space=vmem, size = 0x400, scoped, tag = 'input window, operand 7']
    #allocation14 [shape = 'u8[262144]{0}', space=vmem, size = 0x40000, scoped, tag = 'input window, operand 8']
    #allocation15 [shape = 'u8[262144]{0}', space=vmem, size = 0x40000, scoped, tag = 'input window, operand 10']
    #allocation16 [shape = 'u8[1024]{0}', space=vmem, size = 0x400, scoped, tag = 'input window, operand 12']
    #allocation17 [shape = 'u8[32768]{0}', space=vmem, size = 0x8000, scoped, tag = 'input window, operand 16, single buffered']
    #allocation18 [shape = 'u8[65536]{0}', space=vmem, size = 0x10000, scoped, tag = 'output window, operand 0, single buffered']
    %23 = vsyncpa [#allocation4], 0
    %24 = vsyncpa [#allocation7], 0
    %25 = vsyncpa [#allocation5], 0
    loop: start=0, step=1, limit=4
    $region2: #{tpu_custom_call.1} parent=1 // loop_pre_header
      _
    $region3: #{tpu_custom_call.1} parent=1 // loop_header
      %s27 = sphi 0, %s31
      %p28 = scmp.ge.s32.totalorder %s27, 4
      %s34 = sphi 0, %s46
      %s35 = sphi 0, %s42
      %s36 = sphi 0, %s34
      %s37 = sphi 0, %s35
      %s38 = sphi 0, %s36
      %s39 = sphi 0, %s37
      %s47 = sphi 0, %s47
      %s49 = sphi 0, %s47
      %s50 = sphi 0, %s49
      %s64 = sphi 0, %s50
      %s70 = sphi 0, %s72
      %s73 = sphi 0, %s70
      %s74 = sphi 0, %s73
      %s90 = sphi 0, %s74
      %s96 = sphi 0, %s98
      %s99 = sphi 0, %s96
      %s100 = sphi 0, %s99
      %s116 = sphi 0, %s100
      %s122 = sphi 0, %s124
      %s125 = sphi 0, %s122
      %s126 = sphi 0, %s125
      %s142 = sphi 0, %s126
      %s148 = sphi 0, %s150
      %s151 = sphi 0, %s148
      %s152 = sphi 0, %s151
      %s168 = sphi 0, %s152
      %s174 = sphi 0, %s176
      %s177 = sphi 0, %s174
      %s178 = sphi 0, %s177
      %s194 = sphi 0, %s178
      %s200 = sphi 0, %s202
      %s203 = sphi 0, %s200
      %s204 = sphi 0, %s203
      %s220 = sphi 0, %s204
      %s226 = sphi 0, %s228
      %s229 = sphi 0, %s226
      %s230 = sphi 0, %s229
      %s246 = sphi 0, %s230
      %s252 = sphi 0, %s254
      %s255 = sphi 0, %s252
      %s256 = sphi 0, %s255
      %s272 = sphi 0, %s256
      %s278 = sphi 0, %s280
      %s281 = sphi 0, %s278
      %s282 = sphi 0, %s281
      %s298 = sphi 0, %s282
      %s304 = sphi 0, %s306
      %s307 = sphi 0, %s304
      %s308 = sphi 0, %s307
      %s324 = sphi 0, %s308
      %s330 = sphi 0, %s332
      %s333 = sphi 0, %s330
      %s334 = sphi 0, %s333
      %s350 = sphi 0, %s334
      %s356 = sphi 0, %s358
      %s359 = sphi 0, %s356
      %s360 = sphi 0, %s359
      %s376 = sphi 0, %s360
      %s382 = sphi 0, %s384
      %s385 = sphi 0, %s382
      %s386 = sphi 0, %s385
      %s402 = sphi 0, %s386
      %s406 = sphi 0, %s406
      %s408 = sphi 0, %s406
      %s409 = sphi 0, %s408
      %s423 = sphi 0, %s409
      %s427 = sphi 0, %s427
      %s429 = sphi 0, %s427
      %s430 = sphi 0, %s429
      %s444 = sphi 0, %s430
      %s448 = sphi 0, %s448
      %s450 = sphi 0, %s448
      %s451 = sphi 0, %s450
      %s465 = sphi 0, %s451
      %s469 = sphi 0, %s469
      %s471 = sphi 0, %s469
      %s472 = sphi 0, %s471
      %s486 = sphi 0, %s472
      %s492 = sphi 0, %s494
      %s495 = sphi 0, %s492
      %s496 = sphi 0, %s495
      %s512 = sphi 0, %s496
    $region4: #{tpu_custom_call.1} parent=1 // loop_header_branch
      %30 = sbr.rel (%p28) target = $region8
    $region5: #{tpu_custom_call.1} parent=1 // loop_body
      %s32 = ssub.s32 %s27, 1
      %s33 = ssub.s32 %s27, 2
      %s40 = sadd.s32 1, %s35
      %p41 = scmp.ge.s32.totalorder %s40, 2
      %s42 = scalar_select %p41, 0, %s40
      %s43 = sadd.s32 1, %s34
      %s44 = scalar_select %p41, %s43, %s34
      %p45 = scmp.ge.s32.totalorder %s44, 1
      %s46 = scalar_select %p45, 0, %s44
      %s48 = sadd.s32 %s47, 1
      %p51 = scmp.eq.s32.totalorder %s27, 1
      %p52 = scmp.ne.s32.totalorder %s47, %s49
      %p53 = scmp.eq.s32.totalorder %s27, 0
      %p54 = por %p52, %p53
      %p55 = scmp.ne.s32.totalorder %s47, %s49
      %p56 = scmp.eq.s32.totalorder %s32, 1
      %p57 = por %p55, %p56
      %p58 = scmp.ne.s32.totalorder %s49, %s50
      %p59 = scmp.eq.s32.totalorder %s32, 0
      %p60 = por %p58, %p59
      %p61 = scmp.ne.s32.totalorder %s49, %s50
      %p62 = scmp.eq.s32.totalorder %s33, 1
      %p63 = por %p61, %p62
      %p65 = scmp.ne.s32.totalorder %s50, %s64
      %p66 = scmp.eq.s32.totalorder %s33, 0
      %p67 = por %p65, %p66
      %s68 = ssub.s32 %s34, %s46
      %p69 = scmp.eq.s32.totalorder %s68, 0
      %s71 = sadd.s32 %s70, 1
      %s72 = scalar_select %p69, %s70, %s71
      %p75 = pneg %p69
      %p76 = scmp.eq.s32.totalorder %s27, 1
      %p77 = por %p75, %p76
      %p78 = scmp.ne.s32.totalorder %s70, %s73
      %p79 = scmp.eq.s32.totalorder %s27, 0
      %p80 = por %p78, %p79
      %p81 = scmp.ne.s32.totalorder %s70, %s73
      %p82 = scmp.eq.s32.totalorder %s32, 1
      %p83 = por %p81, %p82
      %p84 = scmp.ne.s32.totalorder %s73, %s74
      %p85 = scmp.eq.s32.totalorder %s32, 0
      %p86 = por %p84, %p85
      %p87 = scmp.ne.s32.totalorder %s73, %s74
      %p88 = scmp.eq.s32.totalorder %s33, 1
      %p89 = por %p87, %p88
      %p91 = scmp.ne.s32.totalorder %s74, %s90
      %p92 = scmp.eq.s32.totalorder %s33, 0
      %p93 = por %p91, %p92
      %s94 = ssub.s32 %s35, %s42
      %p95 = scmp.eq.s32.totalorder %s94, 0
      %s97 = sadd.s32 %s96, 1
      %s98 = scalar_select %p95, %s96, %s97
      %p101 = pneg %p95
      %p102 = scmp.eq.s32.totalorder %s27, 1
      %p103 = por %p101, %p102
      %p104 = scmp.ne.s32.totalorder %s96, %s99
      %p105 = scmp.eq.s32.totalorder %s27, 0
      %p106 = por %p104, %p105
      %p107 = scmp.ne.s32.totalorder %s96, %s99
      %p108 = scmp.eq.s32.totalorder %s32, 1
      %p109 = por %p107, %p108
      %p110 = scmp.ne.s32.totalorder %s99, %s100
      %p111 = scmp.eq.s32.totalorder %s32, 0
      %p112 = por %p110, %p111
      %p113 = scmp.ne.s32.totalorder %s99, %s100
      %p114 = scmp.eq.s32.totalorder %s33, 1
      %p115 = por %p113, %p114
      %p117 = scmp.ne.s32.totalorder %s100, %s116
      %p118 = scmp.eq.s32.totalorder %s33, 0
      %p119 = por %p117, %p118
      %s120 = ssub.s32 %s35, %s42
      %p121 = scmp.eq.s32.totalorder %s120, 0
      %s123 = sadd.s32 %s122, 1
      %s124 = scalar_select %p121, %s122, %s123
      %p127 = pneg %p121
      %p128 = scmp.eq.s32.totalorder %s27, 1
      %p129 = por %p127, %p128
      %p130 = scmp.ne.s32.totalorder %s122, %s125
      %p131 = scmp.eq.s32.totalorder %s27, 0
      %p132 = por %p130, %p131
      %p133 = scmp.ne.s32.totalorder %s122, %s125
      %p134 = scmp.eq.s32.totalorder %s32, 1
      %p135 = por %p133, %p134
      %p136 = scmp.ne.s32.totalorder %s125, %s126
      %p137 = scmp.eq.s32.totalorder %s32, 0
      %p138 = por %p136, %p137
      %p139 = scmp.ne.s32.totalorder %s125, %s126
      %p140 = scmp.eq.s32.totalorder %s33, 1
      %p141 = por %p139, %p140
      %p143 = scmp.ne.s32.totalorder %s126, %s142
      %p144 = scmp.eq.s32.totalorder %s33, 0
      %p145 = por %p143, %p144
      %s146 = ssub.s32 %s35, %s42
      %p147 = scmp.eq.s32.totalorder %s146, 0
      %s149 = sadd.s32 %s148, 1
      %s150 = scalar_select %p147, %s148, %s149
      %p153 = pneg %p147
      %p154 = scmp.eq.s32.totalorder %s27, 1
      %p155 = por %p153, %p154
      %p156 = scmp.ne.s32.totalorder %s148, %s151
      %p157 = scmp.eq.s32.totalorder %s27, 0
      %p158 = por %p156, %p157
      %p159 = scmp.ne.s32.totalorder %s148, %s151
      %p160 = scmp.eq.s32.totalorder %s32, 1
      %p161 = por %p159, %p160
      %p162 = scmp.ne.s32.totalorder %s151, %s152
      %p163 = scmp.eq.s32.totalorder %s32, 0
      %p164 = por %p162, %p163
      %p165 = scmp.ne.s32.totalorder %s151, %s152
      %p166 = scmp.eq.s32.totalorder %s33, 1
      %p167 = por %p165, %p166
      %p169 = scmp.ne.s32.totalorder %s152, %s168
      %p170 = scmp.eq.s32.totalorder %s33, 0
      %p171 = por %p169, %p170
      %s172 = ssub.s32 %s35, %s42
      %p173 = scmp.eq.s32.totalorder %s172, 0
      %s175 = sadd.s32 %s174, 1
      %s176 = scalar_select %p173, %s174, %s175
      %p179 = pneg %p173
      %p180 = scmp.eq.s32.totalorder %s27, 1
      %p181 = por %p179, %p180
      %p182 = scmp.ne.s32.totalorder %s174, %s177
      %p183 = scmp.eq.s32.totalorder %s27, 0
      %p184 = por %p182, %p183
      %p185 = scmp.ne.s32.totalorder %s174, %s177
      %p186 = scmp.eq.s32.totalorder %s32, 1
      %p187 = por %p185, %p186
      %p188 = scmp.ne.s32.totalorder %s177, %s178
      %p189 = scmp.eq.s32.totalorder %s32, 0
      %p190 = por %p188, %p189
      %p191 = scmp.ne.s32.totalorder %s177, %s178
      %p192 = scmp.eq.s32.totalorder %s33, 1
      %p193 = por %p191, %p192
      %p195 = scmp.ne.s32.totalorder %s178, %s194
      %p196 = scmp.eq.s32.totalorder %s33, 0
      %p197 = por %p195, %p196
      %s198 = ssub.s32 %s35, %s42
      %p199 = scmp.eq.s32.totalorder %s198, 0
      %s201 = sadd.s32 %s200, 1
      %s202 = scalar_select %p199, %s200, %s201
      %p205 = pneg %p199
      %p206 = scmp.eq.s32.totalorder %s27, 1
      %p207 = por %p205, %p206
      %p208 = scmp.ne.s32.totalorder %s200, %s203
      %p209 = scmp.eq.s32.totalorder %s27, 0
      %p210 = por %p208, %p209
      %p211 = scmp.ne.s32.totalorder %s200, %s203
      %p212 = scmp.eq.s32.totalorder %s32, 1
      %p213 = por %p211, %p212
      %p214 = scmp.ne.s32.totalorder %s203, %s204
      %p215 = scmp.eq.s32.totalorder %s32, 0
      %p216 = por %p214, %p215
      %p217 = scmp.ne.s32.totalorder %s203, %s204
      %p218 = scmp.eq.s32.totalorder %s33, 1
      %p219 = por %p217, %p218
      %p221 = scmp.ne.s32.totalorder %s204, %s220
      %p222 = scmp.eq.s32.totalorder %s33, 0
      %p223 = por %p221, %p222
      %s224 = ssub.s32 %s35, %s42
      %p225 = scmp.eq.s32.totalorder %s224, 0
      %s227 = sadd.s32 %s226, 1
      %s228 = scalar_select %p225, %s226, %s227
      %p231 = pneg %p225
      %p232 = scmp.eq.s32.totalorder %s27, 1
      %p233 = por %p231, %p232
      %p234 = scmp.ne.s32.totalorder %s226, %s229
      %p235 = scmp.eq.s32.totalorder %s27, 0
      %p236 = por %p234, %p235
      %p237 = scmp.ne.s32.totalorder %s226, %s229
      %p238 = scmp.eq.s32.totalorder %s32, 1
      %p239 = por %p237, %p238
      %p240 = scmp.ne.s32.totalorder %s229, %s230
      %p241 = scmp.eq.s32.totalorder %s32, 0
      %p242 = por %p240, %p241
      %p243 = scmp.ne.s32.totalorder %s229, %s230
      %p244 = scmp.eq.s32.totalorder %s33, 1
      %p245 = por %p243, %p244
      %p247 = scmp.ne.s32.totalorder %s230, %s246
      %p248 = scmp.eq.s32.totalorder %s33, 0
      %p249 = por %p247, %p248
      %s250 = ssub.s32 %s35, %s42
      %p251 = scmp.eq.s32.totalorder %s250, 0
      %s253 = sadd.s32 %s252, 1
      %s254 = scalar_select %p251, %s252, %s253
      %p257 = pneg %p251
      %p258 = scmp.eq.s32.totalorder %s27, 1
      %p259 = por %p257, %p258
      %p260 = scmp.ne.s32.totalorder %s252, %s255
      %p261 = scmp.eq.s32.totalorder %s27, 0
      %p262 = por %p260, %p261
      %p263 = scmp.ne.s32.totalorder %s252, %s255
      %p264 = scmp.eq.s32.totalorder %s32, 1
      %p265 = por %p263, %p264
      %p266 = scmp.ne.s32.totalorder %s255, %s256
      %p267 = scmp.eq.s32.totalorder %s32, 0
      %p268 = por %p266, %p267
      %p269 = scmp.ne.s32.totalorder %s255, %s256
      %p270 = scmp.eq.s32.totalorder %s33, 1
      %p271 = por %p269, %p270
      %p273 = scmp.ne.s32.totalorder %s256, %s272
      %p274 = scmp.eq.s32.totalorder %s33, 0
      %p275 = por %p273, %p274
      %s276 = ssub.s32 %s35, %s42
      %p277 = scmp.eq.s32.totalorder %s276, 0
      %s279 = sadd.s32 %s278, 1
      %s280 = scalar_select %p277, %s278, %s279
      %p283 = pneg %p277
      %p284 = scmp.eq.s32.totalorder %s27, 1
      %p285 = por %p283, %p284
      %p286 = scmp.ne.s32.totalorder %s278, %s281
      %p287 = scmp.eq.s32.totalorder %s27, 0
      %p288 = por %p286, %p287
      %p289 = scmp.ne.s32.totalorder %s278, %s281
      %p290 = scmp.eq.s32.totalorder %s32, 1
      %p291 = por %p289, %p290
      %p292 = scmp.ne.s32.totalorder %s281, %s282
      %p293 = scmp.eq.s32.totalorder %s32, 0
      %p294 = por %p292, %p293
      %p295 = scmp.ne.s32.totalorder %s281, %s282
      %p296 = scmp.eq.s32.totalorder %s33, 1
      %p297 = por %p295, %p296
      %p299 = scmp.ne.s32.totalorder %s282, %s298
      %p300 = scmp.eq.s32.totalorder %s33, 0
      %p301 = por %p299, %p300
      %s302 = ssub.s32 %s35, %s42
      %p303 = scmp.eq.s32.totalorder %s302, 0
      %s305 = sadd.s32 %s304, 1
      %s306 = scalar_select %p303, %s304, %s305
      %p309 = pneg %p303
      %p310 = scmp.eq.s32.totalorder %s27, 1
      %p311 = por %p309, %p310
      %p312 = scmp.ne.s32.totalorder %s304, %s307
      %p313 = scmp.eq.s32.totalorder %s27, 0
      %p314 = por %p312, %p313
      %p315 = scmp.ne.s32.totalorder %s304, %s307
      %p316 = scmp.eq.s32.totalorder %s32, 1
      %p317 = por %p315, %p316
      %p318 = scmp.ne.s32.totalorder %s307, %s308
      %p319 = scmp.eq.s32.totalorder %s32, 0
      %p320 = por %p318, %p319
      %p321 = scmp.ne.s32.totalorder %s307, %s308
      %p322 = scmp.eq.s32.totalorder %s33, 1
      %p323 = por %p321, %p322
      %p325 = scmp.ne.s32.totalorder %s308, %s324
      %p326 = scmp.eq.s32.totalorder %s33, 0
      %p327 = por %p325, %p326
      %s328 = ssub.s32 %s35, %s42
      %p329 = scmp.eq.s32.totalorder %s328, 0
      %s331 = sadd.s32 %s330, 1
      %s332 = scalar_select %p329, %s330, %s331
      %p335 = pneg %p329
      %p336 = scmp.eq.s32.totalorder %s27, 1
      %p337 = por %p335, %p336
      %p338 = scmp.ne.s32.totalorder %s330, %s333
      %p339 = scmp.eq.s32.totalorder %s27, 0
      %p340 = por %p338, %p339
      %p341 = scmp.ne.s32.totalorder %s330, %s333
      %p342 = scmp.eq.s32.totalorder %s32, 1
      %p343 = por %p341, %p342
      %p344 = scmp.ne.s32.totalorder %s333, %s334
      %p345 = scmp.eq.s32.totalorder %s32, 0
      %p346 = por %p344, %p345
      %p347 = scmp.ne.s32.totalorder %s333, %s334
      %p348 = scmp.eq.s32.totalorder %s33, 1
      %p349 = por %p347, %p348
      %p351 = scmp.ne.s32.totalorder %s334, %s350
      %p352 = scmp.eq.s32.totalorder %s33, 0
      %p353 = por %p351, %p352
      %s354 = ssub.s32 %s35, %s42
      %p355 = scmp.eq.s32.totalorder %s354, 0
      %s357 = sadd.s32 %s356, 1
      %s358 = scalar_select %p355, %s356, %s357
      %p361 = pneg %p355
      %p362 = scmp.eq.s32.totalorder %s27, 1
      %p363 = por %p361, %p362
      %p364 = scmp.ne.s32.totalorder %s356, %s359
      %p365 = scmp.eq.s32.totalorder %s27, 0
      %p366 = por %p364, %p365
      %p367 = scmp.ne.s32.totalorder %s356, %s359
      %p368 = scmp.eq.s32.totalorder %s32, 1
      %p369 = por %p367, %p368
      %p370 = scmp.ne.s32.totalorder %s359, %s360
      %p371 = scmp.eq.s32.totalorder %s32, 0
      %p372 = por %p370, %p371
      %p373 = scmp.ne.s32.totalorder %s359, %s360
      %p374 = scmp.eq.s32.totalorder %s33, 1
      %p375 = por %p373, %p374
      %p377 = scmp.ne.s32.totalorder %s360, %s376
      %p378 = scmp.eq.s32.totalorder %s33, 0
      %p379 = por %p377, %p378
      %s380 = ssub.s32 %s35, %s42
      %p381 = scmp.eq.s32.totalorder %s380, 0
      %s383 = sadd.s32 %s382, 1
      %s384 = scalar_select %p381, %s382, %s383
      %p387 = pneg %p381
      %p388 = scmp.eq.s32.totalorder %s27, 1
      %p389 = por %p387, %p388
      %p390 = scmp.ne.s32.totalorder %s382, %s385
      %p391 = scmp.eq.s32.totalorder %s27, 0
      %p392 = por %p390, %p391
      %p393 = scmp.ne.s32.totalorder %s382, %s385
      %p394 = scmp.eq.s32.totalorder %s32, 1
      %p395 = por %p393, %p394
      %p396 = scmp.ne.s32.totalorder %s385, %s386
      %p397 = scmp.eq.s32.totalorder %s32, 0
      %p398 = por %p396, %p397
      %p399 = scmp.ne.s32.totalorder %s385, %s386
      %p400 = scmp.eq.s32.totalorder %s33, 1
      %p401 = por %p399, %p400
      %p403 = scmp.ne.s32.totalorder %s386, %s402
      %p404 = scmp.eq.s32.totalorder %s33, 0
      %p405 = por %p403, %p404
      %s407 = sadd.s32 %s406, 1
      %p410 = scmp.eq.s32.totalorder %s27, 1
      %p411 = scmp.ne.s32.totalorder %s406, %s408
      %p412 = scmp.eq.s32.totalorder %s27, 0
      %p413 = por %p411, %p412
      %p414 = scmp.ne.s32.totalorder %s406, %s408
      %p415 = scmp.eq.s32.totalorder %s32, 1
      %p416 = por %p414, %p415
      %p417 = scmp.ne.s32.totalorder %s408, %s409
      %p418 = scmp.eq.s32.totalorder %s32, 0
      %p419 = por %p417, %p418
      %p420 = scmp.ne.s32.totalorder %s408, %s409
      %p421 = scmp.eq.s32.totalorder %s33, 1
      %p422 = por %p420, %p421
      %p424 = scmp.ne.s32.totalorder %s409, %s423
      %p425 = scmp.eq.s32.totalorder %s33, 0
      %p426 = por %p424, %p425
      %s428 = sadd.s32 %s427, 1
      %p431 = scmp.eq.s32.totalorder %s27, 1
      %p432 = scmp.ne.s32.totalorder %s427, %s429
      %p433 = scmp.eq.s32.totalorder %s27, 0
      %p434 = por %p432, %p433
      %p435 = scmp.ne.s32.totalorder %s427, %s429
      %p436 = scmp.eq.s32.totalorder %s32, 1
      %p437 = por %p435, %p436
      %p438 = scmp.ne.s32.totalorder %s429, %s430
      %p439 = scmp.eq.s32.totalorder %s32, 0
      %p440 = por %p438, %p439
      %p441 = scmp.ne.s32.totalorder %s429, %s430
      %p442 = scmp.eq.s32.totalorder %s33, 1
      %p443 = por %p441, %p442
      %p445 = scmp.ne.s32.totalorder %s430, %s444
      %p446 = scmp.eq.s32.totalorder %s33, 0
      %p447 = por %p445, %p446
      %s449 = sadd.s32 %s448, 1
      %p452 = scmp.eq.s32.totalorder %s27, 1
      %p453 = scmp.ne.s32.totalorder %s448, %s450
      %p454 = scmp.eq.s32.totalorder %s27, 0
      %p455 = por %p453, %p454
      %p456 = scmp.ne.s32.totalorder %s448, %s450
      %p457 = scmp.eq.s32.totalorder %s32, 1
      %p458 = por %p456, %p457
      %p459 = scmp.ne.s32.totalorder %s450, %s451
      %p460 = scmp.eq.s32.totalorder %s32, 0
      %p461 = por %p459, %p460
      %p462 = scmp.ne.s32.totalorder %s450, %s451
      %p463 = scmp.eq.s32.totalorder %s33, 1
      %p464 = por %p462, %p463
      %p466 = scmp.ne.s32.totalorder %s451, %s465
      %p467 = scmp.eq.s32.totalorder %s33, 0
      %p468 = por %p466, %p467
      %s470 = sadd.s32 %s469, 1
      %p473 = scmp.eq.s32.totalorder %s27, 1
      %p474 = scmp.ne.s32.totalorder %s469, %s471
      %p475 = scmp.eq.s32.totalorder %s27, 0
      %p476 = por %p474, %p475
      %p477 = scmp.ne.s32.totalorder %s469, %s471
      %p478 = scmp.eq.s32.totalorder %s32, 1
      %p479 = por %p477, %p478
      %p480 = scmp.ne.s32.totalorder %s471, %s472
      %p481 = scmp.eq.s32.totalorder %s32, 0
      %p482 = por %p480, %p481
      %p483 = scmp.ne.s32.totalorder %s471, %s472
      %p484 = scmp.eq.s32.totalorder %s33, 1
      %p485 = por %p483, %p484
      %p487 = scmp.ne.s32.totalorder %s472, %s486
      %p488 = scmp.eq.s32.totalorder %s33, 0
      %p489 = por %p487, %p488
      %s490 = ssub.s32 %s34, %s46
      %p491 = scmp.eq.s32.totalorder %s490, 0
      %s493 = sadd.s32 %s492, 1
      %s494 = scalar_select %p491, %s492, %s493
      %p497 = pneg %p491
      %p498 = scmp.eq.s32.totalorder %s27, 1
      %p499 = por %p497, %p498
      %p500 = scmp.ne.s32.totalorder %s492, %s495
      %p501 = scmp.eq.s32.totalorder %s27, 0
      %p502 = por %p500, %p501
      %p503 = scmp.ne.s32.totalorder %s492, %s495
      %p504 = scmp.eq.s32.totalorder %s32, 1
      %p505 = por %p503, %p504
      %p506 = scmp.ne.s32.totalorder %s495, %s496
      %p507 = scmp.eq.s32.totalorder %s32, 0
      %p508 = por %p506, %p507
      %p509 = scmp.ne.s32.totalorder %s495, %s496
      %p510 = scmp.eq.s32.totalorder %s33, 1
      %p511 = por %p509, %p510
      %p513 = scmp.ne.s32.totalorder %s496, %s512
      %p514 = scmp.eq.s32.totalorder %s33, 0
      %p515 = por %p513, %p514
      %p516 = scmp.le.s32.totalorder 1, %s27
      %p517 = scmp.lt.s32.totalorder %s27, 3
      %p518 = pnand %p516, %p517
      %p519 = pneg %p518
      // Predicated region
      $region9: #{tpu_custom_call.1} parent=5 // pred_check
        _
      $region10: #{tpu_custom_call.1} parent=5 // pred_check_branch
        %521 = sbr.rel (%p518) target = $region12
      $region11: #{tpu_custom_call.1} parent=5 // pred_region
        %s522 = ssub.s32 %s27, 1
        // Predicated region
        $region13: #{tpu_custom_call.1} parent=11 // pred_check
          %p523 = pneg %p60
        $region14: #{tpu_custom_call.1} parent=11 // pred_check_branch
          %525 = sbr.rel (%p523) target = $region16
        $region15: #{tpu_custom_call.1} parent=11 // pred_region
          %527 = vsyncadd [#allocation4], 0
          %s528 = sshll.u32 %s0, 4
          %s529 = int_to_ptr.hbm [resolvable:$true] %s528
          %s530 = sshll.u32 [#allocation3], 4
          %s531 = int_to_ptr.vmem [resolvable:$true] %s530
          %536 = dma.hbm_to_vmem [thread:$0]  %s529, 256, %s531, [#allocation4], 128, 128, 8
        $region16: #{tpu_custom_call.1} parent=11 // pred_fallthru
          _
        // Predicated region
        $region17: #{tpu_custom_call.1} parent=11 // pred_check
          %p537 = pneg %p86
        $region18: #{tpu_custom_call.1} parent=11 // pred_check_branch
          %539 = sbr.rel (%p537) target = $region20
        $region19: #{tpu_custom_call.1} parent=11 // pred_region
          %s540 = smul.u32 8, %s36
          %542 = vsyncadd [#allocation7], 0
          %s543 = smul.addr %s540, 2
          %s544 = smul.addr %s543, 8
          %s545 = scalar_lea.hbm %s1, %s544
          %s546 = sshll.u32 %s545, 4
          %s547 = int_to_ptr.hbm [resolvable:$true] %s546
          %s548 = sshll.u32 [#allocation6], 4
          %s549 = int_to_ptr.vmem [resolvable:$true] %s548
          %554 = dma.hbm_to_vmem [thread:$0]  %s547, 2048, %s549, [#allocation7], 128, 128, 8
        $region20: #{tpu_custom_call.1} parent=11 // pred_fallthru
          _
        // Predicated region
        $region21: #{tpu_custom_call.1} parent=11 // pred_check
          %p555 = pneg %p419
        $region22: #{tpu_custom_call.1} parent=11 // pred_check_branch
          %557 = sbr.rel (%p555) target = $region24
        $region23: #{tpu_custom_call.1} parent=11 // pred_region
          _
        $region24: #{tpu_custom_call.1} parent=11 // pred_fallthru
          _
        // Predicated region
        $region25: #{tpu_custom_call.1} parent=11 // pred_check
          %p558 = pneg %p440
        $region26: #{tpu_custom_call.1} parent=11 // pred_check_branch
          %560 = sbr.rel (%p558) target = $region28
        $region27: #{tpu_custom_call.1} parent=11 // pred_region
          _
        $region28: #{tpu_custom_call.1} parent=11 // pred_fallthru
          _
        // Predicated region
        $region29: #{tpu_custom_call.1} parent=11 // pred_check
          %p561 = pneg %p461
        $region30: #{tpu_custom_call.1} parent=11 // pred_check_branch
          %563 = sbr.rel (%p561) target = $region32
        $region31: #{tpu_custom_call.1} parent=11 // pred_region
          %565 = vsyncadd [#allocation7], 0
          %s566 = sshll.u32 %s16, 4
          %s567 = int_to_ptr.hbm [resolvable:$true] %s566
          %s568 = sshll.u32 [#allocation17], 4
          %s569 = int_to_ptr.vmem [resolvable:$true] %s568
          %574 = dma.hbm_to_vmem [thread:$0]  %s567, 1024, %s569, [#allocation7], 64, 64, 4
        $region32: #{tpu_custom_call.1} parent=11 // pred_fallthru
          _
        // Predicated region
        $region33: #{tpu_custom_call.1} parent=11 // pred_check
          %p575 = pneg %p482
        $region34: #{tpu_custom_call.1} parent=11 // pred_check_branch
          %577 = sbr.rel (%p575) target = $region36
        $region35: #{tpu_custom_call.1} parent=11 // pred_region
          _
        $region36: #{tpu_custom_call.1} parent=11 // pred_fallthru
          _
      $region12: #{tpu_custom_call.1} parent=5 // pred_fallthru
        _
      %p578 = scmp.lt.s32.totalorder %s27, 2
      // Predicated region
      $region37: #{tpu_custom_call.1} parent=5 // pred_check
        %p579 = pneg %p578
      $region38: #{tpu_custom_call.1} parent=5 // pred_check_branch
        %581 = sbr.rel (%p579) target = $region40
      $region39: #{tpu_custom_call.1} parent=5 // pred_region
        // Predicated region
        $region41: #{tpu_custom_call.1} parent=39 // pred_check
          %p582 = pneg %p106
        $region42: #{tpu_custom_call.1} parent=39 // pred_check_branch
          %584 = sbr.rel (%p582) target = $region44
        $region43: #{tpu_custom_call.1} parent=39 // pred_region
          %s585 = sand.u32 %s27, 1
          %s586 = scalar_lea.sflag [#allocation4], %s585
          %s587 = sand.u32 %s96, 1
          %s588 = smul.addr %s587, 192
          %s589 = scalar_lea.vmem [#allocation8], %s588
          %591 = vsyncadd %s586, 0
          %s592 = smul.addr %s35, 48
          %s593 = smul.addr %s592, 4
          %s594 = scalar_lea.hbm %s2, %s593
          %s595 = sshll.u32 %s594, 4
          %s596 = int_to_ptr.hbm [resolvable:$true] %s595
          %s597 = sshll.u32 %s589, 4
          %s598 = int_to_ptr.vmem [resolvable:$true] %s597
          %603 = dma.hbm_to_vmem [thread:$0]  %s596, 3072, %s598, %s586, 192, 192, 12
        $region44: #{tpu_custom_call.1} parent=39 // pred_fallthru
          _
        // Predicated region
        $region45: #{tpu_custom_call.1} parent=39 // pred_check
          %p604 = pneg %p132
        $region46: #{tpu_custom_call.1} parent=39 // pred_check_branch
          %606 = sbr.rel (%p604) target = $region48
        $region47: #{tpu_custom_call.1} parent=39 // pred_region
          %s607 = sand.u32 %s27, 1
          %s608 = scalar_lea.sflag [#allocation4], %s607
          %s609 = sand.u32 %s122, 1
          %s610 = smul.addr %s609, 3
          %s611 = scalar_lea.vmem [#allocation9], %s610
          %613 = vsyncadd %s608, 0
          %s614 = smul.addr %s35, 3
          %s615 = scalar_lea.hbm %s3, %s614
          %s617 = sshll.u32 %s615, 4
          %s618 = int_to_ptr.hbm [resolvable:$true] %s617
          %s619 = sshll.u32 %s611, 4
          %s620 = int_to_ptr.vmem [resolvable:$true] %s619
          %622 = dma.hbm_to_vmem [thread:$0]  %s618, 48, %s620, %s608
        $region48: #{tpu_custom_call.1} parent=39 // pred_fallthru
          _
        // Predicated region
        $region49: #{tpu_custom_call.1} parent=39 // pred_check
          %p623 = pneg %p158
        $region50: #{tpu_custom_call.1} parent=39 // pred_check_branch
          %625 = sbr.rel (%p623) target = $region52
        $region51: #{tpu_custom_call.1} parent=39 // pred_region
          %s626 = sand.u32 %s27, 1
          %s627 = scalar_lea.sflag [#allocation4], %s626
          %s628 = sand.u32 %s148, 1
          %s629 = smul.addr %s628, 64
          %s630 = scalar_lea.vmem [#allocation10], %s629
          %632 = vsyncadd %s627, 0
          %s633 = smul.addr %s35, 16
          %s634 = smul.addr %s633, 4
          %s635 = scalar_lea.hbm %s4, %s634
          %s636 = sshll.u32 %s635, 4
          %s637 = int_to_ptr.hbm [resolvable:$true] %s636
          %s638 = sshll.u32 %s630, 4
          %s639 = int_to_ptr.vmem [resolvable:$true] %s638
          %644 = dma.hbm_to_vmem [thread:$0]  %s637, 1024, %s639, %s627, 64, 64, 4
        $region52: #{tpu_custom_call.1} parent=39 // pred_fallthru
          _
        // Predicated region
        $region53: #{tpu_custom_call.1} parent=39 // pred_check
          %p645 = pneg %p184
        $region54: #{tpu_custom_call.1} parent=39 // pred_check_branch
          %647 = sbr.rel (%p645) target = $region56
        $region55: #{tpu_custom_call.1} parent=39 // pred_region
          %s648 = sand.u32 %s27, 1
          %s649 = scalar_lea.sflag [#allocation4], %s648
          %s650 = sand.u32 %s174, 1
          %s651 = scalar_lea.vmem [#allocation11], %s650
          %653 = vsyncadd %s649, 0
          %s654 = scalar_lea.hbm %s5, %s35
          %s656 = sshll.u32 %s654, 4
          %s657 = int_to_ptr.hbm [resolvable:$true] %s656
          %s658 = sshll.u32 %s651, 4
          %s659 = int_to_ptr.vmem [resolvable:$true] %s658
          %661 = dma.hbm_to_vmem [thread:$0]  %s657, 16, %s659, %s649
        $region56: #{tpu_custom_call.1} parent=39 // pred_fallthru
          _
        // Predicated region
        $region57: #{tpu_custom_call.1} parent=39 // pred_check
          %p662 = pneg %p210
        $region58: #{tpu_custom_call.1} parent=39 // pred_check_branch
          %664 = sbr.rel (%p662) target = $region60
        $region59: #{tpu_custom_call.1} parent=39 // pred_region
          %s665 = sand.u32 %s27, 1
          %s666 = scalar_lea.sflag [#allocation4], %s665
          %s667 = sand.u32 %s200, 1
          %s668 = scalar_lea.vmem [#allocation12], %s667
          %670 = vsyncadd %s666, 0
          %s671 = scalar_lea.hbm %s6, %s35
          %s673 = sshll.u32 %s671, 4
          %s674 = int_to_ptr.hbm [resolvable:$true] %s673
          %s675 = sshll.u32 %s668, 4
          %s676 = int_to_ptr.vmem [resolvable:$true] %s675
          %678 = dma.hbm_to_vmem [thread:$0]  %s674, 16, %s676, %s666
        $region60: #{tpu_custom_call.1} parent=39 // pred_fallthru
          _
        // Predicated region
        $region61: #{tpu_custom_call.1} parent=39 // pred_check
          %p679 = pneg %p236
        $region62: #{tpu_custom_call.1} parent=39 // pred_check_branch
          %681 = sbr.rel (%p679) target = $region64
        $region63: #{tpu_custom_call.1} parent=39 // pred_region
          %s682 = sand.u32 %s27, 1
          %s683 = scalar_lea.sflag [#allocation4], %s682
          %s684 = sand.u32 %s226, 1
          %s685 = scalar_lea.vmem [#allocation13], %s684
          %687 = vsyncadd %s683, 0
          %s688 = scalar_lea.hbm %s7, %s35
          %s690 = sshll.u32 %s688, 4
          %s691 = int_to_ptr.hbm [resolvable:$true] %s690
          %s692 = sshll.u32 %s685, 4
          %s693 = int_to_ptr.vmem [resolvable:$true] %s692
          %695 = dma.hbm_to_vmem [thread:$0]  %s691, 16, %s693, %s683
        $region64: #{tpu_custom_call.1} parent=39 // pred_fallthru
          _
        // Predicated region
        $region65: #{tpu_custom_call.1} parent=39 // pred_check
          %p696 = pneg %p262
        $region66: #{tpu_custom_call.1} parent=39 // pred_check_branch
          %698 = sbr.rel (%p696) target = $region68
        $region67: #{tpu_custom_call.1} parent=39 // pred_region
          %s699 = sand.u32 %s27, 1
          %s700 = scalar_lea.sflag [#allocation4], %s699
          %s701 = sand.u32 %s252, 1
          %s702 = smul.addr %s701, 256
          %s703 = scalar_lea.vmem [#allocation14], %s702
          %705 = vsyncadd %s700, 0
          %s706 = smul.addr %s35, 64
          %s707 = smul.addr %s706, 4
          %s708 = scalar_lea.hbm %s8, %s707
          %s709 = sshll.u32 %s708, 4
          %s710 = int_to_ptr.hbm [resolvable:$true] %s709
          %s711 = sshll.u32 %s703, 4
          %s712 = int_to_ptr.vmem [resolvable:$true] %s711
          %717 = dma.hbm_to_vmem [thread:$0]  %s710, 4096, %s712, %s700, 256, 256, 16
        $region68: #{tpu_custom_call.1} parent=39 // pred_fallthru
          _
        // Predicated region
        $region69: #{tpu_custom_call.1} parent=39 // pred_check
          %p718 = pneg %p288
        $region70: #{tpu_custom_call.1} parent=39 // pred_check_branch
          %720 = sbr.rel (%p718) target = $region72
        $region71: #{tpu_custom_call.1} parent=39 // pred_region
          %p721 = scmp.lt.s32.totalorder %s35, 1
          %s722 = scalar_select %p721, %s35, 1
          %s723 = smul.addr %s722, 4
          %s724 = scalar_lea.vmem %s9, %s723
        $region72: #{tpu_custom_call.1} parent=39 // pred_fallthru
          _
        // Predicated region
        $region73: #{tpu_custom_call.1} parent=39 // pred_check
          %p725 = pneg %p314
        $region74: #{tpu_custom_call.1} parent=39 // pred_check_branch
          %727 = sbr.rel (%p725) target = $region76
        $region75: #{tpu_custom_call.1} parent=39 // pred_region
          %s728 = sand.u32 %s27, 1
          %s729 = scalar_lea.sflag [#allocation4], %s728
          %s730 = sand.u32 %s304, 1
          %s731 = smul.addr %s730, 256
          %s732 = scalar_lea.vmem [#allocation15], %s731
          %734 = vsyncadd %s729, 0
          %s735 = smul.addr %s35, 64
          %s736 = smul.addr %s735, 4
          %s737 = scalar_lea.hbm %s10, %s736
          %s738 = sshll.u32 %s737, 4
          %s739 = int_to_ptr.hbm [resolvable:$true] %s738
          %s740 = sshll.u32 %s732, 4
          %s741 = int_to_ptr.vmem [resolvable:$true] %s740
          %746 = dma.hbm_to_vmem [thread:$0]  %s739, 4096, %s741, %s729, 64, 64, 4
        $region76: #{tpu_custom_call.1} parent=39 // pred_fallthru
          _
        // Predicated region
        $region77: #{tpu_custom_call.1} parent=39 // pred_check
          %p747 = pneg %p340
        $region78: #{tpu_custom_call.1} parent=39 // pred_check_branch
          %749 = sbr.rel (%p747) target = $region80
        $region79: #{tpu_custom_call.1} parent=39 // pred_region
          %p750 = scmp.lt.s32.totalorder %s35, 1
          %s751 = scalar_select %p750, %s35, 1
          %s752 = scalar_lea.vmem %s11, %s751
        $region80: #{tpu_custom_call.1} parent=39 // pred_fallthru
          _
        // Predicated region
        $region81: #{tpu_custom_call.1} parent=39 // pred_check
          %p753 = pneg %p366
        $region82: #{tpu_custom_call.1} parent=39 // pred_check_branch
          %755 = sbr.rel (%p753) target = $region84
        $region83: #{tpu_custom_call.1} parent=39 // pred_region
          %s756 = sand.u32 %s27, 1
          %s757 = scalar_lea.sflag [#allocation4], %s756
          %s758 = sand.u32 %s356, 1
          %s759 = scalar_lea.vmem [#allocation16], %s758
          %761 = vsyncadd %s757, 0
          %s762 = scalar_lea.hbm %s12, %s35
          %s764 = sshll.u32 %s762, 4
          %s765 = int_to_ptr.hbm [resolvable:$true] %s764
          %s766 = sshll.u32 %s759, 4
          %s767 = int_to_ptr.vmem [resolvable:$true] %s766
          %769 = dma.hbm_to_vmem [thread:$0]  %s765, 16, %s767, %s757
        $region84: #{tpu_custom_call.1} parent=39 // pred_fallthru
          _
        // Predicated region
        $region85: #{tpu_custom_call.1} parent=39 // pred_check
          %p770 = pneg %p392
        $region86: #{tpu_custom_call.1} parent=39 // pred_check_branch
          %772 = sbr.rel (%p770) target = $region88
        $region87: #{tpu_custom_call.1} parent=39 // pred_region
          %p773 = scmp.lt.s32.totalorder %s35, 1
          %s774 = scalar_select %p773, %s35, 1
          %s775 = scalar_lea.vmem %s13, %s774
        $region88: #{tpu_custom_call.1} parent=39 // pred_fallthru
          _
      $region40: #{tpu_custom_call.1} parent=5 // pred_fallthru
        _
      %p776 = scmp.le.s32.totalorder 1, %s27
      %p777 = scmp.lt.s32.totalorder %s27, 3
      %p778 = pnand %p776, %p777
      %p779 = pneg %p778
      // Predicated region
      $region89: #{tpu_custom_call.1} parent=5 // pred_check
        _
      $region90: #{tpu_custom_call.1} parent=5 // pred_check_branch
        %781 = sbr.rel (%p778) target = $region92
      $region91: #{tpu_custom_call.1} parent=5 // pred_region
        %s782 = ssub.s32 %s27, 1
        // Predicated region
        $region93: #{tpu_custom_call.1} parent=91 // pred_check
          %p783 = pneg %p60
        $region94: #{tpu_custom_call.1} parent=91 // pred_check_branch
          %785 = sbr.rel (%p783) target = $region96
        $region95: #{tpu_custom_call.1} parent=91 // pred_region
          %787 = dma.done [#allocation4], 256
        $region96: #{tpu_custom_call.1} parent=91 // pred_fallthru
          _
        // Predicated region
        $region97: #{tpu_custom_call.1} parent=91 // pred_check
          %p788 = pneg %p86
        $region98: #{tpu_custom_call.1} parent=91 // pred_check_branch
          %790 = sbr.rel (%p788) target = $region100
        $region99: #{tpu_custom_call.1} parent=91 // pred_region
          %792 = dma.done [#allocation7], 2048
        $region100: #{tpu_custom_call.1} parent=91 // pred_fallthru
          _
        %s793 = sand.u32 %s32, 1
        %s794 = scalar_lea.sflag [#allocation4], %s793
        %s795 = sand.u32 %s99, 1
        %s796 = smul.addr %s795, 192
        %s797 = scalar_lea.vmem [#allocation8], %s796
        // Predicated region
        $region101: #{tpu_custom_call.1} parent=91 // pred_check
          %p798 = pneg %p112
        $region102: #{tpu_custom_call.1} parent=91 // pred_check_branch
          %800 = sbr.rel (%p798) target = $region104
        $region103: #{tpu_custom_call.1} parent=91 // pred_region
          %802 = dma.done %s794, 3072
        $region104: #{tpu_custom_call.1} parent=91 // pred_fallthru
          _
        %s803 = sand.u32 %s32, 1
        %s804 = scalar_lea.sflag [#allocation4], %s803
        %s805 = sand.u32 %s125, 1
        %s806 = smul.addr %s805, 3
        %s807 = scalar_lea.vmem [#allocation9], %s806
        // Predicated region
        $region105: #{tpu_custom_call.1} parent=91 // pred_check
          %p808 = pneg %p138
        $region106: #{tpu_custom_call.1} parent=91 // pred_check_branch
          %810 = sbr.rel (%p808) target = $region108
        $region107: #{tpu_custom_call.1} parent=91 // pred_region
          %812 = dma.done %s804, 48
        $region108: #{tpu_custom_call.1} parent=91 // pred_fallthru
          _
        %s813 = sand.u32 %s32, 1
        %s814 = scalar_lea.sflag [#allocation4], %s813
        %s815 = sand.u32 %s151, 1
        %s816 = smul.addr %s815, 64
        %s817 = scalar_lea.vmem [#allocation10], %s816
        // Predicated region
        $region109: #{tpu_custom_call.1} parent=91 // pred_check
          %p818 = pneg %p164
        $region110: #{tpu_custom_call.1} parent=91 // pred_check_branch
          %820 = sbr.rel (%p818) target = $region112
        $region111: #{tpu_custom_call.1} parent=91 // pred_region
          %822 = dma.done %s814, 1024
        $region112: #{tpu_custom_call.1} parent=91 // pred_fallthru
          _
        %s823 = sand.u32 %s32, 1
        %s824 = scalar_lea.sflag [#allocation4], %s823
        %s825 = sand.u32 %s177, 1
        %s826 = scalar_lea.vmem [#allocation11], %s825
        // Predicated region
        $region113: #{tpu_custom_call.1} parent=91 // pred_check
          %p827 = pneg %p190
        $region114: #{tpu_custom_call.1} parent=91 // pred_check_branch
          %829 = sbr.rel (%p827) target = $region116
        $region115: #{tpu_custom_call.1} parent=91 // pred_region
          %831 = dma.done %s824, 16
        $region116: #{tpu_custom_call.1} parent=91 // pred_fallthru
          _
        %s832 = sand.u32 %s32, 1
        %s833 = scalar_lea.sflag [#allocation4], %s832
        %s834 = sand.u32 %s203, 1
        %s835 = scalar_lea.vmem [#allocation12], %s834
        // Predicated region
        $region117: #{tpu_custom_call.1} parent=91 // pred_check
          %p836 = pneg %p216
        $region118: #{tpu_custom_call.1} parent=91 // pred_check_branch
          %838 = sbr.rel (%p836) target = $region120
        $region119: #{tpu_custom_call.1} parent=91 // pred_region
          %840 = dma.done %s833, 16
        $region120: #{tpu_custom_call.1} parent=91 // pred_fallthru
          _
        %s841 = sand.u32 %s32, 1
        %s842 = scalar_lea.sflag [#allocation4], %s841
        %s843 = sand.u32 %s229, 1
        %s844 = scalar_lea.vmem [#allocation13], %s843
        // Predicated region
        $region121: #{tpu_custom_call.1} parent=91 // pred_check
          %p845 = pneg %p242
        $region122: #{tpu_custom_call.1} parent=91 // pred_check_branch
          %847 = sbr.rel (%p845) target = $region124
        $region123: #{tpu_custom_call.1} parent=91 // pred_region
          %849 = dma.done %s842, 16
        $region124: #{tpu_custom_call.1} parent=91 // pred_fallthru
          _
        %s850 = sand.u32 %s32, 1
        %s851 = scalar_lea.sflag [#allocation4], %s850
        %s852 = sand.u32 %s255, 1
        %s853 = smul.addr %s852, 256
        %s854 = scalar_lea.vmem [#allocation14], %s853
        // Predicated region
        $region125: #{tpu_custom_call.1} parent=91 // pred_check
          %p855 = pneg %p268
        $region126: #{tpu_custom_call.1} parent=91 // pred_check_branch
          %857 = sbr.rel (%p855) target = $region128
        $region127: #{tpu_custom_call.1} parent=91 // pred_region
          %859 = dma.done %s851, 4096
        $region128: #{tpu_custom_call.1} parent=91 // pred_fallthru
          _
        %s860 = sand.u32 %s32, 1
        %s861 = scalar_lea.sflag [#allocation4], %s860
        %s862 = sand.u32 %s307, 1
        %s863 = smul.addr %s862, 256
        %s864 = scalar_lea.vmem [#allocation15], %s863
        // Predicated region
        $region129: #{tpu_custom_call.1} parent=91 // pred_check
          %p865 = pneg %p320
        $region130: #{tpu_custom_call.1} parent=91 // pred_check_branch
          %867 = sbr.rel (%p865) target = $region132
        $region131: #{tpu_custom_call.1} parent=91 // pred_region
          %869 = dma.done %s861, 4096
        $region132: #{tpu_custom_call.1} parent=91 // pred_fallthru
          _
        %s870 = sand.u32 %s32, 1
        %s871 = scalar_lea.sflag [#allocation4], %s870
        %s872 = sand.u32 %s359, 1
        %s873 = scalar_lea.vmem [#allocation16], %s872
        // Predicated region
        $region133: #{tpu_custom_call.1} parent=91 // pred_check
          %p874 = pneg %p372
        $region134: #{tpu_custom_call.1} parent=91 // pred_check_branch
          %876 = sbr.rel (%p874) target = $region136
        $region135: #{tpu_custom_call.1} parent=91 // pred_region
          %878 = dma.done %s871, 16
        $region136: #{tpu_custom_call.1} parent=91 // pred_fallthru
          _
        // Predicated region
        $region137: #{tpu_custom_call.1} parent=91 // pred_check
          %p879 = pneg %p461
        $region138: #{tpu_custom_call.1} parent=91 // pred_check_branch
          %881 = sbr.rel (%p879) target = $region140
        $region139: #{tpu_custom_call.1} parent=91 // pred_region
          %883 = dma.done [#allocation7], 1024
        $region140: #{tpu_custom_call.1} parent=91 // pred_fallthru
          _
        %p884 = pneg %p60
        %p885 = pneg %p57
        %p886 = pneg %p86
        %p887 = pneg %p83
        %s888 = sand.u32 %s32, 1
        %s889 = scalar_lea.sflag [#allocation4], %s888
        %s890 = sand.u32 %s99, 1
        %s891 = smul.addr %s890, 192
        %s892 = scalar_lea.vmem [#allocation8], %s891
        %p893 = pneg %p112
        %p894 = pneg %p109
        %s895 = sand.u32 %s32, 1
        %s896 = scalar_lea.sflag [#allocation4], %s895
        %s897 = sand.u32 %s125, 1
        %s898 = smul.addr %s897, 3
        %s899 = scalar_lea.vmem [#allocation9], %s898
        %p900 = pneg %p138
        %p901 = pneg %p135
        %s902 = sand.u32 %s32, 1
        %s903 = scalar_lea.sflag [#allocation4], %s902
        %s904 = sand.u32 %s151, 1
        %s905 = smul.addr %s904, 64
        %s906 = scalar_lea.vmem [#allocation10], %s905
        %p907 = pneg %p164
        %p908 = pneg %p161
        %s909 = sand.u32 %s32, 1
        %s910 = scalar_lea.sflag [#allocation4], %s909
        %s911 = sand.u32 %s177, 1
        %s912 = scalar_lea.vmem [#allocation11], %s911
        %p913 = pneg %p190
        %p914 = pneg %p187
        %s915 = sand.u32 %s32, 1
        %s916 = scalar_lea.sflag [#allocation4], %s915
        %s917 = sand.u32 %s203, 1
        %s918 = scalar_lea.vmem [#allocation12], %s917
        %p919 = pneg %p216
        %p920 = pneg %p213
        %s921 = sand.u32 %s32, 1
        %s922 = scalar_lea.sflag [#allocation4], %s921
        %s923 = sand.u32 %s229, 1
        %s924 = scalar_lea.vmem [#allocation13], %s923
        %p925 = pneg %p242
        %p926 = pneg %p239
        %s927 = sand.u32 %s32, 1
        %s928 = scalar_lea.sflag [#allocation4], %s927
        %s929 = sand.u32 %s255, 1
        %s930 = smul.addr %s929, 256
        %s931 = scalar_lea.vmem [#allocation14], %s930
        %p932 = pneg %p268
        %p933 = pneg %p265
        %p934 = scmp.lt.s32.totalorder %s37, 1
        %s935 = scalar_select %p934, %s37, 1
        %s936 = smul.addr %s935, 4
        %s937 = scalar_lea.vmem %s9, %s936
        %p938 = pneg %p294
        %p939 = pneg %p291
        %s940 = sand.u32 %s32, 1
        %s941 = scalar_lea.sflag [#allocation4], %s940
        %s942 = sand.u32 %s307, 1
        %s943 = smul.addr %s942, 256
        %s944 = scalar_lea.vmem [#allocation15], %s943
        %p945 = pneg %p320
        %p946 = pneg %p317
        %p947 = scmp.lt.s32.totalorder %s37, 1
        %s948 = scalar_select %p947, %s37, 1
        %s949 = scalar_lea.vmem %s11, %s948
        %p950 = pneg %p346
        %p951 = pneg %p343
        %s952 = sand.u32 %s32, 1
        %s953 = scalar_lea.sflag [#allocation4], %s952
        %s954 = sand.u32 %s359, 1
        %s955 = scalar_lea.vmem [#allocation16], %s954
        %p956 = pneg %p372
        %p957 = pneg %p369
        %p958 = scmp.lt.s32.totalorder %s37, 1
        %s959 = scalar_select %p958, %s37, 1
        %s960 = scalar_lea.vmem %s13, %s959
        %p961 = pneg %p398
        %p962 = pneg %p395
        %p963 = pneg %p419
        %p964 = pneg %p416
        %p965 = pneg %p440
        %p966 = pneg %p437
        %p967 = pneg %p461
        %p968 = pneg %p458
        %p969 = pneg %p482
        %p970 = pneg %p479
        %p971 = pneg %p508
        %p972 = pneg %p505
        %s973 = smul.u32 8, %s36
        %p974 = scmp.lt.s32.totalorder %s37, 1
        %s975 = scalar_select %p974, %s37, 1
        %s976 = smul.addr %s975, 4
        %s977 = scalar_lea.vmem %s9, %s976
        %p978 = scmp.lt.s32.totalorder %s37, 1
        %s979 = scalar_select %p978, %s37, 1
        %s980 = scalar_lea.vmem %s11, %s979
        %p981 = scmp.lt.s32.totalorder %s37, 1
        %s982 = scalar_select %p981, %s37, 1
        %s983 = scalar_lea.vmem %s13, %s982
        %s984 = smul.u32 8, %s36
        %p986 = scmp.eq.s32.totalorder %s37, 0
        // Predicated region
        $region141: #{tpu_custom_call.1} parent=91 // pred_check
          %p987 = pneg %p986
        $region142: #{tpu_custom_call.1} parent=91 // pred_check_branch
          %989 = sbr.rel (%p987) target = $region144
        $region143: #{tpu_custom_call.1} parent=91 // pred_region
          %v990 = vld [vmem:[#allocation6] sm:$0xff]
          %v991 = vld [vmem:[#allocation6 + $0x8] sm:$0xff]
          %v992 = vld [vmem:[#allocation6 + $0x10] sm:$0xff]
          %v993 = vld [vmem:[#allocation6 + $0x18] sm:$0xff]
          %v994 = vld [vmem:[#allocation6 + $0x20] sm:$0xff]
          %v995 = vld [vmem:[#allocation6 + $0x28] sm:$0xff]
          %v996 = vld [vmem:[#allocation6 + $0x30] sm:$0xff]
          %v997 = vld [vmem:[#allocation6 + $0x38] sm:$0xff]
          %v998 = vld [vmem:[#allocation6 + $0x40] sm:$0xff]
          %v999 = vld [vmem:[#allocation6 + $0x48] sm:$0xff]
          %v1000 = vld [vmem:[#allocation6 + $0x50] sm:$0xff]
          %v1001 = vld [vmem:[#allocation6 + $0x58] sm:$0xff]
          %v1002 = vld [vmem:[#allocation6 + $0x60] sm:$0xff]
          %v1003 = vld [vmem:[#allocation6 + $0x68] sm:$0xff]
          %v1004 = vld [vmem:[#allocation6 + $0x70] sm:$0xff]
          %v1005 = vld [vmem:[#allocation6 + $0x78] sm:$0xff]
          %1006 = vst [vmem:[#allocation2] sm:$0xff] %v990
          %1007 = vst [vmem:[#allocation2 + $0x8] sm:$0xff] %v991
          %1008 = vst [vmem:[#allocation2 + $0x10] sm:$0xff] %v992
          %1009 = vst [vmem:[#allocation2 + $0x18] sm:$0xff] %v993
          %1010 = vst [vmem:[#allocation2 + $0x20] sm:$0xff] %v994
          %1011 = vst [vmem:[#allocation2 + $0x28] sm:$0xff] %v995
          %1012 = vst [vmem:[#allocation2 + $0x30] sm:$0xff] %v996
          %1013 = vst [vmem:[#allocation2 + $0x38] sm:$0xff] %v997
          %1014 = vst [vmem:[#allocation2 + $0x40] sm:$0xff] %v998
          %1015 = vst [vmem:[#allocation2 + $0x48] sm:$0xff] %v999
          %1016 = vst [vmem:[#allocation2 + $0x50] sm:$0xff] %v1000
          %1017 = vst [vmem:[#allocation2 + $0x58] sm:$0xff] %v1001
          %1018 = vst [vmem:[#allocation2 + $0x60] sm:$0xff] %v1002
          %1019 = vst [vmem:[#allocation2 + $0x68] sm:$0xff] %v1003
          %1020 = vst [vmem:[#allocation2 + $0x70] sm:$0xff] %v1004
          %1021 = vst [vmem:[#allocation2 + $0x78] sm:$0xff] %v1005
        $region144: #{tpu_custom_call.1} parent=91 // pred_fallthru
          _
        %v1022 = vld [vmem:[#allocation2] sm:$0xff]
        %v1023 = vld [vmem:[#allocation2 + $0x8] sm:$0xff]
        %v1024 = vld [vmem:[#allocation2 + $0x10] sm:$0xff]
        %v1025 = vld [vmem:[#allocation2 + $0x18] sm:$0xff]
        %v1026 = vld [vmem:[#allocation2 + $0x20] sm:$0xff]
        %v1027 = vld [vmem:[#allocation2 + $0x28] sm:$0xff]
        %v1028 = vld [vmem:[#allocation2 + $0x30] sm:$0xff]
        %v1029 = vld [vmem:[#allocation2 + $0x38] sm:$0xff]
        %v1030 = vld [vmem:[#allocation2 + $0x40] sm:$0xff]
        %v1031 = vld [vmem:[#allocation2 + $0x48] sm:$0xff]
        %v1032 = vld [vmem:[#allocation2 + $0x50] sm:$0xff]
        %v1033 = vld [vmem:[#allocation2 + $0x58] sm:$0xff]
        %v1034 = vld [vmem:[#allocation2 + $0x60] sm:$0xff]
        %v1035 = vld [vmem:[#allocation2 + $0x68] sm:$0xff]
        %v1036 = vld [vmem:[#allocation2 + $0x70] sm:$0xff]
        %v1037 = vld [vmem:[#allocation2 + $0x78] sm:$0xff]
        %v1038 = vpack.c.bf16 %v1023, %v1022
        %v1039 = vpack.c.bf16 %v1025, %v1024
        %v1040 = vpack.c.bf16 %v1027, %v1026
        %v1041 = vpack.c.bf16 %v1029, %v1028
        %v1042 = vpack.c.bf16 %v1031, %v1030
        %v1043 = vpack.c.bf16 %v1033, %v1032
        %v1044 = vpack.c.bf16 %v1035, %v1034
        %v1045 = vpack.c.bf16 %v1037, %v1036
        %v1046 = vld [vmem:[%s797] sm:$0xff]
        %v1047 = vld [vmem:[%s797 + $0x8] sm:$0xf]
        %v1048 = vld [vmem:[%s797 + $0xc] sm:$0xff]
        %v1049 = vld [vmem:[%s797 + $0x14] sm:$0xf]
        %v1050 = vld [vmem:[%s797 + $0x18] sm:$0xff]
        %v1051 = vld [vmem:[%s797 + $0x20] sm:$0xf]
        %v1052 = vld [vmem:[%s797 + $0x24] sm:$0xff]
        %v1053 = vld [vmem:[%s797 + $0x2c] sm:$0xf]
        %v1054 = vld [vmem:[%s797 + $0x30] sm:$0xff]
        %v1055 = vld [vmem:[%s797 + $0x38] sm:$0xf]
        %v1056 = vld [vmem:[%s797 + $0x3c] sm:$0xff]
        %v1057 = vld [vmem:[%s797 + $0x44] sm:$0xf]
        %v1058 = vld [vmem:[%s797 + $0x48] sm:$0xff]
        %v1059 = vld [vmem:[%s797 + $0x50] sm:$0xf]
        %v1060 = vld [vmem:[%s797 + $0x54] sm:$0xff]
        %v1061 = vld [vmem:[%s797 + $0x5c] sm:$0xf]
        %v1062 = vld [vmem:[%s797 + $0x60] sm:$0xff]
        %v1063 = vld [vmem:[%s797 + $0x68] sm:$0xf]
        %v1064 = vld [vmem:[%s797 + $0x6c] sm:$0xff]
        %v1065 = vld [vmem:[%s797 + $0x74] sm:$0xf]
        %v1066 = vld [vmem:[%s797 + $0x78] sm:$0xff]
        %v1067 = vld [vmem:[%s797 + $0x80] sm:$0xf]
        %v1068 = vld [vmem:[%s797 + $0x84] sm:$0xff]
        %v1069 = vld [vmem:[%s797 + $0x8c] sm:$0xf]
        %v1070 = vld [vmem:[%s797 + $0x90] sm:$0xff]
        %v1071 = vld [vmem:[%s797 + $0x98] sm:$0xf]
        %v1072 = vld [vmem:[%s797 + $0x9c] sm:$0xff]
        %v1073 = vld [vmem:[%s797 + $0xa4] sm:$0xf]
        %v1074 = vld [vmem:[%s797 + $0xa8] sm:$0xff]
        %v1075 = vld [vmem:[%s797 + $0xb0] sm:$0xf]
        %v1076 = vld [vmem:[%s797 + $0xb4] sm:$0xff]
        %v1077 = vld [vmem:[%s797 + $0xbc] sm:$0xf]
        %v1078 = vld [vmem:[%s807] sm:$0x7]
        %v1080 = vperm.slane %v1078, 0
        %v1081 = vperm.slane %v1078, 1
        %v1082 = vperm.slane %v1078, 2
        %v1118 = vunpack.c.l.b16 %v1046
        %v1119 = vunpack.c.h.b16 %v1046
        %v1120 = vunpack.c.l.b16 %v1047
        %v1121 = vunpack.c.l.b16 %v1048
        %v1122 = vunpack.c.h.b16 %v1048
        %v1123 = vunpack.c.l.b16 %v1049
        %v1124 = vunpack.c.l.b16 %v1050
        %v1125 = vunpack.c.h.b16 %v1050
        %v1126 = vunpack.c.l.b16 %v1051
        %v1127 = vunpack.c.l.b16 %v1052
        %v1128 = vunpack.c.h.b16 %v1052
        %v1129 = vunpack.c.l.b16 %v1053
        %v1130 = vunpack.c.l.b16 %v1054
        %v1131 = vunpack.c.h.b16 %v1054
        %v1132 = vunpack.c.l.b16 %v1055
        %v1133 = vunpack.c.l.b16 %v1056
        %v1134 = vunpack.c.h.b16 %v1056
        %v1135 = vunpack.c.l.b16 %v1057
        %v1136 = vunpack.c.l.b16 %v1058
        %v1137 = vunpack.c.h.b16 %v1058
        %v1138 = vunpack.c.l.b16 %v1059
        %v1139 = vunpack.c.l.b16 %v1060
        %v1140 = vunpack.c.h.b16 %v1060
        %v1141 = vunpack.c.l.b16 %v1061
        %v1142 = vunpack.c.l.b16 %v1062
        %v1143 = vunpack.c.h.b16 %v1062
        %v1144 = vunpack.c.l.b16 %v1063
        %v1145 = vunpack.c.l.b16 %v1064
        %v1146 = vunpack.c.h.b16 %v1064
        %v1147 = vunpack.c.l.b16 %v1065
        %v1148 = vunpack.c.l.b16 %v1066
        %v1149 = vunpack.c.h.b16 %v1066
        %v1150 = vunpack.c.l.b16 %v1067
        %v1151 = vunpack.c.l.b16 %v1068
        %v1152 = vunpack.c.h.b16 %v1068
        %v1153 = vunpack.c.l.b16 %v1069
        %v1154 = vunpack.c.l.b16 %v1070
        %v1155 = vunpack.c.h.b16 %v1070
        %v1156 = vunpack.c.l.b16 %v1071
        %v1157 = vunpack.c.l.b16 %v1072
        %v1158 = vunpack.c.h.b16 %v1072
        %v1159 = vunpack.c.l.b16 %v1073
        %v1160 = vunpack.c.l.b16 %v1074
        %v1161 = vunpack.c.h.b16 %v1074
        %v1162 = vunpack.c.l.b16 %v1075
        %v1163 = vunpack.c.l.b16 %v1076
        %v1164 = vunpack.c.h.b16 %v1076
        %v1165 = vunpack.c.l.b16 %v1077
        %v1166 = vpack.c.b16 %v1121, %v1118
        %v1167 = vpack.c.b16 %v1122, %v1119
        %v1168 = vpack.c.b16 %v1123, %v1120
        %v1169 = vpack.c.b16 %v1127, %v1124
        %v1170 = vpack.c.b16 %v1128, %v1125
        %v1171 = vpack.c.b16 %v1129, %v1126
        %v1172 = vpack.c.b16 %v1133, %v1130
        %v1173 = vpack.c.b16 %v1134, %v1131
        %v1174 = vpack.c.b16 %v1135, %v1132
        %v1175 = vpack.c.b16 %v1139, %v1136
        %v1176 = vpack.c.b16 %v1140, %v1137
        %v1177 = vpack.c.b16 %v1141, %v1138
        %v1178 = vpack.c.b16 %v1145, %v1142
        %v1179 = vpack.c.b16 %v1146, %v1143
        %v1180 = vpack.c.b16 %v1147, %v1144
        %v1181 = vpack.c.b16 %v1151, %v1148
        %v1182 = vpack.c.b16 %v1152, %v1149
        %v1183 = vpack.c.b16 %v1153, %v1150
        %v1184 = vpack.c.b16 %v1157, %v1154
        %v1185 = vpack.c.b16 %v1158, %v1155
        %v1186 = vpack.c.b16 %v1159, %v1156
        %v1187 = vpack.c.b16 %v1163, %v1160
        %v1188 = vpack.c.b16 %v1164, %v1161
        %v1189 = vpack.c.b16 %v1165, %v1162
        %1214 = vmatpush.bf16.msra.mxu0 %v1187
        %1215 = vmatpush.bf16.msra.mxu0 %v1184
        %1216 = vmatpush.bf16.msra.mxu0 %v1181
        %1217 = vmatpush.bf16.msra.mxu0 %v1178
        %1218 = vmatpush.bf16.msra.mxu0 %v1175
        %1219 = vmatpush.bf16.msra.mxu0 %v1172
        %1220 = vmatpush.bf16.msra.mxu0 %v1169
        %1221 = vmatpush.bf16.msra.mxu0 %v1166
        %1222 = vmatmul.bf16.gmra.mxu0 %v1038
        %v1223 = vpop.f32.mrf.mxu0
        %v1224 = vadd.f32 %v1080, %v1223
        %v1225 = vpop.f32.mrf.mxu0
        %v1226 = vadd.f32 %v1080, %v1225
        %1227 = vmatmul.bf16.gmra.mxu0 %v1039
        %v1228 = vpop.f32.mrf.mxu0
        %v1229 = vadd.f32 %v1080, %v1228
        %v1230 = vpop.f32.mrf.mxu0
        %v1231 = vadd.f32 %v1080, %v1230
        %1232 = vmatmul.bf16.gmra.mxu0 %v1040
        %v1233 = vpop.f32.mrf.mxu0
        %v1234 = vadd.f32 %v1080, %v1233
        %v1235 = vpop.f32.mrf.mxu0
        %v1236 = vadd.f32 %v1080, %v1235
        %1237 = vmatmul.bf16.gmra.mxu0 %v1041
        %v1238 = vpop.f32.mrf.mxu0
        %v1239 = vadd.f32 %v1080, %v1238
        %v1240 = vpop.f32.mrf.mxu0
        %v1241 = vadd.f32 %v1080, %v1240
        %1242 = vmatmul.bf16.gmra.mxu0 %v1042
        %v1243 = vpop.f32.mrf.mxu0
        %v1244 = vadd.f32 %v1080, %v1243
        %v1245 = vpop.f32.mrf.mxu0
        %v1246 = vadd.f32 %v1080, %v1245
        %1247 = vmatmul.bf16.gmra.mxu0 %v1043
        %v1248 = vpop.f32.mrf.mxu0
        %v1249 = vadd.f32 %v1080, %v1248
        %v1250 = vpop.f32.mrf.mxu0
        %v1251 = vadd.f32 %v1080, %v1250
        %1252 = vmatmul.bf16.gmra.mxu0 %v1044
        %v1253 = vpop.f32.mrf.mxu0
        %v1254 = vadd.f32 %v1080, %v1253
        %v1255 = vpop.f32.mrf.mxu0
        %v1256 = vadd.f32 %v1080, %v1255
        %1257 = vmatmul.bf16.gmra.mxu0 %v1045
        %v1258 = vpop.f32.mrf.mxu0
        %v1259 = vadd.f32 %v1080, %v1258
        %v1260 = vpop.f32.mrf.mxu0
        %v1261 = vadd.f32 %v1080, %v1260
        %1262 = vdwg.mxu0
        %1263 = vmatpush.bf16.msra.mxu0 %v1188
        %1264 = vmatpush.bf16.msra.mxu0 %v1185
        %1265 = vmatpush.bf16.msra.mxu0 %v1182
        %1266 = vmatpush.bf16.msra.mxu0 %v1179
        %1267 = vmatpush.bf16.msra.mxu0 %v1176
        %1268 = vmatpush.bf16.msra.mxu0 %v1173
        %1269 = vmatpush.bf16.msra.mxu0 %v1170
        %1270 = vmatpush.bf16.msra.mxu0 %v1167
        %1271 = vmatmul.bf16.gmra.mxu0 %v1038
        %v1272 = vpop.f32.mrf.mxu0
        %v1273 = vadd.f32 %v1081, %v1272
        %v1274 = vpop.f32.mrf.mxu0
        %v1275 = vadd.f32 %v1081, %v1274
        %1276 = vmatmul.bf16.gmra.mxu0 %v1039
        %v1277 = vpop.f32.mrf.mxu0
        %v1278 = vadd.f32 %v1081, %v1277
        %v1279 = vpop.f32.mrf.mxu0
        %v1280 = vadd.f32 %v1081, %v1279
        %1281 = vmatmul.bf16.gmra.mxu0 %v1040
        %v1282 = vpop.f32.mrf.mxu0
        %v1283 = vadd.f32 %v1081, %v1282
        %v1284 = vpop.f32.mrf.mxu0
        %v1285 = vadd.f32 %v1081, %v1284
        %1286 = vmatmul.bf16.gmra.mxu0 %v1041
        %v1287 = vpop.f32.mrf.mxu0
        %v1288 = vadd.f32 %v1081, %v1287
        %v1289 = vpop.f32.mrf.mxu0
        %v1290 = vadd.f32 %v1081, %v1289
        %1291 = vmatmul.bf16.gmra.mxu0 %v1042
        %v1292 = vpop.f32.mrf.mxu0
        %v1293 = vadd.f32 %v1081, %v1292
        %v1294 = vpop.f32.mrf.mxu0
        %v1295 = vadd.f32 %v1081, %v1294
        %1296 = vmatmul.bf16.gmra.mxu0 %v1043
        %v1297 = vpop.f32.mrf.mxu0
        %v1298 = vadd.f32 %v1081, %v1297
        %v1299 = vpop.f32.mrf.mxu0
        %v1300 = vadd.f32 %v1081, %v1299
        %1301 = vmatmul.bf16.gmra.mxu0 %v1044
        %v1302 = vpop.f32.mrf.mxu0
        %v1303 = vadd.f32 %v1081, %v1302
        %v1304 = vpop.f32.mrf.mxu0
        %v1305 = vadd.f32 %v1081, %v1304
        %1306 = vmatmul.bf16.gmra.mxu0 %v1045
        %v1307 = vpop.f32.mrf.mxu0
        %v1308 = vadd.f32 %v1081, %v1307
        %v1309 = vpop.f32.mrf.mxu0
        %v1310 = vadd.f32 %v1081, %v1309
        %1311 = vdwg.mxu0
        %1312 = vmatpush.bf16.msra.mxu0 %v1189
        %1313 = vmatpush.bf16.msra.mxu0 %v1186
        %1314 = vmatpush.bf16.msra.mxu0 %v1183
        %1315 = vmatpush.bf16.msra.mxu0 %v1180
        %1316 = vmatpush.bf16.msra.mxu0 %v1177
        %1317 = vmatpush.bf16.msra.mxu0 %v1174
        %1318 = vmatpush.bf16.msra.mxu0 %v1171
        %1319 = vmatpush.bf16.msra.mxu0 %v1168
        %1320 = vmatmul.bf16.gmra.mxu0 %v1038
        %v1321 = vpop.f32.mrf.mxu0
        %v1322 = vadd.f32 %v1082, %v1321
        %v1323 = vpop.f32.mrf.mxu0
        %v1324 = vadd.f32 %v1082, %v1323
        %1325 = vmatmul.bf16.gmra.mxu0 %v1039
        %v1326 = vpop.f32.mrf.mxu0
        %v1327 = vadd.f32 %v1082, %v1326
        %v1328 = vpop.f32.mrf.mxu0
        %v1329 = vadd.f32 %v1082, %v1328
        %1330 = vmatmul.bf16.gmra.mxu0 %v1040
        %v1331 = vpop.f32.mrf.mxu0
        %v1332 = vadd.f32 %v1082, %v1331
        %v1333 = vpop.f32.mrf.mxu0
        %v1334 = vadd.f32 %v1082, %v1333
        %1335 = vmatmul.bf16.gmra.mxu0 %v1041
        %v1336 = vpop.f32.mrf.mxu0
        %v1337 = vadd.f32 %v1082, %v1336
        %v1338 = vpop.f32.mrf.mxu0
        %v1339 = vadd.f32 %v1082, %v1338
        %1340 = vmatmul.bf16.gmra.mxu0 %v1042
        %v1341 = vpop.f32.mrf.mxu0
        %v1342 = vadd.f32 %v1082, %v1341
        %v1343 = vpop.f32.mrf.mxu0
        %v1344 = vadd.f32 %v1082, %v1343
        %1345 = vmatmul.bf16.gmra.mxu0 %v1043
        %v1346 = vpop.f32.mrf.mxu0
        %v1347 = vadd.f32 %v1082, %v1346
        %v1348 = vpop.f32.mrf.mxu0
        %v1349 = vadd.f32 %v1082, %v1348
        %1350 = vmatmul.bf16.gmra.mxu0 %v1044
        %v1351 = vpop.f32.mrf.mxu0
        %v1352 = vadd.f32 %v1082, %v1351
        %v1353 = vpop.f32.mrf.mxu0
        %v1354 = vadd.f32 %v1082, %v1353
        %1355 = vmatmul.bf16.gmra.mxu0 %v1045
        %v1356 = vpop.f32.mrf.mxu0
        %v1357 = vadd.f32 %v1082, %v1356
        %v1358 = vpop.f32.mrf.mxu0
        %v1359 = vadd.f32 %v1082, %v1358
        %1360 = vdwg.mxu0
        %v1361 = vld [vmem:[#allocation3] sm:$0xff]
        %v1362 = vld [vmem:[#allocation3 + $0x8] sm:$0xff]
        %v1363 = vpack.c.bf16 %v1224, %v1224
        %v1364 = vpack.c.bf16 %v1226, %v1226
        %v1365 = vpack.c.bf16 %v1229, %v1229
        %v1366 = vpack.c.bf16 %v1231, %v1231
        %v1367 = vpack.c.bf16 %v1234, %v1234
        %v1368 = vpack.c.bf16 %v1236, %v1236
        %v1369 = vpack.c.bf16 %v1239, %v1239
        %v1370 = vpack.c.bf16 %v1241, %v1241
        %v1371 = vpack.c.bf16 %v1244, %v1244
        %v1372 = vpack.c.bf16 %v1246, %v1246
        %v1373 = vpack.c.bf16 %v1249, %v1249
        %v1374 = vpack.c.bf16 %v1251, %v1251
        %v1375 = vpack.c.bf16 %v1254, %v1254
        %v1376 = vpack.c.bf16 %v1256, %v1256
        %v1377 = vpack.c.bf16 %v1259, %v1259
        %v1378 = vpack.c.bf16 %v1261, %v1261
        %v1379 = vpack.c.bf16 %v1273, %v1273
        %v1380 = vpack.c.bf16 %v1275, %v1275
        %v1381 = vpack.c.bf16 %v1278, %v1278
        %v1382 = vpack.c.bf16 %v1280, %v1280
        %v1383 = vpack.c.bf16 %v1283, %v1283
        %v1384 = vpack.c.bf16 %v1285, %v1285
        %v1385 = vpack.c.bf16 %v1288, %v1288
        %v1386 = vpack.c.bf16 %v1290, %v1290
        %v1387 = vpack.c.bf16 %v1293, %v1293
        %v1388 = vpack.c.bf16 %v1295, %v1295
        %v1389 = vpack.c.bf16 %v1298, %v1298
        %v1390 = vpack.c.bf16 %v1300, %v1300
        %v1391 = vpack.c.bf16 %v1303, %v1303
        %v1392 = vpack.c.bf16 %v1305, %v1305
        %v1393 = vpack.c.bf16 %v1308, %v1308
        %v1394 = vpack.c.bf16 %v1310, %v1310
        %v1395 = vpack.c.bf16 %v1322, %v1322
        %v1396 = vpack.c.bf16 %v1324, %v1324
        %v1397 = vpack.c.bf16 %v1327, %v1327
        %v1398 = vpack.c.bf16 %v1329, %v1329
        %v1399 = vpack.c.bf16 %v1332, %v1332
        %v1400 = vpack.c.bf16 %v1334, %v1334
        %v1401 = vpack.c.bf16 %v1337, %v1337
        %v1402 = vpack.c.bf16 %v1339, %v1339
        %v1403 = vpack.c.bf16 %v1342, %v1342
        %v1404 = vpack.c.bf16 %v1344, %v1344
        %v1405 = vpack.c.bf16 %v1347, %v1347
        %v1406 = vpack.c.bf16 %v1349, %v1349
        %v1407 = vpack.c.bf16 %v1352, %v1352
        %v1408 = vpack.c.bf16 %v1354, %v1354
        %v1409 = vpack.c.bf16 %v1357, %v1357
        %v1410 = vpack.c.bf16 %v1359, %v1359
        %v1413 = vunpack.c.l.b16 %v1363
        %v1414 = vunpack.c.l.b16 %v1364
        %v1415 = vpack.c.b16 %v1414, %v1413
        %v1418 = vunpack.c.l.b16 %v1379
        %v1419 = vunpack.c.l.b16 %v1380
        %v1420 = vpack.c.b16 %v1419, %v1418
        %vm1421 = vcmask 261120
        %v1423 = vsel %vm1421, %v1415, 0
        %v1426 = vsel %vm1421, %v1420, 0
        %1428 = vmatpush.bf16.xpose.msra.mxu0 0
        %1429 = vmatpush.bf16.xpose.msra.mxu0 0
        %1430 = vmatpush.bf16.xpose.msra.mxu0 0
        %1431 = vmatpush.bf16.xpose.msra.mxu0 0
        %1432 = vmatpush.bf16.xpose.msra.mxu0 0
        %1433 = vmatpush.bf16.xpose.msra.mxu0 0
        %1434 = vmatpush.bf16.xpose.msra.mxu0 0
        %1435 = vmatpush.bf16.xpose.msra.mxu0 %v1426
        %1436 = vmatmul.bf16.gmra.mxu0 %v1423
        %v1437 = vpop.f32.mrf.mxu0
        %v1438 = vadd.f32 0.0, %v1437
        %v1439 = vpop.f32.mrf.mxu0
        %v1440 = vadd.f32 0.0, %v1439
        %1441 = vdwg.mxu0
        %v1444 = vunpack.c.l.b16 %v1365
        %v1445 = vunpack.c.l.b16 %v1366
        %v1446 = vpack.c.b16 %v1445, %v1444
        %v1449 = vunpack.c.l.b16 %v1381
        %v1450 = vunpack.c.l.b16 %v1382
        %v1451 = vpack.c.b16 %v1450, %v1449
        %v1453 = vsel %vm1421, %v1446, 0
        %v1456 = vsel %vm1421, %v1451, 0
        %1458 = vmatpush.bf16.xpose.msra.mxu0 0
        %1459 = vmatpush.bf16.xpose.msra.mxu0 0
        %1460 = vmatpush.bf16.xpose.msra.mxu0 0
        %1461 = vmatpush.bf16.xpose.msra.mxu0 0
        %1462 = vmatpush.bf16.xpose.msra.mxu0 0
        %1463 = vmatpush.bf16.xpose.msra.mxu0 0
        %1464 = vmatpush.bf16.xpose.msra.mxu0 0
        %1465 = vmatpush.bf16.xpose.msra.mxu0 %v1456
        %1466 = vmatmul.bf16.gmra.mxu0 %v1453
        %v1467 = vpop.f32.mrf.mxu0
        %v1468 = vadd.f32 0.0, %v1467
        %v1469 = vpop.f32.mrf.mxu0
        %v1470 = vadd.f32 0.0, %v1469
        %1471 = vdwg.mxu0
        %v1474 = vunpack.c.l.b16 %v1367
        %v1475 = vunpack.c.l.b16 %v1368
        %v1476 = vpack.c.b16 %v1475, %v1474
        %v1479 = vunpack.c.l.b16 %v1383
        %v1480 = vunpack.c.l.b16 %v1384
        %v1481 = vpack.c.b16 %v1480, %v1479
        %v1483 = vsel %vm1421, %v1476, 0
        %v1486 = vsel %vm1421, %v1481, 0
        %1488 = vmatpush.bf16.xpose.msra.mxu0 0
        %1489 = vmatpush.bf16.xpose.msra.mxu0 0
        %1490 = vmatpush.bf16.xpose.msra.mxu0 0
        %1491 = vmatpush.bf16.xpose.msra.mxu0 0
        %1492 = vmatpush.bf16.xpose.msra.mxu0 0
        %1493 = vmatpush.bf16.xpose.msra.mxu0 0
        %1494 = vmatpush.bf16.xpose.msra.mxu0 0
        %1495 = vmatpush.bf16.xpose.msra.mxu0 %v1486
        %1496 = vmatmul.bf16.gmra.mxu0 %v1483
        %v1497 = vpop.f32.mrf.mxu0
        %v1498 = vadd.f32 0.0, %v1497
        %v1499 = vpop.f32.mrf.mxu0
        %v1500 = vadd.f32 0.0, %v1499
        %1501 = vdwg.mxu0
        %v1504 = vunpack.c.l.b16 %v1369
        %v1505 = vunpack.c.l.b16 %v1370
        %v1506 = vpack.c.b16 %v1505, %v1504
        %v1509 = vunpack.c.l.b16 %v1385
        %v1510 = vunpack.c.l.b16 %v1386
        %v1511 = vpack.c.b16 %v1510, %v1509
        %v1513 = vsel %vm1421, %v1506, 0
        %v1516 = vsel %vm1421, %v1511, 0
        %1518 = vmatpush.bf16.xpose.msra.mxu0 0
        %1519 = vmatpush.bf16.xpose.msra.mxu0 0
        %1520 = vmatpush.bf16.xpose.msra.mxu0 0
        %1521 = vmatpush.bf16.xpose.msra.mxu0 0
        %1522 = vmatpush.bf16.xpose.msra.mxu0 0
        %1523 = vmatpush.bf16.xpose.msra.mxu0 0
        %1524 = vmatpush.bf16.xpose.msra.mxu0 0
        %1525 = vmatpush.bf16.xpose.msra.mxu0 %v1516
        %1526 = vmatmul.bf16.gmra.mxu0 %v1513
        %v1527 = vpop.f32.mrf.mxu0
        %v1528 = vadd.f32 0.0, %v1527
        %v1529 = vpop.f32.mrf.mxu0
        %v1530 = vadd.f32 0.0, %v1529
        %1531 = vdwg.mxu0
        %v1534 = vunpack.c.l.b16 %v1371
        %v1535 = vunpack.c.l.b16 %v1372
        %v1536 = vpack.c.b16 %v1535, %v1534
        %v1539 = vunpack.c.l.b16 %v1387
        %v1540 = vunpack.c.l.b16 %v1388
        %v1541 = vpack.c.b16 %v1540, %v1539
        %v1543 = vsel %vm1421, %v1536, 0
        %v1546 = vsel %vm1421, %v1541, 0
        %1548 = vmatpush.bf16.xpose.msra.mxu0 0
        %1549 = vmatpush.bf16.xpose.msra.mxu0 0
        %1550 = vmatpush.bf16.xpose.msra.mxu0 0
        %1551 = vmatpush.bf16.xpose.msra.mxu0 0
        %1552 = vmatpush.bf16.xpose.msra.mxu0 0
        %1553 = vmatpush.bf16.xpose.msra.mxu0 0
        %1554 = vmatpush.bf16.xpose.msra.mxu0 0
        %1555 = vmatpush.bf16.xpose.msra.mxu0 %v1546
        %1556 = vmatmul.bf16.gmra.mxu0 %v1543
        %v1557 = vpop.f32.mrf.mxu0
        %v1558 = vadd.f32 0.0, %v1557
        %v1559 = vpop.f32.mrf.mxu0
        %v1560 = vadd.f32 0.0, %v1559
        %1561 = vdwg.mxu0
        %v1564 = vunpack.c.l.b16 %v1373
        %v1565 = vunpack.c.l.b16 %v1374
        %v1566 = vpack.c.b16 %v1565, %v1564
        %v1569 = vunpack.c.l.b16 %v1389
        %v1570 = vunpack.c.l.b16 %v1390
        %v1571 = vpack.c.b16 %v1570, %v1569
        %v1573 = vsel %vm1421, %v1566, 0
        %v1576 = vsel %vm1421, %v1571, 0
        %1578 = vmatpush.bf16.xpose.msra.mxu0 0
        %1579 = vmatpush.bf16.xpose.msra.mxu0 0
        %1580 = vmatpush.bf16.xpose.msra.mxu0 0
        %1581 = vmatpush.bf16.xpose.msra.mxu0 0
        %1582 = vmatpush.bf16.xpose.msra.mxu0 0
        %1583 = vmatpush.bf16.xpose.msra.mxu0 0
        %1584 = vmatpush.bf16.xpose.msra.mxu0 0
        %1585 = vmatpush.bf16.xpose.msra.mxu0 %v1576
        %1586 = vmatmul.bf16.gmra.mxu0 %v1573
        %v1587 = vpop.f32.mrf.mxu0
        %v1588 = vadd.f32 0.0, %v1587
        %v1589 = vpop.f32.mrf.mxu0
        %v1590 = vadd.f32 0.0, %v1589
        %1591 = vdwg.mxu0
        %v1594 = vunpack.c.l.b16 %v1375
        %v1595 = vunpack.c.l.b16 %v1376
        %v1596 = vpack.c.b16 %v1595, %v1594
        %v1599 = vunpack.c.l.b16 %v1391
        %v1600 = vunpack.c.l.b16 %v1392
        %v1601 = vpack.c.b16 %v1600, %v1599
        %v1603 = vsel %vm1421, %v1596, 0
        %v1606 = vsel %vm1421, %v1601, 0
        %1608 = vmatpush.bf16.xpose.msra.mxu0 0
        %1609 = vmatpush.bf16.xpose.msra.mxu0 0
        %1610 = vmatpush.bf16.xpose.msra.mxu0 0
        %1611 = vmatpush.bf16.xpose.msra.mxu0 0
        %1612 = vmatpush.bf16.xpose.msra.mxu0 0
        %1613 = vmatpush.bf16.xpose.msra.mxu0 0
        %1614 = vmatpush.bf16.xpose.msra.mxu0 0
        %1615 = vmatpush.bf16.xpose.msra.mxu0 %v1606
        %1616 = vmatmul.bf16.gmra.mxu0 %v1603
        %v1617 = vpop.f32.mrf.mxu0
        %v1618 = vadd.f32 0.0, %v1617
        %v1619 = vpop.f32.mrf.mxu0
        %v1620 = vadd.f32 0.0, %v1619
        %1621 = vdwg.mxu0
        %v1624 = vunpack.c.l.b16 %v1377
        %v1625 = vunpack.c.l.b16 %v1378
        %v1626 = vpack.c.b16 %v1625, %v1624
        %v1629 = vunpack.c.l.b16 %v1393
        %v1630 = vunpack.c.l.b16 %v1394
        %v1631 = vpack.c.b16 %v1630, %v1629
        %v1633 = vsel %vm1421, %v1626, 0
        %v1636 = vsel %vm1421, %v1631, 0
        %1638 = vmatpush.bf16.xpose.msra.mxu0 0
        %1639 = vmatpush.bf16.xpose.msra.mxu0 0
        %1640 = vmatpush.bf16.xpose.msra.mxu0 0
        %1641 = vmatpush.bf16.xpose.msra.mxu0 0
        %1642 = vmatpush.bf16.xpose.msra.mxu0 0
        %1643 = vmatpush.bf16.xpose.msra.mxu0 0
        %1644 = vmatpush.bf16.xpose.msra.mxu0 0
        %1645 = vmatpush.bf16.xpose.msra.mxu0 %v1636
        %1646 = vmatmul.bf16.gmra.mxu0 %v1633
        %v1647 = vpop.f32.mrf.mxu0
        %v1648 = vadd.f32 0.0, %v1647
        %v1649 = vpop.f32.mrf.mxu0
        %v1650 = vadd.f32 0.0, %v1649
        %1651 = vdwg.mxu0
        %v1652 = vmul.f32 %v1438, 0.17677669
        %v1653 = vmul.f32 %v1440, 0.17677669
        %v1654 = vmul.f32 %v1468, 0.17677669
        %v1655 = vmul.f32 %v1470, 0.17677669
        %v1656 = vmul.f32 %v1498, 0.17677669
        %v1657 = vmul.f32 %v1500, 0.17677669
        %v1658 = vmul.f32 %v1528, 0.17677669
        %v1659 = vmul.f32 %v1530, 0.17677669
        %v1660 = vmul.f32 %v1558, 0.17677669
        %v1661 = vmul.f32 %v1560, 0.17677669
        %v1662 = vmul.f32 %v1588, 0.17677669
        %v1663 = vmul.f32 %v1590, 0.17677669
        %v1664 = vmul.f32 %v1618, 0.17677669
        %v1665 = vmul.f32 %v1620, 0.17677669
        %v1666 = vmul.f32 %v1648, 0.17677669
        %v1667 = vmul.f32 %v1650, 0.17677669
        %v1668 = vadd.f32 %v1652, %v1361
        %v1669 = vadd.f32 %v1653, %v1362
        %v1670 = vadd.f32 %v1654, %v1361
        %v1671 = vadd.f32 %v1655, %v1362
        %v1672 = vadd.f32 %v1656, %v1361
        %v1673 = vadd.f32 %v1657, %v1362
        %v1674 = vadd.f32 %v1658, %v1361
        %v1675 = vadd.f32 %v1659, %v1362
        %v1676 = vadd.f32 %v1660, %v1361
        %v1677 = vadd.f32 %v1661, %v1362
        %v1678 = vadd.f32 %v1662, %v1361
        %v1679 = vadd.f32 %v1663, %v1362
        %v1680 = vadd.f32 %v1664, %v1361
        %v1681 = vadd.f32 %v1665, %v1362
        %v1682 = vadd.f32 %v1666, %v1361
        %v1683 = vadd.f32 %v1667, %v1362
        %vm1684 = vcmask 130048
        %v1685 = vsel %vm1684, %v1668, -inf
        %1686 = vmax.xlane.f32.xlu0 %v1685
        %v1687 = vpop.xlane.xlu0 %1686
        %v1688 = vsel %vm1684, %v1669, -inf
        %1689 = vmax.xlane.f32.xlu0 %v1688
        %v1690 = vpop.xlane.xlu0 %1689
        %v1691 = vsel %vm1684, %v1670, -inf
        %1692 = vmax.xlane.f32.xlu0 %v1691
        %v1693 = vpop.xlane.xlu0 %1692
        %v1694 = vsel %vm1684, %v1671, -inf
        %1695 = vmax.xlane.f32.xlu0 %v1694
        %v1696 = vpop.xlane.xlu0 %1695
        %v1697 = vsel %vm1684, %v1672, -inf
        %1698 = vmax.xlane.f32.xlu0 %v1697
        %v1699 = vpop.xlane.xlu0 %1698
        %v1700 = vsel %vm1684, %v1673, -inf
        %1701 = vmax.xlane.f32.xlu0 %v1700
        %v1702 = vpop.xlane.xlu0 %1701
        %v1703 = vsel %vm1684, %v1674, -inf
        %1704 = vmax.xlane.f32.xlu0 %v1703
        %v1705 = vpop.xlane.xlu0 %1704
        %v1706 = vsel %vm1684, %v1675, -inf
        %1707 = vmax.xlane.f32.xlu0 %v1706
        %v1708 = vpop.xlane.xlu0 %1707
        %v1709 = vsel %vm1684, %v1676, -inf
        %1710 = vmax.xlane.f32.xlu0 %v1709
        %v1711 = vpop.xlane.xlu0 %1710
        %v1712 = vsel %vm1684, %v1677, -inf
        %1713 = vmax.xlane.f32.xlu0 %v1712
        %v1714 = vpop.xlane.xlu0 %1713
        %v1715 = vsel %vm1684, %v1678, -inf
        %1716 = vmax.xlane.f32.xlu0 %v1715
        %v1717 = vpop.xlane.xlu0 %1716
        %v1718 = vsel %vm1684, %v1679, -inf
        %1719 = vmax.xlane.f32.xlu0 %v1718
        %v1720 = vpop.xlane.xlu0 %1719
        %v1721 = vsel %vm1684, %v1680, -inf
        %1722 = vmax.xlane.f32.xlu0 %v1721
        %v1723 = vpop.xlane.xlu0 %1722
        %v1724 = vsel %vm1684, %v1681, -inf
        %1725 = vmax.xlane.f32.xlu0 %v1724
        %v1726 = vpop.xlane.xlu0 %1725
        %v1727 = vsel %vm1684, %v1682, -inf
        %1728 = vmax.xlane.f32.xlu0 %v1727
        %v1729 = vpop.xlane.xlu0 %1728
        %v1730 = vsel %vm1684, %v1683, -inf
        %1731 = vmax.xlane.f32.xlu0 %v1730
        %v1732 = vpop.xlane.xlu0 %1731
        %v1733 = vsub.f32 %v1668, %v1687
        %v1734 = vsub.f32 %v1669, %v1690
        %v1735 = vsub.f32 %v1670, %v1693
        %v1736 = vsub.f32 %v1671, %v1696
        %v1737 = vsub.f32 %v1672, %v1699
        %v1738 = vsub.f32 %v1673, %v1702
        %v1739 = vsub.f32 %v1674, %v1705
        %v1740 = vsub.f32 %v1675, %v1708
        %v1741 = vsub.f32 %v1676, %v1711
        %v1742 = vsub.f32 %v1677, %v1714
        %v1743 = vsub.f32 %v1678, %v1717
        %v1744 = vsub.f32 %v1679, %v1720
        %v1745 = vsub.f32 %v1680, %v1723
        %v1746 = vsub.f32 %v1681, %v1726
        %v1747 = vsub.f32 %v1682, %v1729
        %v1748 = vsub.f32 %v1683, %v1732
        %v1749 = vmul.f32 %v1733, 1.442695
        %v1750 = vpow.pop %v1749
        %v1751 = vmul.f32 %v1734, 1.442695
        %v1752 = vpow.pop %v1751
        %v1753 = vmul.f32 %v1735, 1.442695
        %v1754 = vpow.pop %v1753
        %v1755 = vmul.f32 %v1736, 1.442695
        %v1756 = vpow.pop %v1755
        %v1757 = vmul.f32 %v1737, 1.442695
        %v1758 = vpow.pop %v1757
        %v1759 = vmul.f32 %v1738, 1.442695
        %v1760 = vpow.pop %v1759
        %v1761 = vmul.f32 %v1739, 1.442695
        %v1762 = vpow.pop %v1761
        %v1763 = vmul.f32 %v1740, 1.442695
        %v1764 = vpow.pop %v1763
        %v1765 = vmul.f32 %v1741, 1.442695
        %v1766 = vpow.pop %v1765
        %v1767 = vmul.f32 %v1742, 1.442695
        %v1768 = vpow.pop %v1767
        %v1769 = vmul.f32 %v1743, 1.442695
        %v1770 = vpow.pop %v1769
        %v1771 = vmul.f32 %v1744, 1.442695
        %v1772 = vpow.pop %v1771
        %v1773 = vmul.f32 %v1745, 1.442695
        %v1774 = vpow.pop %v1773
        %v1775 = vmul.f32 %v1746, 1.442695
        %v1776 = vpow.pop %v1775
        %v1777 = vmul.f32 %v1747, 1.442695
        %v1778 = vpow.pop %v1777
        %v1779 = vmul.f32 %v1748, 1.442695
        %v1780 = vpow.pop %v1779
        %v1781 = vsel %vm1684, %v1750, 0.0
        %1782 = vadd.xlane.f32.xlu0 %v1781
        %v1783 = vpop.xlane.xlu0 %1782
        %v1784 = vsel %vm1684, %v1752, 0.0
        %1785 = vadd.xlane.f32.xlu0 %v1784
        %v1786 = vpop.xlane.xlu0 %1785
        %v1787 = vsel %vm1684, %v1754, 0.0
        %1788 = vadd.xlane.f32.xlu0 %v1787
        %v1789 = vpop.xlane.xlu0 %1788
        %v1790 = vsel %vm1684, %v1756, 0.0
        %1791 = vadd.xlane.f32.xlu0 %v1790
        %v1792 = vpop.xlane.xlu0 %1791
        %v1793 = vsel %vm1684, %v1758, 0.0
        %1794 = vadd.xlane.f32.xlu0 %v1793
        %v1795 = vpop.xlane.xlu0 %1794
        %v1796 = vsel %vm1684, %v1760, 0.0
        %1797 = vadd.xlane.f32.xlu0 %v1796
        %v1798 = vpop.xlane.xlu0 %1797
        %v1799 = vsel %vm1684, %v1762, 0.0
        %1800 = vadd.xlane.f32.xlu0 %v1799
        %v1801 = vpop.xlane.xlu0 %1800
        %v1802 = vsel %vm1684, %v1764, 0.0
        %1803 = vadd.xlane.f32.xlu0 %v1802
        %v1804 = vpop.xlane.xlu0 %1803
        %v1805 = vsel %vm1684, %v1766, 0.0
        %1806 = vadd.xlane.f32.xlu0 %v1805
        %v1807 = vpop.xlane.xlu0 %1806
        %v1808 = vsel %vm1684, %v1768, 0.0
        %1809 = vadd.xlane.f32.xlu0 %v1808
        %v1810 = vpop.xlane.xlu0 %1809
        %v1811 = vsel %vm1684, %v1770, 0.0
        %1812 = vadd.xlane.f32.xlu0 %v1811
        %v1813 = vpop.xlane.xlu0 %1812
        %v1814 = vsel %vm1684, %v1772, 0.0
        %1815 = vadd.xlane.f32.xlu0 %v1814
        %v1816 = vpop.xlane.xlu0 %1815
        %v1817 = vsel %vm1684, %v1774, 0.0
        %1818 = vadd.xlane.f32.xlu0 %v1817
        %v1819 = vpop.xlane.xlu0 %1818
        %v1820 = vsel %vm1684, %v1776, 0.0
        %1821 = vadd.xlane.f32.xlu0 %v1820
        %v1822 = vpop.xlane.xlu0 %1821
        %v1823 = vsel %vm1684, %v1778, 0.0
        %1824 = vadd.xlane.f32.xlu0 %v1823
        %v1825 = vpop.xlane.xlu0 %1824
        %v1826 = vsel %vm1684, %v1780, 0.0
        %1827 = vadd.xlane.f32.xlu0 %v1826
        %v1828 = vpop.xlane.xlu0 %1827
        %v1829 = vrcp.pop %v1783
        %v1830 = vrcp.pop %v1786
        %v1831 = vrcp.pop %v1789
        %v1832 = vrcp.pop %v1792
        %v1833 = vrcp.pop %v1795
        %v1834 = vrcp.pop %v1798
        %v1835 = vrcp.pop %v1801
        %v1836 = vrcp.pop %v1804
        %v1837 = vrcp.pop %v1807
        %v1838 = vrcp.pop %v1810
        %v1839 = vrcp.pop %v1813
        %v1840 = vrcp.pop %v1816
        %v1841 = vrcp.pop %v1819
        %v1842 = vrcp.pop %v1822
        %v1843 = vrcp.pop %v1825
        %v1844 = vrcp.pop %v1828
        %v1845 = vmul.f32 %v1750, %v1829
        %v1846 = vmul.f32 %v1752, %v1830
        %v1847 = vmul.f32 %v1754, %v1831
        %v1848 = vmul.f32 %v1756, %v1832
        %v1849 = vmul.f32 %v1758, %v1833
        %v1850 = vmul.f32 %v1760, %v1834
        %v1851 = vmul.f32 %v1762, %v1835
        %v1852 = vmul.f32 %v1764, %v1836
        %v1853 = vmul.f32 %v1766, %v1837
        %v1854 = vmul.f32 %v1768, %v1838
        %v1855 = vmul.f32 %v1770, %v1839
        %v1856 = vmul.f32 %v1772, %v1840
        %v1857 = vmul.f32 %v1774, %v1841
        %v1858 = vmul.f32 %v1776, %v1842
        %v1859 = vmul.f32 %v1778, %v1843
        %v1860 = vmul.f32 %v1780, %v1844
        %v1861 = vpack.c.bf16 %v1845, %v1845
        %v1862 = vpack.c.bf16 %v1846, %v1846
        %v1863 = vpack.c.bf16 %v1847, %v1847
        %v1864 = vpack.c.bf16 %v1848, %v1848
        %v1865 = vpack.c.bf16 %v1849, %v1849
        %v1866 = vpack.c.bf16 %v1850, %v1850
        %v1867 = vpack.c.bf16 %v1851, %v1851
        %v1868 = vpack.c.bf16 %v1852, %v1852
        %v1869 = vpack.c.bf16 %v1853, %v1853
        %v1870 = vpack.c.bf16 %v1854, %v1854
        %v1871 = vpack.c.bf16 %v1855, %v1855
        %v1872 = vpack.c.bf16 %v1856, %v1856
        %v1873 = vpack.c.bf16 %v1857, %v1857
        %v1874 = vpack.c.bf16 %v1858, %v1858
        %v1875 = vpack.c.bf16 %v1859, %v1859
        %v1876 = vpack.c.bf16 %v1860, %v1860
        %v1879 = vunpack.c.l.b16 %v1861
        %v1880 = vunpack.c.l.b16 %v1862
        %v1881 = vpack.c.b16 %v1880, %v1879
        %v1884 = vunpack.c.l.b16 %v1395
        %v1885 = vunpack.c.l.b16 %v1396
        %v1886 = vpack.c.b16 %v1885, %v1884
        %v1889 = vsel %vm1684, %v1881, 0
        %1891 = vmatpush.bf16.msra.mxu0 0
        %1892 = vmatpush.bf16.msra.mxu0 0
        %1893 = vmatpush.bf16.msra.mxu0 0
        %1894 = vmatpush.bf16.msra.mxu0 0
        %1895 = vmatpush.bf16.msra.mxu0 0
        %1896 = vmatpush.bf16.msra.mxu0 0
        %1897 = vmatpush.bf16.msra.mxu0 0
        %1898 = vmatpush.bf16.msra.mxu0 %v1886
        %1899 = vmatmul.bf16.gmra.mxu0 %v1889
        %v1900 = vpop.f32.mrf.mxu0
        %v1901 = vadd.f32 0.0, %v1900
        %v1902 = vpop.f32.mrf.mxu0
        %v1903 = vadd.f32 0.0, %v1902
        %1904 = vdwg.mxu0
        %v1907 = vunpack.c.l.b16 %v1863
        %v1908 = vunpack.c.l.b16 %v1864
        %v1909 = vpack.c.b16 %v1908, %v1907
        %v1912 = vunpack.c.l.b16 %v1397
        %v1913 = vunpack.c.l.b16 %v1398
        %v1914 = vpack.c.b16 %v1913, %v1912
        %v1917 = vsel %vm1684, %v1909, 0
        %1919 = vmatpush.bf16.msra.mxu0 0
        %1920 = vmatpush.bf16.msra.mxu0 0
        %1921 = vmatpush.bf16.msra.mxu0 0
        %1922 = vmatpush.bf16.msra.mxu0 0
        %1923 = vmatpush.bf16.msra.mxu0 0
        %1924 = vmatpush.bf16.msra.mxu0 0
        %1925 = vmatpush.bf16.msra.mxu0 0
        %1926 = vmatpush.bf16.msra.mxu0 %v1914
        %1927 = vmatmul.bf16.gmra.mxu0 %v1917
        %v1928 = vpop.f32.mrf.mxu0
        %v1929 = vadd.f32 0.0, %v1928
        %v1930 = vpop.f32.mrf.mxu0
        %v1931 = vadd.f32 0.0, %v1930
        %1932 = vdwg.mxu0
        %v1935 = vunpack.c.l.b16 %v1865
        %v1936 = vunpack.c.l.b16 %v1866
        %v1937 = vpack.c.b16 %v1936, %v1935
        %v1940 = vunpack.c.l.b16 %v1399
        %v1941 = vunpack.c.l.b16 %v1400
        %v1942 = vpack.c.b16 %v1941, %v1940
        %v1945 = vsel %vm1684, %v1937, 0
        %1947 = vmatpush.bf16.msra.mxu0 0
        %1948 = vmatpush.bf16.msra.mxu0 0
        %1949 = vmatpush.bf16.msra.mxu0 0
        %1950 = vmatpush.bf16.msra.mxu0 0
        %1951 = vmatpush.bf16.msra.mxu0 0
        %1952 = vmatpush.bf16.msra.mxu0 0
        %1953 = vmatpush.bf16.msra.mxu0 0
        %1954 = vmatpush.bf16.msra.mxu0 %v1942
        %1955 = vmatmul.bf16.gmra.mxu0 %v1945
        %v1956 = vpop.f32.mrf.mxu0
        %v1957 = vadd.f32 0.0, %v1956
        %v1958 = vpop.f32.mrf.mxu0
        %v1959 = vadd.f32 0.0, %v1958
        %1960 = vdwg.mxu0
        %v1963 = vunpack.c.l.b16 %v1867
        %v1964 = vunpack.c.l.b16 %v1868
        %v1965 = vpack.c.b16 %v1964, %v1963
        %v1968 = vunpack.c.l.b16 %v1401
        %v1969 = vunpack.c.l.b16 %v1402
        %v1970 = vpack.c.b16 %v1969, %v1968
        %v1973 = vsel %vm1684, %v1965, 0
        %1975 = vmatpush.bf16.msra.mxu0 0
        %1976 = vmatpush.bf16.msra.mxu0 0
        %1977 = vmatpush.bf16.msra.mxu0 0
        %1978 = vmatpush.bf16.msra.mxu0 0
        %1979 = vmatpush.bf16.msra.mxu0 0
        %1980 = vmatpush.bf16.msra.mxu0 0
        %1981 = vmatpush.bf16.msra.mxu0 0
        %1982 = vmatpush.bf16.msra.mxu0 %v1970
        %1983 = vmatmul.bf16.gmra.mxu0 %v1973
        %v1984 = vpop.f32.mrf.mxu0
        %v1985 = vadd.f32 0.0, %v1984
        %v1986 = vpop.f32.mrf.mxu0
        %v1987 = vadd.f32 0.0, %v1986
        %1988 = vdwg.mxu0
        %v1991 = vunpack.c.l.b16 %v1869
        %v1992 = vunpack.c.l.b16 %v1870
        %v1993 = vpack.c.b16 %v1992, %v1991
        %v1996 = vunpack.c.l.b16 %v1403
        %v1997 = vunpack.c.l.b16 %v1404
        %v1998 = vpack.c.b16 %v1997, %v1996
        %v2001 = vsel %vm1684, %v1993, 0
        %2003 = vmatpush.bf16.msra.mxu0 0
        %2004 = vmatpush.bf16.msra.mxu0 0
        %2005 = vmatpush.bf16.msra.mxu0 0
        %2006 = vmatpush.bf16.msra.mxu0 0
        %2007 = vmatpush.bf16.msra.mxu0 0
        %2008 = vmatpush.bf16.msra.mxu0 0
        %2009 = vmatpush.bf16.msra.mxu0 0
        %2010 = vmatpush.bf16.msra.mxu0 %v1998
        %2011 = vmatmul.bf16.gmra.mxu0 %v2001
        %v2012 = vpop.f32.mrf.mxu0
        %v2013 = vadd.f32 0.0, %v2012
        %v2014 = vpop.f32.mrf.mxu0
        %v2015 = vadd.f32 0.0, %v2014
        %2016 = vdwg.mxu0
        %v2019 = vunpack.c.l.b16 %v1871
        %v2020 = vunpack.c.l.b16 %v1872
        %v2021 = vpack.c.b16 %v2020, %v2019
        %v2024 = vunpack.c.l.b16 %v1405
        %v2025 = vunpack.c.l.b16 %v1406
        %v2026 = vpack.c.b16 %v2025, %v2024
        %v2029 = vsel %vm1684, %v2021, 0
        %2031 = vmatpush.bf16.msra.mxu0 0
        %2032 = vmatpush.bf16.msra.mxu0 0
        %2033 = vmatpush.bf16.msra.mxu0 0
        %2034 = vmatpush.bf16.msra.mxu0 0
        %2035 = vmatpush.bf16.msra.mxu0 0
        %2036 = vmatpush.bf16.msra.mxu0 0
        %2037 = vmatpush.bf16.msra.mxu0 0
        %2038 = vmatpush.bf16.msra.mxu0 %v2026
        %2039 = vmatmul.bf16.gmra.mxu0 %v2029
        %v2040 = vpop.f32.mrf.mxu0
        %v2041 = vadd.f32 0.0, %v2040
        %v2042 = vpop.f32.mrf.mxu0
        %v2043 = vadd.f32 0.0, %v2042
        %2044 = vdwg.mxu0
        %v2047 = vunpack.c.l.b16 %v1873
        %v2048 = vunpack.c.l.b16 %v1874
        %v2049 = vpack.c.b16 %v2048, %v2047
        %v2052 = vunpack.c.l.b16 %v1407
        %v2053 = vunpack.c.l.b16 %v1408
        %v2054 = vpack.c.b16 %v2053, %v2052
        %v2057 = vsel %vm1684, %v2049, 0
        %2059 = vmatpush.bf16.msra.mxu0 0
        %2060 = vmatpush.bf16.msra.mxu0 0
        %2061 = vmatpush.bf16.msra.mxu0 0
        %2062 = vmatpush.bf16.msra.mxu0 0
        %2063 = vmatpush.bf16.msra.mxu0 0
        %2064 = vmatpush.bf16.msra.mxu0 0
        %2065 = vmatpush.bf16.msra.mxu0 0
        %2066 = vmatpush.bf16.msra.mxu0 %v2054
        %2067 = vmatmul.bf16.gmra.mxu0 %v2057
        %v2068 = vpop.f32.mrf.mxu0
        %v2069 = vadd.f32 0.0, %v2068
        %v2070 = vpop.f32.mrf.mxu0
        %v2071 = vadd.f32 0.0, %v2070
        %2072 = vdwg.mxu0
        %v2075 = vunpack.c.l.b16 %v1875
        %v2076 = vunpack.c.l.b16 %v1876
        %v2077 = vpack.c.b16 %v2076, %v2075
        %v2080 = vunpack.c.l.b16 %v1409
        %v2081 = vunpack.c.l.b16 %v1410
        %v2082 = vpack.c.b16 %v2081, %v2080
        %v2085 = vsel %vm1684, %v2077, 0
        %2087 = vmatpush.bf16.msra.mxu0 0
        %2088 = vmatpush.bf16.msra.mxu0 0
        %2089 = vmatpush.bf16.msra.mxu0 0
        %2090 = vmatpush.bf16.msra.mxu0 0
        %2091 = vmatpush.bf16.msra.mxu0 0
        %2092 = vmatpush.bf16.msra.mxu0 0
        %2093 = vmatpush.bf16.msra.mxu0 0
        %2094 = vmatpush.bf16.msra.mxu0 %v2082
        %2095 = vmatmul.bf16.gmra.mxu0 %v2085
        %v2096 = vpop.f32.mrf.mxu0
        %v2097 = vadd.f32 0.0, %v2096
        %v2098 = vpop.f32.mrf.mxu0
        %v2099 = vadd.f32 0.0, %v2098
        %2100 = vdwg.mxu0
        %2101 = vrot.lane.b32.xlu0 %v1415, 96
        %v2102 = vpop.permute.xlu0 %2101
        %2103 = vrot.lane.b32.xlu0 %v1420, 96
        %v2104 = vpop.permute.xlu0 %2103
        %v2106 = vsel %vm1421, %v2102, 0
        %v2109 = vsel %vm1421, %v2104, 0
        %2111 = vmatpush.bf16.xpose.msra.mxu0 0
        %2112 = vmatpush.bf16.xpose.msra.mxu0 0
        %2113 = vmatpush.bf16.xpose.msra.mxu0 0
        %2114 = vmatpush.bf16.xpose.msra.mxu0 0
        %2115 = vmatpush.bf16.xpose.msra.mxu0 0
        %2116 = vmatpush.bf16.xpose.msra.mxu0 0
        %2117 = vmatpush.bf16.xpose.msra.mxu0 0
        %2118 = vmatpush.bf16.xpose.msra.mxu0 %v2109
        %2119 = vmatmul.bf16.gmra.mxu0 %v2106
        %v2120 = vpop.f32.mrf.mxu0
        %v2121 = vadd.f32 0.0, %v2120
        %v2122 = vpop.f32.mrf.mxu0
        %v2123 = vadd.f32 0.0, %v2122
        %2124 = vdwg.mxu0
        %2125 = vrot.lane.b32.xlu0 %v1446, 96
        %v2126 = vpop.permute.xlu0 %2125
        %2127 = vrot.lane.b32.xlu0 %v1451, 96
        %v2128 = vpop.permute.xlu0 %2127
        %v2130 = vsel %vm1421, %v2126, 0
        %v2133 = vsel %vm1421, %v2128, 0
        %2135 = vmatpush.bf16.xpose.msra.mxu0 0
        %2136 = vmatpush.bf16.xpose.msra.mxu0 0
        %2137 = vmatpush.bf16.xpose.msra.mxu0 0
        %2138 = vmatpush.bf16.xpose.msra.mxu0 0
        %2139 = vmatpush.bf16.xpose.msra.mxu0 0
        %2140 = vmatpush.bf16.xpose.msra.mxu0 0
        %2141 = vmatpush.bf16.xpose.msra.mxu0 0
        %2142 = vmatpush.bf16.xpose.msra.mxu0 %v2133
        %2143 = vmatmul.bf16.gmra.mxu0 %v2130
        %v2144 = vpop.f32.mrf.mxu0
        %v2145 = vadd.f32 0.0, %v2144
        %v2146 = vpop.f32.mrf.mxu0
        %v2147 = vadd.f32 0.0, %v2146
        %2148 = vdwg.mxu0
        %2149 = vrot.lane.b32.xlu0 %v1476, 96
        %v2150 = vpop.permute.xlu0 %2149
        %2151 = vrot.lane.b32.xlu0 %v1481, 96
        %v2152 = vpop.permute.xlu0 %2151
        %v2154 = vsel %vm1421, %v2150, 0
        %v2157 = vsel %vm1421, %v2152, 0
        %2159 = vmatpush.bf16.xpose.msra.mxu0 0
        %2160 = vmatpush.bf16.xpose.msra.mxu0 0
        %2161 = vmatpush.bf16.xpose.msra.mxu0 0
        %2162 = vmatpush.bf16.xpose.msra.mxu0 0
        %2163 = vmatpush.bf16.xpose.msra.mxu0 0
        %2164 = vmatpush.bf16.xpose.msra.mxu0 0
        %2165 = vmatpush.bf16.xpose.msra.mxu0 0
        %2166 = vmatpush.bf16.xpose.msra.mxu0 %v2157
        %2167 = vmatmul.bf16.gmra.mxu0 %v2154
        %v2168 = vpop.f32.mrf.mxu0
        %v2169 = vadd.f32 0.0, %v2168
        %v2170 = vpop.f32.mrf.mxu0
        %v2171 = vadd.f32 0.0, %v2170
        %2172 = vdwg.mxu0
        %2173 = vrot.lane.b32.xlu0 %v1506, 96
        %v2174 = vpop.permute.xlu0 %2173
        %2175 = vrot.lane.b32.xlu0 %v1511, 96
        %v2176 = vpop.permute.xlu0 %2175
        %v2178 = vsel %vm1421, %v2174, 0
        %v2181 = vsel %vm1421, %v2176, 0
        %2183 = vmatpush.bf16.xpose.msra.mxu0 0
        %2184 = vmatpush.bf16.xpose.msra.mxu0 0
        %2185 = vmatpush.bf16.xpose.msra.mxu0 0
        %2186 = vmatpush.bf16.xpose.msra.mxu0 0
        %2187 = vmatpush.bf16.xpose.msra.mxu0 0
        %2188 = vmatpush.bf16.xpose.msra.mxu0 0
        %2189 = vmatpush.bf16.xpose.msra.mxu0 0
        %2190 = vmatpush.bf16.xpose.msra.mxu0 %v2181
        %2191 = vmatmul.bf16.gmra.mxu0 %v2178
        %v2192 = vpop.f32.mrf.mxu0
        %v2193 = vadd.f32 0.0, %v2192
        %v2194 = vpop.f32.mrf.mxu0
        %v2195 = vadd.f32 0.0, %v2194
        %2196 = vdwg.mxu0
        %2197 = vrot.lane.b32.xlu0 %v1536, 96
        %v2198 = vpop.permute.xlu0 %2197
        %2199 = vrot.lane.b32.xlu0 %v1541, 96
        %v2200 = vpop.permute.xlu0 %2199
        %v2202 = vsel %vm1421, %v2198, 0
        %v2205 = vsel %vm1421, %v2200, 0
        %2207 = vmatpush.bf16.xpose.msra.mxu0 0
        %2208 = vmatpush.bf16.xpose.msra.mxu0 0
        %2209 = vmatpush.bf16.xpose.msra.mxu0 0
        %2210 = vmatpush.bf16.xpose.msra.mxu0 0
        %2211 = vmatpush.bf16.xpose.msra.mxu0 0
        %2212 = vmatpush.bf16.xpose.msra.mxu0 0
        %2213 = vmatpush.bf16.xpose.msra.mxu0 0
        %2214 = vmatpush.bf16.xpose.msra.mxu0 %v2205
        %2215 = vmatmul.bf16.gmra.mxu0 %v2202
        %v2216 = vpop.f32.mrf.mxu0
        %v2217 = vadd.f32 0.0, %v2216
        %v2218 = vpop.f32.mrf.mxu0
        %v2219 = vadd.f32 0.0, %v2218
        %2220 = vdwg.mxu0
        %2221 = vrot.lane.b32.xlu0 %v1566, 96
        %v2222 = vpop.permute.xlu0 %2221
        %2223 = vrot.lane.b32.xlu0 %v1571, 96
        %v2224 = vpop.permute.xlu0 %2223
        %v2226 = vsel %vm1421, %v2222, 0
        %v2229 = vsel %vm1421, %v2224, 0
        %2231 = vmatpush.bf16.xpose.msra.mxu0 0
        %2232 = vmatpush.bf16.xpose.msra.mxu0 0
        %2233 = vmatpush.bf16.xpose.msra.mxu0 0
        %2234 = vmatpush.bf16.xpose.msra.mxu0 0
        %2235 = vmatpush.bf16.xpose.msra.mxu0 0
        %2236 = vmatpush.bf16.xpose.msra.mxu0 0
        %2237 = vmatpush.bf16.xpose.msra.mxu0 0
        %2238 = vmatpush.bf16.xpose.msra.mxu0 %v2229
        %2239 = vmatmul.bf16.gmra.mxu0 %v2226
        %v2240 = vpop.f32.mrf.mxu0
        %v2241 = vadd.f32 0.0, %v2240
        %v2242 = vpop.f32.mrf.mxu0
        %v2243 = vadd.f32 0.0, %v2242
        %2244 = vdwg.mxu0
        %2245 = vrot.lane.b32.xlu0 %v1596, 96
        %v2246 = vpop.permute.xlu0 %2245
        %2247 = vrot.lane.b32.xlu0 %v1601, 96
        %v2248 = vpop.permute.xlu0 %2247
        %v2250 = vsel %vm1421, %v2246, 0
        %v2253 = vsel %vm1421, %v2248, 0
        %2255 = vmatpush.bf16.xpose.msra.mxu0 0
        %2256 = vmatpush.bf16.xpose.msra.mxu0 0
        %2257 = vmatpush.bf16.xpose.msra.mxu0 0
        %2258 = vmatpush.bf16.xpose.msra.mxu0 0
        %2259 = vmatpush.bf16.xpose.msra.mxu0 0
        %2260 = vmatpush.bf16.xpose.msra.mxu0 0
        %2261 = vmatpush.bf16.xpose.msra.mxu0 0
        %2262 = vmatpush.bf16.xpose.msra.mxu0 %v2253
        %2263 = vmatmul.bf16.gmra.mxu0 %v2250
        %v2264 = vpop.f32.mrf.mxu0
        %v2265 = vadd.f32 0.0, %v2264
        %v2266 = vpop.f32.mrf.mxu0
        %v2267 = vadd.f32 0.0, %v2266
        %2268 = vdwg.mxu0
        %2269 = vrot.lane.b32.xlu0 %v1626, 96
        %v2270 = vpop.permute.xlu0 %2269
        %2271 = vrot.lane.b32.xlu0 %v1631, 96
        %v2272 = vpop.permute.xlu0 %2271
        %v2274 = vsel %vm1421, %v2270, 0
        %v2277 = vsel %vm1421, %v2272, 0
        %2279 = vmatpush.bf16.xpose.msra.mxu0 0
        %2280 = vmatpush.bf16.xpose.msra.mxu0 0
        %2281 = vmatpush.bf16.xpose.msra.mxu0 0
        %2282 = vmatpush.bf16.xpose.msra.mxu0 0
        %2283 = vmatpush.bf16.xpose.msra.mxu0 0
        %2284 = vmatpush.bf16.xpose.msra.mxu0 0
        %2285 = vmatpush.bf16.xpose.msra.mxu0 0
        %2286 = vmatpush.bf16.xpose.msra.mxu0 %v2277
        %2287 = vmatmul.bf16.gmra.mxu0 %v2274
        %v2288 = vpop.f32.mrf.mxu0
        %v2289 = vadd.f32 0.0, %v2288
        %v2290 = vpop.f32.mrf.mxu0
        %v2291 = vadd.f32 0.0, %v2290
        %2292 = vdwg.mxu0
        %v2293 = vmul.f32 %v2121, 0.17677669
        %v2294 = vmul.f32 %v2123, 0.17677669
        %v2295 = vmul.f32 %v2145, 0.17677669
        %v2296 = vmul.f32 %v2147, 0.17677669
        %v2297 = vmul.f32 %v2169, 0.17677669
        %v2298 = vmul.f32 %v2171, 0.17677669
        %v2299 = vmul.f32 %v2193, 0.17677669
        %v2300 = vmul.f32 %v2195, 0.17677669
        %v2301 = vmul.f32 %v2217, 0.17677669
        %v2302 = vmul.f32 %v2219, 0.17677669
        %v2303 = vmul.f32 %v2241, 0.17677669
        %v2304 = vmul.f32 %v2243, 0.17677669
        %v2305 = vmul.f32 %v2265, 0.17677669
        %v2306 = vmul.f32 %v2267, 0.17677669
        %v2307 = vmul.f32 %v2289, 0.17677669
        %v2308 = vmul.f32 %v2291, 0.17677669
        %v2309 = vadd.f32 %v2293, %v1361
        %v2310 = vadd.f32 %v2294, %v1362
        %v2311 = vadd.f32 %v2295, %v1361
        %v2312 = vadd.f32 %v2296, %v1362
        %v2313 = vadd.f32 %v2297, %v1361
        %v2314 = vadd.f32 %v2298, %v1362
        %v2315 = vadd.f32 %v2299, %v1361
        %v2316 = vadd.f32 %v2300, %v1362
        %v2317 = vadd.f32 %v2301, %v1361
        %v2318 = vadd.f32 %v2302, %v1362
        %v2319 = vadd.f32 %v2303, %v1361
        %v2320 = vadd.f32 %v2304, %v1362
        %v2321 = vadd.f32 %v2305, %v1361
        %v2322 = vadd.f32 %v2306, %v1362
        %v2323 = vadd.f32 %v2307, %v1361
        %v2324 = vadd.f32 %v2308, %v1362
        %v2325 = vsel %vm1684, %v2309, -inf
        %2326 = vmax.xlane.f32.xlu0 %v2325
        %v2327 = vpop.xlane.xlu0 %2326
        %v2328 = vsel %vm1684, %v2310, -inf
        %2329 = vmax.xlane.f32.xlu0 %v2328
        %v2330 = vpop.xlane.xlu0 %2329
        %v2331 = vsel %vm1684, %v2311, -inf
        %2332 = vmax.xlane.f32.xlu0 %v2331
        %v2333 = vpop.xlane.xlu0 %2332
        %v2334 = vsel %vm1684, %v2312, -inf
        %2335 = vmax.xlane.f32.xlu0 %v2334
        %v2336 = vpop.xlane.xlu0 %2335
        %v2337 = vsel %vm1684, %v2313, -inf
        %2338 = vmax.xlane.f32.xlu0 %v2337
        %v2339 = vpop.xlane.xlu0 %2338
        %v2340 = vsel %vm1684, %v2314, -inf
        %2341 = vmax.xlane.f32.xlu0 %v2340
        %v2342 = vpop.xlane.xlu0 %2341
        %v2343 = vsel %vm1684, %v2315, -inf
        %2344 = vmax.xlane.f32.xlu0 %v2343
        %v2345 = vpop.xlane.xlu0 %2344
        %v2346 = vsel %vm1684, %v2316, -inf
        %2347 = vmax.xlane.f32.xlu0 %v2346
        %v2348 = vpop.xlane.xlu0 %2347
        %v2349 = vsel %vm1684, %v2317, -inf
        %2350 = vmax.xlane.f32.xlu0 %v2349
        %v2351 = vpop.xlane.xlu0 %2350
        %v2352 = vsel %vm1684, %v2318, -inf
        %2353 = vmax.xlane.f32.xlu0 %v2352
        %v2354 = vpop.xlane.xlu0 %2353
        %v2355 = vsel %vm1684, %v2319, -inf
        %2356 = vmax.xlane.f32.xlu0 %v2355
        %v2357 = vpop.xlane.xlu0 %2356
        %v2358 = vsel %vm1684, %v2320, -inf
        %2359 = vmax.xlane.f32.xlu0 %v2358
        %v2360 = vpop.xlane.xlu0 %2359
        %v2361 = vsel %vm1684, %v2321, -inf
        %2362 = vmax.xlane.f32.xlu0 %v2361
        %v2363 = vpop.xlane.xlu0 %2362
        %v2364 = vsel %vm1684, %v2322, -inf
        %2365 = vmax.xlane.f32.xlu0 %v2364
        %v2366 = vpop.xlane.xlu0 %2365
        %v2367 = vsel %vm1684, %v2323, -inf
        %2368 = vmax.xlane.f32.xlu0 %v2367
        %v2369 = vpop.xlane.xlu0 %2368
        %v2370 = vsel %vm1684, %v2324, -inf
        %2371 = vmax.xlane.f32.xlu0 %v2370
        %v2372 = vpop.xlane.xlu0 %2371
        %v2373 = vsub.f32 %v2309, %v2327
        %v2374 = vsub.f32 %v2310, %v2330
        %v2375 = vsub.f32 %v2311, %v2333
        %v2376 = vsub.f32 %v2312, %v2336
        %v2377 = vsub.f32 %v2313, %v2339
        %v2378 = vsub.f32 %v2314, %v2342
        %v2379 = vsub.f32 %v2315, %v2345
        %v2380 = vsub.f32 %v2316, %v2348
        %v2381 = vsub.f32 %v2317, %v2351
        %v2382 = vsub.f32 %v2318, %v2354
        %v2383 = vsub.f32 %v2319, %v2357
        %v2384 = vsub.f32 %v2320, %v2360
        %v2385 = vsub.f32 %v2321, %v2363
        %v2386 = vsub.f32 %v2322, %v2366
        %v2387 = vsub.f32 %v2323, %v2369
        %v2388 = vsub.f32 %v2324, %v2372
        %v2389 = vmul.f32 %v2373, 1.442695
        %v2390 = vpow.pop %v2389
        %v2391 = vmul.f32 %v2374, 1.442695
        %v2392 = vpow.pop %v2391
        %v2393 = vmul.f32 %v2375, 1.442695
        %v2394 = vpow.pop %v2393
        %v2395 = vmul.f32 %v2376, 1.442695
        %v2396 = vpow.pop %v2395
        %v2397 = vmul.f32 %v2377, 1.442695
        %v2398 = vpow.pop %v2397
        %v2399 = vmul.f32 %v2378, 1.442695
        %v2400 = vpow.pop %v2399
        %v2401 = vmul.f32 %v2379, 1.442695
        %v2402 = vpow.pop %v2401
        %v2403 = vmul.f32 %v2380, 1.442695
        %v2404 = vpow.pop %v2403
        %v2405 = vmul.f32 %v2381, 1.442695
        %v2406 = vpow.pop %v2405
        %v2407 = vmul.f32 %v2382, 1.442695
        %v2408 = vpow.pop %v2407
        %v2409 = vmul.f32 %v2383, 1.442695
        %v2410 = vpow.pop %v2409
        %v2411 = vmul.f32 %v2384, 1.442695
        %v2412 = vpow.pop %v2411
        %v2413 = vmul.f32 %v2385, 1.442695
        %v2414 = vpow.pop %v2413
        %v2415 = vmul.f32 %v2386, 1.442695
        %v2416 = vpow.pop %v2415
        %v2417 = vmul.f32 %v2387, 1.442695
        %v2418 = vpow.pop %v2417
        %v2419 = vmul.f32 %v2388, 1.442695
        %v2420 = vpow.pop %v2419
        %v2421 = vsel %vm1684, %v2390, 0.0
        %2422 = vadd.xlane.f32.xlu0 %v2421
        %v2423 = vpop.xlane.xlu0 %2422
        %v2424 = vsel %vm1684, %v2392, 0.0
        %2425 = vadd.xlane.f32.xlu0 %v2424
        %v2426 = vpop.xlane.xlu0 %2425
        %v2427 = vsel %vm1684, %v2394, 0.0
        %2428 = vadd.xlane.f32.xlu0 %v2427
        %v2429 = vpop.xlane.xlu0 %2428
        %v2430 = vsel %vm1684, %v2396, 0.0
        %2431 = vadd.xlane.f32.xlu0 %v2430
        %v2432 = vpop.xlane.xlu0 %2431
        %v2433 = vsel %vm1684, %v2398, 0.0
        %2434 = vadd.xlane.f32.xlu0 %v2433
        %v2435 = vpop.xlane.xlu0 %2434
        %v2436 = vsel %vm1684, %v2400, 0.0
        %2437 = vadd.xlane.f32.xlu0 %v2436
        %v2438 = vpop.xlane.xlu0 %2437
        %v2439 = vsel %vm1684, %v2402, 0.0
        %2440 = vadd.xlane.f32.xlu0 %v2439
        %v2441 = vpop.xlane.xlu0 %2440
        %v2442 = vsel %vm1684, %v2404, 0.0
        %2443 = vadd.xlane.f32.xlu0 %v2442
        %v2444 = vpop.xlane.xlu0 %2443
        %v2445 = vsel %vm1684, %v2406, 0.0
        %2446 = vadd.xlane.f32.xlu0 %v2445
        %v2447 = vpop.xlane.xlu0 %2446
        %v2448 = vsel %vm1684, %v2408, 0.0
        %2449 = vadd.xlane.f32.xlu0 %v2448
        %v2450 = vpop.xlane.xlu0 %2449
        %v2451 = vsel %vm1684, %v2410, 0.0
        %2452 = vadd.xlane.f32.xlu0 %v2451
        %v2453 = vpop.xlane.xlu0 %2452
        %v2454 = vsel %vm1684, %v2412, 0.0
        %2455 = vadd.xlane.f32.xlu0 %v2454
        %v2456 = vpop.xlane.xlu0 %2455
        %v2457 = vsel %vm1684, %v2414, 0.0
        %2458 = vadd.xlane.f32.xlu0 %v2457
        %v2459 = vpop.xlane.xlu0 %2458
        %v2460 = vsel %vm1684, %v2416, 0.0
        %2461 = vadd.xlane.f32.xlu0 %v2460
        %v2462 = vpop.xlane.xlu0 %2461
        %v2463 = vsel %vm1684, %v2418, 0.0
        %2464 = vadd.xlane.f32.xlu0 %v2463
        %v2465 = vpop.xlane.xlu0 %2464
        %v2466 = vsel %vm1684, %v2420, 0.0
        %2467 = vadd.xlane.f32.xlu0 %v2466
        %v2468 = vpop.xlane.xlu0 %2467
        %v2469 = vrcp.pop %v2423
        %v2470 = vrcp.pop %v2426
        %v2471 = vrcp.pop %v2429
        %v2472 = vrcp.pop %v2432
        %v2473 = vrcp.pop %v2435
        %v2474 = vrcp.pop %v2438
        %v2475 = vrcp.pop %v2441
        %v2476 = vrcp.pop %v2444
        %v2477 = vrcp.pop %v2447
        %v2478 = vrcp.pop %v2450
        %v2479 = vrcp.pop %v2453
        %v2480 = vrcp.pop %v2456
        %v2481 = vrcp.pop %v2459
        %v2482 = vrcp.pop %v2462
        %v2483 = vrcp.pop %v2465
        %v2484 = vrcp.pop %v2468
        %v2485 = vmul.f32 %v2390, %v2469
        %v2486 = vmul.f32 %v2392, %v2470
        %v2487 = vmul.f32 %v2394, %v2471
        %v2488 = vmul.f32 %v2396, %v2472
        %v2489 = vmul.f32 %v2398, %v2473
        %v2490 = vmul.f32 %v2400, %v2474
        %v2491 = vmul.f32 %v2402, %v2475
        %v2492 = vmul.f32 %v2404, %v2476
        %v2493 = vmul.f32 %v2406, %v2477
        %v2494 = vmul.f32 %v2408, %v2478
        %v2495 = vmul.f32 %v2410, %v2479
        %v2496 = vmul.f32 %v2412, %v2480
        %v2497 = vmul.f32 %v2414, %v2481
        %v2498 = vmul.f32 %v2416, %v2482
        %v2499 = vmul.f32 %v2418, %v2483
        %v2500 = vmul.f32 %v2420, %v2484
        %v2501 = vpack.c.bf16 %v2485, %v2485
        %v2502 = vpack.c.bf16 %v2486, %v2486
        %v2503 = vpack.c.bf16 %v2487, %v2487
        %v2504 = vpack.c.bf16 %v2488, %v2488
        %v2505 = vpack.c.bf16 %v2489, %v2489
        %v2506 = vpack.c.bf16 %v2490, %v2490
        %v2507 = vpack.c.bf16 %v2491, %v2491
        %v2508 = vpack.c.bf16 %v2492, %v2492
        %v2509 = vpack.c.bf16 %v2493, %v2493
        %v2510 = vpack.c.bf16 %v2494, %v2494
        %v2511 = vpack.c.bf16 %v2495, %v2495
        %v2512 = vpack.c.bf16 %v2496, %v2496
        %v2513 = vpack.c.bf16 %v2497, %v2497
        %v2514 = vpack.c.bf16 %v2498, %v2498
        %v2515 = vpack.c.bf16 %v2499, %v2499
        %v2516 = vpack.c.bf16 %v2500, %v2500
        %v2519 = vunpack.c.l.b16 %v2501
        %v2520 = vunpack.c.l.b16 %v2502
        %v2521 = vpack.c.b16 %v2520, %v2519
        %2522 = vrot.lane.b32.xlu0 %v1886, 96
        %v2523 = vpop.permute.xlu0 %2522
        %v2526 = vsel %vm1684, %v2521, 0
        %2528 = vmatpush.bf16.msra.mxu0 0
        %2529 = vmatpush.bf16.msra.mxu0 0
        %2530 = vmatpush.bf16.msra.mxu0 0
        %2531 = vmatpush.bf16.msra.mxu0 0
        %2532 = vmatpush.bf16.msra.mxu0 0
        %2533 = vmatpush.bf16.msra.mxu0 0
        %2534 = vmatpush.bf16.msra.mxu0 0
        %2535 = vmatpush.bf16.msra.mxu0 %v2523
        %2536 = vmatmul.bf16.gmra.mxu0 %v2526
        %v2537 = vpop.f32.mrf.mxu0
        %v2538 = vadd.f32 0.0, %v2537
        %v2539 = vpop.f32.mrf.mxu0
        %v2540 = vadd.f32 0.0, %v2539
        %2541 = vdwg.mxu0
        %v2544 = vunpack.c.l.b16 %v2503
        %v2545 = vunpack.c.l.b16 %v2504
        %v2546 = vpack.c.b16 %v2545, %v2544
        %2547 = vrot.lane.b32.xlu0 %v1914, 96
        %v2548 = vpop.permute.xlu0 %2547
        %v2551 = vsel %vm1684, %v2546, 0
        %2553 = vmatpush.bf16.msra.mxu0 0
        %2554 = vmatpush.bf16.msra.mxu0 0
        %2555 = vmatpush.bf16.msra.mxu0 0
        %2556 = vmatpush.bf16.msra.mxu0 0
        %2557 = vmatpush.bf16.msra.mxu0 0
        %2558 = vmatpush.bf16.msra.mxu0 0
        %2559 = vmatpush.bf16.msra.mxu0 0
        %2560 = vmatpush.bf16.msra.mxu0 %v2548
        %2561 = vmatmul.bf16.gmra.mxu0 %v2551
        %v2562 = vpop.f32.mrf.mxu0
        %v2563 = vadd.f32 0.0, %v2562
        %v2564 = vpop.f32.mrf.mxu0
        %v2565 = vadd.f32 0.0, %v2564
        %2566 = vdwg.mxu0
        %v2569 = vunpack.c.l.b16 %v2505
        %v2570 = vunpack.c.l.b16 %v2506
        %v2571 = vpack.c.b16 %v2570, %v2569
        %2572 = vrot.lane.b32.xlu0 %v1942, 96
        %v2573 = vpop.permute.xlu0 %2572
        %v2576 = vsel %vm1684, %v2571, 0
        %2578 = vmatpush.bf16.msra.mxu0 0
        %2579 = vmatpush.bf16.msra.mxu0 0
        %2580 = vmatpush.bf16.msra.mxu0 0
        %2581 = vmatpush.bf16.msra.mxu0 0
        %2582 = vmatpush.bf16.msra.mxu0 0
        %2583 = vmatpush.bf16.msra.mxu0 0
        %2584 = vmatpush.bf16.msra.mxu0 0
        %2585 = vmatpush.bf16.msra.mxu0 %v2573
        %2586 = vmatmul.bf16.gmra.mxu0 %v2576
        %v2587 = vpop.f32.mrf.mxu0
        %v2588 = vadd.f32 0.0, %v2587
        %v2589 = vpop.f32.mrf.mxu0
        %v2590 = vadd.f32 0.0, %v2589
        %2591 = vdwg.mxu0
        %v2594 = vunpack.c.l.b16 %v2507
        %v2595 = vunpack.c.l.b16 %v2508
        %v2596 = vpack.c.b16 %v2595, %v2594
        %2597 = vrot.lane.b32.xlu0 %v1970, 96
        %v2598 = vpop.permute.xlu0 %2597
        %v2601 = vsel %vm1684, %v2596, 0
        %2603 = vmatpush.bf16.msra.mxu0 0
        %2604 = vmatpush.bf16.msra.mxu0 0
        %2605 = vmatpush.bf16.msra.mxu0 0
        %2606 = vmatpush.bf16.msra.mxu0 0
        %2607 = vmatpush.bf16.msra.mxu0 0
        %2608 = vmatpush.bf16.msra.mxu0 0
        %2609 = vmatpush.bf16.msra.mxu0 0
        %2610 = vmatpush.bf16.msra.mxu0 %v2598
        %2611 = vmatmul.bf16.gmra.mxu0 %v2601
        %v2612 = vpop.f32.mrf.mxu0
        %v2613 = vadd.f32 0.0, %v2612
        %v2614 = vpop.f32.mrf.mxu0
        %v2615 = vadd.f32 0.0, %v2614
        %2616 = vdwg.mxu0
        %v2619 = vunpack.c.l.b16 %v2509
        %v2620 = vunpack.c.l.b16 %v2510
        %v2621 = vpack.c.b16 %v2620, %v2619
        %2622 = vrot.lane.b32.xlu0 %v1998, 96
        %v2623 = vpop.permute.xlu0 %2622
        %v2626 = vsel %vm1684, %v2621, 0
        %2628 = vmatpush.bf16.msra.mxu0 0
        %2629 = vmatpush.bf16.msra.mxu0 0
        %2630 = vmatpush.bf16.msra.mxu0 0
        %2631 = vmatpush.bf16.msra.mxu0 0
        %2632 = vmatpush.bf16.msra.mxu0 0
        %2633 = vmatpush.bf16.msra.mxu0 0
        %2634 = vmatpush.bf16.msra.mxu0 0
        %2635 = vmatpush.bf16.msra.mxu0 %v2623
        %2636 = vmatmul.bf16.gmra.mxu0 %v2626
        %v2637 = vpop.f32.mrf.mxu0
        %v2638 = vadd.f32 0.0, %v2637
        %v2639 = vpop.f32.mrf.mxu0
        %v2640 = vadd.f32 0.0, %v2639
        %2641 = vdwg.mxu0
        %v2644 = vunpack.c.l.b16 %v2511
        %v2645 = vunpack.c.l.b16 %v2512
        %v2646 = vpack.c.b16 %v2645, %v2644
        %2647 = vrot.lane.b32.xlu0 %v2026, 96
        %v2648 = vpop.permute.xlu0 %2647
        %v2651 = vsel %vm1684, %v2646, 0
        %2653 = vmatpush.bf16.msra.mxu0 0
        %2654 = vmatpush.bf16.msra.mxu0 0
        %2655 = vmatpush.bf16.msra.mxu0 0
        %2656 = vmatpush.bf16.msra.mxu0 0
        %2657 = vmatpush.bf16.msra.mxu0 0
        %2658 = vmatpush.bf16.msra.mxu0 0
        %2659 = vmatpush.bf16.msra.mxu0 0
        %2660 = vmatpush.bf16.msra.mxu0 %v2648
        %2661 = vmatmul.bf16.gmra.mxu0 %v2651
        %v2662 = vpop.f32.mrf.mxu0
        %v2663 = vadd.f32 0.0, %v2662
        %v2664 = vpop.f32.mrf.mxu0
        %v2665 = vadd.f32 0.0, %v2664
        %2666 = vdwg.mxu0
        %v2669 = vunpack.c.l.b16 %v2513
        %v2670 = vunpack.c.l.b16 %v2514
        %v2671 = vpack.c.b16 %v2670, %v2669
        %2672 = vrot.lane.b32.xlu0 %v2054, 96
        %v2673 = vpop.permute.xlu0 %2672
        %v2676 = vsel %vm1684, %v2671, 0
        %2678 = vmatpush.bf16.msra.mxu0 0
        %2679 = vmatpush.bf16.msra.mxu0 0
        %2680 = vmatpush.bf16.msra.mxu0 0
        %2681 = vmatpush.bf16.msra.mxu0 0
        %2682 = vmatpush.bf16.msra.mxu0 0
        %2683 = vmatpush.bf16.msra.mxu0 0
        %2684 = vmatpush.bf16.msra.mxu0 0
        %2685 = vmatpush.bf16.msra.mxu0 %v2673
        %2686 = vmatmul.bf16.gmra.mxu0 %v2676
        %v2687 = vpop.f32.mrf.mxu0
        %v2688 = vadd.f32 0.0, %v2687
        %v2689 = vpop.f32.mrf.mxu0
        %v2690 = vadd.f32 0.0, %v2689
        %2691 = vdwg.mxu0
        %v2694 = vunpack.c.l.b16 %v2515
        %v2695 = vunpack.c.l.b16 %v2516
        %v2696 = vpack.c.b16 %v2695, %v2694
        %2697 = vrot.lane.b32.xlu0 %v2082, 96
        %v2698 = vpop.permute.xlu0 %2697
        %v2701 = vsel %vm1684, %v2696, 0
        %2703 = vmatpush.bf16.msra.mxu0 0
        %2704 = vmatpush.bf16.msra.mxu0 0
        %2705 = vmatpush.bf16.msra.mxu0 0
        %2706 = vmatpush.bf16.msra.mxu0 0
        %2707 = vmatpush.bf16.msra.mxu0 0
        %2708 = vmatpush.bf16.msra.mxu0 0
        %2709 = vmatpush.bf16.msra.mxu0 0
        %2710 = vmatpush.bf16.msra.mxu0 %v2698
        %2711 = vmatmul.bf16.gmra.mxu0 %v2701
        %v2712 = vpop.f32.mrf.mxu0
        %v2713 = vadd.f32 0.0, %v2712
        %v2714 = vpop.f32.mrf.mxu0
        %v2715 = vadd.f32 0.0, %v2714
        %2716 = vdwg.mxu0
        %2717 = vrot.lane.b32.xlu0 %v1415, 64
        %v2718 = vpop.permute.xlu0 %2717
        %2719 = vrot.lane.b32.xlu0 %v1420, 64
        %v2720 = vpop.permute.xlu0 %2719
        %v2722 = vsel %vm1421, %v2718, 0
        %v2725 = vsel %vm1421, %v2720, 0
        %2727 = vmatpush.bf16.xpose.msra.mxu0 0
        %2728 = vmatpush.bf16.xpose.msra.mxu0 0
        %2729 = vmatpush.bf16.xpose.msra.mxu0 0
        %2730 = vmatpush.bf16.xpose.msra.mxu0 0
        %2731 = vmatpush.bf16.xpose.msra.mxu0 0
        %2732 = vmatpush.bf16.xpose.msra.mxu0 0
        %2733 = vmatpush.bf16.xpose.msra.mxu0 0
        %2734 = vmatpush.bf16.xpose.msra.mxu0 %v2725
        %2735 = vmatmul.bf16.gmra.mxu0 %v2722
        %v2736 = vpop.f32.mrf.mxu0
        %v2737 = vadd.f32 0.0, %v2736
        %v2738 = vpop.f32.mrf.mxu0
        %v2739 = vadd.f32 0.0, %v2738
        %2740 = vdwg.mxu0
        %2741 = vrot.lane.b32.xlu0 %v1446, 64
        %v2742 = vpop.permute.xlu0 %2741
        %2743 = vrot.lane.b32.xlu0 %v1451, 64
        %v2744 = vpop.permute.xlu0 %2743
        %v2746 = vsel %vm1421, %v2742, 0
        %v2749 = vsel %vm1421, %v2744, 0
        %2751 = vmatpush.bf16.xpose.msra.mxu0 0
        %2752 = vmatpush.bf16.xpose.msra.mxu0 0
        %2753 = vmatpush.bf16.xpose.msra.mxu0 0
        %2754 = vmatpush.bf16.xpose.msra.mxu0 0
        %2755 = vmatpush.bf16.xpose.msra.mxu0 0
        %2756 = vmatpush.bf16.xpose.msra.mxu0 0
        %2757 = vmatpush.bf16.xpose.msra.mxu0 0
        %2758 = vmatpush.bf16.xpose.msra.mxu0 %v2749
        %2759 = vmatmul.bf16.gmra.mxu0 %v2746
        %v2760 = vpop.f32.mrf.mxu0
        %v2761 = vadd.f32 0.0, %v2760
        %v2762 = vpop.f32.mrf.mxu0
        %v2763 = vadd.f32 0.0, %v2762
        %2764 = vdwg.mxu0
        %2765 = vrot.lane.b32.xlu0 %v1476, 64
        %v2766 = vpop.permute.xlu0 %2765
        %2767 = vrot.lane.b32.xlu0 %v1481, 64
        %v2768 = vpop.permute.xlu0 %2767
        %v2770 = vsel %vm1421, %v2766, 0
        %v2773 = vsel %vm1421, %v2768, 0
        %2775 = vmatpush.bf16.xpose.msra.mxu0 0
        %2776 = vmatpush.bf16.xpose.msra.mxu0 0
        %2777 = vmatpush.bf16.xpose.msra.mxu0 0
        %2778 = vmatpush.bf16.xpose.msra.mxu0 0
        %2779 = vmatpush.bf16.xpose.msra.mxu0 0
        %2780 = vmatpush.bf16.xpose.msra.mxu0 0
        %2781 = vmatpush.bf16.xpose.msra.mxu0 0
        %2782 = vmatpush.bf16.xpose.msra.mxu0 %v2773
        %2783 = vmatmul.bf16.gmra.mxu0 %v2770
        %v2784 = vpop.f32.mrf.mxu0
        %v2785 = vadd.f32 0.0, %v2784
        %v2786 = vpop.f32.mrf.mxu0
        %v2787 = vadd.f32 0.0, %v2786
        %2788 = vdwg.mxu0
        %2789 = vrot.lane.b32.xlu0 %v1506, 64
        %v2790 = vpop.permute.xlu0 %2789
        %2791 = vrot.lane.b32.xlu0 %v1511, 64
        %v2792 = vpop.permute.xlu0 %2791
        %v2794 = vsel %vm1421, %v2790, 0
        %v2797 = vsel %vm1421, %v2792, 0
        %2799 = vmatpush.bf16.xpose.msra.mxu0 0
        %2800 = vmatpush.bf16.xpose.msra.mxu0 0
        %2801 = vmatpush.bf16.xpose.msra.mxu0 0
        %2802 = vmatpush.bf16.xpose.msra.mxu0 0
        %2803 = vmatpush.bf16.xpose.msra.mxu0 0
        %2804 = vmatpush.bf16.xpose.msra.mxu0 0
        %2805 = vmatpush.bf16.xpose.msra.mxu0 0
        %2806 = vmatpush.bf16.xpose.msra.mxu0 %v2797
        %2807 = vmatmul.bf16.gmra.mxu0 %v2794
        %v2808 = vpop.f32.mrf.mxu0
        %v2809 = vadd.f32 0.0, %v2808
        %v2810 = vpop.f32.mrf.mxu0
        %v2811 = vadd.f32 0.0, %v2810
        %2812 = vdwg.mxu0
        %2813 = vrot.lane.b32.xlu0 %v1536, 64
        %v2814 = vpop.permute.xlu0 %2813
        %2815 = vrot.lane.b32.xlu0 %v1541, 64
        %v2816 = vpop.permute.xlu0 %2815
        %v2818 = vsel %vm1421, %v2814, 0
        %v2821 = vsel %vm1421, %v2816, 0
        %2823 = vmatpush.bf16.xpose.msra.mxu0 0
        %2824 = vmatpush.bf16.xpose.msra.mxu0 0
        %2825 = vmatpush.bf16.xpose.msra.mxu0 0
        %2826 = vmatpush.bf16.xpose.msra.mxu0 0
        %2827 = vmatpush.bf16.xpose.msra.mxu0 0
        %2828 = vmatpush.bf16.xpose.msra.mxu0 0
        %2829 = vmatpush.bf16.xpose.msra.mxu0 0
        %2830 = vmatpush.bf16.xpose.msra.mxu0 %v2821
        %2831 = vmatmul.bf16.gmra.mxu0 %v2818
        %v2832 = vpop.f32.mrf.mxu0
        %v2833 = vadd.f32 0.0, %v2832
        %v2834 = vpop.f32.mrf.mxu0
        %v2835 = vadd.f32 0.0, %v2834
        %2836 = vdwg.mxu0
        %2837 = vrot.lane.b32.xlu0 %v1566, 64
        %v2838 = vpop.permute.xlu0 %2837
        %2839 = vrot.lane.b32.xlu0 %v1571, 64
        %v2840 = vpop.permute.xlu0 %2839
        %v2842 = vsel %vm1421, %v2838, 0
        %v2845 = vsel %vm1421, %v2840, 0
        %2847 = vmatpush.bf16.xpose.msra.mxu0 0
        %2848 = vmatpush.bf16.xpose.msra.mxu0 0
        %2849 = vmatpush.bf16.xpose.msra.mxu0 0
        %2850 = vmatpush.bf16.xpose.msra.mxu0 0
        %2851 = vmatpush.bf16.xpose.msra.mxu0 0
        %2852 = vmatpush.bf16.xpose.msra.mxu0 0
        %2853 = vmatpush.bf16.xpose.msra.mxu0 0
        %2854 = vmatpush.bf16.xpose.msra.mxu0 %v2845
        %2855 = vmatmul.bf16.gmra.mxu0 %v2842
        %v2856 = vpop.f32.mrf.mxu0
        %v2857 = vadd.f32 0.0, %v2856
        %v2858 = vpop.f32.mrf.mxu0
        %v2859 = vadd.f32 0.0, %v2858
        %2860 = vdwg.mxu0
        %2861 = vrot.lane.b32.xlu0 %v1596, 64
        %v2862 = vpop.permute.xlu0 %2861
        %2863 = vrot.lane.b32.xlu0 %v1601, 64
        %v2864 = vpop.permute.xlu0 %2863
        %v2866 = vsel %vm1421, %v2862, 0
        %v2869 = vsel %vm1421, %v2864, 0
        %2871 = vmatpush.bf16.xpose.msra.mxu0 0
        %2872 = vmatpush.bf16.xpose.msra.mxu0 0
        %2873 = vmatpush.bf16.xpose.msra.mxu0 0
        %2874 = vmatpush.bf16.xpose.msra.mxu0 0
        %2875 = vmatpush.bf16.xpose.msra.mxu0 0
        %2876 = vmatpush.bf16.xpose.msra.mxu0 0
        %2877 = vmatpush.bf16.xpose.msra.mxu0 0
        %2878 = vmatpush.bf16.xpose.msra.mxu0 %v2869
        %2879 = vmatmul.bf16.gmra.mxu0 %v2866
        %v2880 = vpop.f32.mrf.mxu0
        %v2881 = vadd.f32 0.0, %v2880
        %v2882 = vpop.f32.mrf.mxu0
        %v2883 = vadd.f32 0.0, %v2882
        %2884 = vdwg.mxu0
        %2885 = vrot.lane.b32.xlu0 %v1626, 64
        %v2886 = vpop.permute.xlu0 %2885
        %2887 = vrot.lane.b32.xlu0 %v1631, 64
        %v2888 = vpop.permute.xlu0 %2887
        %v2890 = vsel %vm1421, %v2886, 0
        %v2893 = vsel %vm1421, %v2888, 0
        %2895 = vmatpush.bf16.xpose.msra.mxu0 0
        %2896 = vmatpush.bf16.xpose.msra.mxu0 0
        %2897 = vmatpush.bf16.xpose.msra.mxu0 0
        %2898 = vmatpush.bf16.xpose.msra.mxu0 0
        %2899 = vmatpush.bf16.xpose.msra.mxu0 0
        %2900 = vmatpush.bf16.xpose.msra.mxu0 0
        %2901 = vmatpush.bf16.xpose.msra.mxu0 0
        %2902 = vmatpush.bf16.xpose.msra.mxu0 %v2893
        %2903 = vmatmul.bf16.gmra.mxu0 %v2890
        %v2904 = vpop.f32.mrf.mxu0
        %v2905 = vadd.f32 0.0, %v2904
        %v2906 = vpop.f32.mrf.mxu0
        %v2907 = vadd.f32 0.0, %v2906
        %2908 = vdwg.mxu0
        %v2909 = vmul.f32 %v2737, 0.17677669
        %v2910 = vmul.f32 %v2739, 0.17677669
        %v2911 = vmul.f32 %v2761, 0.17677669
        %v2912 = vmul.f32 %v2763, 0.17677669
        %v2913 = vmul.f32 %v2785, 0.17677669
        %v2914 = vmul.f32 %v2787, 0.17677669
        %v2915 = vmul.f32 %v2809, 0.17677669
        %v2916 = vmul.f32 %v2811, 0.17677669
        %v2917 = vmul.f32 %v2833, 0.17677669
        %v2918 = vmul.f32 %v2835, 0.17677669
        %v2919 = vmul.f32 %v2857, 0.17677669
        %v2920 = vmul.f32 %v2859, 0.17677669
        %v2921 = vmul.f32 %v2881, 0.17677669
        %v2922 = vmul.f32 %v2883, 0.17677669
        %v2923 = vmul.f32 %v2905, 0.17677669
        %v2924 = vmul.f32 %v2907, 0.17677669
        %v2925 = vadd.f32 %v2909, %v1361
        %v2926 = vadd.f32 %v2910, %v1362
        %v2927 = vadd.f32 %v2911, %v1361
        %v2928 = vadd.f32 %v2912, %v1362
        %v2929 = vadd.f32 %v2913, %v1361
        %v2930 = vadd.f32 %v2914, %v1362
        %v2931 = vadd.f32 %v2915, %v1361
        %v2932 = vadd.f32 %v2916, %v1362
        %v2933 = vadd.f32 %v2917, %v1361
        %v2934 = vadd.f32 %v2918, %v1362
        %v2935 = vadd.f32 %v2919, %v1361
        %v2936 = vadd.f32 %v2920, %v1362
        %v2937 = vadd.f32 %v2921, %v1361
        %v2938 = vadd.f32 %v2922, %v1362
        %v2939 = vadd.f32 %v2923, %v1361
        %v2940 = vadd.f32 %v2924, %v1362
        %v2941 = vsel %vm1684, %v2925, -inf
        %2942 = vmax.xlane.f32.xlu0 %v2941
        %v2943 = vpop.xlane.xlu0 %2942
        %v2944 = vsel %vm1684, %v2926, -inf
        %2945 = vmax.xlane.f32.xlu0 %v2944
        %v2946 = vpop.xlane.xlu0 %2945
        %v2947 = vsel %vm1684, %v2927, -inf
        %2948 = vmax.xlane.f32.xlu0 %v2947
        %v2949 = vpop.xlane.xlu0 %2948
        %v2950 = vsel %vm1684, %v2928, -inf
        %2951 = vmax.xlane.f32.xlu0 %v2950
        %v2952 = vpop.xlane.xlu0 %2951
        %v2953 = vsel %vm1684, %v2929, -inf
        %2954 = vmax.xlane.f32.xlu0 %v2953
        %v2955 = vpop.xlane.xlu0 %2954
        %v2956 = vsel %vm1684, %v2930, -inf
        %2957 = vmax.xlane.f32.xlu0 %v2956
        %v2958 = vpop.xlane.xlu0 %2957
        %v2959 = vsel %vm1684, %v2931, -inf
        %2960 = vmax.xlane.f32.xlu0 %v2959
        %v2961 = vpop.xlane.xlu0 %2960
        %v2962 = vsel %vm1684, %v2932, -inf
        %2963 = vmax.xlane.f32.xlu0 %v2962
        %v2964 = vpop.xlane.xlu0 %2963
        %v2965 = vsel %vm1684, %v2933, -inf
        %2966 = vmax.xlane.f32.xlu0 %v2965
        %v2967 = vpop.xlane.xlu0 %2966
        %v2968 = vsel %vm1684, %v2934, -inf
        %2969 = vmax.xlane.f32.xlu0 %v2968
        %v2970 = vpop.xlane.xlu0 %2969
        %v2971 = vsel %vm1684, %v2935, -inf
        %2972 = vmax.xlane.f32.xlu0 %v2971
        %v2973 = vpop.xlane.xlu0 %2972
        %v2974 = vsel %vm1684, %v2936, -inf
        %2975 = vmax.xlane.f32.xlu0 %v2974
        %v2976 = vpop.xlane.xlu0 %2975
        %v2977 = vsel %vm1684, %v2937, -inf
        %2978 = vmax.xlane.f32.xlu0 %v2977
        %v2979 = vpop.xlane.xlu0 %2978
        %v2980 = vsel %vm1684, %v2938, -inf
        %2981 = vmax.xlane.f32.xlu0 %v2980
        %v2982 = vpop.xlane.xlu0 %2981
        %v2983 = vsel %vm1684, %v2939, -inf
        %2984 = vmax.xlane.f32.xlu0 %v2983
        %v2985 = vpop.xlane.xlu0 %2984
        %v2986 = vsel %vm1684, %v2940, -inf
        %2987 = vmax.xlane.f32.xlu0 %v2986
        %v2988 = vpop.xlane.xlu0 %2987
        %v2989 = vsub.f32 %v2925, %v2943
        %v2990 = vsub.f32 %v2926, %v2946
        %v2991 = vsub.f32 %v2927, %v2949
        %v2992 = vsub.f32 %v2928, %v2952
        %v2993 = vsub.f32 %v2929, %v2955
        %v2994 = vsub.f32 %v2930, %v2958
        %v2995 = vsub.f32 %v2931, %v2961
        %v2996 = vsub.f32 %v2932, %v2964
        %v2997 = vsub.f32 %v2933, %v2967
        %v2998 = vsub.f32 %v2934, %v2970
        %v2999 = vsub.f32 %v2935, %v2973
        %v3000 = vsub.f32 %v2936, %v2976
        %v3001 = vsub.f32 %v2937, %v2979
        %v3002 = vsub.f32 %v2938, %v2982
        %v3003 = vsub.f32 %v2939, %v2985
        %v3004 = vsub.f32 %v2940, %v2988
        %v3005 = vmul.f32 %v2989, 1.442695
        %v3006 = vpow.pop %v3005
        %v3007 = vmul.f32 %v2990, 1.442695
        %v3008 = vpow.pop %v3007
        %v3009 = vmul.f32 %v2991, 1.442695
        %v3010 = vpow.pop %v3009
        %v3011 = vmul.f32 %v2992, 1.442695
        %v3012 = vpow.pop %v3011
        %v3013 = vmul.f32 %v2993, 1.442695
        %v3014 = vpow.pop %v3013
        %v3015 = vmul.f32 %v2994, 1.442695
        %v3016 = vpow.pop %v3015
        %v3017 = vmul.f32 %v2995, 1.442695
        %v3018 = vpow.pop %v3017
        %v3019 = vmul.f32 %v2996, 1.442695
        %v3020 = vpow.pop %v3019
        %v3021 = vmul.f32 %v2997, 1.442695
        %v3022 = vpow.pop %v3021
        %v3023 = vmul.f32 %v2998, 1.442695
        %v3024 = vpow.pop %v3023
        %v3025 = vmul.f32 %v2999, 1.442695
        %v3026 = vpow.pop %v3025
        %v3027 = vmul.f32 %v3000, 1.442695
        %v3028 = vpow.pop %v3027
        %v3029 = vmul.f32 %v3001, 1.442695
        %v3030 = vpow.pop %v3029
        %v3031 = vmul.f32 %v3002, 1.442695
        %v3032 = vpow.pop %v3031
        %v3033 = vmul.f32 %v3003, 1.442695
        %v3034 = vpow.pop %v3033
        %v3035 = vmul.f32 %v3004, 1.442695
        %v3036 = vpow.pop %v3035
        %v3037 = vsel %vm1684, %v3006, 0.0
        %3038 = vadd.xlane.f32.xlu0 %v3037
        %v3039 = vpop.xlane.xlu0 %3038
        %v3040 = vsel %vm1684, %v3008, 0.0
        %3041 = vadd.xlane.f32.xlu0 %v3040
        %v3042 = vpop.xlane.xlu0 %3041
        %v3043 = vsel %vm1684, %v3010, 0.0
        %3044 = vadd.xlane.f32.xlu0 %v3043
        %v3045 = vpop.xlane.xlu0 %3044
        %v3046 = vsel %vm1684, %v3012, 0.0
        %3047 = vadd.xlane.f32.xlu0 %v3046
        %v3048 = vpop.xlane.xlu0 %3047
        %v3049 = vsel %vm1684, %v3014, 0.0
        %3050 = vadd.xlane.f32.xlu0 %v3049
        %v3051 = vpop.xlane.xlu0 %3050
        %v3052 = vsel %vm1684, %v3016, 0.0
        %3053 = vadd.xlane.f32.xlu0 %v3052
        %v3054 = vpop.xlane.xlu0 %3053
        %v3055 = vsel %vm1684, %v3018, 0.0
        %3056 = vadd.xlane.f32.xlu0 %v3055
        %v3057 = vpop.xlane.xlu0 %3056
        %v3058 = vsel %vm1684, %v3020, 0.0
        %3059 = vadd.xlane.f32.xlu0 %v3058
        %v3060 = vpop.xlane.xlu0 %3059
        %v3061 = vsel %vm1684, %v3022, 0.0
        %3062 = vadd.xlane.f32.xlu0 %v3061
        %v3063 = vpop.xlane.xlu0 %3062
        %v3064 = vsel %vm1684, %v3024, 0.0
        %3065 = vadd.xlane.f32.xlu0 %v3064
        %v3066 = vpop.xlane.xlu0 %3065
        %v3067 = vsel %vm1684, %v3026, 0.0
        %3068 = vadd.xlane.f32.xlu0 %v3067
        %v3069 = vpop.xlane.xlu0 %3068
        %v3070 = vsel %vm1684, %v3028, 0.0
        %3071 = vadd.xlane.f32.xlu0 %v3070
        %v3072 = vpop.xlane.xlu0 %3071
        %v3073 = vsel %vm1684, %v3030, 0.0
        %3074 = vadd.xlane.f32.xlu0 %v3073
        %v3075 = vpop.xlane.xlu0 %3074
        %v3076 = vsel %vm1684, %v3032, 0.0
        %3077 = vadd.xlane.f32.xlu0 %v3076
        %v3078 = vpop.xlane.xlu0 %3077
        %v3079 = vsel %vm1684, %v3034, 0.0
        %3080 = vadd.xlane.f32.xlu0 %v3079
        %v3081 = vpop.xlane.xlu0 %3080
        %v3082 = vsel %vm1684, %v3036, 0.0
        %3083 = vadd.xlane.f32.xlu0 %v3082
        %v3084 = vpop.xlane.xlu0 %3083
        %v3085 = vrcp.pop %v3039
        %v3086 = vrcp.pop %v3042
        %v3087 = vrcp.pop %v3045
        %v3088 = vrcp.pop %v3048
        %v3089 = vrcp.pop %v3051
        %v3090 = vrcp.pop %v3054
        %v3091 = vrcp.pop %v3057
        %v3092 = vrcp.pop %v3060
        %v3093 = vrcp.pop %v3063
        %v3094 = vrcp.pop %v3066
        %v3095 = vrcp.pop %v3069
        %v3096 = vrcp.pop %v3072
        %v3097 = vrcp.pop %v3075
        %v3098 = vrcp.pop %v3078
        %v3099 = vrcp.pop %v3081
        %v3100 = vrcp.pop %v3084
        %v3101 = vmul.f32 %v3006, %v3085
        %v3102 = vmul.f32 %v3008, %v3086
        %v3103 = vmul.f32 %v3010, %v3087
        %v3104 = vmul.f32 %v3012, %v3088
        %v3105 = vmul.f32 %v3014, %v3089
        %v3106 = vmul.f32 %v3016, %v3090
        %v3107 = vmul.f32 %v3018, %v3091
        %v3108 = vmul.f32 %v3020, %v3092
        %v3109 = vmul.f32 %v3022, %v3093
        %v3110 = vmul.f32 %v3024, %v3094
        %v3111 = vmul.f32 %v3026, %v3095
        %v3112 = vmul.f32 %v3028, %v3096
        %v3113 = vmul.f32 %v3030, %v3097
        %v3114 = vmul.f32 %v3032, %v3098
        %v3115 = vmul.f32 %v3034, %v3099
        %v3116 = vmul.f32 %v3036, %v3100
        %v3117 = vpack.c.bf16 %v3101, %v3101
        %v3118 = vpack.c.bf16 %v3102, %v3102
        %v3119 = vpack.c.bf16 %v3103, %v3103
        %v3120 = vpack.c.bf16 %v3104, %v3104
        %v3121 = vpack.c.bf16 %v3105, %v3105
        %v3122 = vpack.c.bf16 %v3106, %v3106
        %v3123 = vpack.c.bf16 %v3107, %v3107
        %v3124 = vpack.c.bf16 %v3108, %v3108
        %v3125 = vpack.c.bf16 %v3109, %v3109
        %v3126 = vpack.c.bf16 %v3110, %v3110
        %v3127 = vpack.c.bf16 %v3111, %v3111
        %v3128 = vpack.c.bf16 %v3112, %v3112
        %v3129 = vpack.c.bf16 %v3113, %v3113
        %v3130 = vpack.c.bf16 %v3114, %v3114
        %v3131 = vpack.c.bf16 %v3115, %v3115
        %v3132 = vpack.c.bf16 %v3116, %v3116
        %v3135 = vunpack.c.l.b16 %v3117
        %v3136 = vunpack.c.l.b16 %v3118
        %v3137 = vpack.c.b16 %v3136, %v3135
        %3138 = vrot.lane.b32.xlu0 %v1886, 64
        %v3139 = vpop.permute.xlu0 %3138
        %v3142 = vsel %vm1684, %v3137, 0
        %3144 = vmatpush.bf16.msra.mxu0 0
        %3145 = vmatpush.bf16.msra.mxu0 0
        %3146 = vmatpush.bf16.msra.mxu0 0
        %3147 = vmatpush.bf16.msra.mxu0 0
        %3148 = vmatpush.bf16.msra.mxu0 0
        %3149 = vmatpush.bf16.msra.mxu0 0
        %3150 = vmatpush.bf16.msra.mxu0 0
        %3151 = vmatpush.bf16.msra.mxu0 %v3139
        %3152 = vmatmul.bf16.gmra.mxu0 %v3142
        %v3153 = vpop.f32.mrf.mxu0
        %v3154 = vadd.f32 0.0, %v3153
        %v3155 = vpop.f32.mrf.mxu0
        %v3156 = vadd.f32 0.0, %v3155
        %3157 = vdwg.mxu0
        %v3160 = vunpack.c.l.b16 %v3119
        %v3161 = vunpack.c.l.b16 %v3120
        %v3162 = vpack.c.b16 %v3161, %v3160
        %3163 = vrot.lane.b32.xlu0 %v1914, 64
        %v3164 = vpop.permute.xlu0 %3163
        %v3167 = vsel %vm1684, %v3162, 0
        %3169 = vmatpush.bf16.msra.mxu0 0
        %3170 = vmatpush.bf16.msra.mxu0 0
        %3171 = vmatpush.bf16.msra.mxu0 0
        %3172 = vmatpush.bf16.msra.mxu0 0
        %3173 = vmatpush.bf16.msra.mxu0 0
        %3174 = vmatpush.bf16.msra.mxu0 0
        %3175 = vmatpush.bf16.msra.mxu0 0
        %3176 = vmatpush.bf16.msra.mxu0 %v3164
        %3177 = vmatmul.bf16.gmra.mxu0 %v3167
        %v3178 = vpop.f32.mrf.mxu0
        %v3179 = vadd.f32 0.0, %v3178
        %v3180 = vpop.f32.mrf.mxu0
        %v3181 = vadd.f32 0.0, %v3180
        %3182 = vdwg.mxu0
        %v3185 = vunpack.c.l.b16 %v3121
        %v3186 = vunpack.c.l.b16 %v3122
        %v3187 = vpack.c.b16 %v3186, %v3185
        %3188 = vrot.lane.b32.xlu0 %v1942, 64
        %v3189 = vpop.permute.xlu0 %3188
        %v3192 = vsel %vm1684, %v3187, 0
        %3194 = vmatpush.bf16.msra.mxu0 0
        %3195 = vmatpush.bf16.msra.mxu0 0
        %3196 = vmatpush.bf16.msra.mxu0 0
        %3197 = vmatpush.bf16.msra.mxu0 0
        %3198 = vmatpush.bf16.msra.mxu0 0
        %3199 = vmatpush.bf16.msra.mxu0 0
        %3200 = vmatpush.bf16.msra.mxu0 0
        %3201 = vmatpush.bf16.msra.mxu0 %v3189
        %3202 = vmatmul.bf16.gmra.mxu0 %v3192
        %v3203 = vpop.f32.mrf.mxu0
        %v3204 = vadd.f32 0.0, %v3203
        %v3205 = vpop.f32.mrf.mxu0
        %v3206 = vadd.f32 0.0, %v3205
        %3207 = vdwg.mxu0
        %v3210 = vunpack.c.l.b16 %v3123
        %v3211 = vunpack.c.l.b16 %v3124
        %v3212 = vpack.c.b16 %v3211, %v3210
        %3213 = vrot.lane.b32.xlu0 %v1970, 64
        %v3214 = vpop.permute.xlu0 %3213
        %v3217 = vsel %vm1684, %v3212, 0
        %3219 = vmatpush.bf16.msra.mxu0 0
        %3220 = vmatpush.bf16.msra.mxu0 0
        %3221 = vmatpush.bf16.msra.mxu0 0
        %3222 = vmatpush.bf16.msra.mxu0 0
        %3223 = vmatpush.bf16.msra.mxu0 0
        %3224 = vmatpush.bf16.msra.mxu0 0
        %3225 = vmatpush.bf16.msra.mxu0 0
        %3226 = vmatpush.bf16.msra.mxu0 %v3214
        %3227 = vmatmul.bf16.gmra.mxu0 %v3217
        %v3228 = vpop.f32.mrf.mxu0
        %v3229 = vadd.f32 0.0, %v3228
        %v3230 = vpop.f32.mrf.mxu0
        %v3231 = vadd.f32 0.0, %v3230
        %3232 = vdwg.mxu0
        %v3235 = vunpack.c.l.b16 %v3125
        %v3236 = vunpack.c.l.b16 %v3126
        %v3237 = vpack.c.b16 %v3236, %v3235
        %3238 = vrot.lane.b32.xlu0 %v1998, 64
        %v3239 = vpop.permute.xlu0 %3238
        %v3242 = vsel %vm1684, %v3237, 0
        %3244 = vmatpush.bf16.msra.mxu0 0
        %3245 = vmatpush.bf16.msra.mxu0 0
        %3246 = vmatpush.bf16.msra.mxu0 0
        %3247 = vmatpush.bf16.msra.mxu0 0
        %3248 = vmatpush.bf16.msra.mxu0 0
        %3249 = vmatpush.bf16.msra.mxu0 0
        %3250 = vmatpush.bf16.msra.mxu0 0
        %3251 = vmatpush.bf16.msra.mxu0 %v3239
        %3252 = vmatmul.bf16.gmra.mxu0 %v3242
        %v3253 = vpop.f32.mrf.mxu0
        %v3254 = vadd.f32 0.0, %v3253
        %v3255 = vpop.f32.mrf.mxu0
        %v3256 = vadd.f32 0.0, %v3255
        %3257 = vdwg.mxu0
        %v3260 = vunpack.c.l.b16 %v3127
        %v3261 = vunpack.c.l.b16 %v3128
        %v3262 = vpack.c.b16 %v3261, %v3260
        %3263 = vrot.lane.b32.xlu0 %v2026, 64
        %v3264 = vpop.permute.xlu0 %3263
        %v3267 = vsel %vm1684, %v3262, 0
        %3269 = vmatpush.bf16.msra.mxu0 0
        %3270 = vmatpush.bf16.msra.mxu0 0
        %3271 = vmatpush.bf16.msra.mxu0 0
        %3272 = vmatpush.bf16.msra.mxu0 0
        %3273 = vmatpush.bf16.msra.mxu0 0
        %3274 = vmatpush.bf16.msra.mxu0 0
        %3275 = vmatpush.bf16.msra.mxu0 0
        %3276 = vmatpush.bf16.msra.mxu0 %v3264
        %3277 = vmatmul.bf16.gmra.mxu0 %v3267
        %v3278 = vpop.f32.mrf.mxu0
        %v3279 = vadd.f32 0.0, %v3278
        %v3280 = vpop.f32.mrf.mxu0
        %v3281 = vadd.f32 0.0, %v3280
        %3282 = vdwg.mxu0
        %v3285 = vunpack.c.l.b16 %v3129
        %v3286 = vunpack.c.l.b16 %v3130
        %v3287 = vpack.c.b16 %v3286, %v3285
        %3288 = vrot.lane.b32.xlu0 %v2054, 64
        %v3289 = vpop.permute.xlu0 %3288
        %v3292 = vsel %vm1684, %v3287, 0
        %3294 = vmatpush.bf16.msra.mxu0 0
        %3295 = vmatpush.bf16.msra.mxu0 0
        %3296 = vmatpush.bf16.msra.mxu0 0
        %3297 = vmatpush.bf16.msra.mxu0 0
        %3298 = vmatpush.bf16.msra.mxu0 0
        %3299 = vmatpush.bf16.msra.mxu0 0
        %3300 = vmatpush.bf16.msra.mxu0 0
        %3301 = vmatpush.bf16.msra.mxu0 %v3289
        %3302 = vmatmul.bf16.gmra.mxu0 %v3292
        %v3303 = vpop.f32.mrf.mxu0
        %v3304 = vadd.f32 0.0, %v3303
        %v3305 = vpop.f32.mrf.mxu0
        %v3306 = vadd.f32 0.0, %v3305
        %3307 = vdwg.mxu0
        %v3310 = vunpack.c.l.b16 %v3131
        %v3311 = vunpack.c.l.b16 %v3132
        %v3312 = vpack.c.b16 %v3311, %v3310
        %3313 = vrot.lane.b32.xlu0 %v2082, 64
        %v3314 = vpop.permute.xlu0 %3313
        %v3317 = vsel %vm1684, %v3312, 0
        %3319 = vmatpush.bf16.msra.mxu0 0
        %3320 = vmatpush.bf16.msra.mxu0 0
        %3321 = vmatpush.bf16.msra.mxu0 0
        %3322 = vmatpush.bf16.msra.mxu0 0
        %3323 = vmatpush.bf16.msra.mxu0 0
        %3324 = vmatpush.bf16.msra.mxu0 0
        %3325 = vmatpush.bf16.msra.mxu0 0
        %3326 = vmatpush.bf16.msra.mxu0 %v3314
        %3327 = vmatmul.bf16.gmra.mxu0 %v3317
        %v3328 = vpop.f32.mrf.mxu0
        %v3329 = vadd.f32 0.0, %v3328
        %v3330 = vpop.f32.mrf.mxu0
        %v3331 = vadd.f32 0.0, %v3330
        %3332 = vdwg.mxu0
        %3333 = vrot.lane.b32.xlu0 %v1415, 32
        %v3334 = vpop.permute.xlu0 %3333
        %3335 = vrot.lane.b32.xlu0 %v1420, 32
        %v3336 = vpop.permute.xlu0 %3335
        %v3338 = vsel %vm1421, %v3334, 0
        %v3341 = vsel %vm1421, %v3336, 0
        %3343 = vmatpush.bf16.xpose.msra.mxu0 0
        %3344 = vmatpush.bf16.xpose.msra.mxu0 0
        %3345 = vmatpush.bf16.xpose.msra.mxu0 0
        %3346 = vmatpush.bf16.xpose.msra.mxu0 0
        %3347 = vmatpush.bf16.xpose.msra.mxu0 0
        %3348 = vmatpush.bf16.xpose.msra.mxu0 0
        %3349 = vmatpush.bf16.xpose.msra.mxu0 0
        %3350 = vmatpush.bf16.xpose.msra.mxu0 %v3341
        %3351 = vmatmul.bf16.gmra.mxu0 %v3338
        %v3352 = vpop.f32.mrf.mxu0
        %v3353 = vadd.f32 0.0, %v3352
        %v3354 = vpop.f32.mrf.mxu0
        %v3355 = vadd.f32 0.0, %v3354
        %3356 = vdwg.mxu0
        %3357 = vrot.lane.b32.xlu0 %v1446, 32
        %v3358 = vpop.permute.xlu0 %3357
        %3359 = vrot.lane.b32.xlu0 %v1451, 32
        %v3360 = vpop.permute.xlu0 %3359
        %v3362 = vsel %vm1421, %v3358, 0
        %v3365 = vsel %vm1421, %v3360, 0
        %3367 = vmatpush.bf16.xpose.msra.mxu0 0
        %3368 = vmatpush.bf16.xpose.msra.mxu0 0
        %3369 = vmatpush.bf16.xpose.msra.mxu0 0
        %3370 = vmatpush.bf16.xpose.msra.mxu0 0
        %3371 = vmatpush.bf16.xpose.msra.mxu0 0
        %3372 = vmatpush.bf16.xpose.msra.mxu0 0
        %3373 = vmatpush.bf16.xpose.msra.mxu0 0
        %3374 = vmatpush.bf16.xpose.msra.mxu0 %v3365
        %3375 = vmatmul.bf16.gmra.mxu0 %v3362
        %v3376 = vpop.f32.mrf.mxu0
        %v3377 = vadd.f32 0.0, %v3376
        %v3378 = vpop.f32.mrf.mxu0
        %v3379 = vadd.f32 0.0, %v3378
        %3380 = vdwg.mxu0
        %3381 = vrot.lane.b32.xlu0 %v1476, 32
        %v3382 = vpop.permute.xlu0 %3381
        %3383 = vrot.lane.b32.xlu0 %v1481, 32
        %v3384 = vpop.permute.xlu0 %3383
        %v3386 = vsel %vm1421, %v3382, 0
        %v3389 = vsel %vm1421, %v3384, 0
        %3391 = vmatpush.bf16.xpose.msra.mxu0 0
        %3392 = vmatpush.bf16.xpose.msra.mxu0 0
        %3393 = vmatpush.bf16.xpose.msra.mxu0 0
        %3394 = vmatpush.bf16.xpose.msra.mxu0 0
        %3395 = vmatpush.bf16.xpose.msra.mxu0 0
        %3396 = vmatpush.bf16.xpose.msra.mxu0 0
        %3397 = vmatpush.bf16.xpose.msra.mxu0 0
        %3398 = vmatpush.bf16.xpose.msra.mxu0 %v3389
        %3399 = vmatmul.bf16.gmra.mxu0 %v3386
        %v3400 = vpop.f32.mrf.mxu0
        %v3401 = vadd.f32 0.0, %v3400
        %v3402 = vpop.f32.mrf.mxu0
        %v3403 = vadd.f32 0.0, %v3402
        %3404 = vdwg.mxu0
        %3405 = vrot.lane.b32.xlu0 %v1506, 32
        %v3406 = vpop.permute.xlu0 %3405
        %3407 = vrot.lane.b32.xlu0 %v1511, 32
        %v3408 = vpop.permute.xlu0 %3407
        %v3410 = vsel %vm1421, %v3406, 0
        %v3413 = vsel %vm1421, %v3408, 0
        %3415 = vmatpush.bf16.xpose.msra.mxu0 0
        %3416 = vmatpush.bf16.xpose.msra.mxu0 0
        %3417 = vmatpush.bf16.xpose.msra.mxu0 0
        %3418 = vmatpush.bf16.xpose.msra.mxu0 0
        %3419 = vmatpush.bf16.xpose.msra.mxu0 0
        %3420 = vmatpush.bf16.xpose.msra.mxu0 0
        %3421 = vmatpush.bf16.xpose.msra.mxu0 0
        %3422 = vmatpush.bf16.xpose.msra.mxu0 %v3413
        %3423 = vmatmul.bf16.gmra.mxu0 %v3410
        %v3424 = vpop.f32.mrf.mxu0
        %v3425 = vadd.f32 0.0, %v3424
        %v3426 = vpop.f32.mrf.mxu0
        %v3427 = vadd.f32 0.0, %v3426
        %3428 = vdwg.mxu0
        %3429 = vrot.lane.b32.xlu0 %v1536, 32
        %v3430 = vpop.permute.xlu0 %3429
        %3431 = vrot.lane.b32.xlu0 %v1541, 32
        %v3432 = vpop.permute.xlu0 %3431
        %v3434 = vsel %vm1421, %v3430, 0
        %v3437 = vsel %vm1421, %v3432, 0
        %3439 = vmatpush.bf16.xpose.msra.mxu0 0
        %3440 = vmatpush.bf16.xpose.msra.mxu0 0
        %3441 = vmatpush.bf16.xpose.msra.mxu0 0
        %3442 = vmatpush.bf16.xpose.msra.mxu0 0
        %3443 = vmatpush.bf16.xpose.msra.mxu0 0
        %3444 = vmatpush.bf16.xpose.msra.mxu0 0
        %3445 = vmatpush.bf16.xpose.msra.mxu0 0
        %3446 = vmatpush.bf16.xpose.msra.mxu0 %v3437
        %3447 = vmatmul.bf16.gmra.mxu0 %v3434
        %v3448 = vpop.f32.mrf.mxu0
        %v3449 = vadd.f32 0.0, %v3448
        %v3450 = vpop.f32.mrf.mxu0
        %v3451 = vadd.f32 0.0, %v3450
        %3452 = vdwg.mxu0
        %3453 = vrot.lane.b32.xlu0 %v1566, 32
        %v3454 = vpop.permute.xlu0 %3453
        %3455 = vrot.lane.b32.xlu0 %v1571, 32
        %v3456 = vpop.permute.xlu0 %3455
        %v3458 = vsel %vm1421, %v3454, 0
        %v3461 = vsel %vm1421, %v3456, 0
        %3463 = vmatpush.bf16.xpose.msra.mxu0 0
        %3464 = vmatpush.bf16.xpose.msra.mxu0 0
        %3465 = vmatpush.bf16.xpose.msra.mxu0 0
        %3466 = vmatpush.bf16.xpose.msra.mxu0 0
        %3467 = vmatpush.bf16.xpose.msra.mxu0 0
        %3468 = vmatpush.bf16.xpose.msra.mxu0 0
        %3469 = vmatpush.bf16.xpose.msra.mxu0 0
        %3470 = vmatpush.bf16.xpose.msra.mxu0 %v3461
        %3471 = vmatmul.bf16.gmra.mxu0 %v3458
        %v3472 = vpop.f32.mrf.mxu0
        %v3473 = vadd.f32 0.0, %v3472
        %v3474 = vpop.f32.mrf.mxu0
        %v3475 = vadd.f32 0.0, %v3474
        %3476 = vdwg.mxu0
        %3477 = vrot.lane.b32.xlu0 %v1596, 32
        %v3478 = vpop.permute.xlu0 %3477
        %3479 = vrot.lane.b32.xlu0 %v1601, 32
        %v3480 = vpop.permute.xlu0 %3479
        %v3482 = vsel %vm1421, %v3478, 0
        %v3485 = vsel %vm1421, %v3480, 0
        %3487 = vmatpush.bf16.xpose.msra.mxu0 0
        %3488 = vmatpush.bf16.xpose.msra.mxu0 0
        %3489 = vmatpush.bf16.xpose.msra.mxu0 0
        %3490 = vmatpush.bf16.xpose.msra.mxu0 0
        %3491 = vmatpush.bf16.xpose.msra.mxu0 0
        %3492 = vmatpush.bf16.xpose.msra.mxu0 0
        %3493 = vmatpush.bf16.xpose.msra.mxu0 0
        %3494 = vmatpush.bf16.xpose.msra.mxu0 %v3485
        %3495 = vmatmul.bf16.gmra.mxu0 %v3482
        %v3496 = vpop.f32.mrf.mxu0
        %v3497 = vadd.f32 0.0, %v3496
        %v3498 = vpop.f32.mrf.mxu0
        %v3499 = vadd.f32 0.0, %v3498
        %3500 = vdwg.mxu0
        %3501 = vrot.lane.b32.xlu0 %v1626, 32
        %v3502 = vpop.permute.xlu0 %3501
        %3503 = vrot.lane.b32.xlu0 %v1631, 32
        %v3504 = vpop.permute.xlu0 %3503
        %v3506 = vsel %vm1421, %v3502, 0
        %v3509 = vsel %vm1421, %v3504, 0
        %3511 = vmatpush.bf16.xpose.msra.mxu0 0
        %3512 = vmatpush.bf16.xpose.msra.mxu0 0
        %3513 = vmatpush.bf16.xpose.msra.mxu0 0
        %3514 = vmatpush.bf16.xpose.msra.mxu0 0
        %3515 = vmatpush.bf16.xpose.msra.mxu0 0
        %3516 = vmatpush.bf16.xpose.msra.mxu0 0
        %3517 = vmatpush.bf16.xpose.msra.mxu0 0
        %3518 = vmatpush.bf16.xpose.msra.mxu0 %v3509
        %3519 = vmatmul.bf16.gmra.mxu0 %v3506
        %v3520 = vpop.f32.mrf.mxu0
        %v3521 = vadd.f32 0.0, %v3520
        %v3522 = vpop.f32.mrf.mxu0
        %v3523 = vadd.f32 0.0, %v3522
        %3524 = vdwg.mxu0
        %v3525 = vmul.f32 %v3353, 0.17677669
        %v3526 = vmul.f32 %v3355, 0.17677669
        %v3527 = vmul.f32 %v3377, 0.17677669
        %v3528 = vmul.f32 %v3379, 0.17677669
        %v3529 = vmul.f32 %v3401, 0.17677669
        %v3530 = vmul.f32 %v3403, 0.17677669
        %v3531 = vmul.f32 %v3425, 0.17677669
        %v3532 = vmul.f32 %v3427, 0.17677669
        %v3533 = vmul.f32 %v3449, 0.17677669
        %v3534 = vmul.f32 %v3451, 0.17677669
        %v3535 = vmul.f32 %v3473, 0.17677669
        %v3536 = vmul.f32 %v3475, 0.17677669
        %v3537 = vmul.f32 %v3497, 0.17677669
        %v3538 = vmul.f32 %v3499, 0.17677669
        %v3539 = vmul.f32 %v3521, 0.17677669
        %v3540 = vmul.f32 %v3523, 0.17677669
        %v3541 = vadd.f32 %v3525, %v1361
        %v3542 = vadd.f32 %v3526, %v1362
        %v3543 = vadd.f32 %v3527, %v1361
        %v3544 = vadd.f32 %v3528, %v1362
        %v3545 = vadd.f32 %v3529, %v1361
        %v3546 = vadd.f32 %v3530, %v1362
        %v3547 = vadd.f32 %v3531, %v1361
        %v3548 = vadd.f32 %v3532, %v1362
        %v3549 = vadd.f32 %v3533, %v1361
        %v3550 = vadd.f32 %v3534, %v1362
        %v3551 = vadd.f32 %v3535, %v1361
        %v3552 = vadd.f32 %v3536, %v1362
        %v3553 = vadd.f32 %v3537, %v1361
        %v3554 = vadd.f32 %v3538, %v1362
        %v3555 = vadd.f32 %v3539, %v1361
        %v3556 = vadd.f32 %v3540, %v1362
        %v3557 = vsel %vm1684, %v3541, -inf
        %3558 = vmax.xlane.f32.xlu0 %v3557
        %v3559 = vpop.xlane.xlu0 %3558
        %v3560 = vsel %vm1684, %v3542, -inf
        %3561 = vmax.xlane.f32.xlu0 %v3560
        %v3562 = vpop.xlane.xlu0 %3561
        %v3563 = vsel %vm1684, %v3543, -inf
        %3564 = vmax.xlane.f32.xlu0 %v3563
        %v3565 = vpop.xlane.xlu0 %3564
        %v3566 = vsel %vm1684, %v3544, -inf
        %3567 = vmax.xlane.f32.xlu0 %v3566
        %v3568 = vpop.xlane.xlu0 %3567
        %v3569 = vsel %vm1684, %v3545, -inf
        %3570 = vmax.xlane.f32.xlu0 %v3569
        %v3571 = vpop.xlane.xlu0 %3570
        %v3572 = vsel %vm1684, %v3546, -inf
        %3573 = vmax.xlane.f32.xlu0 %v3572
        %v3574 = vpop.xlane.xlu0 %3573
        %v3575 = vsel %vm1684, %v3547, -inf
        %3576 = vmax.xlane.f32.xlu0 %v3575
        %v3577 = vpop.xlane.xlu0 %3576
        %v3578 = vsel %vm1684, %v3548, -inf
        %3579 = vmax.xlane.f32.xlu0 %v3578
        %v3580 = vpop.xlane.xlu0 %3579
        %v3581 = vsel %vm1684, %v3549, -inf
        %3582 = vmax.xlane.f32.xlu0 %v3581
        %v3583 = vpop.xlane.xlu0 %3582
        %v3584 = vsel %vm1684, %v3550, -inf
        %3585 = vmax.xlane.f32.xlu0 %v3584
        %v3586 = vpop.xlane.xlu0 %3585
        %v3587 = vsel %vm1684, %v3551, -inf
        %3588 = vmax.xlane.f32.xlu0 %v3587
        %v3589 = vpop.xlane.xlu0 %3588
        %v3590 = vsel %vm1684, %v3552, -inf
        %3591 = vmax.xlane.f32.xlu0 %v3590
        %v3592 = vpop.xlane.xlu0 %3591
        %v3593 = vsel %vm1684, %v3553, -inf
        %3594 = vmax.xlane.f32.xlu0 %v3593
        %v3595 = vpop.xlane.xlu0 %3594
        %v3596 = vsel %vm1684, %v3554, -inf
        %3597 = vmax.xlane.f32.xlu0 %v3596
        %v3598 = vpop.xlane.xlu0 %3597
        %v3599 = vsel %vm1684, %v3555, -inf
        %3600 = vmax.xlane.f32.xlu0 %v3599
        %v3601 = vpop.xlane.xlu0 %3600
        %v3602 = vsel %vm1684, %v3556, -inf
        %3603 = vmax.xlane.f32.xlu0 %v3602
        %v3604 = vpop.xlane.xlu0 %3603
        %v3605 = vsub.f32 %v3541, %v3559
        %v3606 = vsub.f32 %v3542, %v3562
        %v3607 = vsub.f32 %v3543, %v3565
        %v3608 = vsub.f32 %v3544, %v3568
        %v3609 = vsub.f32 %v3545, %v3571
        %v3610 = vsub.f32 %v3546, %v3574
        %v3611 = vsub.f32 %v3547, %v3577
        %v3612 = vsub.f32 %v3548, %v3580
        %v3613 = vsub.f32 %v3549, %v3583
        %v3614 = vsub.f32 %v3550, %v3586
        %v3615 = vsub.f32 %v3551, %v3589
        %v3616 = vsub.f32 %v3552, %v3592
        %v3617 = vsub.f32 %v3553, %v3595
        %v3618 = vsub.f32 %v3554, %v3598
        %v3619 = vsub.f32 %v3555, %v3601
        %v3620 = vsub.f32 %v3556, %v3604
        %v3621 = vmul.f32 %v3605, 1.442695
        %v3622 = vpow.pop %v3621
        %v3623 = vmul.f32 %v3606, 1.442695
        %v3624 = vpow.pop %v3623
        %v3625 = vmul.f32 %v3607, 1.442695
        %v3626 = vpow.pop %v3625
        %v3627 = vmul.f32 %v3608, 1.442695
        %v3628 = vpow.pop %v3627
        %v3629 = vmul.f32 %v3609, 1.442695
        %v3630 = vpow.pop %v3629
        %v3631 = vmul.f32 %v3610, 1.442695
        %v3632 = vpow.pop %v3631
        %v3633 = vmul.f32 %v3611, 1.442695
        %v3634 = vpow.pop %v3633
        %v3635 = vmul.f32 %v3612, 1.442695
        %v3636 = vpow.pop %v3635
        %v3637 = vmul.f32 %v3613, 1.442695
        %v3638 = vpow.pop %v3637
        %v3639 = vmul.f32 %v3614, 1.442695
        %v3640 = vpow.pop %v3639
        %v3641 = vmul.f32 %v3615, 1.442695
        %v3642 = vpow.pop %v3641
        %v3643 = vmul.f32 %v3616, 1.442695
        %v3644 = vpow.pop %v3643
        %v3645 = vmul.f32 %v3617, 1.442695
        %v3646 = vpow.pop %v3645
        %v3647 = vmul.f32 %v3618, 1.442695
        %v3648 = vpow.pop %v3647
        %v3649 = vmul.f32 %v3619, 1.442695
        %v3650 = vpow.pop %v3649
        %v3651 = vmul.f32 %v3620, 1.442695
        %v3652 = vpow.pop %v3651
        %v3653 = vsel %vm1684, %v3622, 0.0
        %3654 = vadd.xlane.f32.xlu0 %v3653
        %v3655 = vpop.xlane.xlu0 %3654
        %v3656 = vsel %vm1684, %v3624, 0.0
        %3657 = vadd.xlane.f32.xlu0 %v3656
        %v3658 = vpop.xlane.xlu0 %3657
        %v3659 = vsel %vm1684, %v3626, 0.0
        %3660 = vadd.xlane.f32.xlu0 %v3659
        %v3661 = vpop.xlane.xlu0 %3660
        %v3662 = vsel %vm1684, %v3628, 0.0
        %3663 = vadd.xlane.f32.xlu0 %v3662
        %v3664 = vpop.xlane.xlu0 %3663
        %v3665 = vsel %vm1684, %v3630, 0.0
        %3666 = vadd.xlane.f32.xlu0 %v3665
        %v3667 = vpop.xlane.xlu0 %3666
        %v3668 = vsel %vm1684, %v3632, 0.0
        %3669 = vadd.xlane.f32.xlu0 %v3668
        %v3670 = vpop.xlane.xlu0 %3669
        %v3671 = vsel %vm1684, %v3634, 0.0
        %3672 = vadd.xlane.f32.xlu0 %v3671
        %v3673 = vpop.xlane.xlu0 %3672
        %v3674 = vsel %vm1684, %v3636, 0.0
        %3675 = vadd.xlane.f32.xlu0 %v3674
        %v3676 = vpop.xlane.xlu0 %3675
        %v3677 = vsel %vm1684, %v3638, 0.0
        %3678 = vadd.xlane.f32.xlu0 %v3677
        %v3679 = vpop.xlane.xlu0 %3678
        %v3680 = vsel %vm1684, %v3640, 0.0
        %3681 = vadd.xlane.f32.xlu0 %v3680
        %v3682 = vpop.xlane.xlu0 %3681
        %v3683 = vsel %vm1684, %v3642, 0.0
        %3684 = vadd.xlane.f32.xlu0 %v3683
        %v3685 = vpop.xlane.xlu0 %3684
        %v3686 = vsel %vm1684, %v3644, 0.0
        %3687 = vadd.xlane.f32.xlu0 %v3686
        %v3688 = vpop.xlane.xlu0 %3687
        %v3689 = vsel %vm1684, %v3646, 0.0
        %3690 = vadd.xlane.f32.xlu0 %v3689
        %v3691 = vpop.xlane.xlu0 %3690
        %v3692 = vsel %vm1684, %v3648, 0.0
        %3693 = vadd.xlane.f32.xlu0 %v3692
        %v3694 = vpop.xlane.xlu0 %3693
        %v3695 = vsel %vm1684, %v3650, 0.0
        %3696 = vadd.xlane.f32.xlu0 %v3695
        %v3697 = vpop.xlane.xlu0 %3696
        %v3698 = vsel %vm1684, %v3652, 0.0
        %3699 = vadd.xlane.f32.xlu0 %v3698
        %v3700 = vpop.xlane.xlu0 %3699
        %v3701 = vrcp.pop %v3655
        %v3702 = vrcp.pop %v3658
        %v3703 = vrcp.pop %v3661
        %v3704 = vrcp.pop %v3664
        %v3705 = vrcp.pop %v3667
        %v3706 = vrcp.pop %v3670
        %v3707 = vrcp.pop %v3673
        %v3708 = vrcp.pop %v3676
        %v3709 = vrcp.pop %v3679
        %v3710 = vrcp.pop %v3682
        %v3711 = vrcp.pop %v3685
        %v3712 = vrcp.pop %v3688
        %v3713 = vrcp.pop %v3691
        %v3714 = vrcp.pop %v3694
        %v3715 = vrcp.pop %v3697
        %v3716 = vrcp.pop %v3700
        %v3717 = vmul.f32 %v3622, %v3701
        %v3718 = vmul.f32 %v3624, %v3702
        %v3719 = vmul.f32 %v3626, %v3703
        %v3720 = vmul.f32 %v3628, %v3704
        %v3721 = vmul.f32 %v3630, %v3705
        %v3722 = vmul.f32 %v3632, %v3706
        %v3723 = vmul.f32 %v3634, %v3707
        %v3724 = vmul.f32 %v3636, %v3708
        %v3725 = vmul.f32 %v3638, %v3709
        %v3726 = vmul.f32 %v3640, %v3710
        %v3727 = vmul.f32 %v3642, %v3711
        %v3728 = vmul.f32 %v3644, %v3712
        %v3729 = vmul.f32 %v3646, %v3713
        %v3730 = vmul.f32 %v3648, %v3714
        %v3731 = vmul.f32 %v3650, %v3715
        %v3732 = vmul.f32 %v3652, %v3716
        %v3733 = vpack.c.bf16 %v3717, %v3717
        %v3734 = vpack.c.bf16 %v3718, %v3718
        %v3735 = vpack.c.bf16 %v3719, %v3719
        %v3736 = vpack.c.bf16 %v3720, %v3720
        %v3737 = vpack.c.bf16 %v3721, %v3721
        %v3738 = vpack.c.bf16 %v3722, %v3722
        %v3739 = vpack.c.bf16 %v3723, %v3723
        %v3740 = vpack.c.bf16 %v3724, %v3724
        %v3741 = vpack.c.bf16 %v3725, %v3725
        %v3742 = vpack.c.bf16 %v3726, %v3726
        %v3743 = vpack.c.bf16 %v3727, %v3727
        %v3744 = vpack.c.bf16 %v3728, %v3728
        %v3745 = vpack.c.bf16 %v3729, %v3729
        %v3746 = vpack.c.bf16 %v3730, %v3730
        %v3747 = vpack.c.bf16 %v3731, %v3731
        %v3748 = vpack.c.bf16 %v3732, %v3732
        %v3751 = vunpack.c.l.b16 %v3733
        %v3752 = vunpack.c.l.b16 %v3734
        %v3753 = vpack.c.b16 %v3752, %v3751
        %3754 = vrot.lane.b32.xlu0 %v1886, 32
        %v3755 = vpop.permute.xlu0 %3754
        %v3758 = vsel %vm1684, %v3753, 0
        %3760 = vmatpush.bf16.msra.mxu0 0
        %3761 = vmatpush.bf16.msra.mxu0 0
        %3762 = vmatpush.bf16.msra.mxu0 0
        %3763 = vmatpush.bf16.msra.mxu0 0
        %3764 = vmatpush.bf16.msra.mxu0 0
        %3765 = vmatpush.bf16.msra.mxu0 0
        %3766 = vmatpush.bf16.msra.mxu0 0
        %3767 = vmatpush.bf16.msra.mxu0 %v3755
        %3768 = vmatmul.bf16.gmra.mxu0 %v3758
        %v3769 = vpop.f32.mrf.mxu0
        %v3770 = vadd.f32 0.0, %v3769
        %v3771 = vpop.f32.mrf.mxu0
        %v3772 = vadd.f32 0.0, %v3771
        %3773 = vdwg.mxu0
        %v3776 = vunpack.c.l.b16 %v3735
        %v3777 = vunpack.c.l.b16 %v3736
        %v3778 = vpack.c.b16 %v3777, %v3776
        %3779 = vrot.lane.b32.xlu0 %v1914, 32
        %v3780 = vpop.permute.xlu0 %3779
        %v3783 = vsel %vm1684, %v3778, 0
        %3785 = vmatpush.bf16.msra.mxu0 0
        %3786 = vmatpush.bf16.msra.mxu0 0
        %3787 = vmatpush.bf16.msra.mxu0 0
        %3788 = vmatpush.bf16.msra.mxu0 0
        %3789 = vmatpush.bf16.msra.mxu0 0
        %3790 = vmatpush.bf16.msra.mxu0 0
        %3791 = vmatpush.bf16.msra.mxu0 0
        %3792 = vmatpush.bf16.msra.mxu0 %v3780
        %3793 = vmatmul.bf16.gmra.mxu0 %v3783
        %v3794 = vpop.f32.mrf.mxu0
        %v3795 = vadd.f32 0.0, %v3794
        %v3796 = vpop.f32.mrf.mxu0
        %v3797 = vadd.f32 0.0, %v3796
        %3798 = vdwg.mxu0
        %v3801 = vunpack.c.l.b16 %v3737
        %v3802 = vunpack.c.l.b16 %v3738
        %v3803 = vpack.c.b16 %v3802, %v3801
        %3804 = vrot.lane.b32.xlu0 %v1942, 32
        %v3805 = vpop.permute.xlu0 %3804
        %v3808 = vsel %vm1684, %v3803, 0
        %3810 = vmatpush.bf16.msra.mxu0 0
        %3811 = vmatpush.bf16.msra.mxu0 0
        %3812 = vmatpush.bf16.msra.mxu0 0
        %3813 = vmatpush.bf16.msra.mxu0 0
        %3814 = vmatpush.bf16.msra.mxu0 0
        %3815 = vmatpush.bf16.msra.mxu0 0
        %3816 = vmatpush.bf16.msra.mxu0 0
        %3817 = vmatpush.bf16.msra.mxu0 %v3805
        %3818 = vmatmul.bf16.gmra.mxu0 %v3808
        %v3819 = vpop.f32.mrf.mxu0
        %v3820 = vadd.f32 0.0, %v3819
        %v3821 = vpop.f32.mrf.mxu0
        %v3822 = vadd.f32 0.0, %v3821
        %3823 = vdwg.mxu0
        %v3826 = vunpack.c.l.b16 %v3739
        %v3827 = vunpack.c.l.b16 %v3740
        %v3828 = vpack.c.b16 %v3827, %v3826
        %3829 = vrot.lane.b32.xlu0 %v1970, 32
        %v3830 = vpop.permute.xlu0 %3829
        %v3833 = vsel %vm1684, %v3828, 0
        %3835 = vmatpush.bf16.msra.mxu0 0
        %3836 = vmatpush.bf16.msra.mxu0 0
        %3837 = vmatpush.bf16.msra.mxu0 0
        %3838 = vmatpush.bf16.msra.mxu0 0
        %3839 = vmatpush.bf16.msra.mxu0 0
        %3840 = vmatpush.bf16.msra.mxu0 0
        %3841 = vmatpush.bf16.msra.mxu0 0
        %3842 = vmatpush.bf16.msra.mxu0 %v3830
        %3843 = vmatmul.bf16.gmra.mxu0 %v3833
        %v3844 = vpop.f32.mrf.mxu0
        %v3845 = vadd.f32 0.0, %v3844
        %v3846 = vpop.f32.mrf.mxu0
        %v3847 = vadd.f32 0.0, %v3846
        %3848 = vdwg.mxu0
        %v3851 = vunpack.c.l.b16 %v3741
        %v3852 = vunpack.c.l.b16 %v3742
        %v3853 = vpack.c.b16 %v3852, %v3851
        %3854 = vrot.lane.b32.xlu0 %v1998, 32
        %v3855 = vpop.permute.xlu0 %3854
        %v3858 = vsel %vm1684, %v3853, 0
        %3860 = vmatpush.bf16.msra.mxu0 0
        %3861 = vmatpush.bf16.msra.mxu0 0
        %3862 = vmatpush.bf16.msra.mxu0 0
        %3863 = vmatpush.bf16.msra.mxu0 0
        %3864 = vmatpush.bf16.msra.mxu0 0
        %3865 = vmatpush.bf16.msra.mxu0 0
        %3866 = vmatpush.bf16.msra.mxu0 0
        %3867 = vmatpush.bf16.msra.mxu0 %v3855
        %3868 = vmatmul.bf16.gmra.mxu0 %v3858
        %v3869 = vpop.f32.mrf.mxu0
        %v3870 = vadd.f32 0.0, %v3869
        %v3871 = vpop.f32.mrf.mxu0
        %v3872 = vadd.f32 0.0, %v3871
        %3873 = vdwg.mxu0
        %v3876 = vunpack.c.l.b16 %v3743
        %v3877 = vunpack.c.l.b16 %v3744
        %v3878 = vpack.c.b16 %v3877, %v3876
        %3879 = vrot.lane.b32.xlu0 %v2026, 32
        %v3880 = vpop.permute.xlu0 %3879
        %v3883 = vsel %vm1684, %v3878, 0
        %3885 = vmatpush.bf16.msra.mxu0 0
        %3886 = vmatpush.bf16.msra.mxu0 0
        %3887 = vmatpush.bf16.msra.mxu0 0
        %3888 = vmatpush.bf16.msra.mxu0 0
        %3889 = vmatpush.bf16.msra.mxu0 0
        %3890 = vmatpush.bf16.msra.mxu0 0
        %3891 = vmatpush.bf16.msra.mxu0 0
        %3892 = vmatpush.bf16.msra.mxu0 %v3880
        %3893 = vmatmul.bf16.gmra.mxu0 %v3883
        %v3894 = vpop.f32.mrf.mxu0
        %v3895 = vadd.f32 0.0, %v3894
        %v3896 = vpop.f32.mrf.mxu0
        %v3897 = vadd.f32 0.0, %v3896
        %3898 = vdwg.mxu0
        %v3901 = vunpack.c.l.b16 %v3745
        %v3902 = vunpack.c.l.b16 %v3746
        %v3903 = vpack.c.b16 %v3902, %v3901
        %3904 = vrot.lane.b32.xlu0 %v2054, 32
        %v3905 = vpop.permute.xlu0 %3904
        %v3908 = vsel %vm1684, %v3903, 0
        %3910 = vmatpush.bf16.msra.mxu0 0
        %3911 = vmatpush.bf16.msra.mxu0 0
        %3912 = vmatpush.bf16.msra.mxu0 0
        %3913 = vmatpush.bf16.msra.mxu0 0
        %3914 = vmatpush.bf16.msra.mxu0 0
        %3915 = vmatpush.bf16.msra.mxu0 0
        %3916 = vmatpush.bf16.msra.mxu0 0
        %3917 = vmatpush.bf16.msra.mxu0 %v3905
        %3918 = vmatmul.bf16.gmra.mxu0 %v3908
        %v3919 = vpop.f32.mrf.mxu0
        %v3920 = vadd.f32 0.0, %v3919
        %v3921 = vpop.f32.mrf.mxu0
        %v3922 = vadd.f32 0.0, %v3921
        %3923 = vdwg.mxu0
        %v3926 = vunpack.c.l.b16 %v3747
        %v3927 = vunpack.c.l.b16 %v3748
        %v3928 = vpack.c.b16 %v3927, %v3926
        %3929 = vrot.lane.b32.xlu0 %v2082, 32
        %v3930 = vpop.permute.xlu0 %3929
        %v3933 = vsel %vm1684, %v3928, 0
        %3935 = vmatpush.bf16.msra.mxu0 0
        %3936 = vmatpush.bf16.msra.mxu0 0
        %3937 = vmatpush.bf16.msra.mxu0 0
        %3938 = vmatpush.bf16.msra.mxu0 0
        %3939 = vmatpush.bf16.msra.mxu0 0
        %3940 = vmatpush.bf16.msra.mxu0 0
        %3941 = vmatpush.bf16.msra.mxu0 0
        %3942 = vmatpush.bf16.msra.mxu0 %v3930
        %3943 = vmatmul.bf16.gmra.mxu0 %v3933
        %v3944 = vpop.f32.mrf.mxu0
        %v3945 = vadd.f32 0.0, %v3944
        %v3946 = vpop.f32.mrf.mxu0
        %v3947 = vadd.f32 0.0, %v3946
        %3948 = vdwg.mxu0
        %3965 = vrot.lane.b32.xlu0 %v2538, 32
        %v3966 = vpop.permute.xlu0 %3965
        %3967 = vrot.lane.b32.xlu0 %v2540, 32
        %v3968 = vpop.permute.xlu0 %3967
        %3969 = vrot.lane.b32.xlu0 %v2563, 32
        %v3970 = vpop.permute.xlu0 %3969
        %3971 = vrot.lane.b32.xlu0 %v2565, 32
        %v3972 = vpop.permute.xlu0 %3971
        %3973 = vrot.lane.b32.xlu0 %v2588, 32
        %v3974 = vpop.permute.xlu0 %3973
        %3975 = vrot.lane.b32.xlu0 %v2590, 32
        %v3976 = vpop.permute.xlu0 %3975
        %3977 = vrot.lane.b32.xlu0 %v2613, 32
        %v3978 = vpop.permute.xlu0 %3977
        %3979 = vrot.lane.b32.xlu0 %v2615, 32
        %v3980 = vpop.permute.xlu0 %3979
        %3981 = vrot.lane.b32.xlu0 %v2638, 32
        %v3982 = vpop.permute.xlu0 %3981
        %3983 = vrot.lane.b32.xlu0 %v2640, 32
        %v3984 = vpop.permute.xlu0 %3983
        %3985 = vrot.lane.b32.xlu0 %v2663, 32
        %v3986 = vpop.permute.xlu0 %3985
        %3987 = vrot.lane.b32.xlu0 %v2665, 32
        %v3988 = vpop.permute.xlu0 %3987
        %3989 = vrot.lane.b32.xlu0 %v2688, 32
        %v3990 = vpop.permute.xlu0 %3989
        %3991 = vrot.lane.b32.xlu0 %v2690, 32
        %v3992 = vpop.permute.xlu0 %3991
        %3993 = vrot.lane.b32.xlu0 %v2713, 32
        %v3994 = vpop.permute.xlu0 %3993
        %3995 = vrot.lane.b32.xlu0 %v2715, 32
        %v3996 = vpop.permute.xlu0 %3995
        %4029 = vrot.lane.b32.xlu0 %v3154, 64
        %v4030 = vpop.permute.xlu0 %4029
        %4031 = vrot.lane.b32.xlu0 %v3156, 64
        %v4032 = vpop.permute.xlu0 %4031
        %4033 = vrot.lane.b32.xlu0 %v3179, 64
        %v4034 = vpop.permute.xlu0 %4033
        %4035 = vrot.lane.b32.xlu0 %v3181, 64
        %v4036 = vpop.permute.xlu0 %4035
        %4037 = vrot.lane.b32.xlu0 %v3204, 64
        %v4038 = vpop.permute.xlu0 %4037
        %4039 = vrot.lane.b32.xlu0 %v3206, 64
        %v4040 = vpop.permute.xlu0 %4039
        %4041 = vrot.lane.b32.xlu0 %v3229, 64
        %v4042 = vpop.permute.xlu0 %4041
        %4043 = vrot.lane.b32.xlu0 %v3231, 64
        %v4044 = vpop.permute.xlu0 %4043
        %4045 = vrot.lane.b32.xlu0 %v3254, 64
        %v4046 = vpop.permute.xlu0 %4045
        %4047 = vrot.lane.b32.xlu0 %v3256, 64
        %v4048 = vpop.permute.xlu0 %4047
        %4049 = vrot.lane.b32.xlu0 %v3279, 64
        %v4050 = vpop.permute.xlu0 %4049
        %4051 = vrot.lane.b32.xlu0 %v3281, 64
        %v4052 = vpop.permute.xlu0 %4051
        %4053 = vrot.lane.b32.xlu0 %v3304, 64
        %v4054 = vpop.permute.xlu0 %4053
        %4055 = vrot.lane.b32.xlu0 %v3306, 64
        %v4056 = vpop.permute.xlu0 %4055
        %4057 = vrot.lane.b32.xlu0 %v3329, 64
        %v4058 = vpop.permute.xlu0 %4057
        %4059 = vrot.lane.b32.xlu0 %v3331, 64
        %v4060 = vpop.permute.xlu0 %4059
        %4093 = vrot.lane.b32.xlu0 %v3770, 96
        %v4094 = vpop.permute.xlu0 %4093
        %4095 = vrot.lane.b32.xlu0 %v3772, 96
        %v4096 = vpop.permute.xlu0 %4095
        %4097 = vrot.lane.b32.xlu0 %v3795, 96
        %v4098 = vpop.permute.xlu0 %4097
        %4099 = vrot.lane.b32.xlu0 %v3797, 96
        %v4100 = vpop.permute.xlu0 %4099
        %4101 = vrot.lane.b32.xlu0 %v3820, 96
        %v4102 = vpop.permute.xlu0 %4101
        %4103 = vrot.lane.b32.xlu0 %v3822, 96
        %v4104 = vpop.permute.xlu0 %4103
        %4105 = vrot.lane.b32.xlu0 %v3845, 96
        %v4106 = vpop.permute.xlu0 %4105
        %4107 = vrot.lane.b32.xlu0 %v3847, 96
        %v4108 = vpop.permute.xlu0 %4107
        %4109 = vrot.lane.b32.xlu0 %v3870, 96
        %v4110 = vpop.permute.xlu0 %4109
        %4111 = vrot.lane.b32.xlu0 %v3872, 96
        %v4112 = vpop.permute.xlu0 %4111
        %4113 = vrot.lane.b32.xlu0 %v3895, 96
        %v4114 = vpop.permute.xlu0 %4113
        %4115 = vrot.lane.b32.xlu0 %v3897, 96
        %v4116 = vpop.permute.xlu0 %4115
        %4117 = vrot.lane.b32.xlu0 %v3920, 96
        %v4118 = vpop.permute.xlu0 %4117
        %4119 = vrot.lane.b32.xlu0 %v3922, 96
        %v4120 = vpop.permute.xlu0 %4119
        %4121 = vrot.lane.b32.xlu0 %v3945, 96
        %v4122 = vpop.permute.xlu0 %4121
        %4123 = vrot.lane.b32.xlu0 %v3947, 96
        %v4124 = vpop.permute.xlu0 %4123
        %v4141 = vsel %vm1421, %v1901, %v3966
        %v4142 = vsel %vm1421, %v1903, %v3968
        %v4143 = vsel %vm1421, %v1929, %v3970
        %v4144 = vsel %vm1421, %v1931, %v3972
        %v4145 = vsel %vm1421, %v1957, %v3974
        %v4146 = vsel %vm1421, %v1959, %v3976
        %v4147 = vsel %vm1421, %v1985, %v3978
        %v4148 = vsel %vm1421, %v1987, %v3980
        %v4149 = vsel %vm1421, %v2013, %v3982
        %v4150 = vsel %vm1421, %v2015, %v3984
        %v4151 = vsel %vm1421, %v2041, %v3986
        %v4152 = vsel %vm1421, %v2043, %v3988
        %v4153 = vsel %vm1421, %v2069, %v3990
        %v4154 = vsel %vm1421, %v2071, %v3992
        %v4155 = vsel %vm1421, %v2097, %v3994
        %v4156 = vsel %vm1421, %v2099, %v3996
        %vm4157 = vcmask 523264
        %v4158 = vsel %vm4157, %v4141, %v4030
        %v4159 = vsel %vm4157, %v4142, %v4032
        %v4160 = vsel %vm4157, %v4143, %v4034
        %v4161 = vsel %vm4157, %v4144, %v4036
        %v4162 = vsel %vm4157, %v4145, %v4038
        %v4163 = vsel %vm4157, %v4146, %v4040
        %v4164 = vsel %vm4157, %v4147, %v4042
        %v4165 = vsel %vm4157, %v4148, %v4044
        %v4166 = vsel %vm4157, %v4149, %v4046
        %v4167 = vsel %vm4157, %v4150, %v4048
        %v4168 = vsel %vm4157, %v4151, %v4050
        %v4169 = vsel %vm4157, %v4152, %v4052
        %v4170 = vsel %vm4157, %v4153, %v4054
        %v4171 = vsel %vm4157, %v4154, %v4056
        %v4172 = vsel %vm4157, %v4155, %v4058
        %v4173 = vsel %vm4157, %v4156, %v4060
        %vm4174 = vcmask 785408
        %v4175 = vsel %vm4174, %v4158, %v4094
        %v4176 = vsel %vm4174, %v4159, %v4096
        %v4177 = vsel %vm4174, %v4160, %v4098
        %v4178 = vsel %vm4174, %v4161, %v4100
        %v4179 = vsel %vm4174, %v4162, %v4102
        %v4180 = vsel %vm4174, %v4163, %v4104
        %v4181 = vsel %vm4174, %v4164, %v4106
        %v4182 = vsel %vm4174, %v4165, %v4108
        %v4183 = vsel %vm4174, %v4166, %v4110
        %v4184 = vsel %vm4174, %v4167, %v4112
        %v4185 = vsel %vm4174, %v4168, %v4114
        %v4186 = vsel %vm4174, %v4169, %v4116
        %v4187 = vsel %vm4174, %v4170, %v4118
        %v4188 = vsel %vm4174, %v4171, %v4120
        %v4189 = vsel %vm4174, %v4172, %v4122
        %v4190 = vsel %vm4174, %v4173, %v4124
        %v4191 = vpack.c.bf16 %v4176, %v4175
        %v4192 = vpack.c.bf16 %v4178, %v4177
        %v4193 = vpack.c.bf16 %v4180, %v4179
        %v4194 = vpack.c.bf16 %v4182, %v4181
        %v4195 = vpack.c.bf16 %v4184, %v4183
        %v4196 = vpack.c.bf16 %v4186, %v4185
        %v4197 = vpack.c.bf16 %v4188, %v4187
        %v4198 = vpack.c.bf16 %v4190, %v4189
        %v4199 = vld [vmem:[%s817] sm:$0xf]
        %v4200 = vld [vmem:[%s817 + $0x4] sm:$0xf]
        %v4201 = vld [vmem:[%s817 + $0x8] sm:$0xf]
        %v4202 = vld [vmem:[%s817 + $0xc] sm:$0xf]
        %v4203 = vld [vmem:[%s817 + $0x10] sm:$0xf]
        %v4204 = vld [vmem:[%s817 + $0x14] sm:$0xf]
        %v4205 = vld [vmem:[%s817 + $0x18] sm:$0xf]
        %v4206 = vld [vmem:[%s817 + $0x1c] sm:$0xf]
        %v4207 = vld [vmem:[%s817 + $0x20] sm:$0xf]
        %v4208 = vld [vmem:[%s817 + $0x24] sm:$0xf]
        %v4209 = vld [vmem:[%s817 + $0x28] sm:$0xf]
        %v4210 = vld [vmem:[%s817 + $0x2c] sm:$0xf]
        %v4211 = vld [vmem:[%s817 + $0x30] sm:$0xf]
        %v4212 = vld [vmem:[%s817 + $0x34] sm:$0xf]
        %v4213 = vld [vmem:[%s817 + $0x38] sm:$0xf]
        %v4214 = vld [vmem:[%s817 + $0x3c] sm:$0xf]
        %v4215 = vld [vmem:[%s826] sm:$0x1]
        %v4217 = vperm.slane %v4215, 0
        %v4235 = vunpack.c.l.b16 %v4199
        %v4236 = vunpack.c.l.b16 %v4200
        %v4237 = vunpack.c.l.b16 %v4201
        %v4238 = vunpack.c.l.b16 %v4202
        %v4239 = vunpack.c.l.b16 %v4203
        %v4240 = vunpack.c.l.b16 %v4204
        %v4241 = vunpack.c.l.b16 %v4205
        %v4242 = vunpack.c.l.b16 %v4206
        %v4243 = vunpack.c.l.b16 %v4207
        %v4244 = vunpack.c.l.b16 %v4208
        %v4245 = vunpack.c.l.b16 %v4209
        %v4246 = vunpack.c.l.b16 %v4210
        %v4247 = vunpack.c.l.b16 %v4211
        %v4248 = vunpack.c.l.b16 %v4212
        %v4249 = vunpack.c.l.b16 %v4213
        %v4250 = vunpack.c.l.b16 %v4214
        %v4251 = vpack.c.b16 %v4236, %v4235
        %v4252 = vpack.c.b16 %v4238, %v4237
        %v4253 = vpack.c.b16 %v4240, %v4239
        %v4254 = vpack.c.b16 %v4242, %v4241
        %v4255 = vpack.c.b16 %v4244, %v4243
        %v4256 = vpack.c.b16 %v4246, %v4245
        %v4257 = vpack.c.b16 %v4248, %v4247
        %v4258 = vpack.c.b16 %v4250, %v4249
        %4267 = vmatpush.bf16.msra.mxu0 %v4258
        %4268 = vmatpush.bf16.msra.mxu0 %v4257
        %4269 = vmatpush.bf16.msra.mxu0 %v4256
        %4270 = vmatpush.bf16.msra.mxu0 %v4255
        %4271 = vmatpush.bf16.msra.mxu0 %v4254
        %4272 = vmatpush.bf16.msra.mxu0 %v4253
        %4273 = vmatpush.bf16.msra.mxu0 %v4252
        %4274 = vmatpush.bf16.msra.mxu0 %v4251
        %4275 = vmatmul.bf16.gmra.mxu0 %v4191
        %v4276 = vpop.f32.mrf.mxu0
        %v4277 = vadd.f32 %v4217, %v4276
        %v4278 = vpop.f32.mrf.mxu0
        %v4279 = vadd.f32 %v4217, %v4278
        %4280 = vmatmul.bf16.gmra.mxu0 %v4192
        %v4281 = vpop.f32.mrf.mxu0
        %v4282 = vadd.f32 %v4217, %v4281
        %v4283 = vpop.f32.mrf.mxu0
        %v4284 = vadd.f32 %v4217, %v4283
        %4285 = vmatmul.bf16.gmra.mxu0 %v4193
        %v4286 = vpop.f32.mrf.mxu0
        %v4287 = vadd.f32 %v4217, %v4286
        %v4288 = vpop.f32.mrf.mxu0
        %v4289 = vadd.f32 %v4217, %v4288
        %4290 = vmatmul.bf16.gmra.mxu0 %v4194
        %v4291 = vpop.f32.mrf.mxu0
        %v4292 = vadd.f32 %v4217, %v4291
        %v4293 = vpop.f32.mrf.mxu0
        %v4294 = vadd.f32 %v4217, %v4293
        %4295 = vmatmul.bf16.gmra.mxu0 %v4195
        %v4296 = vpop.f32.mrf.mxu0
        %v4297 = vadd.f32 %v4217, %v4296
        %v4298 = vpop.f32.mrf.mxu0
        %v4299 = vadd.f32 %v4217, %v4298
        %4300 = vmatmul.bf16.gmra.mxu0 %v4196
        %v4301 = vpop.f32.mrf.mxu0
        %v4302 = vadd.f32 %v4217, %v4301
        %v4303 = vpop.f32.mrf.mxu0
        %v4304 = vadd.f32 %v4217, %v4303
        %4305 = vmatmul.bf16.gmra.mxu0 %v4197
        %v4306 = vpop.f32.mrf.mxu0
        %v4307 = vadd.f32 %v4217, %v4306
        %v4308 = vpop.f32.mrf.mxu0
        %v4309 = vadd.f32 %v4217, %v4308
        %4310 = vmatmul.bf16.gmra.mxu0 %v4198
        %v4311 = vpop.f32.mrf.mxu0
        %v4312 = vadd.f32 %v4217, %v4311
        %v4313 = vpop.f32.mrf.mxu0
        %v4314 = vadd.f32 %v4217, %v4313
        %4315 = vdwg.mxu0
        %v4316 = vadd.f32 %v1022, %v4277
        %v4317 = vadd.f32 %v1023, %v4279
        %v4318 = vadd.f32 %v1024, %v4282
        %v4319 = vadd.f32 %v1025, %v4284
        %v4320 = vadd.f32 %v1026, %v4287
        %v4321 = vadd.f32 %v1027, %v4289
        %v4322 = vadd.f32 %v1028, %v4292
        %v4323 = vadd.f32 %v1029, %v4294
        %v4324 = vadd.f32 %v1030, %v4297
        %v4325 = vadd.f32 %v1031, %v4299
        %v4326 = vadd.f32 %v1032, %v4302
        %v4327 = vadd.f32 %v1033, %v4304
        %v4328 = vadd.f32 %v1034, %v4307
        %v4329 = vadd.f32 %v1035, %v4309
        %v4330 = vadd.f32 %v1036, %v4312
        %v4331 = vadd.f32 %v1037, %v4314
        %v4332 = vld [vmem:[%s835] sm:$0x1]
        %v4333 = vld [vmem:[%s844] sm:$0x1]
        %4334 = vadd.xlane.f32.xlu0 %v4316
        %v4335 = vpop.xlane.xlu0 %4334
        %4336 = vadd.xlane.f32.xlu0 %v4317
        %v4337 = vpop.xlane.xlu0 %4336
        %4338 = vadd.xlane.f32.xlu0 %v4318
        %v4339 = vpop.xlane.xlu0 %4338
        %4340 = vadd.xlane.f32.xlu0 %v4319
        %v4341 = vpop.xlane.xlu0 %4340
        %4342 = vadd.xlane.f32.xlu0 %v4320
        %v4343 = vpop.xlane.xlu0 %4342
        %4344 = vadd.xlane.f32.xlu0 %v4321
        %v4345 = vpop.xlane.xlu0 %4344
        %4346 = vadd.xlane.f32.xlu0 %v4322
        %v4347 = vpop.xlane.xlu0 %4346
        %4348 = vadd.xlane.f32.xlu0 %v4323
        %v4349 = vpop.xlane.xlu0 %4348
        %4350 = vadd.xlane.f32.xlu0 %v4324
        %v4351 = vpop.xlane.xlu0 %4350
        %4352 = vadd.xlane.f32.xlu0 %v4325
        %v4353 = vpop.xlane.xlu0 %4352
        %4354 = vadd.xlane.f32.xlu0 %v4326
        %v4355 = vpop.xlane.xlu0 %4354
        %4356 = vadd.xlane.f32.xlu0 %v4327
        %v4357 = vpop.xlane.xlu0 %4356
        %4358 = vadd.xlane.f32.xlu0 %v4328
        %v4359 = vpop.xlane.xlu0 %4358
        %4360 = vadd.xlane.f32.xlu0 %v4329
        %v4361 = vpop.xlane.xlu0 %4360
        %4362 = vadd.xlane.f32.xlu0 %v4330
        %v4363 = vpop.xlane.xlu0 %4362
        %4364 = vadd.xlane.f32.xlu0 %v4331
        %v4365 = vpop.xlane.xlu0 %4364
        %v4366 = vrcp.pop 128.0
        %v4367 = vmul.f32 128.0, %v4366
        %v4368 = vsub.f32 1.0, %v4367
        %v4369 = vmul.f32 %v4366, %v4368
        %v4370 = vadd.f32 %v4366, %v4369
        %vm4371 = vweird.f32 %v4366
        %v4372 = vsel %vm4371, %v4366, %v4370
        %v4373 = vmul.f32 %v4335, %v4372
        %v4374 = vmul.f32 %v4337, %v4372
        %v4375 = vmul.f32 %v4339, %v4372
        %v4376 = vmul.f32 %v4341, %v4372
        %v4377 = vmul.f32 %v4343, %v4372
        %v4378 = vmul.f32 %v4345, %v4372
        %v4379 = vmul.f32 %v4347, %v4372
        %v4380 = vmul.f32 %v4349, %v4372
        %v4381 = vmul.f32 %v4351, %v4372
        %v4382 = vmul.f32 %v4353, %v4372
        %v4383 = vmul.f32 %v4355, %v4372
        %v4384 = vmul.f32 %v4357, %v4372
        %v4385 = vmul.f32 %v4359, %v4372
        %v4386 = vmul.f32 %v4361, %v4372
        %v4387 = vmul.f32 %v4363, %v4372
        %v4388 = vmul.f32 %v4365, %v4372
        %v4389 = vsub.f32 %v4316, %v4373
        %v4390 = vsub.f32 %v4317, %v4374
        %v4391 = vsub.f32 %v4318, %v4375
        %v4392 = vsub.f32 %v4319, %v4376
        %v4393 = vsub.f32 %v4320, %v4377
        %v4394 = vsub.f32 %v4321, %v4378
        %v4395 = vsub.f32 %v4322, %v4379
        %v4396 = vsub.f32 %v4323, %v4380
        %v4397 = vsub.f32 %v4324, %v4381
        %v4398 = vsub.f32 %v4325, %v4382
        %v4399 = vsub.f32 %v4326, %v4383
        %v4400 = vsub.f32 %v4327, %v4384
        %v4401 = vsub.f32 %v4328, %v4385
        %v4402 = vsub.f32 %v4329, %v4386
        %v4403 = vsub.f32 %v4330, %v4387
        %v4404 = vsub.f32 %v4331, %v4388
        %v4405 = vmul.f32 %v4389, %v4389
        %v4406 = vmul.f32 %v4390, %v4390
        %v4407 = vmul.f32 %v4391, %v4391
        %v4408 = vmul.f32 %v4392, %v4392
        %v4409 = vmul.f32 %v4393, %v4393
        %v4410 = vmul.f32 %v4394, %v4394
        %v4411 = vmul.f32 %v4395, %v4395
        %v4412 = vmul.f32 %v4396, %v4396
        %v4413 = vmul.f32 %v4397, %v4397
        %v4414 = vmul.f32 %v4398, %v4398
        %v4415 = vmul.f32 %v4399, %v4399
        %v4416 = vmul.f32 %v4400, %v4400
        %v4417 = vmul.f32 %v4401, %v4401
        %v4418 = vmul.f32 %v4402, %v4402
        %v4419 = vmul.f32 %v4403, %v4403
        %v4420 = vmul.f32 %v4404, %v4404
        %4421 = vadd.xlane.f32.xlu0 %v4405
        %v4422 = vpop.xlane.xlu0 %4421
        %4423 = vadd.xlane.f32.xlu0 %v4406
        %v4424 = vpop.xlane.xlu0 %4423
        %4425 = vadd.xlane.f32.xlu0 %v4407
        %v4426 = vpop.xlane.xlu0 %4425
        %4427 = vadd.xlane.f32.xlu0 %v4408
        %v4428 = vpop.xlane.xlu0 %4427
        %4429 = vadd.xlane.f32.xlu0 %v4409
        %v4430 = vpop.xlane.xlu0 %4429
        %4431 = vadd.xlane.f32.xlu0 %v4410
        %v4432 = vpop.xlane.xlu0 %4431
        %4433 = vadd.xlane.f32.xlu0 %v4411
        %v4434 = vpop.xlane.xlu0 %4433
        %4435 = vadd.xlane.f32.xlu0 %v4412
        %v4436 = vpop.xlane.xlu0 %4435
        %4437 = vadd.xlane.f32.xlu0 %v4413
        %v4438 = vpop.xlane.xlu0 %4437
        %4439 = vadd.xlane.f32.xlu0 %v4414
        %v4440 = vpop.xlane.xlu0 %4439
        %4441 = vadd.xlane.f32.xlu0 %v4415
        %v4442 = vpop.xlane.xlu0 %4441
        %4443 = vadd.xlane.f32.xlu0 %v4416
        %v4444 = vpop.xlane.xlu0 %4443
        %4445 = vadd.xlane.f32.xlu0 %v4417
        %v4446 = vpop.xlane.xlu0 %4445
        %4447 = vadd.xlane.f32.xlu0 %v4418
        %v4448 = vpop.xlane.xlu0 %4447
        %4449 = vadd.xlane.f32.xlu0 %v4419
        %v4450 = vpop.xlane.xlu0 %4449
        %4451 = vadd.xlane.f32.xlu0 %v4420
        %v4452 = vpop.xlane.xlu0 %4451
        %v4453 = vmul.f32 %v4422, %v4372
        %v4454 = vmul.f32 %v4424, %v4372
        %v4455 = vmul.f32 %v4426, %v4372
        %v4456 = vmul.f32 %v4428, %v4372
        %v4457 = vmul.f32 %v4430, %v4372
        %v4458 = vmul.f32 %v4432, %v4372
        %v4459 = vmul.f32 %v4434, %v4372
        %v4460 = vmul.f32 %v4436, %v4372
        %v4461 = vmul.f32 %v4438, %v4372
        %v4462 = vmul.f32 %v4440, %v4372
        %v4463 = vmul.f32 %v4442, %v4372
        %v4464 = vmul.f32 %v4444, %v4372
        %v4465 = vmul.f32 %v4446, %v4372
        %v4466 = vmul.f32 %v4448, %v4372
        %v4467 = vmul.f32 %v4450, %v4372
        %v4468 = vmul.f32 %v4452, %v4372
        %v4469 = vadd.f32 %v4453, 1e-05
        %v4470 = vadd.f32 %v4454, 1e-05
        %v4471 = vadd.f32 %v4455, 1e-05
        %v4472 = vadd.f32 %v4456, 1e-05
        %v4473 = vadd.f32 %v4457, 1e-05
        %v4474 = vadd.f32 %v4458, 1e-05
        %v4475 = vadd.f32 %v4459, 1e-05
        %v4476 = vadd.f32 %v4460, 1e-05
        %v4477 = vadd.f32 %v4461, 1e-05
        %v4478 = vadd.f32 %v4462, 1e-05
        %v4479 = vadd.f32 %v4463, 1e-05
        %v4480 = vadd.f32 %v4464, 1e-05
        %v4481 = vadd.f32 %v4465, 1e-05
        %v4482 = vadd.f32 %v4466, 1e-05
        %v4483 = vadd.f32 %v4467, 1e-05
        %v4484 = vadd.f32 %v4468, 1e-05
        %v4485 = vrsqrt.pop %v4469
        %v4486 = vmul.f32 %v4485, %v4469
        %v4487 = vmul.f32 %v4486, %v4485
        %v4488 = vmul.f32 0.5, %v4487
        %v4489 = vsub.f32 1.5, %v4488
        %v4490 = vmul.f32 %v4485, %v4489
        %vm4491 = vweird.f32 %v4469
        %vm4492 = vweird.f32 %v4485
        %vm4493 = vmor %vm4491, %vm4492
        %v4494 = vsel %vm4493, %v4485, %v4490
        %v4495 = vrsqrt.pop %v4470
        %v4496 = vmul.f32 %v4495, %v4470
        %v4497 = vmul.f32 %v4496, %v4495
        %v4498 = vmul.f32 0.5, %v4497
        %v4499 = vsub.f32 1.5, %v4498
        %v4500 = vmul.f32 %v4495, %v4499
        %vm4501 = vweird.f32 %v4470
        %vm4502 = vweird.f32 %v4495
        %vm4503 = vmor %vm4501, %vm4502
        %v4504 = vsel %vm4503, %v4495, %v4500
        %v4505 = vrsqrt.pop %v4471
        %v4506 = vmul.f32 %v4505, %v4471
        %v4507 = vmul.f32 %v4506, %v4505
        %v4508 = vmul.f32 0.5, %v4507
        %v4509 = vsub.f32 1.5, %v4508
        %v4510 = vmul.f32 %v4505, %v4509
        %vm4511 = vweird.f32 %v4471
        %vm4512 = vweird.f32 %v4505
        %vm4513 = vmor %vm4511, %vm4512
        %v4514 = vsel %vm4513, %v4505, %v4510
        %v4515 = vrsqrt.pop %v4472
        %v4516 = vmul.f32 %v4515, %v4472
        %v4517 = vmul.f32 %v4516, %v4515
        %v4518 = vmul.f32 0.5, %v4517
        %v4519 = vsub.f32 1.5, %v4518
        %v4520 = vmul.f32 %v4515, %v4519
        %vm4521 = vweird.f32 %v4472
        %vm4522 = vweird.f32 %v4515
        %vm4523 = vmor %vm4521, %vm4522
        %v4524 = vsel %vm4523, %v4515, %v4520
        %v4525 = vrsqrt.pop %v4473
        %v4526 = vmul.f32 %v4525, %v4473
        %v4527 = vmul.f32 %v4526, %v4525
        %v4528 = vmul.f32 0.5, %v4527
        %v4529 = vsub.f32 1.5, %v4528
        %v4530 = vmul.f32 %v4525, %v4529
        %vm4531 = vweird.f32 %v4473
        %vm4532 = vweird.f32 %v4525
        %vm4533 = vmor %vm4531, %vm4532
        %v4534 = vsel %vm4533, %v4525, %v4530
        %v4535 = vrsqrt.pop %v4474
        %v4536 = vmul.f32 %v4535, %v4474
        %v4537 = vmul.f32 %v4536, %v4535
        %v4538 = vmul.f32 0.5, %v4537
        %v4539 = vsub.f32 1.5, %v4538
        %v4540 = vmul.f32 %v4535, %v4539
        %vm4541 = vweird.f32 %v4474
        %vm4542 = vweird.f32 %v4535
        %vm4543 = vmor %vm4541, %vm4542
        %v4544 = vsel %vm4543, %v4535, %v4540
        %v4545 = vrsqrt.pop %v4475
        %v4546 = vmul.f32 %v4545, %v4475
        %v4547 = vmul.f32 %v4546, %v4545
        %v4548 = vmul.f32 0.5, %v4547
        %v4549 = vsub.f32 1.5, %v4548
        %v4550 = vmul.f32 %v4545, %v4549
        %vm4551 = vweird.f32 %v4475
        %vm4552 = vweird.f32 %v4545
        %vm4553 = vmor %vm4551, %vm4552
        %v4554 = vsel %vm4553, %v4545, %v4550
        %v4555 = vrsqrt.pop %v4476
        %v4556 = vmul.f32 %v4555, %v4476
        %v4557 = vmul.f32 %v4556, %v4555
        %v4558 = vmul.f32 0.5, %v4557
        %v4559 = vsub.f32 1.5, %v4558
        %v4560 = vmul.f32 %v4555, %v4559
        %vm4561 = vweird.f32 %v4476
        %vm4562 = vweird.f32 %v4555
        %vm4563 = vmor %vm4561, %vm4562
        %v4564 = vsel %vm4563, %v4555, %v4560
        %v4565 = vrsqrt.pop %v4477
        %v4566 = vmul.f32 %v4565, %v4477
        %v4567 = vmul.f32 %v4566, %v4565
        %v4568 = vmul.f32 0.5, %v4567
        %v4569 = vsub.f32 1.5, %v4568
        %v4570 = vmul.f32 %v4565, %v4569
        %vm4571 = vweird.f32 %v4477
        %vm4572 = vweird.f32 %v4565
        %vm4573 = vmor %vm4571, %vm4572
        %v4574 = vsel %vm4573, %v4565, %v4570
        %v4575 = vrsqrt.pop %v4478
        %v4576 = vmul.f32 %v4575, %v4478
        %v4577 = vmul.f32 %v4576, %v4575
        %v4578 = vmul.f32 0.5, %v4577
        %v4579 = vsub.f32 1.5, %v4578
        %v4580 = vmul.f32 %v4575, %v4579
        %vm4581 = vweird.f32 %v4478
        %vm4582 = vweird.f32 %v4575
        %vm4583 = vmor %vm4581, %vm4582
        %v4584 = vsel %vm4583, %v4575, %v4580
        %v4585 = vrsqrt.pop %v4479
        %v4586 = vmul.f32 %v4585, %v4479
        %v4587 = vmul.f32 %v4586, %v4585
        %v4588 = vmul.f32 0.5, %v4587
        %v4589 = vsub.f32 1.5, %v4588
        %v4590 = vmul.f32 %v4585, %v4589
        %vm4591 = vweird.f32 %v4479
        %vm4592 = vweird.f32 %v4585
        %vm4593 = vmor %vm4591, %vm4592
        %v4594 = vsel %vm4593, %v4585, %v4590
        %v4595 = vrsqrt.pop %v4480
        %v4596 = vmul.f32 %v4595, %v4480
        %v4597 = vmul.f32 %v4596, %v4595
        %v4598 = vmul.f32 0.5, %v4597
        %v4599 = vsub.f32 1.5, %v4598
        %v4600 = vmul.f32 %v4595, %v4599
        %vm4601 = vweird.f32 %v4480
        %vm4602 = vweird.f32 %v4595
        %vm4603 = vmor %vm4601, %vm4602
        %v4604 = vsel %vm4603, %v4595, %v4600
        %v4605 = vrsqrt.pop %v4481
        %v4606 = vmul.f32 %v4605, %v4481
        %v4607 = vmul.f32 %v4606, %v4605
        %v4608 = vmul.f32 0.5, %v4607
        %v4609 = vsub.f32 1.5, %v4608
        %v4610 = vmul.f32 %v4605, %v4609
        %vm4611 = vweird.f32 %v4481
        %vm4612 = vweird.f32 %v4605
        %vm4613 = vmor %vm4611, %vm4612
        %v4614 = vsel %vm4613, %v4605, %v4610
        %v4615 = vrsqrt.pop %v4482
        %v4616 = vmul.f32 %v4615, %v4482
        %v4617 = vmul.f32 %v4616, %v4615
        %v4618 = vmul.f32 0.5, %v4617
        %v4619 = vsub.f32 1.5, %v4618
        %v4620 = vmul.f32 %v4615, %v4619
        %vm4621 = vweird.f32 %v4482
        %vm4622 = vweird.f32 %v4615
        %vm4623 = vmor %vm4621, %vm4622
        %v4624 = vsel %vm4623, %v4615, %v4620
        %v4625 = vrsqrt.pop %v4483
        %v4626 = vmul.f32 %v4625, %v4483
        %v4627 = vmul.f32 %v4626, %v4625
        %v4628 = vmul.f32 0.5, %v4627
        %v4629 = vsub.f32 1.5, %v4628
        %v4630 = vmul.f32 %v4625, %v4629
        %vm4631 = vweird.f32 %v4483
        %vm4632 = vweird.f32 %v4625
        %vm4633 = vmor %vm4631, %vm4632
        %v4634 = vsel %vm4633, %v4625, %v4630
        %v4635 = vrsqrt.pop %v4484
        %v4636 = vmul.f32 %v4635, %v4484
        %v4637 = vmul.f32 %v4636, %v4635
        %v4638 = vmul.f32 0.5, %v4637
        %v4639 = vsub.f32 1.5, %v4638
        %v4640 = vmul.f32 %v4635, %v4639
        %vm4641 = vweird.f32 %v4484
        %vm4642 = vweird.f32 %v4635
        %vm4643 = vmor %vm4641, %vm4642
        %v4644 = vsel %vm4643, %v4635, %v4640
        %v4645 = vmul.f32 %v4389, %v4494
        %v4646 = vmul.f32 %v4390, %v4504
        %v4647 = vmul.f32 %v4391, %v4514
        %v4648 = vmul.f32 %v4392, %v4524
        %v4649 = vmul.f32 %v4393, %v4534
        %v4650 = vmul.f32 %v4394, %v4544
        %v4651 = vmul.f32 %v4395, %v4554
        %v4652 = vmul.f32 %v4396, %v4564
        %v4653 = vmul.f32 %v4397, %v4574
        %v4654 = vmul.f32 %v4398, %v4584
        %v4655 = vmul.f32 %v4399, %v4594
        %v4656 = vmul.f32 %v4400, %v4604
        %v4657 = vmul.f32 %v4401, %v4614
        %v4658 = vmul.f32 %v4402, %v4624
        %v4659 = vmul.f32 %v4403, %v4634
        %v4660 = vmul.f32 %v4404, %v4644
        %v4662 = vperm.slane %v4332, 0
        %v4664 = vmul.f32 %v4645, %v4662
        %v4665 = vmul.f32 %v4646, %v4662
        %v4666 = vmul.f32 %v4647, %v4662
        %v4667 = vmul.f32 %v4648, %v4662
        %v4668 = vmul.f32 %v4649, %v4662
        %v4669 = vmul.f32 %v4650, %v4662
        %v4670 = vmul.f32 %v4651, %v4662
        %v4671 = vmul.f32 %v4652, %v4662
        %v4672 = vmul.f32 %v4653, %v4662
        %v4673 = vmul.f32 %v4654, %v4662
        %v4674 = vmul.f32 %v4655, %v4662
        %v4675 = vmul.f32 %v4656, %v4662
        %v4676 = vmul.f32 %v4657, %v4662
        %v4677 = vmul.f32 %v4658, %v4662
        %v4678 = vmul.f32 %v4659, %v4662
        %v4679 = vmul.f32 %v4660, %v4662
        %v4681 = vperm.slane %v4333, 0
        %v4683 = vadd.f32 %v4664, %v4681
        %v4684 = vadd.f32 %v4665, %v4681
        %v4685 = vadd.f32 %v4666, %v4681
        %v4686 = vadd.f32 %v4667, %v4681
        %v4687 = vadd.f32 %v4668, %v4681
        %v4688 = vadd.f32 %v4669, %v4681
        %v4689 = vadd.f32 %v4670, %v4681
        %v4690 = vadd.f32 %v4671, %v4681
        %v4691 = vadd.f32 %v4672, %v4681
        %v4692 = vadd.f32 %v4673, %v4681
        %v4693 = vadd.f32 %v4674, %v4681
        %v4694 = vadd.f32 %v4675, %v4681
        %v4695 = vadd.f32 %v4676, %v4681
        %v4696 = vadd.f32 %v4677, %v4681
        %v4697 = vadd.f32 %v4678, %v4681
        %v4698 = vadd.f32 %v4679, %v4681
        %v4699 = vpack.c.bf16 %v4684, %v4683
        %v4700 = vpack.c.bf16 %v4686, %v4685
        %v4701 = vpack.c.bf16 %v4688, %v4687
        %v4702 = vpack.c.bf16 %v4690, %v4689
        %v4703 = vpack.c.bf16 %v4692, %v4691
        %v4704 = vpack.c.bf16 %v4694, %v4693
        %v4705 = vpack.c.bf16 %v4696, %v4695
        %v4706 = vpack.c.bf16 %v4698, %v4697
        %v4707 = vld [vmem:[%s854] sm:$0xff]
        %v4708 = vld [vmem:[%s854 + $0x8] sm:$0xff]
        %v4709 = vld [vmem:[%s854 + $0x10] sm:$0xff]
        %v4710 = vld [vmem:[%s854 + $0x18] sm:$0xff]
        %v4711 = vld [vmem:[%s854 + $0x20] sm:$0xff]
        %v4712 = vld [vmem:[%s854 + $0x28] sm:$0xff]
        %v4713 = vld [vmem:[%s854 + $0x30] sm:$0xff]
        %v4714 = vld [vmem:[%s854 + $0x38] sm:$0xff]
        %v4715 = vld [vmem:[%s854 + $0x40] sm:$0xff]
        %v4716 = vld [vmem:[%s854 + $0x48] sm:$0xff]
        %v4717 = vld [vmem:[%s854 + $0x50] sm:$0xff]
        %v4718 = vld [vmem:[%s854 + $0x58] sm:$0xff]
        %v4719 = vld [vmem:[%s854 + $0x60] sm:$0xff]
        %v4720 = vld [vmem:[%s854 + $0x68] sm:$0xff]
        %v4721 = vld [vmem:[%s854 + $0x70] sm:$0xff]
        %v4722 = vld [vmem:[%s854 + $0x78] sm:$0xff]
        %v4723 = vld [vmem:[%s854 + $0x80] sm:$0xff]
        %v4724 = vld [vmem:[%s854 + $0x88] sm:$0xff]
        %v4725 = vld [vmem:[%s854 + $0x90] sm:$0xff]
        %v4726 = vld [vmem:[%s854 + $0x98] sm:$0xff]
        %v4727 = vld [vmem:[%s854 + $0xa0] sm:$0xff]
        %v4728 = vld [vmem:[%s854 + $0xa8] sm:$0xff]
        %v4729 = vld [vmem:[%s854 + $0xb0] sm:$0xff]
        %v4730 = vld [vmem:[%s854 + $0xb8] sm:$0xff]
        %v4731 = vld [vmem:[%s854 + $0xc0] sm:$0xff]
        %v4732 = vld [vmem:[%s854 + $0xc8] sm:$0xff]
        %v4733 = vld [vmem:[%s854 + $0xd0] sm:$0xff]
        %v4734 = vld [vmem:[%s854 + $0xd8] sm:$0xff]
        %v4735 = vld [vmem:[%s854 + $0xe0] sm:$0xff]
        %v4736 = vld [vmem:[%s854 + $0xe8] sm:$0xff]
        %v4737 = vld [vmem:[%s854 + $0xf0] sm:$0xff]
        %v4738 = vld [vmem:[%s854 + $0xf8] sm:$0xff]
        %v4739 = vld [vmem:[%s977] sm:$0xf]
        %v4741 = vperm.slane %v4739, 0
        %v4742 = vperm.slane %v4739, 1
        %v4743 = vperm.slane %v4739, 2
        %v4744 = vperm.slane %v4739, 3
        %v4781 = vunpack.c.l.b16 %v4707
        %v4782 = vunpack.c.h.b16 %v4707
        %v4783 = vunpack.c.l.b16 %v4708
        %v4784 = vunpack.c.h.b16 %v4708
        %v4785 = vunpack.c.l.b16 %v4709
        %v4786 = vunpack.c.h.b16 %v4709
        %v4787 = vunpack.c.l.b16 %v4710
        %v4788 = vunpack.c.h.b16 %v4710
        %v4789 = vunpack.c.l.b16 %v4711
        %v4790 = vunpack.c.h.b16 %v4711
        %v4791 = vunpack.c.l.b16 %v4712
        %v4792 = vunpack.c.h.b16 %v4712
        %v4793 = vunpack.c.l.b16 %v4713
        %v4794 = vunpack.c.h.b16 %v4713
        %v4795 = vunpack.c.l.b16 %v4714
        %v4796 = vunpack.c.h.b16 %v4714
        %v4797 = vunpack.c.l.b16 %v4715
        %v4798 = vunpack.c.h.b16 %v4715
        %v4799 = vunpack.c.l.b16 %v4716
        %v4800 = vunpack.c.h.b16 %v4716
        %v4801 = vunpack.c.l.b16 %v4717
        %v4802 = vunpack.c.h.b16 %v4717
        %v4803 = vunpack.c.l.b16 %v4718
        %v4804 = vunpack.c.h.b16 %v4718
        %v4805 = vunpack.c.l.b16 %v4719
        %v4806 = vunpack.c.h.b16 %v4719
        %v4807 = vunpack.c.l.b16 %v4720
        %v4808 = vunpack.c.h.b16 %v4720
        %v4809 = vunpack.c.l.b16 %v4721
        %v4810 = vunpack.c.h.b16 %v4721
        %v4811 = vunpack.c.l.b16 %v4722
        %v4812 = vunpack.c.h.b16 %v4722
        %v4813 = vunpack.c.l.b16 %v4723
        %v4814 = vunpack.c.h.b16 %v4723
        %v4815 = vunpack.c.l.b16 %v4724
        %v4816 = vunpack.c.h.b16 %v4724
        %v4817 = vunpack.c.l.b16 %v4725
        %v4818 = vunpack.c.h.b16 %v4725
        %v4819 = vunpack.c.l.b16 %v4726
        %v4820 = vunpack.c.h.b16 %v4726
        %v4821 = vunpack.c.l.b16 %v4727
        %v4822 = vunpack.c.h.b16 %v4727
        %v4823 = vunpack.c.l.b16 %v4728
        %v4824 = vunpack.c.h.b16 %v4728
        %v4825 = vunpack.c.l.b16 %v4729
        %v4826 = vunpack.c.h.b16 %v4729
        %v4827 = vunpack.c.l.b16 %v4730
        %v4828 = vunpack.c.h.b16 %v4730
        %v4829 = vunpack.c.l.b16 %v4731
        %v4830 = vunpack.c.h.b16 %v4731
        %v4831 = vunpack.c.l.b16 %v4732
        %v4832 = vunpack.c.h.b16 %v4732
        %v4833 = vunpack.c.l.b16 %v4733
        %v4834 = vunpack.c.h.b16 %v4733
        %v4835 = vunpack.c.l.b16 %v4734
        %v4836 = vunpack.c.h.b16 %v4734
        %v4837 = vunpack.c.l.b16 %v4735
        %v4838 = vunpack.c.h.b16 %v4735
        %v4839 = vunpack.c.l.b16 %v4736
        %v4840 = vunpack.c.h.b16 %v4736
        %v4841 = vunpack.c.l.b16 %v4737
        %v4842 = vunpack.c.h.b16 %v4737
        %v4843 = vunpack.c.l.b16 %v4738
        %v4844 = vunpack.c.h.b16 %v4738
        %v4845 = vpack.c.b16 %v4785, %v4781
        %v4846 = vpack.c.b16 %v4786, %v4782
        %v4847 = vpack.c.b16 %v4787, %v4783
        %v4848 = vpack.c.b16 %v4788, %v4784
        %v4849 = vpack.c.b16 %v4793, %v4789
        %v4850 = vpack.c.b16 %v4794, %v4790
        %v4851 = vpack.c.b16 %v4795, %v4791
        %v4852 = vpack.c.b16 %v4796, %v4792
        %v4853 = vpack.c.b16 %v4801, %v4797
        %v4854 = vpack.c.b16 %v4802, %v4798
        %v4855 = vpack.c.b16 %v4803, %v4799
        %v4856 = vpack.c.b16 %v4804, %v4800
        %v4857 = vpack.c.b16 %v4809, %v4805
        %v4858 = vpack.c.b16 %v4810, %v4806
        %v4859 = vpack.c.b16 %v4811, %v4807
        %v4860 = vpack.c.b16 %v4812, %v4808
        %v4861 = vpack.c.b16 %v4817, %v4813
        %v4862 = vpack.c.b16 %v4818, %v4814
        %v4863 = vpack.c.b16 %v4819, %v4815
        %v4864 = vpack.c.b16 %v4820, %v4816
        %v4865 = vpack.c.b16 %v4825, %v4821
        %v4866 = vpack.c.b16 %v4826, %v4822
        %v4867 = vpack.c.b16 %v4827, %v4823
        %v4868 = vpack.c.b16 %v4828, %v4824
        %v4869 = vpack.c.b16 %v4833, %v4829
        %v4870 = vpack.c.b16 %v4834, %v4830
        %v4871 = vpack.c.b16 %v4835, %v4831
        %v4872 = vpack.c.b16 %v4836, %v4832
        %v4873 = vpack.c.b16 %v4841, %v4837
        %v4874 = vpack.c.b16 %v4842, %v4838
        %v4875 = vpack.c.b16 %v4843, %v4839
        %v4876 = vpack.c.b16 %v4844, %v4840
        %4909 = vmatpush.bf16.msra.mxu0 %v4873
        %4910 = vmatpush.bf16.msra.mxu0 %v4869
        %4911 = vmatpush.bf16.msra.mxu0 %v4865
        %4912 = vmatpush.bf16.msra.mxu0 %v4861
        %4913 = vmatpush.bf16.msra.mxu0 %v4857
        %4914 = vmatpush.bf16.msra.mxu0 %v4853
        %4915 = vmatpush.bf16.msra.mxu0 %v4849
        %4916 = vmatpush.bf16.msra.mxu0 %v4845
        %4917 = vmatmul.bf16.gmra.mxu0 %v4699
        %v4918 = vpop.f32.mrf.mxu0
        %v4919 = vadd.f32 %v4741, %v4918
        %v4920 = vpop.f32.mrf.mxu0
        %v4921 = vadd.f32 %v4741, %v4920
        %4922 = vmatmul.bf16.gmra.mxu0 %v4700
        %v4923 = vpop.f32.mrf.mxu0
        %v4924 = vadd.f32 %v4741, %v4923
        %v4925 = vpop.f32.mrf.mxu0
        %v4926 = vadd.f32 %v4741, %v4925
        %4927 = vmatmul.bf16.gmra.mxu0 %v4701
        %v4928 = vpop.f32.mrf.mxu0
        %v4929 = vadd.f32 %v4741, %v4928
        %v4930 = vpop.f32.mrf.mxu0
        %v4931 = vadd.f32 %v4741, %v4930
        %4932 = vmatmul.bf16.gmra.mxu0 %v4702
        %v4933 = vpop.f32.mrf.mxu0
        %v4934 = vadd.f32 %v4741, %v4933
        %v4935 = vpop.f32.mrf.mxu0
        %v4936 = vadd.f32 %v4741, %v4935
        %4937 = vmatmul.bf16.gmra.mxu0 %v4703
        %v4938 = vpop.f32.mrf.mxu0
        %v4939 = vadd.f32 %v4741, %v4938
        %v4940 = vpop.f32.mrf.mxu0
        %v4941 = vadd.f32 %v4741, %v4940
        %4942 = vmatmul.bf16.gmra.mxu0 %v4704
        %v4943 = vpop.f32.mrf.mxu0
        %v4944 = vadd.f32 %v4741, %v4943
        %v4945 = vpop.f32.mrf.mxu0
        %v4946 = vadd.f32 %v4741, %v4945
        %4947 = vmatmul.bf16.gmra.mxu0 %v4705
        %v4948 = vpop.f32.mrf.mxu0
        %v4949 = vadd.f32 %v4741, %v4948
        %v4950 = vpop.f32.mrf.mxu0
        %v4951 = vadd.f32 %v4741, %v4950
        %4952 = vmatmul.bf16.gmra.mxu0 %v4706
        %v4953 = vpop.f32.mrf.mxu0
        %v4954 = vadd.f32 %v4741, %v4953
        %v4955 = vpop.f32.mrf.mxu0
        %v4956 = vadd.f32 %v4741, %v4955
        %4957 = vdwg.mxu0
        %4958 = vmatpush.bf16.msra.mxu0 %v4874
        %4959 = vmatpush.bf16.msra.mxu0 %v4870
        %4960 = vmatpush.bf16.msra.mxu0 %v4866
        %4961 = vmatpush.bf16.msra.mxu0 %v4862
        %4962 = vmatpush.bf16.msra.mxu0 %v4858
        %4963 = vmatpush.bf16.msra.mxu0 %v4854
        %4964 = vmatpush.bf16.msra.mxu0 %v4850
        %4965 = vmatpush.bf16.msra.mxu0 %v4846
        %4966 = vmatmul.bf16.gmra.mxu0 %v4699
        %v4967 = vpop.f32.mrf.mxu0
        %v4968 = vadd.f32 %v4742, %v4967
        %v4969 = vpop.f32.mrf.mxu0
        %v4970 = vadd.f32 %v4742, %v4969
        %4971 = vmatmul.bf16.gmra.mxu0 %v4700
        %v4972 = vpop.f32.mrf.mxu0
        %v4973 = vadd.f32 %v4742, %v4972
        %v4974 = vpop.f32.mrf.mxu0
        %v4975 = vadd.f32 %v4742, %v4974
        %4976 = vmatmul.bf16.gmra.mxu0 %v4701
        %v4977 = vpop.f32.mrf.mxu0
        %v4978 = vadd.f32 %v4742, %v4977
        %v4979 = vpop.f32.mrf.mxu0
        %v4980 = vadd.f32 %v4742, %v4979
        %4981 = vmatmul.bf16.gmra.mxu0 %v4702
        %v4982 = vpop.f32.mrf.mxu0
        %v4983 = vadd.f32 %v4742, %v4982
        %v4984 = vpop.f32.mrf.mxu0
        %v4985 = vadd.f32 %v4742, %v4984
        %4986 = vmatmul.bf16.gmra.mxu0 %v4703
        %v4987 = vpop.f32.mrf.mxu0
        %v4988 = vadd.f32 %v4742, %v4987
        %v4989 = vpop.f32.mrf.mxu0
        %v4990 = vadd.f32 %v4742, %v4989
        %4991 = vmatmul.bf16.gmra.mxu0 %v4704
        %v4992 = vpop.f32.mrf.mxu0
        %v4993 = vadd.f32 %v4742, %v4992
        %v4994 = vpop.f32.mrf.mxu0
        %v4995 = vadd.f32 %v4742, %v4994
        %4996 = vmatmul.bf16.gmra.mxu0 %v4705
        %v4997 = vpop.f32.mrf.mxu0
        %v4998 = vadd.f32 %v4742, %v4997
        %v4999 = vpop.f32.mrf.mxu0
        %v5000 = vadd.f32 %v4742, %v4999
        %5001 = vmatmul.bf16.gmra.mxu0 %v4706
        %v5002 = vpop.f32.mrf.mxu0
        %v5003 = vadd.f32 %v4742, %v5002
        %v5004 = vpop.f32.mrf.mxu0
        %v5005 = vadd.f32 %v4742, %v5004
        %5006 = vdwg.mxu0
        %5007 = vmatpush.bf16.msra.mxu0 %v4875
        %5008 = vmatpush.bf16.msra.mxu0 %v4871
        %5009 = vmatpush.bf16.msra.mxu0 %v4867
        %5010 = vmatpush.bf16.msra.mxu0 %v4863
        %5011 = vmatpush.bf16.msra.mxu0 %v4859
        %5012 = vmatpush.bf16.msra.mxu0 %v4855
        %5013 = vmatpush.bf16.msra.mxu0 %v4851
        %5014 = vmatpush.bf16.msra.mxu0 %v4847
        %5015 = vmatmul.bf16.gmra.mxu0 %v4699
        %v5016 = vpop.f32.mrf.mxu0
        %v5017 = vadd.f32 %v4743, %v5016
        %v5018 = vpop.f32.mrf.mxu0
        %v5019 = vadd.f32 %v4743, %v5018
        %5020 = vmatmul.bf16.gmra.mxu0 %v4700
        %v5021 = vpop.f32.mrf.mxu0
        %v5022 = vadd.f32 %v4743, %v5021
        %v5023 = vpop.f32.mrf.mxu0
        %v5024 = vadd.f32 %v4743, %v5023
        %5025 = vmatmul.bf16.gmra.mxu0 %v4701
        %v5026 = vpop.f32.mrf.mxu0
        %v5027 = vadd.f32 %v4743, %v5026
        %v5028 = vpop.f32.mrf.mxu0
        %v5029 = vadd.f32 %v4743, %v5028
        %5030 = vmatmul.bf16.gmra.mxu0 %v4702
        %v5031 = vpop.f32.mrf.mxu0
        %v5032 = vadd.f32 %v4743, %v5031
        %v5033 = vpop.f32.mrf.mxu0
        %v5034 = vadd.f32 %v4743, %v5033
        %5035 = vmatmul.bf16.gmra.mxu0 %v4703
        %v5036 = vpop.f32.mrf.mxu0
        %v5037 = vadd.f32 %v4743, %v5036
        %v5038 = vpop.f32.mrf.mxu0
        %v5039 = vadd.f32 %v4743, %v5038
        %5040 = vmatmul.bf16.gmra.mxu0 %v4704
        %v5041 = vpop.f32.mrf.mxu0
        %v5042 = vadd.f32 %v4743, %v5041
        %v5043 = vpop.f32.mrf.mxu0
        %v5044 = vadd.f32 %v4743, %v5043
        %5045 = vmatmul.bf16.gmra.mxu0 %v4705
        %v5046 = vpop.f32.mrf.mxu0
        %v5047 = vadd.f32 %v4743, %v5046
        %v5048 = vpop.f32.mrf.mxu0
        %v5049 = vadd.f32 %v4743, %v5048
        %5050 = vmatmul.bf16.gmra.mxu0 %v4706
        %v5051 = vpop.f32.mrf.mxu0
        %v5052 = vadd.f32 %v4743, %v5051
        %v5053 = vpop.f32.mrf.mxu0
        %v5054 = vadd.f32 %v4743, %v5053
        %5055 = vdwg.mxu0
        %5056 = vmatpush.bf16.msra.mxu0 %v4876
        %5057 = vmatpush.bf16.msra.mxu0 %v4872
        %5058 = vmatpush.bf16.msra.mxu0 %v4868
        %5059 = vmatpush.bf16.msra.mxu0 %v4864
        %5060 = vmatpush.bf16.msra.mxu0 %v4860
        %5061 = vmatpush.bf16.msra.mxu0 %v4856
        %5062 = vmatpush.bf16.msra.mxu0 %v4852
        %5063 = vmatpush.bf16.msra.mxu0 %v4848
        %5064 = vmatmul.bf16.gmra.mxu0 %v4699
        %v5065 = vpop.f32.mrf.mxu0
        %v5066 = vadd.f32 %v4744, %v5065
        %v5067 = vpop.f32.mrf.mxu0
        %v5068 = vadd.f32 %v4744, %v5067
        %5069 = vmatmul.bf16.gmra.mxu0 %v4700
        %v5070 = vpop.f32.mrf.mxu0
        %v5071 = vadd.f32 %v4744, %v5070
        %v5072 = vpop.f32.mrf.mxu0
        %v5073 = vadd.f32 %v4744, %v5072
        %5074 = vmatmul.bf16.gmra.mxu0 %v4701
        %v5075 = vpop.f32.mrf.mxu0
        %v5076 = vadd.f32 %v4744, %v5075
        %v5077 = vpop.f32.mrf.mxu0
        %v5078 = vadd.f32 %v4744, %v5077
        %5079 = vmatmul.bf16.gmra.mxu0 %v4702
        %v5080 = vpop.f32.mrf.mxu0
        %v5081 = vadd.f32 %v4744, %v5080
        %v5082 = vpop.f32.mrf.mxu0
        %v5083 = vadd.f32 %v4744, %v5082
        %5084 = vmatmul.bf16.gmra.mxu0 %v4703
        %v5085 = vpop.f32.mrf.mxu0
        %v5086 = vadd.f32 %v4744, %v5085
        %v5087 = vpop.f32.mrf.mxu0
        %v5088 = vadd.f32 %v4744, %v5087
        %5089 = vmatmul.bf16.gmra.mxu0 %v4704
        %v5090 = vpop.f32.mrf.mxu0
        %v5091 = vadd.f32 %v4744, %v5090
        %v5092 = vpop.f32.mrf.mxu0
        %v5093 = vadd.f32 %v4744, %v5092
        %5094 = vmatmul.bf16.gmra.mxu0 %v4705
        %v5095 = vpop.f32.mrf.mxu0
        %v5096 = vadd.f32 %v4744, %v5095
        %v5097 = vpop.f32.mrf.mxu0
        %v5098 = vadd.f32 %v4744, %v5097
        %5099 = vmatmul.bf16.gmra.mxu0 %v4706
        %v5100 = vpop.f32.mrf.mxu0
        %v5101 = vadd.f32 %v4744, %v5100
        %v5102 = vpop.f32.mrf.mxu0
        %v5103 = vadd.f32 %v4744, %v5102
        %5104 = vdwg.mxu0
        %v5105 = vmul.f32 %v4919, 0.5
        %v5106 = vmul.f32 %v4968, 0.5
        %v5107 = vmul.f32 %v5017, 0.5
        %v5108 = vmul.f32 %v5066, 0.5
        %v5109 = vmul.f32 %v4921, 0.5
        %v5110 = vmul.f32 %v4970, 0.5
        %v5111 = vmul.f32 %v5019, 0.5
        %v5112 = vmul.f32 %v5068, 0.5
        %v5113 = vmul.f32 %v4924, 0.5
        %v5114 = vmul.f32 %v4973, 0.5
        %v5115 = vmul.f32 %v5022, 0.5
        %v5116 = vmul.f32 %v5071, 0.5
        %v5117 = vmul.f32 %v4926, 0.5
        %v5118 = vmul.f32 %v4975, 0.5
        %v5119 = vmul.f32 %v5024, 0.5
        %v5120 = vmul.f32 %v5073, 0.5
        %v5121 = vmul.f32 %v4929, 0.5
        %v5122 = vmul.f32 %v4978, 0.5
        %v5123 = vmul.f32 %v5027, 0.5
        %v5124 = vmul.f32 %v5076, 0.5
        %v5125 = vmul.f32 %v4931, 0.5
        %v5126 = vmul.f32 %v4980, 0.5
        %v5127 = vmul.f32 %v5029, 0.5
        %v5128 = vmul.f32 %v5078, 0.5
        %v5129 = vmul.f32 %v4934, 0.5
        %v5130 = vmul.f32 %v4983, 0.5
        %v5131 = vmul.f32 %v5032, 0.5
        %v5132 = vmul.f32 %v5081, 0.5
        %v5133 = vmul.f32 %v4936, 0.5
        %v5134 = vmul.f32 %v4985, 0.5
        %v5135 = vmul.f32 %v5034, 0.5
        %v5136 = vmul.f32 %v5083, 0.5
        %v5137 = vmul.f32 %v4939, 0.5
        %v5138 = vmul.f32 %v4988, 0.5
        %v5139 = vmul.f32 %v5037, 0.5
        %v5140 = vmul.f32 %v5086, 0.5
        %v5141 = vmul.f32 %v4941, 0.5
        %v5142 = vmul.f32 %v4990, 0.5
        %v5143 = vmul.f32 %v5039, 0.5
        %v5144 = vmul.f32 %v5088, 0.5
        %v5145 = vmul.f32 %v4944, 0.5
        %v5146 = vmul.f32 %v4993, 0.5
        %v5147 = vmul.f32 %v5042, 0.5
        %v5148 = vmul.f32 %v5091, 0.5
        %v5149 = vmul.f32 %v4946, 0.5
        %v5150 = vmul.f32 %v4995, 0.5
        %v5151 = vmul.f32 %v5044, 0.5
        %v5152 = vmul.f32 %v5093, 0.5
        %v5153 = vmul.f32 %v4949, 0.5
        %v5154 = vmul.f32 %v4998, 0.5
        %v5155 = vmul.f32 %v5047, 0.5
        %v5156 = vmul.f32 %v5096, 0.5
        %v5157 = vmul.f32 %v4951, 0.5
        %v5158 = vmul.f32 %v5000, 0.5
        %v5159 = vmul.f32 %v5049, 0.5
        %v5160 = vmul.f32 %v5098, 0.5
        %v5161 = vmul.f32 %v4954, 0.5
        %v5162 = vmul.f32 %v5003, 0.5
        %v5163 = vmul.f32 %v5052, 0.5
        %v5164 = vmul.f32 %v5101, 0.5
        %v5165 = vmul.f32 %v4956, 0.5
        %v5166 = vmul.f32 %v5005, 0.5
        %v5167 = vmul.f32 %v5054, 0.5
        %v5168 = vmul.f32 %v5103, 0.5
        %v5169 = vmul.f32 %v4919, %v4919
        %v5170 = vmul.f32 %v4968, %v4968
        %v5171 = vmul.f32 %v5017, %v5017
        %v5172 = vmul.f32 %v5066, %v5066
        %v5173 = vmul.f32 %v4921, %v4921
        %v5174 = vmul.f32 %v4970, %v4970
        %v5175 = vmul.f32 %v5019, %v5019
        %v5176 = vmul.f32 %v5068, %v5068
        %v5177 = vmul.f32 %v4924, %v4924
        %v5178 = vmul.f32 %v4973, %v4973
        %v5179 = vmul.f32 %v5022, %v5022
        %v5180 = vmul.f32 %v5071, %v5071
        %v5181 = vmul.f32 %v4926, %v4926
        %v5182 = vmul.f32 %v4975, %v4975
        %v5183 = vmul.f32 %v5024, %v5024
        %v5184 = vmul.f32 %v5073, %v5073
        %v5185 = vmul.f32 %v4929, %v4929
        %v5186 = vmul.f32 %v4978, %v4978
        %v5187 = vmul.f32 %v5027, %v5027
        %v5188 = vmul.f32 %v5076, %v5076
        %v5189 = vmul.f32 %v4931, %v4931
        %v5190 = vmul.f32 %v4980, %v4980
        %v5191 = vmul.f32 %v5029, %v5029
        %v5192 = vmul.f32 %v5078, %v5078
        %v5193 = vmul.f32 %v4934, %v4934
        %v5194 = vmul.f32 %v4983, %v4983
        %v5195 = vmul.f32 %v5032, %v5032
        %v5196 = vmul.f32 %v5081, %v5081
        %v5197 = vmul.f32 %v4936, %v4936
        %v5198 = vmul.f32 %v4985, %v4985
        %v5199 = vmul.f32 %v5034, %v5034
        %v5200 = vmul.f32 %v5083, %v5083
        %v5201 = vmul.f32 %v4939, %v4939
        %v5202 = vmul.f32 %v4988, %v4988
        %v5203 = vmul.f32 %v5037, %v5037
        %v5204 = vmul.f32 %v5086, %v5086
        %v5205 = vmul.f32 %v4941, %v4941
        %v5206 = vmul.f32 %v4990, %v4990
        %v5207 = vmul.f32 %v5039, %v5039
        %v5208 = vmul.f32 %v5088, %v5088
        %v5209 = vmul.f32 %v4944, %v4944
        %v5210 = vmul.f32 %v4993, %v4993
        %v5211 = vmul.f32 %v5042, %v5042
        %v5212 = vmul.f32 %v5091, %v5091
        %v5213 = vmul.f32 %v4946, %v4946
        %v5214 = vmul.f32 %v4995, %v4995
        %v5215 = vmul.f32 %v5044, %v5044
        %v5216 = vmul.f32 %v5093, %v5093
        %v5217 = vmul.f32 %v4949, %v4949
        %v5218 = vmul.f32 %v4998, %v4998
        %v5219 = vmul.f32 %v5047, %v5047
        %v5220 = vmul.f32 %v5096, %v5096
        %v5221 = vmul.f32 %v4951, %v4951
        %v5222 = vmul.f32 %v5000, %v5000
        %v5223 = vmul.f32 %v5049, %v5049
        %v5224 = vmul.f32 %v5098, %v5098
        %v5225 = vmul.f32 %v4954, %v4954
        %v5226 = vmul.f32 %v5003, %v5003
        %v5227 = vmul.f32 %v5052, %v5052
        %v5228 = vmul.f32 %v5101, %v5101
        %v5229 = vmul.f32 %v4956, %v4956
        %v5230 = vmul.f32 %v5005, %v5005
        %v5231 = vmul.f32 %v5054, %v5054
        %v5232 = vmul.f32 %v5103, %v5103
        %v5233 = vmul.f32 %v5169, %v4919
        %v5234 = vmul.f32 %v5170, %v4968
        %v5235 = vmul.f32 %v5171, %v5017
        %v5236 = vmul.f32 %v5172, %v5066
        %v5237 = vmul.f32 %v5173, %v4921
        %v5238 = vmul.f32 %v5174, %v4970
        %v5239 = vmul.f32 %v5175, %v5019
        %v5240 = vmul.f32 %v5176, %v5068
        %v5241 = vmul.f32 %v5177, %v4924
        %v5242 = vmul.f32 %v5178, %v4973
        %v5243 = vmul.f32 %v5179, %v5022
        %v5244 = vmul.f32 %v5180, %v5071
        %v5245 = vmul.f32 %v5181, %v4926
        %v5246 = vmul.f32 %v5182, %v4975
        %v5247 = vmul.f32 %v5183, %v5024
        %v5248 = vmul.f32 %v5184, %v5073
        %v5249 = vmul.f32 %v5185, %v4929
        %v5250 = vmul.f32 %v5186, %v4978
        %v5251 = vmul.f32 %v5187, %v5027
        %v5252 = vmul.f32 %v5188, %v5076
        %v5253 = vmul.f32 %v5189, %v4931
        %v5254 = vmul.f32 %v5190, %v4980
        %v5255 = vmul.f32 %v5191, %v5029
        %v5256 = vmul.f32 %v5192, %v5078
        %v5257 = vmul.f32 %v5193, %v4934
        %v5258 = vmul.f32 %v5194, %v4983
        %v5259 = vmul.f32 %v5195, %v5032
        %v5260 = vmul.f32 %v5196, %v5081
        %v5261 = vmul.f32 %v5197, %v4936
        %v5262 = vmul.f32 %v5198, %v4985
        %v5263 = vmul.f32 %v5199, %v5034
        %v5264 = vmul.f32 %v5200, %v5083
        %v5265 = vmul.f32 %v5201, %v4939
        %v5266 = vmul.f32 %v5202, %v4988
        %v5267 = vmul.f32 %v5203, %v5037
        %v5268 = vmul.f32 %v5204, %v5086
        %v5269 = vmul.f32 %v5205, %v4941
        %v5270 = vmul.f32 %v5206, %v4990
        %v5271 = vmul.f32 %v5207, %v5039
        %v5272 = vmul.f32 %v5208, %v5088
        %v5273 = vmul.f32 %v5209, %v4944
        %v5274 = vmul.f32 %v5210, %v4993
        %v5275 = vmul.f32 %v5211, %v5042
        %v5276 = vmul.f32 %v5212, %v5091
        %v5277 = vmul.f32 %v5213, %v4946
        %v5278 = vmul.f32 %v5214, %v4995
        %v5279 = vmul.f32 %v5215, %v5044
        %v5280 = vmul.f32 %v5216, %v5093
        %v5281 = vmul.f32 %v5217, %v4949
        %v5282 = vmul.f32 %v5218, %v4998
        %v5283 = vmul.f32 %v5219, %v5047
        %v5284 = vmul.f32 %v5220, %v5096
        %v5285 = vmul.f32 %v5221, %v4951
        %v5286 = vmul.f32 %v5222, %v5000
        %v5287 = vmul.f32 %v5223, %v5049
        %v5288 = vmul.f32 %v5224, %v5098
        %v5289 = vmul.f32 %v5225, %v4954
        %v5290 = vmul.f32 %v5226, %v5003
        %v5291 = vmul.f32 %v5227, %v5052
        %v5292 = vmul.f32 %v5228, %v5101
        %v5293 = vmul.f32 %v5229, %v4956
        %v5294 = vmul.f32 %v5230, %v5005
        %v5295 = vmul.f32 %v5231, %v5054
        %v5296 = vmul.f32 %v5232, %v5103
        %v5297 = vmul.f32 %v5233, 0.044715
        %v5298 = vmul.f32 %v5234, 0.044715
        %v5299 = vmul.f32 %v5235, 0.044715
        %v5300 = vmul.f32 %v5236, 0.044715
        %v5301 = vmul.f32 %v5237, 0.044715
        %v5302 = vmul.f32 %v5238, 0.044715
        %v5303 = vmul.f32 %v5239, 0.044715
        %v5304 = vmul.f32 %v5240, 0.044715
        %v5305 = vmul.f32 %v5241, 0.044715
        %v5306 = vmul.f32 %v5242, 0.044715
        %v5307 = vmul.f32 %v5243, 0.044715
        %v5308 = vmul.f32 %v5244, 0.044715
        %v5309 = vmul.f32 %v5245, 0.044715
        %v5310 = vmul.f32 %v5246, 0.044715
        %v5311 = vmul.f32 %v5247, 0.044715
        %v5312 = vmul.f32 %v5248, 0.044715
        %v5313 = vmul.f32 %v5249, 0.044715
        %v5314 = vmul.f32 %v5250, 0.044715
        %v5315 = vmul.f32 %v5251, 0.044715
        %v5316 = vmul.f32 %v5252, 0.044715
        %v5317 = vmul.f32 %v5253, 0.044715
        %v5318 = vmul.f32 %v5254, 0.044715
        %v5319 = vmul.f32 %v5255, 0.044715
        %v5320 = vmul.f32 %v5256, 0.044715
        %v5321 = vmul.f32 %v5257, 0.044715
        %v5322 = vmul.f32 %v5258, 0.044715
        %v5323 = vmul.f32 %v5259, 0.044715
        %v5324 = vmul.f32 %v5260, 0.044715
        %v5325 = vmul.f32 %v5261, 0.044715
        %v5326 = vmul.f32 %v5262, 0.044715
        %v5327 = vmul.f32 %v5263, 0.044715
        %v5328 = vmul.f32 %v5264, 0.044715
        %v5329 = vmul.f32 %v5265, 0.044715
        %v5330 = vmul.f32 %v5266, 0.044715
        %v5331 = vmul.f32 %v5267, 0.044715
        %v5332 = vmul.f32 %v5268, 0.044715
        %v5333 = vmul.f32 %v5269, 0.044715
        %v5334 = vmul.f32 %v5270, 0.044715
        %v5335 = vmul.f32 %v5271, 0.044715
        %v5336 = vmul.f32 %v5272, 0.044715
        %v5337 = vmul.f32 %v5273, 0.044715
        %v5338 = vmul.f32 %v5274, 0.044715
        %v5339 = vmul.f32 %v5275, 0.044715
        %v5340 = vmul.f32 %v5276, 0.044715
        %v5341 = vmul.f32 %v5277, 0.044715
        %v5342 = vmul.f32 %v5278, 0.044715
        %v5343 = vmul.f32 %v5279, 0.044715
        %v5344 = vmul.f32 %v5280, 0.044715
        %v5345 = vmul.f32 %v5281, 0.044715
        %v5346 = vmul.f32 %v5282, 0.044715
        %v5347 = vmul.f32 %v5283, 0.044715
        %v5348 = vmul.f32 %v5284, 0.044715
        %v5349 = vmul.f32 %v5285, 0.044715
        %v5350 = vmul.f32 %v5286, 0.044715
        %v5351 = vmul.f32 %v5287, 0.044715
        %v5352 = vmul.f32 %v5288, 0.044715
        %v5353 = vmul.f32 %v5289, 0.044715
        %v5354 = vmul.f32 %v5290, 0.044715
        %v5355 = vmul.f32 %v5291, 0.044715
        %v5356 = vmul.f32 %v5292, 0.044715
        %v5357 = vmul.f32 %v5293, 0.044715
        %v5358 = vmul.f32 %v5294, 0.044715
        %v5359 = vmul.f32 %v5295, 0.044715
        %v5360 = vmul.f32 %v5296, 0.044715
        %v5361 = vadd.f32 %v4919, %v5297
        %v5362 = vadd.f32 %v4968, %v5298
        %v5363 = vadd.f32 %v5017, %v5299
        %v5364 = vadd.f32 %v5066, %v5300
        %v5365 = vadd.f32 %v4921, %v5301
        %v5366 = vadd.f32 %v4970, %v5302
        %v5367 = vadd.f32 %v5019, %v5303
        %v5368 = vadd.f32 %v5068, %v5304
        %v5369 = vadd.f32 %v4924, %v5305
        %v5370 = vadd.f32 %v4973, %v5306
        %v5371 = vadd.f32 %v5022, %v5307
        %v5372 = vadd.f32 %v5071, %v5308
        %v5373 = vadd.f32 %v4926, %v5309
        %v5374 = vadd.f32 %v4975, %v5310
        %v5375 = vadd.f32 %v5024, %v5311
        %v5376 = vadd.f32 %v5073, %v5312
        %v5377 = vadd.f32 %v4929, %v5313
        %v5378 = vadd.f32 %v4978, %v5314
        %v5379 = vadd.f32 %v5027, %v5315
        %v5380 = vadd.f32 %v5076, %v5316
        %v5381 = vadd.f32 %v4931, %v5317
        %v5382 = vadd.f32 %v4980, %v5318
        %v5383 = vadd.f32 %v5029, %v5319
        %v5384 = vadd.f32 %v5078, %v5320
        %v5385 = vadd.f32 %v4934, %v5321
        %v5386 = vadd.f32 %v4983, %v5322
        %v5387 = vadd.f32 %v5032, %v5323
        %v5388 = vadd.f32 %v5081, %v5324
        %v5389 = vadd.f32 %v4936, %v5325
        %v5390 = vadd.f32 %v4985, %v5326
        %v5391 = vadd.f32 %v5034, %v5327
        %v5392 = vadd.f32 %v5083, %v5328
        %v5393 = vadd.f32 %v4939, %v5329
        %v5394 = vadd.f32 %v4988, %v5330
        %v5395 = vadd.f32 %v5037, %v5331
        %v5396 = vadd.f32 %v5086, %v5332
        %v5397 = vadd.f32 %v4941, %v5333
        %v5398 = vadd.f32 %v4990, %v5334
        %v5399 = vadd.f32 %v5039, %v5335
        %v5400 = vadd.f32 %v5088, %v5336
        %v5401 = vadd.f32 %v4944, %v5337
        %v5402 = vadd.f32 %v4993, %v5338
        %v5403 = vadd.f32 %v5042, %v5339
        %v5404 = vadd.f32 %v5091, %v5340
        %v5405 = vadd.f32 %v4946, %v5341
        %v5406 = vadd.f32 %v4995, %v5342
        %v5407 = vadd.f32 %v5044, %v5343
        %v5408 = vadd.f32 %v5093, %v5344
        %v5409 = vadd.f32 %v4949, %v5345
        %v5410 = vadd.f32 %v4998, %v5346
        %v5411 = vadd.f32 %v5047, %v5347
        %v5412 = vadd.f32 %v5096, %v5348
        %v5413 = vadd.f32 %v4951, %v5349
        %v5414 = vadd.f32 %v5000, %v5350
        %v5415 = vadd.f32 %v5049, %v5351
        %v5416 = vadd.f32 %v5098, %v5352
        %v5417 = vadd.f32 %v4954, %v5353
        %v5418 = vadd.f32 %v5003, %v5354
        %v5419 = vadd.f32 %v5052, %v5355
        %v5420 = vadd.f32 %v5101, %v5356
        %v5421 = vadd.f32 %v4956, %v5357
        %v5422 = vadd.f32 %v5005, %v5358
        %v5423 = vadd.f32 %v5054, %v5359
        %v5424 = vadd.f32 %v5103, %v5360
        %v5425 = vmul.f32 %v5361, 0.7978846
        %v5426 = vmul.f32 %v5362, 0.7978846
        %v5427 = vmul.f32 %v5363, 0.7978846
        %v5428 = vmul.f32 %v5364, 0.7978846
        %v5429 = vmul.f32 %v5365, 0.7978846
        %v5430 = vmul.f32 %v5366, 0.7978846
        %v5431 = vmul.f32 %v5367, 0.7978846
        %v5432 = vmul.f32 %v5368, 0.7978846
        %v5433 = vmul.f32 %v5369, 0.7978846
        %v5434 = vmul.f32 %v5370, 0.7978846
        %v5435 = vmul.f32 %v5371, 0.7978846
        %v5436 = vmul.f32 %v5372, 0.7978846
        %v5437 = vmul.f32 %v5373, 0.7978846
        %v5438 = vmul.f32 %v5374, 0.7978846
        %v5439 = vmul.f32 %v5375, 0.7978846
        %v5440 = vmul.f32 %v5376, 0.7978846
        %v5441 = vmul.f32 %v5377, 0.7978846
        %v5442 = vmul.f32 %v5378, 0.7978846
        %v5443 = vmul.f32 %v5379, 0.7978846
        %v5444 = vmul.f32 %v5380, 0.7978846
        %v5445 = vmul.f32 %v5381, 0.7978846
        %v5446 = vmul.f32 %v5382, 0.7978846
        %v5447 = vmul.f32 %v5383, 0.7978846
        %v5448 = vmul.f32 %v5384, 0.7978846
        %v5449 = vmul.f32 %v5385, 0.7978846
        %v5450 = vmul.f32 %v5386, 0.7978846
        %v5451 = vmul.f32 %v5387, 0.7978846
        %v5452 = vmul.f32 %v5388, 0.7978846
        %v5453 = vmul.f32 %v5389, 0.7978846
        %v5454 = vmul.f32 %v5390, 0.7978846
        %v5455 = vmul.f32 %v5391, 0.7978846
        %v5456 = vmul.f32 %v5392, 0.7978846
        %v5457 = vmul.f32 %v5393, 0.7978846
        %v5458 = vmul.f32 %v5394, 0.7978846
        %v5459 = vmul.f32 %v5395, 0.7978846
        %v5460 = vmul.f32 %v5396, 0.7978846
        %v5461 = vmul.f32 %v5397, 0.7978846
        %v5462 = vmul.f32 %v5398, 0.7978846
        %v5463 = vmul.f32 %v5399, 0.7978846
        %v5464 = vmul.f32 %v5400, 0.7978846
        %v5465 = vmul.f32 %v5401, 0.7978846
        %v5466 = vmul.f32 %v5402, 0.7978846
        %v5467 = vmul.f32 %v5403, 0.7978846
        %v5468 = vmul.f32 %v5404, 0.7978846
        %v5469 = vmul.f32 %v5405, 0.7978846
        %v5470 = vmul.f32 %v5406, 0.7978846
        %v5471 = vmul.f32 %v5407, 0.7978846
        %v5472 = vmul.f32 %v5408, 0.7978846
        %v5473 = vmul.f32 %v5409, 0.7978846
        %v5474 = vmul.f32 %v5410, 0.7978846
        %v5475 = vmul.f32 %v5411, 0.7978846
        %v5476 = vmul.f32 %v5412, 0.7978846
        %v5477 = vmul.f32 %v5413, 0.7978846
        %v5478 = vmul.f32 %v5414, 0.7978846
        %v5479 = vmul.f32 %v5415, 0.7978846
        %v5480 = vmul.f32 %v5416, 0.7978846
        %v5481 = vmul.f32 %v5417, 0.7978846
        %v5482 = vmul.f32 %v5418, 0.7978846
        %v5483 = vmul.f32 %v5419, 0.7978846
        %v5484 = vmul.f32 %v5420, 0.7978846
        %v5485 = vmul.f32 %v5421, 0.7978846
        %v5486 = vmul.f32 %v5422, 0.7978846
        %v5487 = vmul.f32 %v5423, 0.7978846
        %v5488 = vmul.f32 %v5424, 0.7978846
        %v5489 = vtanh.pop %v5425
        %v5490 = vtanh.pop %v5426
        %v5491 = vtanh.pop %v5427
        %v5492 = vtanh.pop %v5428
        %v5493 = vtanh.pop %v5429
        %v5494 = vtanh.pop %v5430
        %v5495 = vtanh.pop %v5431
        %v5496 = vtanh.pop %v5432
        %v5497 = vtanh.pop %v5433
        %v5498 = vtanh.pop %v5434
        %v5499 = vtanh.pop %v5435
        %v5500 = vtanh.pop %v5436
        %v5501 = vtanh.pop %v5437
        %v5502 = vtanh.pop %v5438
        %v5503 = vtanh.pop %v5439
        %v5504 = vtanh.pop %v5440
        %v5505 = vtanh.pop %v5441
        %v5506 = vtanh.pop %v5442
        %v5507 = vtanh.pop %v5443
        %v5508 = vtanh.pop %v5444
        %v5509 = vtanh.pop %v5445
        %v5510 = vtanh.pop %v5446
        %v5511 = vtanh.pop %v5447
        %v5512 = vtanh.pop %v5448
        %v5513 = vtanh.pop %v5449
        %v5514 = vtanh.pop %v5450
        %v5515 = vtanh.pop %v5451
        %v5516 = vtanh.pop %v5452
        %v5517 = vtanh.pop %v5453
        %v5518 = vtanh.pop %v5454
        %v5519 = vtanh.pop %v5455
        %v5520 = vtanh.pop %v5456
        %v5521 = vtanh.pop %v5457
        %v5522 = vtanh.pop %v5458
        %v5523 = vtanh.pop %v5459
        %v5524 = vtanh.pop %v5460
        %v5525 = vtanh.pop %v5461
        %v5526 = vtanh.pop %v5462
        %v5527 = vtanh.pop %v5463
        %v5528 = vtanh.pop %v5464
        %v5529 = vtanh.pop %v5465
        %v5530 = vtanh.pop %v5466
        %v5531 = vtanh.pop %v5467
        %v5532 = vtanh.pop %v5468
        %v5533 = vtanh.pop %v5469
        %v5534 = vtanh.pop %v5470
        %v5535 = vtanh.pop %v5471
        %v5536 = vtanh.pop %v5472
        %v5537 = vtanh.pop %v5473
        %v5538 = vtanh.pop %v5474
        %v5539 = vtanh.pop %v5475
        %v5540 = vtanh.pop %v5476
        %v5541 = vtanh.pop %v5477
        %v5542 = vtanh.pop %v5478
        %v5543 = vtanh.pop %v5479
        %v5544 = vtanh.pop %v5480
        %v5545 = vtanh.pop %v5481
        %v5546 = vtanh.pop %v5482
        %v5547 = vtanh.pop %v5483
        %v5548 = vtanh.pop %v5484
        %v5549 = vtanh.pop %v5485
        %v5550 = vtanh.pop %v5486
        %v5551 = vtanh.pop %v5487
        %v5552 = vtanh.pop %v5488
        %v5553 = vadd.f32 %v5489, 1.0
        %v5554 = vadd.f32 %v5490, 1.0
        %v5555 = vadd.f32 %v5491, 1.0
        %v5556 = vadd.f32 %v5492, 1.0
        %v5557 = vadd.f32 %v5493, 1.0
        %v5558 = vadd.f32 %v5494, 1.0
        %v5559 = vadd.f32 %v5495, 1.0
        %v5560 = vadd.f32 %v5496, 1.0
        %v5561 = vadd.f32 %v5497, 1.0
        %v5562 = vadd.f32 %v5498, 1.0
        %v5563 = vadd.f32 %v5499, 1.0
        %v5564 = vadd.f32 %v5500, 1.0
        %v5565 = vadd.f32 %v5501, 1.0
        %v5566 = vadd.f32 %v5502, 1.0
        %v5567 = vadd.f32 %v5503, 1.0
        %v5568 = vadd.f32 %v5504, 1.0
        %v5569 = vadd.f32 %v5505, 1.0
        %v5570 = vadd.f32 %v5506, 1.0
        %v5571 = vadd.f32 %v5507, 1.0
        %v5572 = vadd.f32 %v5508, 1.0
        %v5573 = vadd.f32 %v5509, 1.0
        %v5574 = vadd.f32 %v5510, 1.0
        %v5575 = vadd.f32 %v5511, 1.0
        %v5576 = vadd.f32 %v5512, 1.0
        %v5577 = vadd.f32 %v5513, 1.0
        %v5578 = vadd.f32 %v5514, 1.0
        %v5579 = vadd.f32 %v5515, 1.0
        %v5580 = vadd.f32 %v5516, 1.0
        %v5581 = vadd.f32 %v5517, 1.0
        %v5582 = vadd.f32 %v5518, 1.0
        %v5583 = vadd.f32 %v5519, 1.0
        %v5584 = vadd.f32 %v5520, 1.0
        %v5585 = vadd.f32 %v5521, 1.0
        %v5586 = vadd.f32 %v5522, 1.0
        %v5587 = vadd.f32 %v5523, 1.0
        %v5588 = vadd.f32 %v5524, 1.0
        %v5589 = vadd.f32 %v5525, 1.0
        %v5590 = vadd.f32 %v5526, 1.0
        %v5591 = vadd.f32 %v5527, 1.0
        %v5592 = vadd.f32 %v5528, 1.0
        %v5593 = vadd.f32 %v5529, 1.0
        %v5594 = vadd.f32 %v5530, 1.0
        %v5595 = vadd.f32 %v5531, 1.0
        %v5596 = vadd.f32 %v5532, 1.0
        %v5597 = vadd.f32 %v5533, 1.0
        %v5598 = vadd.f32 %v5534, 1.0
        %v5599 = vadd.f32 %v5535, 1.0
        %v5600 = vadd.f32 %v5536, 1.0
        %v5601 = vadd.f32 %v5537, 1.0
        %v5602 = vadd.f32 %v5538, 1.0
        %v5603 = vadd.f32 %v5539, 1.0
        %v5604 = vadd.f32 %v5540, 1.0
        %v5605 = vadd.f32 %v5541, 1.0
        %v5606 = vadd.f32 %v5542, 1.0
        %v5607 = vadd.f32 %v5543, 1.0
        %v5608 = vadd.f32 %v5544, 1.0
        %v5609 = vadd.f32 %v5545, 1.0
        %v5610 = vadd.f32 %v5546, 1.0
        %v5611 = vadd.f32 %v5547, 1.0
        %v5612 = vadd.f32 %v5548, 1.0
        %v5613 = vadd.f32 %v5549, 1.0
        %v5614 = vadd.f32 %v5550, 1.0
        %v5615 = vadd.f32 %v5551, 1.0
        %v5616 = vadd.f32 %v5552, 1.0
        %v5617 = vmul.f32 %v5105, %v5553
        %v5618 = vmul.f32 %v5106, %v5554
        %v5619 = vmul.f32 %v5107, %v5555
        %v5620 = vmul.f32 %v5108, %v5556
        %v5621 = vmul.f32 %v5109, %v5557
        %v5622 = vmul.f32 %v5110, %v5558
        %v5623 = vmul.f32 %v5111, %v5559
        %v5624 = vmul.f32 %v5112, %v5560
        %v5625 = vmul.f32 %v5113, %v5561
        %v5626 = vmul.f32 %v5114, %v5562
        %v5627 = vmul.f32 %v5115, %v5563
        %v5628 = vmul.f32 %v5116, %v5564
        %v5629 = vmul.f32 %v5117, %v5565
        %v5630 = vmul.f32 %v5118, %v5566
        %v5631 = vmul.f32 %v5119, %v5567
        %v5632 = vmul.f32 %v5120, %v5568
        %v5633 = vmul.f32 %v5121, %v5569
        %v5634 = vmul.f32 %v5122, %v5570
        %v5635 = vmul.f32 %v5123, %v5571
        %v5636 = vmul.f32 %v5124, %v5572
        %v5637 = vmul.f32 %v5125, %v5573
        %v5638 = vmul.f32 %v5126, %v5574
        %v5639 = vmul.f32 %v5127, %v5575
        %v5640 = vmul.f32 %v5128, %v5576
        %v5641 = vmul.f32 %v5129, %v5577
        %v5642 = vmul.f32 %v5130, %v5578
        %v5643 = vmul.f32 %v5131, %v5579
        %v5644 = vmul.f32 %v5132, %v5580
        %v5645 = vmul.f32 %v5133, %v5581
        %v5646 = vmul.f32 %v5134, %v5582
        %v5647 = vmul.f32 %v5135, %v5583
        %v5648 = vmul.f32 %v5136, %v5584
        %v5649 = vmul.f32 %v5137, %v5585
        %v5650 = vmul.f32 %v5138, %v5586
        %v5651 = vmul.f32 %v5139, %v5587
        %v5652 = vmul.f32 %v5140, %v5588
        %v5653 = vmul.f32 %v5141, %v5589
        %v5654 = vmul.f32 %v5142, %v5590
        %v5655 = vmul.f32 %v5143, %v5591
        %v5656 = vmul.f32 %v5144, %v5592
        %v5657 = vmul.f32 %v5145, %v5593
        %v5658 = vmul.f32 %v5146, %v5594
        %v5659 = vmul.f32 %v5147, %v5595
        %v5660 = vmul.f32 %v5148, %v5596
        %v5661 = vmul.f32 %v5149, %v5597
        %v5662 = vmul.f32 %v5150, %v5598
        %v5663 = vmul.f32 %v5151, %v5599
        %v5664 = vmul.f32 %v5152, %v5600
        %v5665 = vmul.f32 %v5153, %v5601
        %v5666 = vmul.f32 %v5154, %v5602
        %v5667 = vmul.f32 %v5155, %v5603
        %v5668 = vmul.f32 %v5156, %v5604
        %v5669 = vmul.f32 %v5157, %v5605
        %v5670 = vmul.f32 %v5158, %v5606
        %v5671 = vmul.f32 %v5159, %v5607
        %v5672 = vmul.f32 %v5160, %v5608
        %v5673 = vmul.f32 %v5161, %v5609
        %v5674 = vmul.f32 %v5162, %v5610
        %v5675 = vmul.f32 %v5163, %v5611
        %v5676 = vmul.f32 %v5164, %v5612
        %v5677 = vmul.f32 %v5165, %v5613
        %v5678 = vmul.f32 %v5166, %v5614
        %v5679 = vmul.f32 %v5167, %v5615
        %v5680 = vmul.f32 %v5168, %v5616
        %v5681 = vpack.c.bf16 %v5621, %v5617
        %v5682 = vpack.c.bf16 %v5622, %v5618
        %v5683 = vpack.c.bf16 %v5623, %v5619
        %v5684 = vpack.c.bf16 %v5624, %v5620
        %v5685 = vpack.c.bf16 %v5629, %v5625
        %v5686 = vpack.c.bf16 %v5630, %v5626
        %v5687 = vpack.c.bf16 %v5631, %v5627
        %v5688 = vpack.c.bf16 %v5632, %v5628
        %v5689 = vpack.c.bf16 %v5637, %v5633
        %v5690 = vpack.c.bf16 %v5638, %v5634
        %v5691 = vpack.c.bf16 %v5639, %v5635
        %v5692 = vpack.c.bf16 %v5640, %v5636
        %v5693 = vpack.c.bf16 %v5645, %v5641
        %v5694 = vpack.c.bf16 %v5646, %v5642
        %v5695 = vpack.c.bf16 %v5647, %v5643
        %v5696 = vpack.c.bf16 %v5648, %v5644
        %v5697 = vpack.c.bf16 %v5653, %v5649
        %v5698 = vpack.c.bf16 %v5654, %v5650
        %v5699 = vpack.c.bf16 %v5655, %v5651
        %v5700 = vpack.c.bf16 %v5656, %v5652
        %v5701 = vpack.c.bf16 %v5661, %v5657
        %v5702 = vpack.c.bf16 %v5662, %v5658
        %v5703 = vpack.c.bf16 %v5663, %v5659
        %v5704 = vpack.c.bf16 %v5664, %v5660
        %v5705 = vpack.c.bf16 %v5669, %v5665
        %v5706 = vpack.c.bf16 %v5670, %v5666
        %v5707 = vpack.c.bf16 %v5671, %v5667
        %v5708 = vpack.c.bf16 %v5672, %v5668
        %v5709 = vpack.c.bf16 %v5677, %v5673
        %v5710 = vpack.c.bf16 %v5678, %v5674
        %v5711 = vpack.c.bf16 %v5679, %v5675
        %v5712 = vpack.c.bf16 %v5680, %v5676
        %v5713 = vld [vmem:[%s864] sm:$0xf]
        %v5714 = vld [vmem:[%s864 + $0x4] sm:$0xf]
        %v5715 = vld [vmem:[%s864 + $0x8] sm:$0xf]
        %v5716 = vld [vmem:[%s864 + $0xc] sm:$0xf]
        %v5717 = vld [vmem:[%s864 + $0x10] sm:$0xf]
        %v5718 = vld [vmem:[%s864 + $0x14] sm:$0xf]
        %v5719 = vld [vmem:[%s864 + $0x18] sm:$0xf]
        %v5720 = vld [vmem:[%s864 + $0x1c] sm:$0xf]
        %v5721 = vld [vmem:[%s864 + $0x20] sm:$0xf]
        %v5722 = vld [vmem:[%s864 + $0x24] sm:$0xf]
        %v5723 = vld [vmem:[%s864 + $0x28] sm:$0xf]
        %v5724 = vld [vmem:[%s864 + $0x2c] sm:$0xf]
        %v5725 = vld [vmem:[%s864 + $0x30] sm:$0xf]
        %v5726 = vld [vmem:[%s864 + $0x34] sm:$0xf]
        %v5727 = vld [vmem:[%s864 + $0x38] sm:$0xf]
        %v5728 = vld [vmem:[%s864 + $0x3c] sm:$0xf]
        %v5729 = vld [vmem:[%s864 + $0x40] sm:$0xf]
        %v5730 = vld [vmem:[%s864 + $0x44] sm:$0xf]
        %v5731 = vld [vmem:[%s864 + $0x48] sm:$0xf]
        %v5732 = vld [vmem:[%s864 + $0x4c] sm:$0xf]
        %v5733 = vld [vmem:[%s864 + $0x50] sm:$0xf]
        %v5734 = vld [vmem:[%s864 + $0x54] sm:$0xf]
        %v5735 = vld [vmem:[%s864 + $0x58] sm:$0xf]
        %v5736 = vld [vmem:[%s864 + $0x5c] sm:$0xf]
        %v5737 = vld [vmem:[%s864 + $0x60] sm:$0xf]
        %v5738 = vld [vmem:[%s864 + $0x64] sm:$0xf]
        %v5739 = vld [vmem:[%s864 + $0x68] sm:$0xf]
        %v5740 = vld [vmem:[%s864 + $0x6c] sm:$0xf]
        %v5741 = vld [vmem:[%s864 + $0x70] sm:$0xf]
        %v5742 = vld [vmem:[%s864 + $0x74] sm:$0xf]
        %v5743 = vld [vmem:[%s864 + $0x78] sm:$0xf]
        %v5744 = vld [vmem:[%s864 + $0x7c] sm:$0xf]
        %v5745 = vld [vmem:[%s864 + $0x80] sm:$0xf]
        %v5746 = vld [vmem:[%s864 + $0x84] sm:$0xf]
        %v5747 = vld [vmem:[%s864 + $0x88] sm:$0xf]
        %v5748 = vld [vmem:[%s864 + $0x8c] sm:$0xf]
        %v5749 = vld [vmem:[%s864 + $0x90] sm:$0xf]
        %v5750 = vld [vmem:[%s864 + $0x94] sm:$0xf]
        %v5751 = vld [vmem:[%s864 + $0x98] sm:$0xf]
        %v5752 = vld [vmem:[%s864 + $0x9c] sm:$0xf]
        %v5753 = vld [vmem:[%s864 + $0xa0] sm:$0xf]
        %v5754 = vld [vmem:[%s864 + $0xa4] sm:$0xf]
        %v5755 = vld [vmem:[%s864 + $0xa8] sm:$0xf]
        %v5756 = vld [vmem:[%s864 + $0xac] sm:$0xf]
        %v5757 = vld [vmem:[%s864 + $0xb0] sm:$0xf]
        %v5758 = vld [vmem:[%s864 + $0xb4] sm:$0xf]
        %v5759 = vld [vmem:[%s864 + $0xb8] sm:$0xf]
        %v5760 = vld [vmem:[%s864 + $0xbc] sm:$0xf]
        %v5761 = vld [vmem:[%s864 + $0xc0] sm:$0xf]
        %v5762 = vld [vmem:[%s864 + $0xc4] sm:$0xf]
        %v5763 = vld [vmem:[%s864 + $0xc8] sm:$0xf]
        %v5764 = vld [vmem:[%s864 + $0xcc] sm:$0xf]
        %v5765 = vld [vmem:[%s864 + $0xd0] sm:$0xf]
        %v5766 = vld [vmem:[%s864 + $0xd4] sm:$0xf]
        %v5767 = vld [vmem:[%s864 + $0xd8] sm:$0xf]
        %v5768 = vld [vmem:[%s864 + $0xdc] sm:$0xf]
        %v5769 = vld [vmem:[%s864 + $0xe0] sm:$0xf]
        %v5770 = vld [vmem:[%s864 + $0xe4] sm:$0xf]
        %v5771 = vld [vmem:[%s864 + $0xe8] sm:$0xf]
        %v5772 = vld [vmem:[%s864 + $0xec] sm:$0xf]
        %v5773 = vld [vmem:[%s864 + $0xf0] sm:$0xf]
        %v5774 = vld [vmem:[%s864 + $0xf4] sm:$0xf]
        %v5775 = vld [vmem:[%s864 + $0xf8] sm:$0xf]
        %v5776 = vld [vmem:[%s864 + $0xfc] sm:$0xf]
        %v5777 = vld [vmem:[%s980] sm:$0x1]
        %v5779 = vperm.slane %v5777, 0
        %v5845 = vunpack.c.l.b16 %v5713
        %v5846 = vunpack.c.l.b16 %v5714
        %v5847 = vunpack.c.l.b16 %v5715
        %v5848 = vunpack.c.l.b16 %v5716
        %v5849 = vunpack.c.l.b16 %v5717
        %v5850 = vunpack.c.l.b16 %v5718
        %v5851 = vunpack.c.l.b16 %v5719
        %v5852 = vunpack.c.l.b16 %v5720
        %v5853 = vunpack.c.l.b16 %v5721
        %v5854 = vunpack.c.l.b16 %v5722
        %v5855 = vunpack.c.l.b16 %v5723
        %v5856 = vunpack.c.l.b16 %v5724
        %v5857 = vunpack.c.l.b16 %v5725
        %v5858 = vunpack.c.l.b16 %v5726
        %v5859 = vunpack.c.l.b16 %v5727
        %v5860 = vunpack.c.l.b16 %v5728
        %v5861 = vunpack.c.l.b16 %v5729
        %v5862 = vunpack.c.l.b16 %v5730
        %v5863 = vunpack.c.l.b16 %v5731
        %v5864 = vunpack.c.l.b16 %v5732
        %v5865 = vunpack.c.l.b16 %v5733
        %v5866 = vunpack.c.l.b16 %v5734
        %v5867 = vunpack.c.l.b16 %v5735
        %v5868 = vunpack.c.l.b16 %v5736
        %v5869 = vunpack.c.l.b16 %v5737
        %v5870 = vunpack.c.l.b16 %v5738
        %v5871 = vunpack.c.l.b16 %v5739
        %v5872 = vunpack.c.l.b16 %v5740
        %v5873 = vunpack.c.l.b16 %v5741
        %v5874 = vunpack.c.l.b16 %v5742
        %v5875 = vunpack.c.l.b16 %v5743
        %v5876 = vunpack.c.l.b16 %v5744
        %v5877 = vunpack.c.l.b16 %v5745
        %v5878 = vunpack.c.l.b16 %v5746
        %v5879 = vunpack.c.l.b16 %v5747
        %v5880 = vunpack.c.l.b16 %v5748
        %v5881 = vunpack.c.l.b16 %v5749
        %v5882 = vunpack.c.l.b16 %v5750
        %v5883 = vunpack.c.l.b16 %v5751
        %v5884 = vunpack.c.l.b16 %v5752
        %v5885 = vunpack.c.l.b16 %v5753
        %v5886 = vunpack.c.l.b16 %v5754
        %v5887 = vunpack.c.l.b16 %v5755
        %v5888 = vunpack.c.l.b16 %v5756
        %v5889 = vunpack.c.l.b16 %v5757
        %v5890 = vunpack.c.l.b16 %v5758
        %v5891 = vunpack.c.l.b16 %v5759
        %v5892 = vunpack.c.l.b16 %v5760
        %v5893 = vunpack.c.l.b16 %v5761
        %v5894 = vunpack.c.l.b16 %v5762
        %v5895 = vunpack.c.l.b16 %v5763
        %v5896 = vunpack.c.l.b16 %v5764
        %v5897 = vunpack.c.l.b16 %v5765
        %v5898 = vunpack.c.l.b16 %v5766
        %v5899 = vunpack.c.l.b16 %v5767
        %v5900 = vunpack.c.l.b16 %v5768
        %v5901 = vunpack.c.l.b16 %v5769
        %v5902 = vunpack.c.l.b16 %v5770
        %v5903 = vunpack.c.l.b16 %v5771
        %v5904 = vunpack.c.l.b16 %v5772
        %v5905 = vunpack.c.l.b16 %v5773
        %v5906 = vunpack.c.l.b16 %v5774
        %v5907 = vunpack.c.l.b16 %v5775
        %v5908 = vunpack.c.l.b16 %v5776
        %v5909 = vpack.c.b16 %v5846, %v5845
        %v5910 = vpack.c.b16 %v5848, %v5847
        %v5911 = vpack.c.b16 %v5850, %v5849
        %v5912 = vpack.c.b16 %v5852, %v5851
        %v5913 = vpack.c.b16 %v5854, %v5853
        %v5914 = vpack.c.b16 %v5856, %v5855
        %v5915 = vpack.c.b16 %v5858, %v5857
        %v5916 = vpack.c.b16 %v5860, %v5859
        %v5917 = vpack.c.b16 %v5862, %v5861
        %v5918 = vpack.c.b16 %v5864, %v5863
        %v5919 = vpack.c.b16 %v5866, %v5865
        %v5920 = vpack.c.b16 %v5868, %v5867
        %v5921 = vpack.c.b16 %v5870, %v5869
        %v5922 = vpack.c.b16 %v5872, %v5871
        %v5923 = vpack.c.b16 %v5874, %v5873
        %v5924 = vpack.c.b16 %v5876, %v5875
        %v5925 = vpack.c.b16 %v5878, %v5877
        %v5926 = vpack.c.b16 %v5880, %v5879
        %v5927 = vpack.c.b16 %v5882, %v5881
        %v5928 = vpack.c.b16 %v5884, %v5883
        %v5929 = vpack.c.b16 %v5886, %v5885
        %v5930 = vpack.c.b16 %v5888, %v5887
        %v5931 = vpack.c.b16 %v5890, %v5889
        %v5932 = vpack.c.b16 %v5892, %v5891
        %v5933 = vpack.c.b16 %v5894, %v5893
        %v5934 = vpack.c.b16 %v5896, %v5895
        %v5935 = vpack.c.b16 %v5898, %v5897
        %v5936 = vpack.c.b16 %v5900, %v5899
        %v5937 = vpack.c.b16 %v5902, %v5901
        %v5938 = vpack.c.b16 %v5904, %v5903
        %v5939 = vpack.c.b16 %v5906, %v5905
        %v5940 = vpack.c.b16 %v5908, %v5907
        %5973 = vmatpush.bf16.msra.mxu0 %v5916
        %5974 = vmatpush.bf16.msra.mxu0 %v5915
        %5975 = vmatpush.bf16.msra.mxu0 %v5914
        %5976 = vmatpush.bf16.msra.mxu0 %v5913
        %5977 = vmatpush.bf16.msra.mxu0 %v5912
        %5978 = vmatpush.bf16.msra.mxu0 %v5911
        %5979 = vmatpush.bf16.msra.mxu0 %v5910
        %5980 = vmatpush.bf16.msra.mxu0 %v5909
        %5981 = vmatmul.bf16.gmra.mxu0 %v5681
        %v5982 = vpop.f32.mrf.mxu0
        %v5983 = vadd.f32 %v5779, %v5982
        %v5984 = vpop.f32.mrf.mxu0
        %v5985 = vadd.f32 %v5779, %v5984
        %5986 = vmatmul.bf16.gmra.mxu0 %v5685
        %v5987 = vpop.f32.mrf.mxu0
        %v5988 = vadd.f32 %v5779, %v5987
        %v5989 = vpop.f32.mrf.mxu0
        %v5990 = vadd.f32 %v5779, %v5989
        %5991 = vmatmul.bf16.gmra.mxu0 %v5689
        %v5992 = vpop.f32.mrf.mxu0
        %v5993 = vadd.f32 %v5779, %v5992
        %v5994 = vpop.f32.mrf.mxu0
        %v5995 = vadd.f32 %v5779, %v5994
        %5996 = vmatmul.bf16.gmra.mxu0 %v5693
        %v5997 = vpop.f32.mrf.mxu0
        %v5998 = vadd.f32 %v5779, %v5997
        %v5999 = vpop.f32.mrf.mxu0
        %v6000 = vadd.f32 %v5779, %v5999
        %6001 = vmatmul.bf16.gmra.mxu0 %v5697
        %v6002 = vpop.f32.mrf.mxu0
        %v6003 = vadd.f32 %v5779, %v6002
        %v6004 = vpop.f32.mrf.mxu0
        %v6005 = vadd.f32 %v5779, %v6004
        %6006 = vmatmul.bf16.gmra.mxu0 %v5701
        %v6007 = vpop.f32.mrf.mxu0
        %v6008 = vadd.f32 %v5779, %v6007
        %v6009 = vpop.f32.mrf.mxu0
        %v6010 = vadd.f32 %v5779, %v6009
        %6011 = vmatmul.bf16.gmra.mxu0 %v5705
        %v6012 = vpop.f32.mrf.mxu0
        %v6013 = vadd.f32 %v5779, %v6012
        %v6014 = vpop.f32.mrf.mxu0
        %v6015 = vadd.f32 %v5779, %v6014
        %6016 = vmatmul.bf16.gmra.mxu0 %v5709
        %v6017 = vpop.f32.mrf.mxu0
        %v6018 = vadd.f32 %v5779, %v6017
        %v6019 = vpop.f32.mrf.mxu0
        %v6020 = vadd.f32 %v5779, %v6019
        %6021 = vdwg.mxu0
        %6022 = vmatpush.bf16.msra.mxu0 %v5924
        %6023 = vmatpush.bf16.msra.mxu0 %v5923
        %6024 = vmatpush.bf16.msra.mxu0 %v5922
        %6025 = vmatpush.bf16.msra.mxu0 %v5921
        %6026 = vmatpush.bf16.msra.mxu0 %v5920
        %6027 = vmatpush.bf16.msra.mxu0 %v5919
        %6028 = vmatpush.bf16.msra.mxu0 %v5918
        %6029 = vmatpush.bf16.msra.mxu0 %v5917
        %6030 = vmatmul.bf16.gmra.mxu0 %v5682
        %v6031 = vpop.f32.mrf.mxu0
        %v6032 = vadd.f32 %v5983, %v6031
        %v6033 = vpop.f32.mrf.mxu0
        %v6034 = vadd.f32 %v5985, %v6033
        %6035 = vmatmul.bf16.gmra.mxu0 %v5686
        %v6036 = vpop.f32.mrf.mxu0
        %v6037 = vadd.f32 %v5988, %v6036
        %v6038 = vpop.f32.mrf.mxu0
        %v6039 = vadd.f32 %v5990, %v6038
        %6040 = vmatmul.bf16.gmra.mxu0 %v5690
        %v6041 = vpop.f32.mrf.mxu0
        %v6042 = vadd.f32 %v5993, %v6041
        %v6043 = vpop.f32.mrf.mxu0
        %v6044 = vadd.f32 %v5995, %v6043
        %6045 = vmatmul.bf16.gmra.mxu0 %v5694
        %v6046 = vpop.f32.mrf.mxu0
        %v6047 = vadd.f32 %v5998, %v6046
        %v6048 = vpop.f32.mrf.mxu0
        %v6049 = vadd.f32 %v6000, %v6048
        %6050 = vmatmul.bf16.gmra.mxu0 %v5698
        %v6051 = vpop.f32.mrf.mxu0
        %v6052 = vadd.f32 %v6003, %v6051
        %v6053 = vpop.f32.mrf.mxu0
        %v6054 = vadd.f32 %v6005, %v6053
        %6055 = vmatmul.bf16.gmra.mxu0 %v5702
        %v6056 = vpop.f32.mrf.mxu0
        %v6057 = vadd.f32 %v6008, %v6056
        %v6058 = vpop.f32.mrf.mxu0
        %v6059 = vadd.f32 %v6010, %v6058
        %6060 = vmatmul.bf16.gmra.mxu0 %v5706
        %v6061 = vpop.f32.mrf.mxu0
        %v6062 = vadd.f32 %v6013, %v6061
        %v6063 = vpop.f32.mrf.mxu0
        %v6064 = vadd.f32 %v6015, %v6063
        %6065 = vmatmul.bf16.gmra.mxu0 %v5710
        %v6066 = vpop.f32.mrf.mxu0
        %v6067 = vadd.f32 %v6018, %v6066
        %v6068 = vpop.f32.mrf.mxu0
        %v6069 = vadd.f32 %v6020, %v6068
        %6070 = vdwg.mxu0
        %6071 = vmatpush.bf16.msra.mxu0 %v5932
        %6072 = vmatpush.bf16.msra.mxu0 %v5931
        %6073 = vmatpush.bf16.msra.mxu0 %v5930
        %6074 = vmatpush.bf16.msra.mxu0 %v5929
        %6075 = vmatpush.bf16.msra.mxu0 %v5928
        %6076 = vmatpush.bf16.msra.mxu0 %v5927
        %6077 = vmatpush.bf16.msra.mxu0 %v5926
        %6078 = vmatpush.bf16.msra.mxu0 %v5925
        %6079 = vmatmul.bf16.gmra.mxu0 %v5683
        %v6080 = vpop.f32.mrf.mxu0
        %v6081 = vadd.f32 %v6032, %v6080
        %v6082 = vpop.f32.mrf.mxu0
        %v6083 = vadd.f32 %v6034, %v6082
        %6084 = vmatmul.bf16.gmra.mxu0 %v5687
        %v6085 = vpop.f32.mrf.mxu0
        %v6086 = vadd.f32 %v6037, %v6085
        %v6087 = vpop.f32.mrf.mxu0
        %v6088 = vadd.f32 %v6039, %v6087
        %6089 = vmatmul.bf16.gmra.mxu0 %v5691
        %v6090 = vpop.f32.mrf.mxu0
        %v6091 = vadd.f32 %v6042, %v6090
        %v6092 = vpop.f32.mrf.mxu0
        %v6093 = vadd.f32 %v6044, %v6092
        %6094 = vmatmul.bf16.gmra.mxu0 %v5695
        %v6095 = vpop.f32.mrf.mxu0
        %v6096 = vadd.f32 %v6047, %v6095
        %v6097 = vpop.f32.mrf.mxu0
        %v6098 = vadd.f32 %v6049, %v6097
        %6099 = vmatmul.bf16.gmra.mxu0 %v5699
        %v6100 = vpop.f32.mrf.mxu0
        %v6101 = vadd.f32 %v6052, %v6100
        %v6102 = vpop.f32.mrf.mxu0
        %v6103 = vadd.f32 %v6054, %v6102
        %6104 = vmatmul.bf16.gmra.mxu0 %v5703
        %v6105 = vpop.f32.mrf.mxu0
        %v6106 = vadd.f32 %v6057, %v6105
        %v6107 = vpop.f32.mrf.mxu0
        %v6108 = vadd.f32 %v6059, %v6107
        %6109 = vmatmul.bf16.gmra.mxu0 %v5707
        %v6110 = vpop.f32.mrf.mxu0
        %v6111 = vadd.f32 %v6062, %v6110
        %v6112 = vpop.f32.mrf.mxu0
        %v6113 = vadd.f32 %v6064, %v6112
        %6114 = vmatmul.bf16.gmra.mxu0 %v5711
        %v6115 = vpop.f32.mrf.mxu0
        %v6116 = vadd.f32 %v6067, %v6115
        %v6117 = vpop.f32.mrf.mxu0
        %v6118 = vadd.f32 %v6069, %v6117
        %6119 = vdwg.mxu0
        %6120 = vmatpush.bf16.msra.mxu0 %v5940
        %6121 = vmatpush.bf16.msra.mxu0 %v5939
        %6122 = vmatpush.bf16.msra.mxu0 %v5938
        %6123 = vmatpush.bf16.msra.mxu0 %v5937
        %6124 = vmatpush.bf16.msra.mxu0 %v5936
        %6125 = vmatpush.bf16.msra.mxu0 %v5935
        %6126 = vmatpush.bf16.msra.mxu0 %v5934
        %6127 = vmatpush.bf16.msra.mxu0 %v5933
        %6128 = vmatmul.bf16.gmra.mxu0 %v5684
        %v6129 = vpop.f32.mrf.mxu0
        %v6130 = vadd.f32 %v6081, %v6129
        %v6131 = vpop.f32.mrf.mxu0
        %v6132 = vadd.f32 %v6083, %v6131
        %6133 = vmatmul.bf16.gmra.mxu0 %v5688
        %v6134 = vpop.f32.mrf.mxu0
        %v6135 = vadd.f32 %v6086, %v6134
        %v6136 = vpop.f32.mrf.mxu0
        %v6137 = vadd.f32 %v6088, %v6136
        %6138 = vmatmul.bf16.gmra.mxu0 %v5692
        %v6139 = vpop.f32.mrf.mxu0
        %v6140 = vadd.f32 %v6091, %v6139
        %v6141 = vpop.f32.mrf.mxu0
        %v6142 = vadd.f32 %v6093, %v6141
        %6143 = vmatmul.bf16.gmra.mxu0 %v5696
        %v6144 = vpop.f32.mrf.mxu0
        %v6145 = vadd.f32 %v6096, %v6144
        %v6146 = vpop.f32.mrf.mxu0
        %v6147 = vadd.f32 %v6098, %v6146
        %6148 = vmatmul.bf16.gmra.mxu0 %v5700
        %v6149 = vpop.f32.mrf.mxu0
        %v6150 = vadd.f32 %v6101, %v6149
        %v6151 = vpop.f32.mrf.mxu0
        %v6152 = vadd.f32 %v6103, %v6151
        %6153 = vmatmul.bf16.gmra.mxu0 %v5704
        %v6154 = vpop.f32.mrf.mxu0
        %v6155 = vadd.f32 %v6106, %v6154
        %v6156 = vpop.f32.mrf.mxu0
        %v6157 = vadd.f32 %v6108, %v6156
        %6158 = vmatmul.bf16.gmra.mxu0 %v5708
        %v6159 = vpop.f32.mrf.mxu0
        %v6160 = vadd.f32 %v6111, %v6159
        %v6161 = vpop.f32.mrf.mxu0
        %v6162 = vadd.f32 %v6113, %v6161
        %6163 = vmatmul.bf16.gmra.mxu0 %v5712
        %v6164 = vpop.f32.mrf.mxu0
        %v6165 = vadd.f32 %v6116, %v6164
        %v6166 = vpop.f32.mrf.mxu0
        %v6167 = vadd.f32 %v6118, %v6166
        %6168 = vdwg.mxu0
        %v6169 = vadd.f32 %v4683, %v6130
        %v6170 = vadd.f32 %v4684, %v6132
        %v6171 = vadd.f32 %v4685, %v6135
        %v6172 = vadd.f32 %v4686, %v6137
        %v6173 = vadd.f32 %v4687, %v6140
        %v6174 = vadd.f32 %v4688, %v6142
        %v6175 = vadd.f32 %v4689, %v6145
        %v6176 = vadd.f32 %v4690, %v6147
        %v6177 = vadd.f32 %v4691, %v6150
        %v6178 = vadd.f32 %v4692, %v6152
        %v6179 = vadd.f32 %v4693, %v6155
        %v6180 = vadd.f32 %v4694, %v6157
        %v6181 = vadd.f32 %v4695, %v6160
        %v6182 = vadd.f32 %v4696, %v6162
        %v6183 = vadd.f32 %v4697, %v6165
        %v6184 = vadd.f32 %v4698, %v6167
        %v6185 = vld [vmem:[%s873] sm:$0x1]
        %v6186 = vld [vmem:[%s983] sm:$0x1]
        %6187 = vadd.xlane.f32.xlu0 %v6169
        %v6188 = vpop.xlane.xlu0 %6187
        %6189 = vadd.xlane.f32.xlu0 %v6170
        %v6190 = vpop.xlane.xlu0 %6189
        %6191 = vadd.xlane.f32.xlu0 %v6171
        %v6192 = vpop.xlane.xlu0 %6191
        %6193 = vadd.xlane.f32.xlu0 %v6172
        %v6194 = vpop.xlane.xlu0 %6193
        %6195 = vadd.xlane.f32.xlu0 %v6173
        %v6196 = vpop.xlane.xlu0 %6195
        %6197 = vadd.xlane.f32.xlu0 %v6174
        %v6198 = vpop.xlane.xlu0 %6197
        %6199 = vadd.xlane.f32.xlu0 %v6175
        %v6200 = vpop.xlane.xlu0 %6199
        %6201 = vadd.xlane.f32.xlu0 %v6176
        %v6202 = vpop.xlane.xlu0 %6201
        %6203 = vadd.xlane.f32.xlu0 %v6177
        %v6204 = vpop.xlane.xlu0 %6203
        %6205 = vadd.xlane.f32.xlu0 %v6178
        %v6206 = vpop.xlane.xlu0 %6205
        %6207 = vadd.xlane.f32.xlu0 %v6179
        %v6208 = vpop.xlane.xlu0 %6207
        %6209 = vadd.xlane.f32.xlu0 %v6180
        %v6210 = vpop.xlane.xlu0 %6209
        %6211 = vadd.xlane.f32.xlu0 %v6181
        %v6212 = vpop.xlane.xlu0 %6211
        %6213 = vadd.xlane.f32.xlu0 %v6182
        %v6214 = vpop.xlane.xlu0 %6213
        %6215 = vadd.xlane.f32.xlu0 %v6183
        %v6216 = vpop.xlane.xlu0 %6215
        %6217 = vadd.xlane.f32.xlu0 %v6184
        %v6218 = vpop.xlane.xlu0 %6217
        %v6219 = vmul.f32 %v6188, %v4372
        %v6220 = vmul.f32 %v6190, %v4372
        %v6221 = vmul.f32 %v6192, %v4372
        %v6222 = vmul.f32 %v6194, %v4372
        %v6223 = vmul.f32 %v6196, %v4372
        %v6224 = vmul.f32 %v6198, %v4372
        %v6225 = vmul.f32 %v6200, %v4372
        %v6226 = vmul.f32 %v6202, %v4372
        %v6227 = vmul.f32 %v6204, %v4372
        %v6228 = vmul.f32 %v6206, %v4372
        %v6229 = vmul.f32 %v6208, %v4372
        %v6230 = vmul.f32 %v6210, %v4372
        %v6231 = vmul.f32 %v6212, %v4372
        %v6232 = vmul.f32 %v6214, %v4372
        %v6233 = vmul.f32 %v6216, %v4372
        %v6234 = vmul.f32 %v6218, %v4372
        %v6235 = vsub.f32 %v6169, %v6219
        %v6236 = vsub.f32 %v6170, %v6220
        %v6237 = vsub.f32 %v6171, %v6221
        %v6238 = vsub.f32 %v6172, %v6222
        %v6239 = vsub.f32 %v6173, %v6223
        %v6240 = vsub.f32 %v6174, %v6224
        %v6241 = vsub.f32 %v6175, %v6225
        %v6242 = vsub.f32 %v6176, %v6226
        %v6243 = vsub.f32 %v6177, %v6227
        %v6244 = vsub.f32 %v6178, %v6228
        %v6245 = vsub.f32 %v6179, %v6229
        %v6246 = vsub.f32 %v6180, %v6230
        %v6247 = vsub.f32 %v6181, %v6231
        %v6248 = vsub.f32 %v6182, %v6232
        %v6249 = vsub.f32 %v6183, %v6233
        %v6250 = vsub.f32 %v6184, %v6234
        %v6251 = vmul.f32 %v6235, %v6235
        %v6252 = vmul.f32 %v6236, %v6236
        %v6253 = vmul.f32 %v6237, %v6237
        %v6254 = vmul.f32 %v6238, %v6238
        %v6255 = vmul.f32 %v6239, %v6239
        %v6256 = vmul.f32 %v6240, %v6240
        %v6257 = vmul.f32 %v6241, %v6241
        %v6258 = vmul.f32 %v6242, %v6242
        %v6259 = vmul.f32 %v6243, %v6243
        %v6260 = vmul.f32 %v6244, %v6244
        %v6261 = vmul.f32 %v6245, %v6245
        %v6262 = vmul.f32 %v6246, %v6246
        %v6263 = vmul.f32 %v6247, %v6247
        %v6264 = vmul.f32 %v6248, %v6248
        %v6265 = vmul.f32 %v6249, %v6249
        %v6266 = vmul.f32 %v6250, %v6250
        %6267 = vadd.xlane.f32.xlu0 %v6251
        %v6268 = vpop.xlane.xlu0 %6267
        %6269 = vadd.xlane.f32.xlu0 %v6252
        %v6270 = vpop.xlane.xlu0 %6269
        %6271 = vadd.xlane.f32.xlu0 %v6253
        %v6272 = vpop.xlane.xlu0 %6271
        %6273 = vadd.xlane.f32.xlu0 %v6254
        %v6274 = vpop.xlane.xlu0 %6273
        %6275 = vadd.xlane.f32.xlu0 %v6255
        %v6276 = vpop.xlane.xlu0 %6275
        %6277 = vadd.xlane.f32.xlu0 %v6256
        %v6278 = vpop.xlane.xlu0 %6277
        %6279 = vadd.xlane.f32.xlu0 %v6257
        %v6280 = vpop.xlane.xlu0 %6279
        %6281 = vadd.xlane.f32.xlu0 %v6258
        %v6282 = vpop.xlane.xlu0 %6281
        %6283 = vadd.xlane.f32.xlu0 %v6259
        %v6284 = vpop.xlane.xlu0 %6283
        %6285 = vadd.xlane.f32.xlu0 %v6260
        %v6286 = vpop.xlane.xlu0 %6285
        %6287 = vadd.xlane.f32.xlu0 %v6261
        %v6288 = vpop.xlane.xlu0 %6287
        %6289 = vadd.xlane.f32.xlu0 %v6262
        %v6290 = vpop.xlane.xlu0 %6289
        %6291 = vadd.xlane.f32.xlu0 %v6263
        %v6292 = vpop.xlane.xlu0 %6291
        %6293 = vadd.xlane.f32.xlu0 %v6264
        %v6294 = vpop.xlane.xlu0 %6293
        %6295 = vadd.xlane.f32.xlu0 %v6265
        %v6296 = vpop.xlane.xlu0 %6295
        %6297 = vadd.xlane.f32.xlu0 %v6266
        %v6298 = vpop.xlane.xlu0 %6297
        %v6299 = vmul.f32 %v6268, %v4372
        %v6300 = vmul.f32 %v6270, %v4372
        %v6301 = vmul.f32 %v6272, %v4372
        %v6302 = vmul.f32 %v6274, %v4372
        %v6303 = vmul.f32 %v6276, %v4372
        %v6304 = vmul.f32 %v6278, %v4372
        %v6305 = vmul.f32 %v6280, %v4372
        %v6306 = vmul.f32 %v6282, %v4372
        %v6307 = vmul.f32 %v6284, %v4372
        %v6308 = vmul.f32 %v6286, %v4372
        %v6309 = vmul.f32 %v6288, %v4372
        %v6310 = vmul.f32 %v6290, %v4372
        %v6311 = vmul.f32 %v6292, %v4372
        %v6312 = vmul.f32 %v6294, %v4372
        %v6313 = vmul.f32 %v6296, %v4372
        %v6314 = vmul.f32 %v6298, %v4372
        %v6315 = vadd.f32 %v6299, 1e-05
        %v6316 = vadd.f32 %v6300, 1e-05
        %v6317 = vadd.f32 %v6301, 1e-05
        %v6318 = vadd.f32 %v6302, 1e-05
        %v6319 = vadd.f32 %v6303, 1e-05
        %v6320 = vadd.f32 %v6304, 1e-05
        %v6321 = vadd.f32 %v6305, 1e-05
        %v6322 = vadd.f32 %v6306, 1e-05
        %v6323 = vadd.f32 %v6307, 1e-05
        %v6324 = vadd.f32 %v6308, 1e-05
        %v6325 = vadd.f32 %v6309, 1e-05
        %v6326 = vadd.f32 %v6310, 1e-05
        %v6327 = vadd.f32 %v6311, 1e-05
        %v6328 = vadd.f32 %v6312, 1e-05
        %v6329 = vadd.f32 %v6313, 1e-05
        %v6330 = vadd.f32 %v6314, 1e-05
        %v6331 = vrsqrt.pop %v6315
        %v6332 = vmul.f32 %v6331, %v6315
        %v6333 = vmul.f32 %v6332, %v6331
        %v6334 = vmul.f32 0.5, %v6333
        %v6335 = vsub.f32 1.5, %v6334
        %v6336 = vmul.f32 %v6331, %v6335
        %vm6337 = vweird.f32 %v6315
        %vm6338 = vweird.f32 %v6331
        %vm6339 = vmor %vm6337, %vm6338
        %v6340 = vsel %vm6339, %v6331, %v6336
        %v6341 = vrsqrt.pop %v6316
        %v6342 = vmul.f32 %v6341, %v6316
        %v6343 = vmul.f32 %v6342, %v6341
        %v6344 = vmul.f32 0.5, %v6343
        %v6345 = vsub.f32 1.5, %v6344
        %v6346 = vmul.f32 %v6341, %v6345
        %vm6347 = vweird.f32 %v6316
        %vm6348 = vweird.f32 %v6341
        %vm6349 = vmor %vm6347, %vm6348
        %v6350 = vsel %vm6349, %v6341, %v6346
        %v6351 = vrsqrt.pop %v6317
        %v6352 = vmul.f32 %v6351, %v6317
        %v6353 = vmul.f32 %v6352, %v6351
        %v6354 = vmul.f32 0.5, %v6353
        %v6355 = vsub.f32 1.5, %v6354
        %v6356 = vmul.f32 %v6351, %v6355
        %vm6357 = vweird.f32 %v6317
        %vm6358 = vweird.f32 %v6351
        %vm6359 = vmor %vm6357, %vm6358
        %v6360 = vsel %vm6359, %v6351, %v6356
        %v6361 = vrsqrt.pop %v6318
        %v6362 = vmul.f32 %v6361, %v6318
        %v6363 = vmul.f32 %v6362, %v6361
        %v6364 = vmul.f32 0.5, %v6363
        %v6365 = vsub.f32 1.5, %v6364
        %v6366 = vmul.f32 %v6361, %v6365
        %vm6367 = vweird.f32 %v6318
        %vm6368 = vweird.f32 %v6361
        %vm6369 = vmor %vm6367, %vm6368
        %v6370 = vsel %vm6369, %v6361, %v6366
        %v6371 = vrsqrt.pop %v6319
        %v6372 = vmul.f32 %v6371, %v6319
        %v6373 = vmul.f32 %v6372, %v6371
        %v6374 = vmul.f32 0.5, %v6373
        %v6375 = vsub.f32 1.5, %v6374
        %v6376 = vmul.f32 %v6371, %v6375
        %vm6377 = vweird.f32 %v6319
        %vm6378 = vweird.f32 %v6371
        %vm6379 = vmor %vm6377, %vm6378
        %v6380 = vsel %vm6379, %v6371, %v6376
        %v6381 = vrsqrt.pop %v6320
        %v6382 = vmul.f32 %v6381, %v6320
        %v6383 = vmul.f32 %v6382, %v6381
        %v6384 = vmul.f32 0.5, %v6383
        %v6385 = vsub.f32 1.5, %v6384
        %v6386 = vmul.f32 %v6381, %v6385
        %vm6387 = vweird.f32 %v6320
        %vm6388 = vweird.f32 %v6381
        %vm6389 = vmor %vm6387, %vm6388
        %v6390 = vsel %vm6389, %v6381, %v6386
        %v6391 = vrsqrt.pop %v6321
        %v6392 = vmul.f32 %v6391, %v6321
        %v6393 = vmul.f32 %v6392, %v6391
        %v6394 = vmul.f32 0.5, %v6393
        %v6395 = vsub.f32 1.5, %v6394
        %v6396 = vmul.f32 %v6391, %v6395
        %vm6397 = vweird.f32 %v6321
        %vm6398 = vweird.f32 %v6391
        %vm6399 = vmor %vm6397, %vm6398
        %v6400 = vsel %vm6399, %v6391, %v6396
        %v6401 = vrsqrt.pop %v6322
        %v6402 = vmul.f32 %v6401, %v6322
        %v6403 = vmul.f32 %v6402, %v6401
        %v6404 = vmul.f32 0.5, %v6403
        %v6405 = vsub.f32 1.5, %v6404
        %v6406 = vmul.f32 %v6401, %v6405
        %vm6407 = vweird.f32 %v6322
        %vm6408 = vweird.f32 %v6401
        %vm6409 = vmor %vm6407, %vm6408
        %v6410 = vsel %vm6409, %v6401, %v6406
        %v6411 = vrsqrt.pop %v6323
        %v6412 = vmul.f32 %v6411, %v6323
        %v6413 = vmul.f32 %v6412, %v6411
        %v6414 = vmul.f32 0.5, %v6413
        %v6415 = vsub.f32 1.5, %v6414
        %v6416 = vmul.f32 %v6411, %v6415
        %vm6417 = vweird.f32 %v6323
        %vm6418 = vweird.f32 %v6411
        %vm6419 = vmor %vm6417, %vm6418
        %v6420 = vsel %vm6419, %v6411, %v6416
        %v6421 = vrsqrt.pop %v6324
        %v6422 = vmul.f32 %v6421, %v6324
        %v6423 = vmul.f32 %v6422, %v6421
        %v6424 = vmul.f32 0.5, %v6423
        %v6425 = vsub.f32 1.5, %v6424
        %v6426 = vmul.f32 %v6421, %v6425
        %vm6427 = vweird.f32 %v6324
        %vm6428 = vweird.f32 %v6421
        %vm6429 = vmor %vm6427, %vm6428
        %v6430 = vsel %vm6429, %v6421, %v6426
        %v6431 = vrsqrt.pop %v6325
        %v6432 = vmul.f32 %v6431, %v6325
        %v6433 = vmul.f32 %v6432, %v6431
        %v6434 = vmul.f32 0.5, %v6433
        %v6435 = vsub.f32 1.5, %v6434
        %v6436 = vmul.f32 %v6431, %v6435
        %vm6437 = vweird.f32 %v6325
        %vm6438 = vweird.f32 %v6431
        %vm6439 = vmor %vm6437, %vm6438
        %v6440 = vsel %vm6439, %v6431, %v6436
        %v6441 = vrsqrt.pop %v6326
        %v6442 = vmul.f32 %v6441, %v6326
        %v6443 = vmul.f32 %v6442, %v6441
        %v6444 = vmul.f32 0.5, %v6443
        %v6445 = vsub.f32 1.5, %v6444
        %v6446 = vmul.f32 %v6441, %v6445
        %vm6447 = vweird.f32 %v6326
        %vm6448 = vweird.f32 %v6441
        %vm6449 = vmor %vm6447, %vm6448
        %v6450 = vsel %vm6449, %v6441, %v6446
        %v6451 = vrsqrt.pop %v6327
        %v6452 = vmul.f32 %v6451, %v6327
        %v6453 = vmul.f32 %v6452, %v6451
        %v6454 = vmul.f32 0.5, %v6453
        %v6455 = vsub.f32 1.5, %v6454
        %v6456 = vmul.f32 %v6451, %v6455
        %vm6457 = vweird.f32 %v6327
        %vm6458 = vweird.f32 %v6451
        %vm6459 = vmor %vm6457, %vm6458
        %v6460 = vsel %vm6459, %v6451, %v6456
        %v6461 = vrsqrt.pop %v6328
        %v6462 = vmul.f32 %v6461, %v6328
        %v6463 = vmul.f32 %v6462, %v6461
        %v6464 = vmul.f32 0.5, %v6463
        %v6465 = vsub.f32 1.5, %v6464
        %v6466 = vmul.f32 %v6461, %v6465
        %vm6467 = vweird.f32 %v6328
        %vm6468 = vweird.f32 %v6461
        %vm6469 = vmor %vm6467, %vm6468
        %v6470 = vsel %vm6469, %v6461, %v6466
        %v6471 = vrsqrt.pop %v6329
        %v6472 = vmul.f32 %v6471, %v6329
        %v6473 = vmul.f32 %v6472, %v6471
        %v6474 = vmul.f32 0.5, %v6473
        %v6475 = vsub.f32 1.5, %v6474
        %v6476 = vmul.f32 %v6471, %v6475
        %vm6477 = vweird.f32 %v6329
        %vm6478 = vweird.f32 %v6471
        %vm6479 = vmor %vm6477, %vm6478
        %v6480 = vsel %vm6479, %v6471, %v6476
        %v6481 = vrsqrt.pop %v6330
        %v6482 = vmul.f32 %v6481, %v6330
        %v6483 = vmul.f32 %v6482, %v6481
        %v6484 = vmul.f32 0.5, %v6483
        %v6485 = vsub.f32 1.5, %v6484
        %v6486 = vmul.f32 %v6481, %v6485
        %vm6487 = vweird.f32 %v6330
        %vm6488 = vweird.f32 %v6481
        %vm6489 = vmor %vm6487, %vm6488
        %v6490 = vsel %vm6489, %v6481, %v6486
        %v6491 = vmul.f32 %v6235, %v6340
        %v6492 = vmul.f32 %v6236, %v6350
        %v6493 = vmul.f32 %v6237, %v6360
        %v6494 = vmul.f32 %v6238, %v6370
        %v6495 = vmul.f32 %v6239, %v6380
        %v6496 = vmul.f32 %v6240, %v6390
        %v6497 = vmul.f32 %v6241, %v6400
        %v6498 = vmul.f32 %v6242, %v6410
        %v6499 = vmul.f32 %v6243, %v6420
        %v6500 = vmul.f32 %v6244, %v6430
        %v6501 = vmul.f32 %v6245, %v6440
        %v6502 = vmul.f32 %v6246, %v6450
        %v6503 = vmul.f32 %v6247, %v6460
        %v6504 = vmul.f32 %v6248, %v6470
        %v6505 = vmul.f32 %v6249, %v6480
        %v6506 = vmul.f32 %v6250, %v6490
        %v6508 = vperm.slane %v6185, 0
        %v6510 = vmul.f32 %v6491, %v6508
        %v6511 = vmul.f32 %v6492, %v6508
        %v6512 = vmul.f32 %v6493, %v6508
        %v6513 = vmul.f32 %v6494, %v6508
        %v6514 = vmul.f32 %v6495, %v6508
        %v6515 = vmul.f32 %v6496, %v6508
        %v6516 = vmul.f32 %v6497, %v6508
        %v6517 = vmul.f32 %v6498, %v6508
        %v6518 = vmul.f32 %v6499, %v6508
        %v6519 = vmul.f32 %v6500, %v6508
        %v6520 = vmul.f32 %v6501, %v6508
        %v6521 = vmul.f32 %v6502, %v6508
        %v6522 = vmul.f32 %v6503, %v6508
        %v6523 = vmul.f32 %v6504, %v6508
        %v6524 = vmul.f32 %v6505, %v6508
        %v6525 = vmul.f32 %v6506, %v6508
        %v6527 = vperm.slane %v6186, 0
        %v6529 = vadd.f32 %v6510, %v6527
        %v6530 = vadd.f32 %v6511, %v6527
        %v6531 = vadd.f32 %v6512, %v6527
        %v6532 = vadd.f32 %v6513, %v6527
        %v6533 = vadd.f32 %v6514, %v6527
        %v6534 = vadd.f32 %v6515, %v6527
        %v6535 = vadd.f32 %v6516, %v6527
        %v6536 = vadd.f32 %v6517, %v6527
        %v6537 = vadd.f32 %v6518, %v6527
        %v6538 = vadd.f32 %v6519, %v6527
        %v6539 = vadd.f32 %v6520, %v6527
        %v6540 = vadd.f32 %v6521, %v6527
        %v6541 = vadd.f32 %v6522, %v6527
        %v6542 = vadd.f32 %v6523, %v6527
        %v6543 = vadd.f32 %v6524, %v6527
        %v6544 = vadd.f32 %v6525, %v6527
        %6545 = vst [vmem:[#allocation2] sm:$0xff] %v6529
        %6546 = vst [vmem:[#allocation2 + $0x8] sm:$0xff] %v6530
        %6547 = vst [vmem:[#allocation2 + $0x10] sm:$0xff] %v6531
        %6548 = vst [vmem:[#allocation2 + $0x18] sm:$0xff] %v6532
        %6549 = vst [vmem:[#allocation2 + $0x20] sm:$0xff] %v6533
        %6550 = vst [vmem:[#allocation2 + $0x28] sm:$0xff] %v6534
        %6551 = vst [vmem:[#allocation2 + $0x30] sm:$0xff] %v6535
        %6552 = vst [vmem:[#allocation2 + $0x38] sm:$0xff] %v6536
        %6553 = vst [vmem:[#allocation2 + $0x40] sm:$0xff] %v6537
        %6554 = vst [vmem:[#allocation2 + $0x48] sm:$0xff] %v6538
        %6555 = vst [vmem:[#allocation2 + $0x50] sm:$0xff] %v6539
        %6556 = vst [vmem:[#allocation2 + $0x58] sm:$0xff] %v6540
        %6557 = vst [vmem:[#allocation2 + $0x60] sm:$0xff] %v6541
        %6558 = vst [vmem:[#allocation2 + $0x68] sm:$0xff] %v6542
        %6559 = vst [vmem:[#allocation2 + $0x70] sm:$0xff] %v6543
        %6560 = vst [vmem:[#allocation2 + $0x78] sm:$0xff] %v6544
        %p6561 = scmp.eq.s32.totalorder %s37, 1
        // Predicated region
        $region145: #{tpu_custom_call.1} parent=91 // pred_check
          %p6562 = pneg %p6561
        $region146: #{tpu_custom_call.1} parent=91 // pred_check_branch
          %6564 = sbr.rel (%p6562) target = $region148
        $region147: #{tpu_custom_call.1} parent=91 // pred_region
          %v6565 = vld [vmem:[%s14] sm:$0x1]
          %v6566 = vld [vmem:[%s15] sm:$0x1]
          %6567 = vadd.xlane.f32.xlu0 %v6529
          %v6568 = vpop.xlane.xlu0 %6567
          %6569 = vadd.xlane.f32.xlu0 %v6530
          %v6570 = vpop.xlane.xlu0 %6569
          %6571 = vadd.xlane.f32.xlu0 %v6531
          %v6572 = vpop.xlane.xlu0 %6571
          %6573 = vadd.xlane.f32.xlu0 %v6532
          %v6574 = vpop.xlane.xlu0 %6573
          %6575 = vadd.xlane.f32.xlu0 %v6533
          %v6576 = vpop.xlane.xlu0 %6575
          %6577 = vadd.xlane.f32.xlu0 %v6534
          %v6578 = vpop.xlane.xlu0 %6577
          %6579 = vadd.xlane.f32.xlu0 %v6535
          %v6580 = vpop.xlane.xlu0 %6579
          %6581 = vadd.xlane.f32.xlu0 %v6536
          %v6582 = vpop.xlane.xlu0 %6581
          %6583 = vadd.xlane.f32.xlu0 %v6537
          %v6584 = vpop.xlane.xlu0 %6583
          %6585 = vadd.xlane.f32.xlu0 %v6538
          %v6586 = vpop.xlane.xlu0 %6585
          %6587 = vadd.xlane.f32.xlu0 %v6539
          %v6588 = vpop.xlane.xlu0 %6587
          %6589 = vadd.xlane.f32.xlu0 %v6540
          %v6590 = vpop.xlane.xlu0 %6589
          %6591 = vadd.xlane.f32.xlu0 %v6541
          %v6592 = vpop.xlane.xlu0 %6591
          %6593 = vadd.xlane.f32.xlu0 %v6542
          %v6594 = vpop.xlane.xlu0 %6593
          %6595 = vadd.xlane.f32.xlu0 %v6543
          %v6596 = vpop.xlane.xlu0 %6595
          %6597 = vadd.xlane.f32.xlu0 %v6544
          %v6598 = vpop.xlane.xlu0 %6597
          %v6599 = vmul.f32 %v6568, %v4372
          %v6600 = vmul.f32 %v6570, %v4372
          %v6601 = vmul.f32 %v6572, %v4372
          %v6602 = vmul.f32 %v6574, %v4372
          %v6603 = vmul.f32 %v6576, %v4372
          %v6604 = vmul.f32 %v6578, %v4372
          %v6605 = vmul.f32 %v6580, %v4372
          %v6606 = vmul.f32 %v6582, %v4372
          %v6607 = vmul.f32 %v6584, %v4372
          %v6608 = vmul.f32 %v6586, %v4372
          %v6609 = vmul.f32 %v6588, %v4372
          %v6610 = vmul.f32 %v6590, %v4372
          %v6611 = vmul.f32 %v6592, %v4372
          %v6612 = vmul.f32 %v6594, %v4372
          %v6613 = vmul.f32 %v6596, %v4372
          %v6614 = vmul.f32 %v6598, %v4372
          %v6615 = vsub.f32 %v6529, %v6599
          %v6616 = vsub.f32 %v6530, %v6600
          %v6617 = vsub.f32 %v6531, %v6601
          %v6618 = vsub.f32 %v6532, %v6602
          %v6619 = vsub.f32 %v6533, %v6603
          %v6620 = vsub.f32 %v6534, %v6604
          %v6621 = vsub.f32 %v6535, %v6605
          %v6622 = vsub.f32 %v6536, %v6606
          %v6623 = vsub.f32 %v6537, %v6607
          %v6624 = vsub.f32 %v6538, %v6608
          %v6625 = vsub.f32 %v6539, %v6609
          %v6626 = vsub.f32 %v6540, %v6610
          %v6627 = vsub.f32 %v6541, %v6611
          %v6628 = vsub.f32 %v6542, %v6612
          %v6629 = vsub.f32 %v6543, %v6613
          %v6630 = vsub.f32 %v6544, %v6614
          %v6631 = vmul.f32 %v6615, %v6615
          %v6632 = vmul.f32 %v6616, %v6616
          %v6633 = vmul.f32 %v6617, %v6617
          %v6634 = vmul.f32 %v6618, %v6618
          %v6635 = vmul.f32 %v6619, %v6619
          %v6636 = vmul.f32 %v6620, %v6620
          %v6637 = vmul.f32 %v6621, %v6621
          %v6638 = vmul.f32 %v6622, %v6622
          %v6639 = vmul.f32 %v6623, %v6623
          %v6640 = vmul.f32 %v6624, %v6624
          %v6641 = vmul.f32 %v6625, %v6625
          %v6642 = vmul.f32 %v6626, %v6626
          %v6643 = vmul.f32 %v6627, %v6627
          %v6644 = vmul.f32 %v6628, %v6628
          %v6645 = vmul.f32 %v6629, %v6629
          %v6646 = vmul.f32 %v6630, %v6630
          %6647 = vadd.xlane.f32.xlu0 %v6631
          %v6648 = vpop.xlane.xlu0 %6647
          %6649 = vadd.xlane.f32.xlu0 %v6632
          %v6650 = vpop.xlane.xlu0 %6649
          %6651 = vadd.xlane.f32.xlu0 %v6633
          %v6652 = vpop.xlane.xlu0 %6651
          %6653 = vadd.xlane.f32.xlu0 %v6634
          %v6654 = vpop.xlane.xlu0 %6653
          %6655 = vadd.xlane.f32.xlu0 %v6635
          %v6656 = vpop.xlane.xlu0 %6655
          %6657 = vadd.xlane.f32.xlu0 %v6636
          %v6658 = vpop.xlane.xlu0 %6657
          %6659 = vadd.xlane.f32.xlu0 %v6637
          %v6660 = vpop.xlane.xlu0 %6659
          %6661 = vadd.xlane.f32.xlu0 %v6638
          %v6662 = vpop.xlane.xlu0 %6661
          %6663 = vadd.xlane.f32.xlu0 %v6639
          %v6664 = vpop.xlane.xlu0 %6663
          %6665 = vadd.xlane.f32.xlu0 %v6640
          %v6666 = vpop.xlane.xlu0 %6665
          %6667 = vadd.xlane.f32.xlu0 %v6641
          %v6668 = vpop.xlane.xlu0 %6667
          %6669 = vadd.xlane.f32.xlu0 %v6642
          %v6670 = vpop.xlane.xlu0 %6669
          %6671 = vadd.xlane.f32.xlu0 %v6643
          %v6672 = vpop.xlane.xlu0 %6671
          %6673 = vadd.xlane.f32.xlu0 %v6644
          %v6674 = vpop.xlane.xlu0 %6673
          %6675 = vadd.xlane.f32.xlu0 %v6645
          %v6676 = vpop.xlane.xlu0 %6675
          %6677 = vadd.xlane.f32.xlu0 %v6646
          %v6678 = vpop.xlane.xlu0 %6677
          %v6679 = vmul.f32 %v6648, %v4372
          %v6680 = vmul.f32 %v6650, %v4372
          %v6681 = vmul.f32 %v6652, %v4372
          %v6682 = vmul.f32 %v6654, %v4372
          %v6683 = vmul.f32 %v6656, %v4372
          %v6684 = vmul.f32 %v6658, %v4372
          %v6685 = vmul.f32 %v6660, %v4372
          %v6686 = vmul.f32 %v6662, %v4372
          %v6687 = vmul.f32 %v6664, %v4372
          %v6688 = vmul.f32 %v6666, %v4372
          %v6689 = vmul.f32 %v6668, %v4372
          %v6690 = vmul.f32 %v6670, %v4372
          %v6691 = vmul.f32 %v6672, %v4372
          %v6692 = vmul.f32 %v6674, %v4372
          %v6693 = vmul.f32 %v6676, %v4372
          %v6694 = vmul.f32 %v6678, %v4372
          %v6695 = vadd.f32 %v6679, 1e-05
          %v6696 = vadd.f32 %v6680, 1e-05
          %v6697 = vadd.f32 %v6681, 1e-05
          %v6698 = vadd.f32 %v6682, 1e-05
          %v6699 = vadd.f32 %v6683, 1e-05
          %v6700 = vadd.f32 %v6684, 1e-05
          %v6701 = vadd.f32 %v6685, 1e-05
          %v6702 = vadd.f32 %v6686, 1e-05
          %v6703 = vadd.f32 %v6687, 1e-05
          %v6704 = vadd.f32 %v6688, 1e-05
          %v6705 = vadd.f32 %v6689, 1e-05
          %v6706 = vadd.f32 %v6690, 1e-05
          %v6707 = vadd.f32 %v6691, 1e-05
          %v6708 = vadd.f32 %v6692, 1e-05
          %v6709 = vadd.f32 %v6693, 1e-05
          %v6710 = vadd.f32 %v6694, 1e-05
          %v6711 = vrsqrt.pop %v6695
          %v6712 = vmul.f32 %v6711, %v6695
          %v6713 = vmul.f32 %v6712, %v6711
          %v6714 = vmul.f32 0.5, %v6713
          %v6715 = vsub.f32 1.5, %v6714
          %v6716 = vmul.f32 %v6711, %v6715
          %vm6717 = vweird.f32 %v6695
          %vm6718 = vweird.f32 %v6711
          %vm6719 = vmor %vm6717, %vm6718
          %v6720 = vsel %vm6719, %v6711, %v6716
          %v6721 = vrsqrt.pop %v6696
          %v6722 = vmul.f32 %v6721, %v6696
          %v6723 = vmul.f32 %v6722, %v6721
          %v6724 = vmul.f32 0.5, %v6723
          %v6725 = vsub.f32 1.5, %v6724
          %v6726 = vmul.f32 %v6721, %v6725
          %vm6727 = vweird.f32 %v6696
          %vm6728 = vweird.f32 %v6721
          %vm6729 = vmor %vm6727, %vm6728
          %v6730 = vsel %vm6729, %v6721, %v6726
          %v6731 = vrsqrt.pop %v6697
          %v6732 = vmul.f32 %v6731, %v6697
          %v6733 = vmul.f32 %v6732, %v6731
          %v6734 = vmul.f32 0.5, %v6733
          %v6735 = vsub.f32 1.5, %v6734
          %v6736 = vmul.f32 %v6731, %v6735
          %vm6737 = vweird.f32 %v6697
          %vm6738 = vweird.f32 %v6731
          %vm6739 = vmor %vm6737, %vm6738
          %v6740 = vsel %vm6739, %v6731, %v6736
          %v6741 = vrsqrt.pop %v6698
          %v6742 = vmul.f32 %v6741, %v6698
          %v6743 = vmul.f32 %v6742, %v6741
          %v6744 = vmul.f32 0.5, %v6743
          %v6745 = vsub.f32 1.5, %v6744
          %v6746 = vmul.f32 %v6741, %v6745
          %vm6747 = vweird.f32 %v6698
          %vm6748 = vweird.f32 %v6741
          %vm6749 = vmor %vm6747, %vm6748
          %v6750 = vsel %vm6749, %v6741, %v6746
          %v6751 = vrsqrt.pop %v6699
          %v6752 = vmul.f32 %v6751, %v6699
          %v6753 = vmul.f32 %v6752, %v6751
          %v6754 = vmul.f32 0.5, %v6753
          %v6755 = vsub.f32 1.5, %v6754
          %v6756 = vmul.f32 %v6751, %v6755
          %vm6757 = vweird.f32 %v6699
          %vm6758 = vweird.f32 %v6751
          %vm6759 = vmor %vm6757, %vm6758
          %v6760 = vsel %vm6759, %v6751, %v6756
          %v6761 = vrsqrt.pop %v6700
          %v6762 = vmul.f32 %v6761, %v6700
          %v6763 = vmul.f32 %v6762, %v6761
          %v6764 = vmul.f32 0.5, %v6763
          %v6765 = vsub.f32 1.5, %v6764
          %v6766 = vmul.f32 %v6761, %v6765
          %vm6767 = vweird.f32 %v6700
          %vm6768 = vweird.f32 %v6761
          %vm6769 = vmor %vm6767, %vm6768
          %v6770 = vsel %vm6769, %v6761, %v6766
          %v6771 = vrsqrt.pop %v6701
          %v6772 = vmul.f32 %v6771, %v6701
          %v6773 = vmul.f32 %v6772, %v6771
          %v6774 = vmul.f32 0.5, %v6773
          %v6775 = vsub.f32 1.5, %v6774
          %v6776 = vmul.f32 %v6771, %v6775
          %vm6777 = vweird.f32 %v6701
          %vm6778 = vweird.f32 %v6771
          %vm6779 = vmor %vm6777, %vm6778
          %v6780 = vsel %vm6779, %v6771, %v6776
          %v6781 = vrsqrt.pop %v6702
          %v6782 = vmul.f32 %v6781, %v6702
          %v6783 = vmul.f32 %v6782, %v6781
          %v6784 = vmul.f32 0.5, %v6783
          %v6785 = vsub.f32 1.5, %v6784
          %v6786 = vmul.f32 %v6781, %v6785
          %vm6787 = vweird.f32 %v6702
          %vm6788 = vweird.f32 %v6781
          %vm6789 = vmor %vm6787, %vm6788
          %v6790 = vsel %vm6789, %v6781, %v6786
          %v6791 = vrsqrt.pop %v6703
          %v6792 = vmul.f32 %v6791, %v6703
          %v6793 = vmul.f32 %v6792, %v6791
          %v6794 = vmul.f32 0.5, %v6793
          %v6795 = vsub.f32 1.5, %v6794
          %v6796 = vmul.f32 %v6791, %v6795
          %vm6797 = vweird.f32 %v6703
          %vm6798 = vweird.f32 %v6791
          %vm6799 = vmor %vm6797, %vm6798
          %v6800 = vsel %vm6799, %v6791, %v6796
          %v6801 = vrsqrt.pop %v6704
          %v6802 = vmul.f32 %v6801, %v6704
          %v6803 = vmul.f32 %v6802, %v6801
          %v6804 = vmul.f32 0.5, %v6803
          %v6805 = vsub.f32 1.5, %v6804
          %v6806 = vmul.f32 %v6801, %v6805
          %vm6807 = vweird.f32 %v6704
          %vm6808 = vweird.f32 %v6801
          %vm6809 = vmor %vm6807, %vm6808
          %v6810 = vsel %vm6809, %v6801, %v6806
          %v6811 = vrsqrt.pop %v6705
          %v6812 = vmul.f32 %v6811, %v6705
          %v6813 = vmul.f32 %v6812, %v6811
          %v6814 = vmul.f32 0.5, %v6813
          %v6815 = vsub.f32 1.5, %v6814
          %v6816 = vmul.f32 %v6811, %v6815
          %vm6817 = vweird.f32 %v6705
          %vm6818 = vweird.f32 %v6811
          %vm6819 = vmor %vm6817, %vm6818
          %v6820 = vsel %vm6819, %v6811, %v6816
          %v6821 = vrsqrt.pop %v6706
          %v6822 = vmul.f32 %v6821, %v6706
          %v6823 = vmul.f32 %v6822, %v6821
          %v6824 = vmul.f32 0.5, %v6823
          %v6825 = vsub.f32 1.5, %v6824
          %v6826 = vmul.f32 %v6821, %v6825
          %vm6827 = vweird.f32 %v6706
          %vm6828 = vweird.f32 %v6821
          %vm6829 = vmor %vm6827, %vm6828
          %v6830 = vsel %vm6829, %v6821, %v6826
          %v6831 = vrsqrt.pop %v6707
          %v6832 = vmul.f32 %v6831, %v6707
          %v6833 = vmul.f32 %v6832, %v6831
          %v6834 = vmul.f32 0.5, %v6833
          %v6835 = vsub.f32 1.5, %v6834
          %v6836 = vmul.f32 %v6831, %v6835
          %vm6837 = vweird.f32 %v6707
          %vm6838 = vweird.f32 %v6831
          %vm6839 = vmor %vm6837, %vm6838
          %v6840 = vsel %vm6839, %v6831, %v6836
          %v6841 = vrsqrt.pop %v6708
          %v6842 = vmul.f32 %v6841, %v6708
          %v6843 = vmul.f32 %v6842, %v6841
          %v6844 = vmul.f32 0.5, %v6843
          %v6845 = vsub.f32 1.5, %v6844
          %v6846 = vmul.f32 %v6841, %v6845
          %vm6847 = vweird.f32 %v6708
          %vm6848 = vweird.f32 %v6841
          %vm6849 = vmor %vm6847, %vm6848
          %v6850 = vsel %vm6849, %v6841, %v6846
          %v6851 = vrsqrt.pop %v6709
          %v6852 = vmul.f32 %v6851, %v6709
          %v6853 = vmul.f32 %v6852, %v6851
          %v6854 = vmul.f32 0.5, %v6853
          %v6855 = vsub.f32 1.5, %v6854
          %v6856 = vmul.f32 %v6851, %v6855
          %vm6857 = vweird.f32 %v6709
          %vm6858 = vweird.f32 %v6851
          %vm6859 = vmor %vm6857, %vm6858
          %v6860 = vsel %vm6859, %v6851, %v6856
          %v6861 = vrsqrt.pop %v6710
          %v6862 = vmul.f32 %v6861, %v6710
          %v6863 = vmul.f32 %v6862, %v6861
          %v6864 = vmul.f32 0.5, %v6863
          %v6865 = vsub.f32 1.5, %v6864
          %v6866 = vmul.f32 %v6861, %v6865
          %vm6867 = vweird.f32 %v6710
          %vm6868 = vweird.f32 %v6861
          %vm6869 = vmor %vm6867, %vm6868
          %v6870 = vsel %vm6869, %v6861, %v6866
          %v6871 = vmul.f32 %v6615, %v6720
          %v6872 = vmul.f32 %v6616, %v6730
          %v6873 = vmul.f32 %v6617, %v6740
          %v6874 = vmul.f32 %v6618, %v6750
          %v6875 = vmul.f32 %v6619, %v6760
          %v6876 = vmul.f32 %v6620, %v6770
          %v6877 = vmul.f32 %v6621, %v6780
          %v6878 = vmul.f32 %v6622, %v6790
          %v6879 = vmul.f32 %v6623, %v6800
          %v6880 = vmul.f32 %v6624, %v6810
          %v6881 = vmul.f32 %v6625, %v6820
          %v6882 = vmul.f32 %v6626, %v6830
          %v6883 = vmul.f32 %v6627, %v6840
          %v6884 = vmul.f32 %v6628, %v6850
          %v6885 = vmul.f32 %v6629, %v6860
          %v6886 = vmul.f32 %v6630, %v6870
          %v6888 = vperm.slane %v6565, 0
          %v6890 = vmul.f32 %v6871, %v6888
          %v6891 = vmul.f32 %v6872, %v6888
          %v6892 = vmul.f32 %v6873, %v6888
          %v6893 = vmul.f32 %v6874, %v6888
          %v6894 = vmul.f32 %v6875, %v6888
          %v6895 = vmul.f32 %v6876, %v6888
          %v6896 = vmul.f32 %v6877, %v6888
          %v6897 = vmul.f32 %v6878, %v6888
          %v6898 = vmul.f32 %v6879, %v6888
          %v6899 = vmul.f32 %v6880, %v6888
          %v6900 = vmul.f32 %v6881, %v6888
          %v6901 = vmul.f32 %v6882, %v6888
          %v6902 = vmul.f32 %v6883, %v6888
          %v6903 = vmul.f32 %v6884, %v6888
          %v6904 = vmul.f32 %v6885, %v6888
          %v6905 = vmul.f32 %v6886, %v6888
          %v6907 = vperm.slane %v6566, 0
          %v6909 = vadd.f32 %v6890, %v6907
          %v6910 = vadd.f32 %v6891, %v6907
          %v6911 = vadd.f32 %v6892, %v6907
          %v6912 = vadd.f32 %v6893, %v6907
          %v6913 = vadd.f32 %v6894, %v6907
          %v6914 = vadd.f32 %v6895, %v6907
          %v6915 = vadd.f32 %v6896, %v6907
          %v6916 = vadd.f32 %v6897, %v6907
          %v6917 = vadd.f32 %v6898, %v6907
          %v6918 = vadd.f32 %v6899, %v6907
          %v6919 = vadd.f32 %v6900, %v6907
          %v6920 = vadd.f32 %v6901, %v6907
          %v6921 = vadd.f32 %v6902, %v6907
          %v6922 = vadd.f32 %v6903, %v6907
          %v6923 = vadd.f32 %v6904, %v6907
          %v6924 = vadd.f32 %v6905, %v6907
          %v6925 = vpack.c.bf16 %v6910, %v6909
          %v6926 = vpack.c.bf16 %v6912, %v6911
          %v6927 = vpack.c.bf16 %v6914, %v6913
          %v6928 = vpack.c.bf16 %v6916, %v6915
          %v6929 = vpack.c.bf16 %v6918, %v6917
          %v6930 = vpack.c.bf16 %v6920, %v6919
          %v6931 = vpack.c.bf16 %v6922, %v6921
          %v6932 = vpack.c.bf16 %v6924, %v6923
          %v6933 = vld [vmem:[#allocation17] sm:$0xf]
          %v6934 = vld [vmem:[#allocation17 + $0x4] sm:$0xf]
          %v6935 = vld [vmem:[#allocation17 + $0x8] sm:$0xf]
          %v6936 = vld [vmem:[#allocation17 + $0xc] sm:$0xf]
          %v6937 = vld [vmem:[#allocation17 + $0x10] sm:$0xf]
          %v6938 = vld [vmem:[#allocation17 + $0x14] sm:$0xf]
          %v6939 = vld [vmem:[#allocation17 + $0x18] sm:$0xf]
          %v6940 = vld [vmem:[#allocation17 + $0x1c] sm:$0xf]
          %v6941 = vld [vmem:[#allocation17 + $0x20] sm:$0xf]
          %v6942 = vld [vmem:[#allocation17 + $0x24] sm:$0xf]
          %v6943 = vld [vmem:[#allocation17 + $0x28] sm:$0xf]
          %v6944 = vld [vmem:[#allocation17 + $0x2c] sm:$0xf]
          %v6945 = vld [vmem:[#allocation17 + $0x30] sm:$0xf]
          %v6946 = vld [vmem:[#allocation17 + $0x34] sm:$0xf]
          %v6947 = vld [vmem:[#allocation17 + $0x38] sm:$0xf]
          %v6948 = vld [vmem:[#allocation17 + $0x3c] sm:$0xf]
          %v6949 = vld [vmem:[%s17] sm:$0x1]
          %v6951 = vperm.slane %v6949, 0
          %v6969 = vunpack.c.l.b16 %v6933
          %v6970 = vunpack.c.l.b16 %v6934
          %v6971 = vunpack.c.l.b16 %v6935
          %v6972 = vunpack.c.l.b16 %v6936
          %v6973 = vunpack.c.l.b16 %v6937
          %v6974 = vunpack.c.l.b16 %v6938
          %v6975 = vunpack.c.l.b16 %v6939
          %v6976 = vunpack.c.l.b16 %v6940
          %v6977 = vunpack.c.l.b16 %v6941
          %v6978 = vunpack.c.l.b16 %v6942
          %v6979 = vunpack.c.l.b16 %v6943
          %v6980 = vunpack.c.l.b16 %v6944
          %v6981 = vunpack.c.l.b16 %v6945
          %v6982 = vunpack.c.l.b16 %v6946
          %v6983 = vunpack.c.l.b16 %v6947
          %v6984 = vunpack.c.l.b16 %v6948
          %v6985 = vpack.c.b16 %v6970, %v6969
          %v6986 = vpack.c.b16 %v6972, %v6971
          %v6987 = vpack.c.b16 %v6974, %v6973
          %v6988 = vpack.c.b16 %v6976, %v6975
          %v6989 = vpack.c.b16 %v6978, %v6977
          %v6990 = vpack.c.b16 %v6980, %v6979
          %v6991 = vpack.c.b16 %v6982, %v6981
          %v6992 = vpack.c.b16 %v6984, %v6983
          %7001 = vmatpush.bf16.msra.mxu0 %v6992
          %7002 = vmatpush.bf16.msra.mxu0 %v6991
          %7003 = vmatpush.bf16.msra.mxu0 %v6990
          %7004 = vmatpush.bf16.msra.mxu0 %v6989
          %7005 = vmatpush.bf16.msra.mxu0 %v6988
          %7006 = vmatpush.bf16.msra.mxu0 %v6987
          %7007 = vmatpush.bf16.msra.mxu0 %v6986
          %7008 = vmatpush.bf16.msra.mxu0 %v6985
          %7009 = vmatmul.bf16.gmra.mxu0 %v6925
          %v7010 = vpop.f32.mrf.mxu0
          %v7011 = vadd.f32 %v6951, %v7010
          %v7012 = vpop.f32.mrf.mxu0
          %v7013 = vadd.f32 %v6951, %v7012
          %7014 = vmatmul.bf16.gmra.mxu0 %v6926
          %v7015 = vpop.f32.mrf.mxu0
          %v7016 = vadd.f32 %v6951, %v7015
          %v7017 = vpop.f32.mrf.mxu0
          %v7018 = vadd.f32 %v6951, %v7017
          %7019 = vmatmul.bf16.gmra.mxu0 %v6927
          %v7020 = vpop.f32.mrf.mxu0
          %v7021 = vadd.f32 %v6951, %v7020
          %v7022 = vpop.f32.mrf.mxu0
          %v7023 = vadd.f32 %v6951, %v7022
          %7024 = vmatmul.bf16.gmra.mxu0 %v6928
          %v7025 = vpop.f32.mrf.mxu0
          %v7026 = vadd.f32 %v6951, %v7025
          %v7027 = vpop.f32.mrf.mxu0
          %v7028 = vadd.f32 %v6951, %v7027
          %7029 = vmatmul.bf16.gmra.mxu0 %v6929
          %v7030 = vpop.f32.mrf.mxu0
          %v7031 = vadd.f32 %v6951, %v7030
          %v7032 = vpop.f32.mrf.mxu0
          %v7033 = vadd.f32 %v6951, %v7032
          %7034 = vmatmul.bf16.gmra.mxu0 %v6930
          %v7035 = vpop.f32.mrf.mxu0
          %v7036 = vadd.f32 %v6951, %v7035
          %v7037 = vpop.f32.mrf.mxu0
          %v7038 = vadd.f32 %v6951, %v7037
          %7039 = vmatmul.bf16.gmra.mxu0 %v6931
          %v7040 = vpop.f32.mrf.mxu0
          %v7041 = vadd.f32 %v6951, %v7040
          %v7042 = vpop.f32.mrf.mxu0
          %v7043 = vadd.f32 %v6951, %v7042
          %7044 = vmatmul.bf16.gmra.mxu0 %v6932
          %v7045 = vpop.f32.mrf.mxu0
          %v7046 = vadd.f32 %v6951, %v7045
          %v7047 = vpop.f32.mrf.mxu0
          %v7048 = vadd.f32 %v6951, %v7047
          %7049 = vdwg.mxu0
          %7050 = vst [vmem:[#allocation18] sm:$0xff] %v7011
          %7051 = vst [vmem:[#allocation18 + $0x8] sm:$0xff] %v7013
          %7052 = vst [vmem:[#allocation18 + $0x10] sm:$0xff] %v7016
          %7053 = vst [vmem:[#allocation18 + $0x18] sm:$0xff] %v7018
          %7054 = vst [vmem:[#allocation18 + $0x20] sm:$0xff] %v7021
          %7055 = vst [vmem:[#allocation18 + $0x28] sm:$0xff] %v7023
          %7056 = vst [vmem:[#allocation18 + $0x30] sm:$0xff] %v7026
          %7057 = vst [vmem:[#allocation18 + $0x38] sm:$0xff] %v7028
          %7058 = vst [vmem:[#allocation18 + $0x40] sm:$0xff] %v7031
          %7059 = vst [vmem:[#allocation18 + $0x48] sm:$0xff] %v7033
          %7060 = vst [vmem:[#allocation18 + $0x50] sm:$0xff] %v7036
          %7061 = vst [vmem:[#allocation18 + $0x58] sm:$0xff] %v7038
          %7062 = vst [vmem:[#allocation18 + $0x60] sm:$0xff] %v7041
          %7063 = vst [vmem:[#allocation18 + $0x68] sm:$0xff] %v7043
          %7064 = vst [vmem:[#allocation18 + $0x70] sm:$0xff] %v7046
          %7065 = vst [vmem:[#allocation18 + $0x78] sm:$0xff] %v7048
        $region148: #{tpu_custom_call.1} parent=91 // pred_fallthru
          _
        // Predicated region
        $region149: #{tpu_custom_call.1} parent=91 // pred_check
          %p7066 = pneg %p505
        $region150: #{tpu_custom_call.1} parent=91 // pred_check_branch
          %7068 = sbr.rel (%p7066) target = $region152
        $region151: #{tpu_custom_call.1} parent=91 // pred_region
          %s7069 = smul.u32 8, %s36
          %7071 = vsyncadd [#allocation5], 0
          %s7072 = smul.addr %s7069, 2
          %s7073 = smul.addr %s7072, 8
          %s7074 = scalar_lea.hbm %s18, %s7073
          %s7075 = sshll.u32 [#allocation18], 4
          %s7076 = int_to_ptr.vmem [resolvable:$true] %s7075
          %s7077 = sshll.u32 %s7074, 4
          %s7078 = int_to_ptr.hbm [resolvable:$true] %s7077
          %7083 = dma.vmem_to_hbm [thread:$0]  %s7076, 2048, %s7078, [#allocation5], 128, 128, 8
        $region152: #{tpu_custom_call.1} parent=91 // pred_fallthru
          _
        // Predicated region
        $region153: #{tpu_custom_call.1} parent=91 // pred_check
          %p7084 = pneg %p505
        $region154: #{tpu_custom_call.1} parent=91 // pred_check_branch
          %7086 = sbr.rel (%p7084) target = $region156
        $region155: #{tpu_custom_call.1} parent=91 // pred_region
          %7088 = dma.done [#allocation5], 2048
        $region156: #{tpu_custom_call.1} parent=91 // pred_fallthru
          _
      $region92: #{tpu_custom_call.1} parent=5 // pred_fallthru
        _
      %p7089 = scmp.le.s32.totalorder 2, %s27
      // Predicated region
      $region157: #{tpu_custom_call.1} parent=5 // pred_check
        %p7090 = pneg %p7089
      $region158: #{tpu_custom_call.1} parent=5 // pred_check_branch
        %7092 = sbr.rel (%p7090) target = $region160
      $region159: #{tpu_custom_call.1} parent=5 // pred_region
        %s7093 = ssub.s32 %s27, 2
      $region160: #{tpu_custom_call.1} parent=5 // pred_fallthru
        _
    $region6: #{tpu_custom_call.1} parent=1 // loop_footer
      %s31 = sadd.s32 1, %s27
    $region7: #{tpu_custom_call.1} parent=1 // loop_footer_branch
      %26 = sbr.rel target = $region3
    $region8: #{tpu_custom_call.1} parent=1 // loop_exit
      _
    %7094 = vsyncpa [#allocation4], 1
    %s7095 = scalar_lea.sflag [#allocation4], 1
    %7096 = vsyncpa %s7095, 1
    %7097 = vsyncpa [#allocation7], 1
    %7098 = vsyncpa [#allocation5], 1
    %s7099 = scalar_lea.sflag [#allocation5], 1
    %7100 = vsyncpa %s7099, 1

</llo_original>
